<compile_context>
chip_gen: v7x
topology: tpu7x:2x2x1
jax: 0.10.0
libtpu: 0.0.40
codegen_flags: <defaults>
</compile_context>

<pallas_src>
import math

import jax
import jax.numpy as jnp
from jax.experimental import pallas as pl
from jax.experimental.pallas import tpu as pltpu

# ----------------------------- model config ----------------------------------
D_MODEL = 128              # d_model (scaled down from 512; multiple of 128)
NHEAD = 2                  # matches TFDecoder default
HEAD_DIM = D_MODEL // NHEAD            # 64
HP = 128                               # padded per-head lane width
NUM_LAYERS = 3             # matches TFDecoder default
DIM_FF = 256               # feed-forward width (scaled down from 2048)
VOCAB = 16                 # tgt_vocab_size
VOCAB_PAD = 128            # lane-dense head output, sliced back to VOCAB outside
LN_EPS = 1e-5
TGT_LEN = 8
MEM_LEN = 16
BATCH = 2

QKV_W = 3 * NHEAD * HP                 # 768  (padded self-attn q|k|v)
QC_W = NHEAD * HP                      # 256  (padded q / k / v width)
KVC_W = 2 * NHEAD * HP                 # 512  (padded cross-attn k|v)

# `wa` (per layer, D_MODEL input rows, bf16) static column offsets
OFF_WQKV_S = 0
OFF_WQ_C = OFF_WQKV_S + QKV_W          # 768
OFF_WKV_C = OFF_WQ_C + QC_W            # 1024
OFF_W1 = OFF_WKV_C + KVC_W             # 1536
WA_COLS = OFF_W1 + DIM_FF              # 1792

# `wb` (per layer, 256 input rows, bf16) static column offsets
OFF_WO_S = 0
OFF_WO_C = D_MODEL                     # 128
OFF_W2 = 2 * D_MODEL                   # 256
WB_COLS = 3 * D_MODEL                  # 384

# packed f32 bias / LayerNorm vector lane offsets (one (1, PVEC_COLS) row / layer)
OFF_BQKV_S = 0
OFF_BQ_C = QKV_W                       # 768
OFF_BKV_C = OFF_BQ_C + QC_W            # 1024
OFF_B1 = OFF_BKV_C + KVC_W             # 1536
OFF_BO_S = OFF_B1 + DIM_FF             # 1792
OFF_BO_C = OFF_BO_S + D_MODEL          # 1920
OFF_B2 = OFF_BO_C + D_MODEL            # 2048
OFF_LN1W = OFF_B2 + D_MODEL            # 2176
OFF_LN1B = OFF_LN1W + D_MODEL          # 2304
OFF_LN2W = OFF_LN1B + D_MODEL          # 2432
OFF_LN2B = OFF_LN2W + D_MODEL          # 2560
OFF_LN3W = OFF_LN2B + D_MODEL          # 2688
OFF_LN3B = OFF_LN3W + D_MODEL          # 2816
PVEC_COLS = OFF_LN3B + D_MODEL         # 2944


# ------------------------------------------------------------------ helpers ---
def _layernorm(x, w, b):
    # x: (N, D) f32; w, b: (1, D) f32
    mu = jnp.mean(x, axis=-1, keepdims=True)
    xc = x - mu
    var = jnp.mean(xc * xc, axis=-1, keepdims=True)
    return xc * jax.lax.rsqrt(var + LN_EPS) * w + b


def _attention(q3, k3, v3, bias):
    # q3: (B, Tq, NHEAD*HP) f32, k3/v3: (B, Tk, NHEAD*HP) f32, bias: (Tq, Tk) | None.
    # Per-head slots are 128-lane aligned (lanes [h*HP, h*HP+64) real, rest zero),
    # so slices and the final concat are free; zero lanes contribute 0 to the dots.
    outs = []
    for h in range(NHEAD):                               # static unroll
        sl = slice(h * HP, (h + 1) * HP)                 # 128-lane aligned slice
        qh = q3[:, :, sl].astype(jnp.bfloat16)
        kh = k3[:, :, sl].astype(jnp.bfloat16)
        vh = v3[:, :, sl].astype(jnp.bfloat16)
        s = jnp.einsum('bqd,bkd->bqk', qh, kh,
                       preferred_element_type=jnp.float32)       # (B, Tq, Tk)
        if bias is not None:
            s = s + bias[None, :, :]
        s = s - jnp.max(s, axis=-1, keepdims=True)
        p = jnp.exp(s)
        p = p * pl.reciprocal(jnp.sum(p, axis=-1, keepdims=True), approx=True)
        outs.append(jnp.einsum('bqk,bkd->bqd', p.astype(jnp.bfloat16), vh,
                               preferred_element_type=jnp.float32))
    return jnp.concatenate(outs, axis=-1)                # (B, Tq, NHEAD*HP)


# ------------------------------------------------ fused decoder-stack kernel --
def decoder_kernel(tgt_ref, mem_ref, wa_ref, wb_ref, pv_ref, wfc_ref, bfc_ref,
                   o_ref):
    B, T, D = tgt_ref.shape
    S = mem_ref.shape[1]
    N = B * T

    x = tgt_ref[...].reshape(N, D)                               # (B*T, D) f32
    mem_bf = mem_ref[...].reshape(B * S, D).astype(jnp.bfloat16)  # (B*S, D) bf16

    # causal (square subsequent) additive mask for target self-attention
    row = jax.lax.broadcasted_iota(jnp.int32, (T, T), 0)
    col = jax.lax.broadcasted_iota(jnp.int32, (T, T), 1)
    causal = jnp.where(col <= row, 0.0, -1e30).astype(jnp.float32)

    for li in range(NUM_LAYERS):                          # statically unrolled
        # ---- masked self-attention + residual + LayerNorm1 (post-norm) -------
        qkv = (jnp.dot(x.astype(jnp.bfloat16),
                       wa_ref[li, :, OFF_WQKV_S:OFF_WQKV_S + QKV_W],
                       preferred_element_type=jnp.float32)
               + pv_ref[li, :, OFF_BQKV_S:OFF_BQKV_S + QKV_W])    # (N, 768)
        q3 = qkv[:, 0:QC_W].reshape(B, T, QC_W)
        k3 = qkv[:, QC_W:2 * QC_W].reshape(B, T, QC_W)
        v3 = qkv[:, 2 * QC_W:3 * QC_W].reshape(B, T, QC_W)
        ctx = _attention(q3, k3, v3, causal).reshape(N, QC_W)
        attn = (jnp.dot(ctx.astype(jnp.bfloat16),
                        wb_ref[li, :, OFF_WO_S:OFF_WO_S + D],
                        preferred_element_type=jnp.float32)
                + pv_ref[li, :, OFF_BO_S:OFF_BO_S + D])
        x = _layernorm(x + attn,
                       pv_ref[li, :, OFF_LN1W:OFF_LN1W + D],
                       pv_ref[li, :, OFF_LN1B:OFF_LN1B + D])

        # ---- cross-attention over memory + residual + LayerNorm2 -------------
        q = (jnp.dot(x.astype(jnp.bfloat16),
                     wa_ref[li, :, OFF_WQ_C:OFF_WQ_C + QC_W],
                     preferred_element_type=jnp.float32)
             + pv_ref[li, :, OFF_BQ_C:OFF_BQ_C + QC_W])           # (N, 256)
        kv = (jnp.dot(mem_bf,
                      wa_ref[li, :, OFF_WKV_C:OFF_WKV_C + KVC_W],
                      preferred_element_type=jnp.float32)
              + pv_ref[li, :, OFF_BKV_C:OFF_BKV_C + KVC_W])       # (B*S, 512)
        q3 = q.reshape(B, T, QC_W)
        kv3 = kv.reshape(B, S, KVC_W)
        ctx = _attention(q3, kv3[:, :, 0:QC_W], kv3[:, :, QC_W:KVC_W],
                         None).reshape(N, QC_W)
        attn = (jnp.dot(ctx.astype(jnp.bfloat16),
                        wb_ref[li, :, OFF_WO_C:OFF_WO_C + D],
                        preferred_element_type=jnp.float32)
                + pv_ref[li, :, OFF_BO_C:OFF_BO_C + D])
        x = _layernorm(x + attn,
                       pv_ref[li, :, OFF_LN2W:OFF_LN2W + D],
                       pv_ref[li, :, OFF_LN2B:OFF_LN2B + D])

        # ---- feed-forward + residual + LayerNorm3 -----------------------------
        h = (jnp.dot(x.astype(jnp.bfloat16),
                     wa_ref[li, :, OFF_W1:OFF_W1 + DIM_FF],
                     preferred_element_type=jnp.float32)
             + pv_ref[li, :, OFF_B1:OFF_B1 + DIM_FF])             # (N, FF)
        h = jnp.maximum(h, 0.0)                                   # ReLU
        ff = (jnp.dot(h.astype(jnp.bfloat16),
                      wb_ref[li, :, OFF_W2:OFF_W2 + D],
                      preferred_element_type=jnp.float32)
              + pv_ref[li, :, OFF_B2:OFF_B2 + D])
        x = _layernorm(x + ff,
                       pv_ref[li, :, OFF_LN3W:OFF_LN3W + D],
                       pv_ref[li, :, OFF_LN3B:OFF_LN3B + D])

    # ---- vocab head (lane-dense, zero-padded to 128 output lanes) -------------
    logits = (jnp.dot(x.astype(jnp.bfloat16), wfc_ref[...],
                      preferred_element_type=jnp.float32) + bfc_ref[...])
    o_ref[...] = logits.reshape(B, T, VOCAB_PAD)


# ------------------------------------------------------------ full forward ----
@jax.jit
def tfdecoder_forward(target, memory, params):
    # target: (T, B, D) f32, memory: (S, B, D) f32  ->  (T, B, VOCAB) f32
    T, B, D = target.shape
    S = memory.shape[0]
    tgt = jnp.transpose(target, (1, 0, 2)).astype(jnp.float32)   # (B, T, D)
    mem = jnp.transpose(memory, (1, 0, 2)).astype(jnp.float32)   # (B, S, D)

    wa, wb, pv, wfc, bfc = (params['wa'], params['wb'], params['pvec'],
                            params['wfc'], params['bfc'])

    out_pad = pl.pallas_call(
        decoder_kernel,
        out_shape=jax.ShapeDtypeStruct((B, T, VOCAB_PAD), jnp.float32),
        grid=(1,),                                    # whole batch in one step
        in_specs=[pl.BlockSpec((B, T, D), lambda i: (0, 0, 0)),
                  pl.BlockSpec((B, S, D), lambda i: (0, 0, 0)),
                  pl.BlockSpec(wa.shape, lambda i: (0, 0, 0)),
                  pl.BlockSpec(wb.shape, lambda i: (0, 0, 0)),
                  pl.BlockSpec(pv.shape, lambda i: (0, 0, 0)),
                  pl.BlockSpec(wfc.shape, lambda i: (0, 0)),
                  pl.BlockSpec(bfc.shape, lambda i: (0, 0))],
        out_specs=pl.BlockSpec((B, T, VOCAB_PAD), lambda i: (0, 0, 0)),
        compiler_params=pltpu.CompilerParams(
            dimension_semantics=("arbitrary",)),
    )(tgt, mem, wa, wb, pv, wfc, bfc)

    logits = out_pad[:, :, :VOCAB]                # drop lane padding
    return jnp.transpose(logits, (1, 0, 2))       # (T, B, VOCAB), like PyTorch


# ------------------------------------------------------------- param init -----
def _pad_head_cols(w):
    # (rows, D_MODEL) -> (rows, NHEAD*HP); per head: 64 real cols + 64 zero cols.
    out = jnp.zeros((w.shape[0], NHEAD * HP), w.dtype)
    for h in range(NHEAD):
        out = out.at[:, h * HP:h * HP + HEAD_DIM].set(
            w[:, h * HEAD_DIM:(h + 1) * HEAD_DIM])
    return out


def _pad_head_rows(w):
    # (D_MODEL, cols) -> (NHEAD*HP, cols); per head: 64 real rows + 64 zero rows.
    out = jnp.zeros((NHEAD * HP, w.shape[1]), w.dtype)
    for h in range(NHEAD):
        out = out.at[h * HP:h * HP + HEAD_DIM].set(
            w[h * HEAD_DIM:(h + 1) * HEAD_DIM])
    return out


def _pad_head_vec(b):
    # (D_MODEL,) -> (NHEAD*HP,)
    out = jnp.zeros((NHEAD * HP,), b.dtype)
    for h in range(NHEAD):
        out = out.at[h * HP:h * HP + HEAD_DIM].set(
            b[h * HEAD_DIM:(h + 1) * HEAD_DIM])
    return out


def init_params(key):
    q_scale = 1.0 / math.sqrt(HEAD_DIM)

    def nrm(k, shape):
        return jax.random.normal(k, shape, jnp.float32) * 0.02

    keys = jax.random.split(key, NUM_LAYERS + 1)
    wa_layers, wb_layers, pv_layers = [], [], []
    for li in range(NUM_LAYERS):
        ks = jax.random.split(keys[li], 12)

        # self-attention: PyTorch-style in_proj (3D, D) / out_proj (D, D)
        in_proj_s = nrm(ks[0], (3 * D_MODEL, D_MODEL))
        in_bias_s = nrm(ks[1], (3 * D_MODEL,))
        out_proj_s = nrm(ks[2], (D_MODEL, D_MODEL))
        out_bias_s = nrm(ks[3], (D_MODEL,))
        # cross-attention
        in_proj_c = nrm(ks[4], (3 * D_MODEL, D_MODEL))
        in_bias_c = nrm(ks[5], (3 * D_MODEL,))
        out_proj_c = nrm(ks[6], (D_MODEL, D_MODEL))
        out_bias_c = nrm(ks[7], (D_MODEL,))
        # feed-forward
        lin1_w = nrm(ks[8], (DIM_FF, D_MODEL))
        lin1_b = nrm(ks[9], (DIM_FF,))
        lin2_w = nrm(ks[10], (D_MODEL, DIM_FF))
        lin2_b = nrm(ks[11], (D_MODEL,))

        # fold 1/sqrt(head_dim) into q projection (weights AND bias); transpose
        wq_s = in_proj_s[:D_MODEL].T * q_scale
        wk_s = in_proj_s[D_MODEL:2 * D_MODEL].T
        wv_s = in_proj_s[2 * D_MODEL:].T
        wq_c = in_proj_c[:D_MODEL].T * q_scale
        wk_c = in_proj_c[D_MODEL:2 * D_MODEL].T
        wv_c = in_proj_c[2 * D_MODEL:].T

        wa_l = jnp.concatenate(
            [_pad_head_cols(wq_s), _pad_head_cols(wk_s), _pad_head_cols(wv_s),
             _pad_head_cols(wq_c),
             _pad_head_cols(wk_c), _pad_head_cols(wv_c),
             lin1_w.T], axis=1)                                   # (D, 1792)
        wb_l = jnp.concatenate(
            [_pad_head_rows(out_proj_s.T), _pad_head_rows(out_proj_c.T),
             lin2_w.T], axis=1)                                   # (256, 384)
        pv_l = jnp.concatenate(
            [_pad_head_vec(in_bias_s[:D_MODEL] * q_scale),
             _pad_head_vec(in_bias_s[D_MODEL:2 * D_MODEL]),
             _pad_head_vec(in_bias_s[2 * D_MODEL:]),
             _pad_head_vec(in_bias_c[:D_MODEL] * q_scale),
             _pad_head_vec(in_bias_c[D_MODEL:2 * D_MODEL]),
             _pad_head_vec(in_bias_c[2 * D_MODEL:]),
             lin1_b,
             out_bias_s, out_bias_c, lin2_b,
             jnp.ones((D_MODEL,)), jnp.zeros((D_MODEL,)),    # ln1 w, b
             jnp.ones((D_MODEL,)), jnp.zeros((D_MODEL,)),    # ln2 w, b
             jnp.ones((D_MODEL,)), jnp.zeros((D_MODEL,))])   # ln3 w, b
        assert wa_l.shape == (D_MODEL, WA_COLS)
        assert wb_l.shape == (NHEAD * HP, WB_COLS)
        assert pv_l.shape == (PVEC_COLS,)

        wa_layers.append(wa_l.astype(jnp.bfloat16))
        wb_layers.append(wb_l.astype(jnp.bfloat16))
        pv_layers.append(pv_l.reshape(1, PVEC_COLS))

    fc_keys = jax.random.split(keys[-1], 2)
    fc_w = nrm(fc_keys[0], (VOCAB, D_MODEL))
    fc_b = nrm(fc_keys[1], (VOCAB,))
    wfc = jnp.zeros((D_MODEL, VOCAB_PAD), jnp.float32).at[:, :VOCAB].set(fc_w.T)
    bfc = jnp.zeros((1, VOCAB_PAD), jnp.float32).at[0, :VOCAB].set(fc_b)

    return {
        'wa': jnp.stack(wa_layers),            # (L, 128, 1792) bf16
        'wb': jnp.stack(wb_layers),            # (L, 256, 384)  bf16
        'pvec': jnp.stack(pv_layers),          # (L, 1, 2944)   f32
        'wfc': wfc.astype(jnp.bfloat16),       # (128, 128)     bf16
        'bfc': bfc,                            # (1, 128)       f32
    }


# --------------------------------------------------------------------- main ---
if __name__ == "__main__":
    key = jax.random.PRNGKey(0)
    pkey, tkey, mkey = jax.random.split(key, 3)

    params = init_params(pkey)

    target = jax.random.normal(tkey, (TGT_LEN, BATCH, D_MODEL), jnp.float32)
    memory = jax.random.normal(mkey, (MEM_LEN, BATCH, D_MODEL), jnp.float32)

    out = tfdecoder_forward(target, memory, params)
    out = jax.block_until_ready(out)

    assert out.shape == (TGT_LEN, BATCH, VOCAB), out.shape
    assert out.dtype == jnp.float32
    assert bool(jnp.all(jnp.isfinite(out)))
    print("KERNEL_OK")
</pallas_src>

<mosaic_0001>
module attributes {stable_mosaic.version = 11 : i64} {
  func.func @decoder_kernel(%arg0: i32, %arg1: memref<2x8x128xf32, #tpu.memory_space<vmem>>, %arg2: memref<2x16x128xf32, #tpu.memory_space<vmem>>, %arg3: memref<3x128x1792xbf16, #tpu.memory_space<vmem>>, %arg4: memref<3x256x384xbf16, #tpu.memory_space<vmem>>, %arg5: memref<3x1x2944xf32, #tpu.memory_space<vmem>>, %arg6: memref<128x128xbf16, #tpu.memory_space<vmem>>, %arg7: memref<1x128xf32, #tpu.memory_space<vmem>>, %arg8: memref<2x8x128xf32, #tpu.memory_space<vmem>>) attributes {dimension_semantics = [#tpu.dimension_semantics<arbitrary>], iteration_bounds = array<i64: 1>, scalar_prefetch = 0 : i64, scratch_operands = 0 : i64, tpu.core_type = #tpu.core_type<tc>, window_params = [{pipeline_mode = #tpu.pipeline_mode<synchronous>, transform_indices = @transform_0, window_bounds = array<i64: 2, 8, 128>}, {pipeline_mode = #tpu.pipeline_mode<synchronous>, transform_indices = @transform_1, window_bounds = array<i64: 2, 16, 128>}, {pipeline_mode = #tpu.pipeline_mode<synchronous>, transform_indices = @transform_2, window_bounds = array<i64: 3, 128, 1792>}, {pipeline_mode = #tpu.pipeline_mode<synchronous>, transform_indices = @transform_3, window_bounds = array<i64: 3, 256, 384>}, {pipeline_mode = #tpu.pipeline_mode<synchronous>, transform_indices = @transform_4, window_bounds = array<i64: 3, 1, 2944>}, {pipeline_mode = #tpu.pipeline_mode<synchronous>, transform_indices = @transform_5, window_bounds = array<i64: 128, 128>}, {pipeline_mode = #tpu.pipeline_mode<synchronous>, transform_indices = @transform_6, window_bounds = array<i64: 1, 128>}, {pipeline_mode = #tpu.pipeline_mode<synchronous>, transform_indices = @transform_7, window_bounds = array<i64: 2, 8, 128>}]} {
    %c0 = arith.constant 0 : index
    %c0_0 = arith.constant 0 : index
    %c0_1 = arith.constant 0 : index
    %0 = vector.load %arg1[%c0, %c0_0, %c0_1] : memref<2x8x128xf32, #tpu.memory_space<vmem>>, vector<2x8x128xf32>
    %1 = vector.shape_cast %0 : vector<2x8x128xf32> to vector<16x128xf32>
    %c0_2 = arith.constant 0 : index
    %c0_3 = arith.constant 0 : index
    %c0_4 = arith.constant 0 : index
    %2 = vector.load %arg2[%c0_2, %c0_3, %c0_4] : memref<2x16x128xf32, #tpu.memory_space<vmem>>, vector<2x16x128xf32>
    %3 = vector.shape_cast %2 : vector<2x16x128xf32> to vector<32x128xf32>
    %4 = arith.truncf %3 : vector<32x128xf32> to vector<32x128xbf16>
    %5 = tpu.iota {dimensions = array<i32: 0>} : vector<8x8xi32>
    %6 = tpu.iota {dimensions = array<i32: 1>} : vector<8x8xi32>
    %7 = arith.cmpi sle, %6, %5 : vector<8x8xi32>
    %cst = arith.constant 0.000000e+00 : f32
    %cst_5 = arith.constant -1.000000e+30 : f32
    %8 = vector.broadcast %cst : f32 to vector<8x8xf32>
    %9 = vector.broadcast %cst_5 : f32 to vector<8x8xf32>
    %10 = arith.select %7, %8, %9 : vector<8x8xi1>, vector<8x8xf32>
    %11 = arith.truncf %1 : vector<16x128xf32> to vector<16x128xbf16>
    %c0_6 = arith.constant 0 : index
    %c0_7 = arith.constant 0 : index
    %c0_8 = arith.constant 0 : index
    %12 = vector.load %arg3[%c0_6, %c0_7, %c0_8] : memref<3x128x1792xbf16, #tpu.memory_space<vmem>>, vector<1x128x768xbf16>
    %13 = vector.shape_cast %12 : vector<1x128x768xbf16> to vector<128x768xbf16>
    %cst_9 = arith.constant dense<0.000000e+00> : vector<16x768xf32>
    %14 = tpu.matmul %11, %13, %cst_9 {dimension_numbers = #tpu.dot_dimension_numbers<[1], [0], [0], [1], [0, 0, 1, 1], [], []>} : vector<16x128xbf16>, vector<128x768xbf16>, vector<16x768xf32> -> vector<16x768xf32>
    %c0_10 = arith.constant 0 : index
    %c0_11 = arith.constant 0 : index
    %c0_12 = arith.constant 0 : index
    %15 = vector.load %arg5[%c0_10, %c0_11, %c0_12] : memref<3x1x2944xf32, #tpu.memory_space<vmem>>, vector<1x1x768xf32>
    %16 = vector.shape_cast %15 : vector<1x1x768xf32> to vector<1x768xf32>
    %17 = vector.broadcast %16 : vector<1x768xf32> to vector<16x768xf32>
    %18 = arith.addf %14, %17 : vector<16x768xf32>
    %19 = vector.extract_strided_slice %18 {offsets = [0, 0], sizes = [16, 256], strides = [1, 1]} : vector<16x768xf32> to vector<16x256xf32>
    %20 = vector.shape_cast %19 : vector<16x256xf32> to vector<2x8x256xf32>
    %21 = vector.extract_strided_slice %18 {offsets = [0, 256], sizes = [16, 256], strides = [1, 1]} : vector<16x768xf32> to vector<16x256xf32>
    %22 = vector.shape_cast %21 : vector<16x256xf32> to vector<2x8x256xf32>
    %23 = vector.extract_strided_slice %18 {offsets = [0, 512], sizes = [16, 256], strides = [1, 1]} : vector<16x768xf32> to vector<16x256xf32>
    %24 = vector.shape_cast %23 : vector<16x256xf32> to vector<2x8x256xf32>
    %25 = vector.extract_strided_slice %20 {offsets = [0, 0, 0], sizes = [2, 8, 128], strides = [1, 1, 1]} : vector<2x8x256xf32> to vector<2x8x128xf32>
    %26 = arith.truncf %25 : vector<2x8x128xf32> to vector<2x8x128xbf16>
    %27 = vector.extract_strided_slice %22 {offsets = [0, 0, 0], sizes = [2, 8, 128], strides = [1, 1, 1]} : vector<2x8x256xf32> to vector<2x8x128xf32>
    %28 = arith.truncf %27 : vector<2x8x128xf32> to vector<2x8x128xbf16>
    %29 = vector.extract_strided_slice %24 {offsets = [0, 0, 0], sizes = [2, 8, 128], strides = [1, 1, 1]} : vector<2x8x256xf32> to vector<2x8x128xf32>
    %30 = arith.truncf %29 : vector<2x8x128xf32> to vector<2x8x128xbf16>
    "tpu.trace_start"() <{level = 10 : i32, message = "bqd,bkd->bqk"}> : () -> ()
    %cst_13 = arith.constant dense<0.000000e+00> : vector<2x8x8xf32>
    %31 = tpu.matmul %26, %28, %cst_13 {dimension_numbers = #tpu.dot_dimension_numbers<[2], [2], [1], [1], [0, 0, 0, 1, 1, 1], [0], [0]>} : vector<2x8x128xbf16>, vector<2x8x128xbf16>, vector<2x8x8xf32> -> vector<2x8x8xf32>
    "tpu.trace_stop"() : () -> ()
    %32 = vector.shape_cast %10 : vector<8x8xf32> to vector<1x8x8xf32>
    %33 = vector.broadcast %32 : vector<1x8x8xf32> to vector<2x8x8xf32>
    %34 = arith.addf %31, %33 : vector<2x8x8xf32>
    %cst_14 = arith.constant dense<0xFF800000> : vector<2x8xf32>
    %35 = vector.multi_reduction <maximumf>, %34, %cst_14 [2] : vector<2x8x8xf32> to vector<2x8xf32>
    %36 = vector.shape_cast %35 : vector<2x8xf32> to vector<2x8x1xf32>
    %37 = vector.broadcast %36 : vector<2x8x1xf32> to vector<2x8x8xf32>
    %38 = arith.subf %34, %37 : vector<2x8x8xf32>
    %39 = math.exp %38 : vector<2x8x8xf32>
    %cst_15 = arith.constant dense<0.000000e+00> : vector<2x8xf32>
    %40 = vector.multi_reduction <add>, %39, %cst_15 [2] : vector<2x8x8xf32> to vector<2x8xf32>
    %41 = vector.shape_cast %40 : vector<2x8xf32> to vector<2x8x1xf32>
    %42 = tpu.reciprocal %41 {approx = true} : vector<2x8x1xf32> -> vector<2x8x1xf32>
    %43 = vector.broadcast %42 : vector<2x8x1xf32> to vector<2x8x8xf32>
    %44 = arith.mulf %39, %43 : vector<2x8x8xf32>
    %45 = arith.truncf %44 : vector<2x8x8xf32> to vector<2x8x8xbf16>
    "tpu.trace_start"() <{level = 10 : i32, message = "bqk,bkd->bqd"}> : () -> ()
    %cst_16 = arith.constant dense<0.000000e+00> : vector<2x8x128xf32>
    %46 = tpu.matmul %45, %30, %cst_16 {dimension_numbers = #tpu.dot_dimension_numbers<[2], [1], [1], [2], [0, 0, 0, 1, 1, 2], [0], [0]>} : vector<2x8x8xbf16>, vector<2x8x128xbf16>, vector<2x8x128xf32> -> vector<2x8x128xf32>
    "tpu.trace_stop"() : () -> ()
    %47 = vector.extract_strided_slice %20 {offsets = [0, 0, 128], sizes = [2, 8, 128], strides = [1, 1, 1]} : vector<2x8x256xf32> to vector<2x8x128xf32>
    %48 = arith.truncf %47 : vector<2x8x128xf32> to vector<2x8x128xbf16>
    %49 = vector.extract_strided_slice %22 {offsets = [0, 0, 128], sizes = [2, 8, 128], strides = [1, 1, 1]} : vector<2x8x256xf32> to vector<2x8x128xf32>
    %50 = arith.truncf %49 : vector<2x8x128xf32> to vector<2x8x128xbf16>
    %51 = vector.extract_strided_slice %24 {offsets = [0, 0, 128], sizes = [2, 8, 128], strides = [1, 1, 1]} : vector<2x8x256xf32> to vector<2x8x128xf32>
    %52 = arith.truncf %51 : vector<2x8x128xf32> to vector<2x8x128xbf16>
    "tpu.trace_start"() <{level = 10 : i32, message = "bqd,bkd->bqk"}> : () -> ()
    %cst_17 = arith.constant dense<0.000000e+00> : vector<2x8x8xf32>
    %53 = tpu.matmul %48, %50, %cst_17 {dimension_numbers = #tpu.dot_dimension_numbers<[2], [2], [1], [1], [0, 0, 0, 1, 1, 1], [0], [0]>} : vector<2x8x128xbf16>, vector<2x8x128xbf16>, vector<2x8x8xf32> -> vector<2x8x8xf32>
    "tpu.trace_stop"() : () -> ()
    %54 = vector.shape_cast %10 : vector<8x8xf32> to vector<1x8x8xf32>
    %55 = vector.broadcast %54 : vector<1x8x8xf32> to vector<2x8x8xf32>
    %56 = arith.addf %53, %55 : vector<2x8x8xf32>
    %cst_18 = arith.constant dense<0xFF800000> : vector<2x8xf32>
    %57 = vector.multi_reduction <maximumf>, %56, %cst_18 [2] : vector<2x8x8xf32> to vector<2x8xf32>
    %58 = vector.shape_cast %57 : vector<2x8xf32> to vector<2x8x1xf32>
    %59 = vector.broadcast %58 : vector<2x8x1xf32> to vector<2x8x8xf32>
    %60 = arith.subf %56, %59 : vector<2x8x8xf32>
    %61 = math.exp %60 : vector<2x8x8xf32>
    %cst_19 = arith.constant dense<0.000000e+00> : vector<2x8xf32>
    %62 = vector.multi_reduction <add>, %61, %cst_19 [2] : vector<2x8x8xf32> to vector<2x8xf32>
    %63 = vector.shape_cast %62 : vector<2x8xf32> to vector<2x8x1xf32>
    %64 = tpu.reciprocal %63 {approx = true} : vector<2x8x1xf32> -> vector<2x8x1xf32>
    %65 = vector.broadcast %64 : vector<2x8x1xf32> to vector<2x8x8xf32>
    %66 = arith.mulf %61, %65 : vector<2x8x8xf32>
    %67 = arith.truncf %66 : vector<2x8x8xf32> to vector<2x8x8xbf16>
    "tpu.trace_start"() <{level = 10 : i32, message = "bqk,bkd->bqd"}> : () -> ()
    %cst_20 = arith.constant dense<0.000000e+00> : vector<2x8x128xf32>
    %68 = tpu.matmul %67, %52, %cst_20 {dimension_numbers = #tpu.dot_dimension_numbers<[2], [1], [1], [2], [0, 0, 0, 1, 1, 2], [0], [0]>} : vector<2x8x8xbf16>, vector<2x8x128xbf16>, vector<2x8x128xf32> -> vector<2x8x128xf32>
    "tpu.trace_stop"() : () -> ()
    %69 = tpu.concatenate %46, %68 in 2 : vector<2x8x128xf32>, vector<2x8x128xf32> -> vector<2x8x256xf32>
    %70 = vector.shape_cast %69 : vector<2x8x256xf32> to vector<16x256xf32>
    %71 = arith.truncf %70 : vector<16x256xf32> to vector<16x256xbf16>
    %c0_21 = arith.constant 0 : index
    %c0_22 = arith.constant 0 : index
    %c0_23 = arith.constant 0 : index
    %72 = vector.load %arg4[%c0_21, %c0_22, %c0_23] : memref<3x256x384xbf16, #tpu.memory_space<vmem>>, vector<1x256x128xbf16>
    %73 = vector.shape_cast %72 : vector<1x256x128xbf16> to vector<256x128xbf16>
    %cst_24 = arith.constant dense<0.000000e+00> : vector<16x128xf32>
    %74 = tpu.matmul %71, %73, %cst_24 {dimension_numbers = #tpu.dot_dimension_numbers<[1], [0], [0], [1], [0, 0, 1, 1], [], []>} : vector<16x256xbf16>, vector<256x128xbf16>, vector<16x128xf32> -> vector<16x128xf32>
    %c0_25 = arith.constant 0 : index
    %c0_26 = arith.constant 0 : index
    %c1792 = arith.constant 1792 : index
    %75 = vector.load %arg5[%c0_25, %c0_26, %c1792] : memref<3x1x2944xf32, #tpu.memory_space<vmem>>, vector<1x1x128xf32>
    %76 = vector.shape_cast %75 : vector<1x1x128xf32> to vector<1x128xf32>
    %77 = vector.broadcast %76 : vector<1x128xf32> to vector<16x128xf32>
    %78 = arith.addf %74, %77 : vector<16x128xf32>
    %79 = arith.addf %1, %78 : vector<16x128xf32>
    %c0_27 = arith.constant 0 : index
    %c0_28 = arith.constant 0 : index
    %c2176 = arith.constant 2176 : index
    %80 = vector.load %arg5[%c0_27, %c0_28, %c2176] : memref<3x1x2944xf32, #tpu.memory_space<vmem>>, vector<1x1x128xf32>
    %81 = vector.shape_cast %80 : vector<1x1x128xf32> to vector<1x128xf32>
    %c0_29 = arith.constant 0 : index
    %c0_30 = arith.constant 0 : index
    %c2304 = arith.constant 2304 : index
    %82 = vector.load %arg5[%c0_29, %c0_30, %c2304] : memref<3x1x2944xf32, #tpu.memory_space<vmem>>, vector<1x1x128xf32>
    %83 = vector.shape_cast %82 : vector<1x1x128xf32> to vector<1x128xf32>
    %cst_31 = arith.constant dense<0.000000e+00> : vector<16xf32>
    %84 = vector.multi_reduction <add>, %79, %cst_31 [1] : vector<16x128xf32> to vector<16xf32>
    %85 = vector.shape_cast %84 : vector<16xf32> to vector<16x1xf32>
    %cst_32 = arith.constant 1.280000e+02 : f32
    %86 = vector.broadcast %cst_32 : f32 to vector<16x1xf32>
    %87 = arith.divf %85, %86 : vector<16x1xf32>
    %88 = vector.broadcast %87 : vector<16x1xf32> to vector<16x128xf32>
    %89 = arith.subf %79, %88 : vector<16x128xf32>
    %90 = arith.mulf %89, %89 : vector<16x128xf32>
    %cst_33 = arith.constant dense<0.000000e+00> : vector<16xf32>
    %91 = vector.multi_reduction <add>, %90, %cst_33 [1] : vector<16x128xf32> to vector<16xf32>
    %92 = vector.shape_cast %91 : vector<16xf32> to vector<16x1xf32>
    %cst_34 = arith.constant 1.280000e+02 : f32
    %93 = vector.broadcast %cst_34 : f32 to vector<16x1xf32>
    %94 = arith.divf %92, %93 : vector<16x1xf32>
    %cst_35 = arith.constant 9.99999974E-6 : f32
    %95 = vector.broadcast %cst_35 : f32 to vector<16x1xf32>
    %96 = arith.addf %94, %95 : vector<16x1xf32>
    %97 = math.rsqrt %96 : vector<16x1xf32>
    %98 = vector.broadcast %97 : vector<16x1xf32> to vector<16x128xf32>
    %99 = arith.mulf %89, %98 : vector<16x128xf32>
    %100 = vector.broadcast %81 : vector<1x128xf32> to vector<16x128xf32>
    %101 = arith.mulf %99, %100 : vector<16x128xf32>
    %102 = vector.broadcast %83 : vector<1x128xf32> to vector<16x128xf32>
    %103 = arith.addf %101, %102 : vector<16x128xf32>
    %104 = arith.truncf %103 : vector<16x128xf32> to vector<16x128xbf16>
    %c0_36 = arith.constant 0 : index
    %c0_37 = arith.constant 0 : index
    %c768 = arith.constant 768 : index
    %105 = vector.load %arg3[%c0_36, %c0_37, %c768] : memref<3x128x1792xbf16, #tpu.memory_space<vmem>>, vector<1x128x256xbf16>
    %106 = vector.shape_cast %105 : vector<1x128x256xbf16> to vector<128x256xbf16>
    %cst_38 = arith.constant dense<0.000000e+00> : vector<16x256xf32>
    %107 = tpu.matmul %104, %106, %cst_38 {dimension_numbers = #tpu.dot_dimension_numbers<[1], [0], [0], [1], [0, 0, 1, 1], [], []>} : vector<16x128xbf16>, vector<128x256xbf16>, vector<16x256xf32> -> vector<16x256xf32>
    %c0_39 = arith.constant 0 : index
    %c0_40 = arith.constant 0 : index
    %c768_41 = arith.constant 768 : index
    %108 = vector.load %arg5[%c0_39, %c0_40, %c768_41] : memref<3x1x2944xf32, #tpu.memory_space<vmem>>, vector<1x1x256xf32>
    %109 = vector.shape_cast %108 : vector<1x1x256xf32> to vector<1x256xf32>
    %110 = vector.broadcast %109 : vector<1x256xf32> to vector<16x256xf32>
    %111 = arith.addf %107, %110 : vector<16x256xf32>
    %c0_42 = arith.constant 0 : index
    %c0_43 = arith.constant 0 : index
    %c1024 = arith.constant 1024 : index
    %112 = vector.load %arg3[%c0_42, %c0_43, %c1024] : memref<3x128x1792xbf16, #tpu.memory_space<vmem>>, vector<1x128x512xbf16>
    %113 = vector.shape_cast %112 : vector<1x128x512xbf16> to vector<128x512xbf16>
    %cst_44 = arith.constant dense<0.000000e+00> : vector<32x512xf32>
    %114 = tpu.matmul %4, %113, %cst_44 {dimension_numbers = #tpu.dot_dimension_numbers<[1], [0], [0], [1], [0, 0, 1, 1], [], []>} : vector<32x128xbf16>, vector<128x512xbf16>, vector<32x512xf32> -> vector<32x512xf32>
    %c0_45 = arith.constant 0 : index
    %c0_46 = arith.constant 0 : index
    %c1024_47 = arith.constant 1024 : index
    %115 = vector.load %arg5[%c0_45, %c0_46, %c1024_47] : memref<3x1x2944xf32, #tpu.memory_space<vmem>>, vector<1x1x512xf32>
    %116 = vector.shape_cast %115 : vector<1x1x512xf32> to vector<1x512xf32>
    %117 = vector.broadcast %116 : vector<1x512xf32> to vector<32x512xf32>
    %118 = arith.addf %114, %117 : vector<32x512xf32>
    %119 = vector.shape_cast %111 : vector<16x256xf32> to vector<2x8x256xf32>
    %120 = vector.shape_cast %118 : vector<32x512xf32> to vector<2x16x512xf32>
    %121 = vector.extract_strided_slice %120 {offsets = [0, 0, 0], sizes = [2, 16, 256], strides = [1, 1, 1]} : vector<2x16x512xf32> to vector<2x16x256xf32>
    %122 = vector.extract_strided_slice %120 {offsets = [0, 0, 256], sizes = [2, 16, 256], strides = [1, 1, 1]} : vector<2x16x512xf32> to vector<2x16x256xf32>
    %123 = vector.extract_strided_slice %119 {offsets = [0, 0, 0], sizes = [2, 8, 128], strides = [1, 1, 1]} : vector<2x8x256xf32> to vector<2x8x128xf32>
    %124 = arith.truncf %123 : vector<2x8x128xf32> to vector<2x8x128xbf16>
    %125 = vector.extract_strided_slice %121 {offsets = [0, 0, 0], sizes = [2, 16, 128], strides = [1, 1, 1]} : vector<2x16x256xf32> to vector<2x16x128xf32>
    %126 = arith.truncf %125 : vector<2x16x128xf32> to vector<2x16x128xbf16>
    %127 = vector.extract_strided_slice %122 {offsets = [0, 0, 0], sizes = [2, 16, 128], strides = [1, 1, 1]} : vector<2x16x256xf32> to vector<2x16x128xf32>
    %128 = arith.truncf %127 : vector<2x16x128xf32> to vector<2x16x128xbf16>
    "tpu.trace_start"() <{level = 10 : i32, message = "bqd,bkd->bqk"}> : () -> ()
    %cst_48 = arith.constant dense<0.000000e+00> : vector<2x8x16xf32>
    %129 = tpu.matmul %124, %126, %cst_48 {dimension_numbers = #tpu.dot_dimension_numbers<[2], [2], [1], [1], [0, 0, 0, 1, 1, 1], [0], [0]>} : vector<2x8x128xbf16>, vector<2x16x128xbf16>, vector<2x8x16xf32> -> vector<2x8x16xf32>
    "tpu.trace_stop"() : () -> ()
    %cst_49 = arith.constant dense<0xFF800000> : vector<2x8xf32>
    %130 = vector.multi_reduction <maximumf>, %129, %cst_49 [2] : vector<2x8x16xf32> to vector<2x8xf32>
    %131 = vector.shape_cast %130 : vector<2x8xf32> to vector<2x8x1xf32>
    %132 = vector.broadcast %131 : vector<2x8x1xf32> to vector<2x8x16xf32>
    %133 = arith.subf %129, %132 : vector<2x8x16xf32>
    %134 = math.exp %133 : vector<2x8x16xf32>
    %cst_50 = arith.constant dense<0.000000e+00> : vector<2x8xf32>
    %135 = vector.multi_reduction <add>, %134, %cst_50 [2] : vector<2x8x16xf32> to vector<2x8xf32>
    %136 = vector.shape_cast %135 : vector<2x8xf32> to vector<2x8x1xf32>
    %137 = tpu.reciprocal %136 {approx = true} : vector<2x8x1xf32> -> vector<2x8x1xf32>
    %138 = vector.broadcast %137 : vector<2x8x1xf32> to vector<2x8x16xf32>
    %139 = arith.mulf %134, %138 : vector<2x8x16xf32>
    %140 = arith.truncf %139 : vector<2x8x16xf32> to vector<2x8x16xbf16>
    "tpu.trace_start"() <{level = 10 : i32, message = "bqk,bkd->bqd"}> : () -> ()
    %cst_51 = arith.constant dense<0.000000e+00> : vector<2x8x128xf32>
    %141 = tpu.matmul %140, %128, %cst_51 {dimension_numbers = #tpu.dot_dimension_numbers<[2], [1], [1], [2], [0, 0, 0, 1, 1, 2], [0], [0]>} : vector<2x8x16xbf16>, vector<2x16x128xbf16>, vector<2x8x128xf32> -> vector<2x8x128xf32>
    "tpu.trace_stop"() : () -> ()
    %142 = vector.extract_strided_slice %119 {offsets = [0, 0, 128], sizes = [2, 8, 128], strides = [1, 1, 1]} : vector<2x8x256xf32> to vector<2x8x128xf32>
    %143 = arith.truncf %142 : vector<2x8x128xf32> to vector<2x8x128xbf16>
    %144 = vector.extract_strided_slice %121 {offsets = [0, 0, 128], sizes = [2, 16, 128], strides = [1, 1, 1]} : vector<2x16x256xf32> to vector<2x16x128xf32>
    %145 = arith.truncf %144 : vector<2x16x128xf32> to vector<2x16x128xbf16>
    %146 = vector.extract_strided_slice %122 {offsets = [0, 0, 128], sizes = [2, 16, 128], strides = [1, 1, 1]} : vector<2x16x256xf32> to vector<2x16x128xf32>
    %147 = arith.truncf %146 : vector<2x16x128xf32> to vector<2x16x128xbf16>
    "tpu.trace_start"() <{level = 10 : i32, message = "bqd,bkd->bqk"}> : () -> ()
    %cst_52 = arith.constant dense<0.000000e+00> : vector<2x8x16xf32>
    %148 = tpu.matmul %143, %145, %cst_52 {dimension_numbers = #tpu.dot_dimension_numbers<[2], [2], [1], [1], [0, 0, 0, 1, 1, 1], [0], [0]>} : vector<2x8x128xbf16>, vector<2x16x128xbf16>, vector<2x8x16xf32> -> vector<2x8x16xf32>
    "tpu.trace_stop"() : () -> ()
    %cst_53 = arith.constant dense<0xFF800000> : vector<2x8xf32>
    %149 = vector.multi_reduction <maximumf>, %148, %cst_53 [2] : vector<2x8x16xf32> to vector<2x8xf32>
    %150 = vector.shape_cast %149 : vector<2x8xf32> to vector<2x8x1xf32>
    %151 = vector.broadcast %150 : vector<2x8x1xf32> to vector<2x8x16xf32>
    %152 = arith.subf %148, %151 : vector<2x8x16xf32>
    %153 = math.exp %152 : vector<2x8x16xf32>
    %cst_54 = arith.constant dense<0.000000e+00> : vector<2x8xf32>
    %154 = vector.multi_reduction <add>, %153, %cst_54 [2] : vector<2x8x16xf32> to vector<2x8xf32>
    %155 = vector.shape_cast %154 : vector<2x8xf32> to vector<2x8x1xf32>
    %156 = tpu.reciprocal %155 {approx = true} : vector<2x8x1xf32> -> vector<2x8x1xf32>
    %157 = vector.broadcast %156 : vector<2x8x1xf32> to vector<2x8x16xf32>
    %158 = arith.mulf %153, %157 : vector<2x8x16xf32>
    %159 = arith.truncf %158 : vector<2x8x16xf32> to vector<2x8x16xbf16>
    "tpu.trace_start"() <{level = 10 : i32, message = "bqk,bkd->bqd"}> : () -> ()
    %cst_55 = arith.constant dense<0.000000e+00> : vector<2x8x128xf32>
    %160 = tpu.matmul %159, %147, %cst_55 {dimension_numbers = #tpu.dot_dimension_numbers<[2], [1], [1], [2], [0, 0, 0, 1, 1, 2], [0], [0]>} : vector<2x8x16xbf16>, vector<2x16x128xbf16>, vector<2x8x128xf32> -> vector<2x8x128xf32>
    "tpu.trace_stop"() : () -> ()
    %161 = tpu.concatenate %141, %160 in 2 : vector<2x8x128xf32>, vector<2x8x128xf32> -> vector<2x8x256xf32>
    %162 = vector.shape_cast %161 : vector<2x8x256xf32> to vector<16x256xf32>
    %163 = arith.truncf %162 : vector<16x256xf32> to vector<16x256xbf16>
    %c0_56 = arith.constant 0 : index
    %c0_57 = arith.constant 0 : index
    %c128 = arith.constant 128 : index
    %164 = vector.load %arg4[%c0_56, %c0_57, %c128] : memref<3x256x384xbf16, #tpu.memory_space<vmem>>, vector<1x256x128xbf16>
    %165 = vector.shape_cast %164 : vector<1x256x128xbf16> to vector<256x128xbf16>
    %cst_58 = arith.constant dense<0.000000e+00> : vector<16x128xf32>
    %166 = tpu.matmul %163, %165, %cst_58 {dimension_numbers = #tpu.dot_dimension_numbers<[1], [0], [0], [1], [0, 0, 1, 1], [], []>} : vector<16x256xbf16>, vector<256x128xbf16>, vector<16x128xf32> -> vector<16x128xf32>
    %c0_59 = arith.constant 0 : index
    %c0_60 = arith.constant 0 : index
    %c1920 = arith.constant 1920 : index
    %167 = vector.load %arg5[%c0_59, %c0_60, %c1920] : memref<3x1x2944xf32, #tpu.memory_space<vmem>>, vector<1x1x128xf32>
    %168 = vector.shape_cast %167 : vector<1x1x128xf32> to vector<1x128xf32>
    %169 = vector.broadcast %168 : vector<1x128xf32> to vector<16x128xf32>
    %170 = arith.addf %166, %169 : vector<16x128xf32>
    %171 = arith.addf %103, %170 : vector<16x128xf32>
    %c0_61 = arith.constant 0 : index
    %c0_62 = arith.constant 0 : index
    %c2432 = arith.constant 2432 : index
    %172 = vector.load %arg5[%c0_61, %c0_62, %c2432] : memref<3x1x2944xf32, #tpu.memory_space<vmem>>, vector<1x1x128xf32>
    %173 = vector.shape_cast %172 : vector<1x1x128xf32> to vector<1x128xf32>
    %c0_63 = arith.constant 0 : index
    %c0_64 = arith.constant 0 : index
    %c2560 = arith.constant 2560 : index
    %174 = vector.load %arg5[%c0_63, %c0_64, %c2560] : memref<3x1x2944xf32, #tpu.memory_space<vmem>>, vector<1x1x128xf32>
    %175 = vector.shape_cast %174 : vector<1x1x128xf32> to vector<1x128xf32>
    %cst_65 = arith.constant dense<0.000000e+00> : vector<16xf32>
    %176 = vector.multi_reduction <add>, %171, %cst_65 [1] : vector<16x128xf32> to vector<16xf32>
    %177 = vector.shape_cast %176 : vector<16xf32> to vector<16x1xf32>
    %cst_66 = arith.constant 1.280000e+02 : f32
    %178 = vector.broadcast %cst_66 : f32 to vector<16x1xf32>
    %179 = arith.divf %177, %178 : vector<16x1xf32>
    %180 = vector.broadcast %179 : vector<16x1xf32> to vector<16x128xf32>
    %181 = arith.subf %171, %180 : vector<16x128xf32>
    %182 = arith.mulf %181, %181 : vector<16x128xf32>
    %cst_67 = arith.constant dense<0.000000e+00> : vector<16xf32>
    %183 = vector.multi_reduction <add>, %182, %cst_67 [1] : vector<16x128xf32> to vector<16xf32>
    %184 = vector.shape_cast %183 : vector<16xf32> to vector<16x1xf32>
    %cst_68 = arith.constant 1.280000e+02 : f32
    %185 = vector.broadcast %cst_68 : f32 to vector<16x1xf32>
    %186 = arith.divf %184, %185 : vector<16x1xf32>
    %cst_69 = arith.constant 9.99999974E-6 : f32
    %187 = vector.broadcast %cst_69 : f32 to vector<16x1xf32>
    %188 = arith.addf %186, %187 : vector<16x1xf32>
    %189 = math.rsqrt %188 : vector<16x1xf32>
    %190 = vector.broadcast %189 : vector<16x1xf32> to vector<16x128xf32>
    %191 = arith.mulf %181, %190 : vector<16x128xf32>
    %192 = vector.broadcast %173 : vector<1x128xf32> to vector<16x128xf32>
    %193 = arith.mulf %191, %192 : vector<16x128xf32>
    %194 = vector.broadcast %175 : vector<1x128xf32> to vector<16x128xf32>
    %195 = arith.addf %193, %194 : vector<16x128xf32>
    %196 = arith.truncf %195 : vector<16x128xf32> to vector<16x128xbf16>
    %c0_70 = arith.constant 0 : index
    %c0_71 = arith.constant 0 : index
    %c1536 = arith.constant 1536 : index
    %197 = vector.load %arg3[%c0_70, %c0_71, %c1536] : memref<3x128x1792xbf16, #tpu.memory_space<vmem>>, vector<1x128x256xbf16>
    %198 = vector.shape_cast %197 : vector<1x128x256xbf16> to vector<128x256xbf16>
    %cst_72 = arith.constant dense<0.000000e+00> : vector<16x256xf32>
    %199 = tpu.matmul %196, %198, %cst_72 {dimension_numbers = #tpu.dot_dimension_numbers<[1], [0], [0], [1], [0, 0, 1, 1], [], []>} : vector<16x128xbf16>, vector<128x256xbf16>, vector<16x256xf32> -> vector<16x256xf32>
    %c0_73 = arith.constant 0 : index
    %c0_74 = arith.constant 0 : index
    %c1536_75 = arith.constant 1536 : index
    %200 = vector.load %arg5[%c0_73, %c0_74, %c1536_75] : memref<3x1x2944xf32, #tpu.memory_space<vmem>>, vector<1x1x256xf32>
    %201 = vector.shape_cast %200 : vector<1x1x256xf32> to vector<1x256xf32>
    %202 = vector.broadcast %201 : vector<1x256xf32> to vector<16x256xf32>
    %203 = arith.addf %199, %202 : vector<16x256xf32>
    %cst_76 = arith.constant 0.000000e+00 : f32
    %204 = vector.broadcast %cst_76 : f32 to vector<16x256xf32>
    %205 = arith.maximumf %203, %204 : vector<16x256xf32>
    %206 = arith.truncf %205 : vector<16x256xf32> to vector<16x256xbf16>
    %c0_77 = arith.constant 0 : index
    %c0_78 = arith.constant 0 : index
    %c256 = arith.constant 256 : index
    %207 = vector.load %arg4[%c0_77, %c0_78, %c256] : memref<3x256x384xbf16, #tpu.memory_space<vmem>>, vector<1x256x128xbf16>
    %208 = vector.shape_cast %207 : vector<1x256x128xbf16> to vector<256x128xbf16>
    %cst_79 = arith.constant dense<0.000000e+00> : vector<16x128xf32>
    %209 = tpu.matmul %206, %208, %cst_79 {dimension_numbers = #tpu.dot_dimension_numbers<[1], [0], [0], [1], [0, 0, 1, 1], [], []>} : vector<16x256xbf16>, vector<256x128xbf16>, vector<16x128xf32> -> vector<16x128xf32>
    %c0_80 = arith.constant 0 : index
    %c0_81 = arith.constant 0 : index
    %c2048 = arith.constant 2048 : index
    %210 = vector.load %arg5[%c0_80, %c0_81, %c2048] : memref<3x1x2944xf32, #tpu.memory_space<vmem>>, vector<1x1x128xf32>
    %211 = vector.shape_cast %210 : vector<1x1x128xf32> to vector<1x128xf32>
    %212 = vector.broadcast %211 : vector<1x128xf32> to vector<16x128xf32>
    %213 = arith.addf %209, %212 : vector<16x128xf32>
    %214 = arith.addf %195, %213 : vector<16x128xf32>
    %c0_82 = arith.constant 0 : index
    %c0_83 = arith.constant 0 : index
    %c2688 = arith.constant 2688 : index
    %215 = vector.load %arg5[%c0_82, %c0_83, %c2688] : memref<3x1x2944xf32, #tpu.memory_space<vmem>>, vector<1x1x128xf32>
    %216 = vector.shape_cast %215 : vector<1x1x128xf32> to vector<1x128xf32>
    %c0_84 = arith.constant 0 : index
    %c0_85 = arith.constant 0 : index
    %c2816 = arith.constant 2816 : index
    %217 = vector.load %arg5[%c0_84, %c0_85, %c2816] : memref<3x1x2944xf32, #tpu.memory_space<vmem>>, vector<1x1x128xf32>
    %218 = vector.shape_cast %217 : vector<1x1x128xf32> to vector<1x128xf32>
    %cst_86 = arith.constant dense<0.000000e+00> : vector<16xf32>
    %219 = vector.multi_reduction <add>, %214, %cst_86 [1] : vector<16x128xf32> to vector<16xf32>
    %220 = vector.shape_cast %219 : vector<16xf32> to vector<16x1xf32>
    %cst_87 = arith.constant 1.280000e+02 : f32
    %221 = vector.broadcast %cst_87 : f32 to vector<16x1xf32>
    %222 = arith.divf %220, %221 : vector<16x1xf32>
    %223 = vector.broadcast %222 : vector<16x1xf32> to vector<16x128xf32>
    %224 = arith.subf %214, %223 : vector<16x128xf32>
    %225 = arith.mulf %224, %224 : vector<16x128xf32>
    %cst_88 = arith.constant dense<0.000000e+00> : vector<16xf32>
    %226 = vector.multi_reduction <add>, %225, %cst_88 [1] : vector<16x128xf32> to vector<16xf32>
    %227 = vector.shape_cast %226 : vector<16xf32> to vector<16x1xf32>
    %cst_89 = arith.constant 1.280000e+02 : f32
    %228 = vector.broadcast %cst_89 : f32 to vector<16x1xf32>
    %229 = arith.divf %227, %228 : vector<16x1xf32>
    %cst_90 = arith.constant 9.99999974E-6 : f32
    %230 = vector.broadcast %cst_90 : f32 to vector<16x1xf32>
    %231 = arith.addf %229, %230 : vector<16x1xf32>
    %232 = math.rsqrt %231 : vector<16x1xf32>
    %233 = vector.broadcast %232 : vector<16x1xf32> to vector<16x128xf32>
    %234 = arith.mulf %224, %233 : vector<16x128xf32>
    %235 = vector.broadcast %216 : vector<1x128xf32> to vector<16x128xf32>
    %236 = arith.mulf %234, %235 : vector<16x128xf32>
    %237 = vector.broadcast %218 : vector<1x128xf32> to vector<16x128xf32>
    %238 = arith.addf %236, %237 : vector<16x128xf32>
    %239 = arith.truncf %238 : vector<16x128xf32> to vector<16x128xbf16>
    %c1 = arith.constant 1 : index
    %c0_91 = arith.constant 0 : index
    %c0_92 = arith.constant 0 : index
    %240 = vector.load %arg3[%c1, %c0_91, %c0_92] : memref<3x128x1792xbf16, #tpu.memory_space<vmem>>, vector<1x128x768xbf16>
    %241 = vector.shape_cast %240 : vector<1x128x768xbf16> to vector<128x768xbf16>
    %cst_93 = arith.constant dense<0.000000e+00> : vector<16x768xf32>
    %242 = tpu.matmul %239, %241, %cst_93 {dimension_numbers = #tpu.dot_dimension_numbers<[1], [0], [0], [1], [0, 0, 1, 1], [], []>} : vector<16x128xbf16>, vector<128x768xbf16>, vector<16x768xf32> -> vector<16x768xf32>
    %c1_94 = arith.constant 1 : index
    %c0_95 = arith.constant 0 : index
    %c0_96 = arith.constant 0 : index
    %243 = vector.load %arg5[%c1_94, %c0_95, %c0_96] : memref<3x1x2944xf32, #tpu.memory_space<vmem>>, vector<1x1x768xf32>
    %244 = vector.shape_cast %243 : vector<1x1x768xf32> to vector<1x768xf32>
    %245 = vector.broadcast %244 : vector<1x768xf32> to vector<16x768xf32>
    %246 = arith.addf %242, %245 : vector<16x768xf32>
    %247 = vector.extract_strided_slice %246 {offsets = [0, 0], sizes = [16, 256], strides = [1, 1]} : vector<16x768xf32> to vector<16x256xf32>
    %248 = vector.shape_cast %247 : vector<16x256xf32> to vector<2x8x256xf32>
    %249 = vector.extract_strided_slice %246 {offsets = [0, 256], sizes = [16, 256], strides = [1, 1]} : vector<16x768xf32> to vector<16x256xf32>
    %250 = vector.shape_cast %249 : vector<16x256xf32> to vector<2x8x256xf32>
    %251 = vector.extract_strided_slice %246 {offsets = [0, 512], sizes = [16, 256], strides = [1, 1]} : vector<16x768xf32> to vector<16x256xf32>
    %252 = vector.shape_cast %251 : vector<16x256xf32> to vector<2x8x256xf32>
    %253 = vector.extract_strided_slice %248 {offsets = [0, 0, 0], sizes = [2, 8, 128], strides = [1, 1, 1]} : vector<2x8x256xf32> to vector<2x8x128xf32>
    %254 = arith.truncf %253 : vector<2x8x128xf32> to vector<2x8x128xbf16>
    %255 = vector.extract_strided_slice %250 {offsets = [0, 0, 0], sizes = [2, 8, 128], strides = [1, 1, 1]} : vector<2x8x256xf32> to vector<2x8x128xf32>
    %256 = arith.truncf %255 : vector<2x8x128xf32> to vector<2x8x128xbf16>
    %257 = vector.extract_strided_slice %252 {offsets = [0, 0, 0], sizes = [2, 8, 128], strides = [1, 1, 1]} : vector<2x8x256xf32> to vector<2x8x128xf32>
    %258 = arith.truncf %257 : vector<2x8x128xf32> to vector<2x8x128xbf16>
    "tpu.trace_start"() <{level = 10 : i32, message = "bqd,bkd->bqk"}> : () -> ()
    %cst_97 = arith.constant dense<0.000000e+00> : vector<2x8x8xf32>
    %259 = tpu.matmul %254, %256, %cst_97 {dimension_numbers = #tpu.dot_dimension_numbers<[2], [2], [1], [1], [0, 0, 0, 1, 1, 1], [0], [0]>} : vector<2x8x128xbf16>, vector<2x8x128xbf16>, vector<2x8x8xf32> -> vector<2x8x8xf32>
    "tpu.trace_stop"() : () -> ()
    %260 = vector.shape_cast %10 : vector<8x8xf32> to vector<1x8x8xf32>
    %261 = vector.broadcast %260 : vector<1x8x8xf32> to vector<2x8x8xf32>
    %262 = arith.addf %259, %261 : vector<2x8x8xf32>
    %cst_98 = arith.constant dense<0xFF800000> : vector<2x8xf32>
    %263 = vector.multi_reduction <maximumf>, %262, %cst_98 [2] : vector<2x8x8xf32> to vector<2x8xf32>
    %264 = vector.shape_cast %263 : vector<2x8xf32> to vector<2x8x1xf32>
    %265 = vector.broadcast %264 : vector<2x8x1xf32> to vector<2x8x8xf32>
    %266 = arith.subf %262, %265 : vector<2x8x8xf32>
    %267 = math.exp %266 : vector<2x8x8xf32>
    %cst_99 = arith.constant dense<0.000000e+00> : vector<2x8xf32>
    %268 = vector.multi_reduction <add>, %267, %cst_99 [2] : vector<2x8x8xf32> to vector<2x8xf32>
    %269 = vector.shape_cast %268 : vector<2x8xf32> to vector<2x8x1xf32>
    %270 = tpu.reciprocal %269 {approx = true} : vector<2x8x1xf32> -> vector<2x8x1xf32>
    %271 = vector.broadcast %270 : vector<2x8x1xf32> to vector<2x8x8xf32>
    %272 = arith.mulf %267, %271 : vector<2x8x8xf32>
    %273 = arith.truncf %272 : vector<2x8x8xf32> to vector<2x8x8xbf16>
    "tpu.trace_start"() <{level = 10 : i32, message = "bqk,bkd->bqd"}> : () -> ()
    %cst_100 = arith.constant dense<0.000000e+00> : vector<2x8x128xf32>
    %274 = tpu.matmul %273, %258, %cst_100 {dimension_numbers = #tpu.dot_dimension_numbers<[2], [1], [1], [2], [0, 0, 0, 1, 1, 2], [0], [0]>} : vector<2x8x8xbf16>, vector<2x8x128xbf16>, vector<2x8x128xf32> -> vector<2x8x128xf32>
    "tpu.trace_stop"() : () -> ()
    %275 = vector.extract_strided_slice %248 {offsets = [0, 0, 128], sizes = [2, 8, 128], strides = [1, 1, 1]} : vector<2x8x256xf32> to vector<2x8x128xf32>
    %276 = arith.truncf %275 : vector<2x8x128xf32> to vector<2x8x128xbf16>
    %277 = vector.extract_strided_slice %250 {offsets = [0, 0, 128], sizes = [2, 8, 128], strides = [1, 1, 1]} : vector<2x8x256xf32> to vector<2x8x128xf32>
    %278 = arith.truncf %277 : vector<2x8x128xf32> to vector<2x8x128xbf16>
    %279 = vector.extract_strided_slice %252 {offsets = [0, 0, 128], sizes = [2, 8, 128], strides = [1, 1, 1]} : vector<2x8x256xf32> to vector<2x8x128xf32>
    %280 = arith.truncf %279 : vector<2x8x128xf32> to vector<2x8x128xbf16>
    "tpu.trace_start"() <{level = 10 : i32, message = "bqd,bkd->bqk"}> : () -> ()
    %cst_101 = arith.constant dense<0.000000e+00> : vector<2x8x8xf32>
    %281 = tpu.matmul %276, %278, %cst_101 {dimension_numbers = #tpu.dot_dimension_numbers<[2], [2], [1], [1], [0, 0, 0, 1, 1, 1], [0], [0]>} : vector<2x8x128xbf16>, vector<2x8x128xbf16>, vector<2x8x8xf32> -> vector<2x8x8xf32>
    "tpu.trace_stop"() : () -> ()
    %282 = vector.shape_cast %10 : vector<8x8xf32> to vector<1x8x8xf32>
    %283 = vector.broadcast %282 : vector<1x8x8xf32> to vector<2x8x8xf32>
    %284 = arith.addf %281, %283 : vector<2x8x8xf32>
    %cst_102 = arith.constant dense<0xFF800000> : vector<2x8xf32>
    %285 = vector.multi_reduction <maximumf>, %284, %cst_102 [2] : vector<2x8x8xf32> to vector<2x8xf32>
    %286 = vector.shape_cast %285 : vector<2x8xf32> to vector<2x8x1xf32>
    %287 = vector.broadcast %286 : vector<2x8x1xf32> to vector<2x8x8xf32>
    %288 = arith.subf %284, %287 : vector<2x8x8xf32>
    %289 = math.exp %288 : vector<2x8x8xf32>
    %cst_103 = arith.constant dense<0.000000e+00> : vector<2x8xf32>
    %290 = vector.multi_reduction <add>, %289, %cst_103 [2] : vector<2x8x8xf32> to vector<2x8xf32>
    %291 = vector.shape_cast %290 : vector<2x8xf32> to vector<2x8x1xf32>
    %292 = tpu.reciprocal %291 {approx = true} : vector<2x8x1xf32> -> vector<2x8x1xf32>
    %293 = vector.broadcast %292 : vector<2x8x1xf32> to vector<2x8x8xf32>
    %294 = arith.mulf %289, %293 : vector<2x8x8xf32>
    %295 = arith.truncf %294 : vector<2x8x8xf32> to vector<2x8x8xbf16>
    "tpu.trace_start"() <{level = 10 : i32, message = "bqk,bkd->bqd"}> : () -> ()
    %cst_104 = arith.constant dense<0.000000e+00> : vector<2x8x128xf32>
    %296 = tpu.matmul %295, %280, %cst_104 {dimension_numbers = #tpu.dot_dimension_numbers<[2], [1], [1], [2], [0, 0, 0, 1, 1, 2], [0], [0]>} : vector<2x8x8xbf16>, vector<2x8x128xbf16>, vector<2x8x128xf32> -> vector<2x8x128xf32>
    "tpu.trace_stop"() : () -> ()
    %297 = tpu.concatenate %274, %296 in 2 : vector<2x8x128xf32>, vector<2x8x128xf32> -> vector<2x8x256xf32>
    %298 = vector.shape_cast %297 : vector<2x8x256xf32> to vector<16x256xf32>
    %299 = arith.truncf %298 : vector<16x256xf32> to vector<16x256xbf16>
    %c1_105 = arith.constant 1 : index
    %c0_106 = arith.constant 0 : index
    %c0_107 = arith.constant 0 : index
    %300 = vector.load %arg4[%c1_105, %c0_106, %c0_107] : memref<3x256x384xbf16, #tpu.memory_space<vmem>>, vector<1x256x128xbf16>
    %301 = vector.shape_cast %300 : vector<1x256x128xbf16> to vector<256x128xbf16>
    %cst_108 = arith.constant dense<0.000000e+00> : vector<16x128xf32>
    %302 = tpu.matmul %299, %301, %cst_108 {dimension_numbers = #tpu.dot_dimension_numbers<[1], [0], [0], [1], [0, 0, 1, 1], [], []>} : vector<16x256xbf16>, vector<256x128xbf16>, vector<16x128xf32> -> vector<16x128xf32>
    %c1_109 = arith.constant 1 : index
    %c0_110 = arith.constant 0 : index
    %c1792_111 = arith.constant 1792 : index
    %303 = vector.load %arg5[%c1_109, %c0_110, %c1792_111] : memref<3x1x2944xf32, #tpu.memory_space<vmem>>, vector<1x1x128xf32>
    %304 = vector.shape_cast %303 : vector<1x1x128xf32> to vector<1x128xf32>
    %305 = vector.broadcast %304 : vector<1x128xf32> to vector<16x128xf32>
    %306 = arith.addf %302, %305 : vector<16x128xf32>
    %307 = arith.addf %238, %306 : vector<16x128xf32>
    %c1_112 = arith.constant 1 : index
    %c0_113 = arith.constant 0 : index
    %c2176_114 = arith.constant 2176 : index
    %308 = vector.load %arg5[%c1_112, %c0_113, %c2176_114] : memref<3x1x2944xf32, #tpu.memory_space<vmem>>, vector<1x1x128xf32>
    %309 = vector.shape_cast %308 : vector<1x1x128xf32> to vector<1x128xf32>
    %c1_115 = arith.constant 1 : index
    %c0_116 = arith.constant 0 : index
    %c2304_117 = arith.constant 2304 : index
    %310 = vector.load %arg5[%c1_115, %c0_116, %c2304_117] : memref<3x1x2944xf32, #tpu.memory_space<vmem>>, vector<1x1x128xf32>
    %311 = vector.shape_cast %310 : vector<1x1x128xf32> to vector<1x128xf32>
    %cst_118 = arith.constant dense<0.000000e+00> : vector<16xf32>
    %312 = vector.multi_reduction <add>, %307, %cst_118 [1] : vector<16x128xf32> to vector<16xf32>
    %313 = vector.shape_cast %312 : vector<16xf32> to vector<16x1xf32>
    %cst_119 = arith.constant 1.280000e+02 : f32
    %314 = vector.broadcast %cst_119 : f32 to vector<16x1xf32>
    %315 = arith.divf %313, %314 : vector<16x1xf32>
    %316 = vector.broadcast %315 : vector<16x1xf32> to vector<16x128xf32>
    %317 = arith.subf %307, %316 : vector<16x128xf32>
    %318 = arith.mulf %317, %317 : vector<16x128xf32>
    %cst_120 = arith.constant dense<0.000000e+00> : vector<16xf32>
    %319 = vector.multi_reduction <add>, %318, %cst_120 [1] : vector<16x128xf32> to vector<16xf32>
    %320 = vector.shape_cast %319 : vector<16xf32> to vector<16x1xf32>
    %cst_121 = arith.constant 1.280000e+02 : f32
    %321 = vector.broadcast %cst_121 : f32 to vector<16x1xf32>
    %322 = arith.divf %320, %321 : vector<16x1xf32>
    %cst_122 = arith.constant 9.99999974E-6 : f32
    %323 = vector.broadcast %cst_122 : f32 to vector<16x1xf32>
    %324 = arith.addf %322, %323 : vector<16x1xf32>
    %325 = math.rsqrt %324 : vector<16x1xf32>
    %326 = vector.broadcast %325 : vector<16x1xf32> to vector<16x128xf32>
    %327 = arith.mulf %317, %326 : vector<16x128xf32>
    %328 = vector.broadcast %309 : vector<1x128xf32> to vector<16x128xf32>
    %329 = arith.mulf %327, %328 : vector<16x128xf32>
    %330 = vector.broadcast %311 : vector<1x128xf32> to vector<16x128xf32>
    %331 = arith.addf %329, %330 : vector<16x128xf32>
    %332 = arith.truncf %331 : vector<16x128xf32> to vector<16x128xbf16>
    %c1_123 = arith.constant 1 : index
    %c0_124 = arith.constant 0 : index
    %c768_125 = arith.constant 768 : index
    %333 = vector.load %arg3[%c1_123, %c0_124, %c768_125] : memref<3x128x1792xbf16, #tpu.memory_space<vmem>>, vector<1x128x256xbf16>
    %334 = vector.shape_cast %333 : vector<1x128x256xbf16> to vector<128x256xbf16>
    %cst_126 = arith.constant dense<0.000000e+00> : vector<16x256xf32>
    %335 = tpu.matmul %332, %334, %cst_126 {dimension_numbers = #tpu.dot_dimension_numbers<[1], [0], [0], [1], [0, 0, 1, 1], [], []>} : vector<16x128xbf16>, vector<128x256xbf16>, vector<16x256xf32> -> vector<16x256xf32>
    %c1_127 = arith.constant 1 : index
    %c0_128 = arith.constant 0 : index
    %c768_129 = arith.constant 768 : index
    %336 = vector.load %arg5[%c1_127, %c0_128, %c768_129] : memref<3x1x2944xf32, #tpu.memory_space<vmem>>, vector<1x1x256xf32>
    %337 = vector.shape_cast %336 : vector<1x1x256xf32> to vector<1x256xf32>
    %338 = vector.broadcast %337 : vector<1x256xf32> to vector<16x256xf32>
    %339 = arith.addf %335, %338 : vector<16x256xf32>
    %c1_130 = arith.constant 1 : index
    %c0_131 = arith.constant 0 : index
    %c1024_132 = arith.constant 1024 : index
    %340 = vector.load %arg3[%c1_130, %c0_131, %c1024_132] : memref<3x128x1792xbf16, #tpu.memory_space<vmem>>, vector<1x128x512xbf16>
    %341 = vector.shape_cast %340 : vector<1x128x512xbf16> to vector<128x512xbf16>
    %cst_133 = arith.constant dense<0.000000e+00> : vector<32x512xf32>
    %342 = tpu.matmul %4, %341, %cst_133 {dimension_numbers = #tpu.dot_dimension_numbers<[1], [0], [0], [1], [0, 0, 1, 1], [], []>} : vector<32x128xbf16>, vector<128x512xbf16>, vector<32x512xf32> -> vector<32x512xf32>
    %c1_134 = arith.constant 1 : index
    %c0_135 = arith.constant 0 : index
    %c1024_136 = arith.constant 1024 : index
    %343 = vector.load %arg5[%c1_134, %c0_135, %c1024_136] : memref<3x1x2944xf32, #tpu.memory_space<vmem>>, vector<1x1x512xf32>
    %344 = vector.shape_cast %343 : vector<1x1x512xf32> to vector<1x512xf32>
    %345 = vector.broadcast %344 : vector<1x512xf32> to vector<32x512xf32>
    %346 = arith.addf %342, %345 : vector<32x512xf32>
    %347 = vector.shape_cast %339 : vector<16x256xf32> to vector<2x8x256xf32>
    %348 = vector.shape_cast %346 : vector<32x512xf32> to vector<2x16x512xf32>
    %349 = vector.extract_strided_slice %348 {offsets = [0, 0, 0], sizes = [2, 16, 256], strides = [1, 1, 1]} : vector<2x16x512xf32> to vector<2x16x256xf32>
    %350 = vector.extract_strided_slice %348 {offsets = [0, 0, 256], sizes = [2, 16, 256], strides = [1, 1, 1]} : vector<2x16x512xf32> to vector<2x16x256xf32>
    %351 = vector.extract_strided_slice %347 {offsets = [0, 0, 0], sizes = [2, 8, 128], strides = [1, 1, 1]} : vector<2x8x256xf32> to vector<2x8x128xf32>
    %352 = arith.truncf %351 : vector<2x8x128xf32> to vector<2x8x128xbf16>
    %353 = vector.extract_strided_slice %349 {offsets = [0, 0, 0], sizes = [2, 16, 128], strides = [1, 1, 1]} : vector<2x16x256xf32> to vector<2x16x128xf32>
    %354 = arith.truncf %353 : vector<2x16x128xf32> to vector<2x16x128xbf16>
    %355 = vector.extract_strided_slice %350 {offsets = [0, 0, 0], sizes = [2, 16, 128], strides = [1, 1, 1]} : vector<2x16x256xf32> to vector<2x16x128xf32>
    %356 = arith.truncf %355 : vector<2x16x128xf32> to vector<2x16x128xbf16>
    "tpu.trace_start"() <{level = 10 : i32, message = "bqd,bkd->bqk"}> : () -> ()
    %cst_137 = arith.constant dense<0.000000e+00> : vector<2x8x16xf32>
    %357 = tpu.matmul %352, %354, %cst_137 {dimension_numbers = #tpu.dot_dimension_numbers<[2], [2], [1], [1], [0, 0, 0, 1, 1, 1], [0], [0]>} : vector<2x8x128xbf16>, vector<2x16x128xbf16>, vector<2x8x16xf32> -> vector<2x8x16xf32>
    "tpu.trace_stop"() : () -> ()
    %cst_138 = arith.constant dense<0xFF800000> : vector<2x8xf32>
    %358 = vector.multi_reduction <maximumf>, %357, %cst_138 [2] : vector<2x8x16xf32> to vector<2x8xf32>
    %359 = vector.shape_cast %358 : vector<2x8xf32> to vector<2x8x1xf32>
    %360 = vector.broadcast %359 : vector<2x8x1xf32> to vector<2x8x16xf32>
    %361 = arith.subf %357, %360 : vector<2x8x16xf32>
    %362 = math.exp %361 : vector<2x8x16xf32>
    %cst_139 = arith.constant dense<0.000000e+00> : vector<2x8xf32>
    %363 = vector.multi_reduction <add>, %362, %cst_139 [2] : vector<2x8x16xf32> to vector<2x8xf32>
    %364 = vector.shape_cast %363 : vector<2x8xf32> to vector<2x8x1xf32>
    %365 = tpu.reciprocal %364 {approx = true} : vector<2x8x1xf32> -> vector<2x8x1xf32>
    %366 = vector.broadcast %365 : vector<2x8x1xf32> to vector<2x8x16xf32>
    %367 = arith.mulf %362, %366 : vector<2x8x16xf32>
    %368 = arith.truncf %367 : vector<2x8x16xf32> to vector<2x8x16xbf16>
    "tpu.trace_start"() <{level = 10 : i32, message = "bqk,bkd->bqd"}> : () -> ()
    %cst_140 = arith.constant dense<0.000000e+00> : vector<2x8x128xf32>
    %369 = tpu.matmul %368, %356, %cst_140 {dimension_numbers = #tpu.dot_dimension_numbers<[2], [1], [1], [2], [0, 0, 0, 1, 1, 2], [0], [0]>} : vector<2x8x16xbf16>, vector<2x16x128xbf16>, vector<2x8x128xf32> -> vector<2x8x128xf32>
    "tpu.trace_stop"() : () -> ()
    %370 = vector.extract_strided_slice %347 {offsets = [0, 0, 128], sizes = [2, 8, 128], strides = [1, 1, 1]} : vector<2x8x256xf32> to vector<2x8x128xf32>
    %371 = arith.truncf %370 : vector<2x8x128xf32> to vector<2x8x128xbf16>
    %372 = vector.extract_strided_slice %349 {offsets = [0, 0, 128], sizes = [2, 16, 128], strides = [1, 1, 1]} : vector<2x16x256xf32> to vector<2x16x128xf32>
    %373 = arith.truncf %372 : vector<2x16x128xf32> to vector<2x16x128xbf16>
    %374 = vector.extract_strided_slice %350 {offsets = [0, 0, 128], sizes = [2, 16, 128], strides = [1, 1, 1]} : vector<2x16x256xf32> to vector<2x16x128xf32>
    %375 = arith.truncf %374 : vector<2x16x128xf32> to vector<2x16x128xbf16>
    "tpu.trace_start"() <{level = 10 : i32, message = "bqd,bkd->bqk"}> : () -> ()
    %cst_141 = arith.constant dense<0.000000e+00> : vector<2x8x16xf32>
    %376 = tpu.matmul %371, %373, %cst_141 {dimension_numbers = #tpu.dot_dimension_numbers<[2], [2], [1], [1], [0, 0, 0, 1, 1, 1], [0], [0]>} : vector<2x8x128xbf16>, vector<2x16x128xbf16>, vector<2x8x16xf32> -> vector<2x8x16xf32>
    "tpu.trace_stop"() : () -> ()
    %cst_142 = arith.constant dense<0xFF800000> : vector<2x8xf32>
    %377 = vector.multi_reduction <maximumf>, %376, %cst_142 [2] : vector<2x8x16xf32> to vector<2x8xf32>
    %378 = vector.shape_cast %377 : vector<2x8xf32> to vector<2x8x1xf32>
    %379 = vector.broadcast %378 : vector<2x8x1xf32> to vector<2x8x16xf32>
    %380 = arith.subf %376, %379 : vector<2x8x16xf32>
    %381 = math.exp %380 : vector<2x8x16xf32>
    %cst_143 = arith.constant dense<0.000000e+00> : vector<2x8xf32>
    %382 = vector.multi_reduction <add>, %381, %cst_143 [2] : vector<2x8x16xf32> to vector<2x8xf32>
    %383 = vector.shape_cast %382 : vector<2x8xf32> to vector<2x8x1xf32>
    %384 = tpu.reciprocal %383 {approx = true} : vector<2x8x1xf32> -> vector<2x8x1xf32>
    %385 = vector.broadcast %384 : vector<2x8x1xf32> to vector<2x8x16xf32>
    %386 = arith.mulf %381, %385 : vector<2x8x16xf32>
    %387 = arith.truncf %386 : vector<2x8x16xf32> to vector<2x8x16xbf16>
    "tpu.trace_start"() <{level = 10 : i32, message = "bqk,bkd->bqd"}> : () -> ()
    %cst_144 = arith.constant dense<0.000000e+00> : vector<2x8x128xf32>
    %388 = tpu.matmul %387, %375, %cst_144 {dimension_numbers = #tpu.dot_dimension_numbers<[2], [1], [1], [2], [0, 0, 0, 1, 1, 2], [0], [0]>} : vector<2x8x16xbf16>, vector<2x16x128xbf16>, vector<2x8x128xf32> -> vector<2x8x128xf32>
    "tpu.trace_stop"() : () -> ()
    %389 = tpu.concatenate %369, %388 in 2 : vector<2x8x128xf32>, vector<2x8x128xf32> -> vector<2x8x256xf32>
    %390 = vector.shape_cast %389 : vector<2x8x256xf32> to vector<16x256xf32>
    %391 = arith.truncf %390 : vector<16x256xf32> to vector<16x256xbf16>
    %c1_145 = arith.constant 1 : index
    %c0_146 = arith.constant 0 : index
    %c128_147 = arith.constant 128 : index
    %392 = vector.load %arg4[%c1_145, %c0_146, %c128_147] : memref<3x256x384xbf16, #tpu.memory_space<vmem>>, vector<1x256x128xbf16>
    %393 = vector.shape_cast %392 : vector<1x256x128xbf16> to vector<256x128xbf16>
    %cst_148 = arith.constant dense<0.000000e+00> : vector<16x128xf32>
    %394 = tpu.matmul %391, %393, %cst_148 {dimension_numbers = #tpu.dot_dimension_numbers<[1], [0], [0], [1], [0, 0, 1, 1], [], []>} : vector<16x256xbf16>, vector<256x128xbf16>, vector<16x128xf32> -> vector<16x128xf32>
    %c1_149 = arith.constant 1 : index
    %c0_150 = arith.constant 0 : index
    %c1920_151 = arith.constant 1920 : index
    %395 = vector.load %arg5[%c1_149, %c0_150, %c1920_151] : memref<3x1x2944xf32, #tpu.memory_space<vmem>>, vector<1x1x128xf32>
    %396 = vector.shape_cast %395 : vector<1x1x128xf32> to vector<1x128xf32>
    %397 = vector.broadcast %396 : vector<1x128xf32> to vector<16x128xf32>
    %398 = arith.addf %394, %397 : vector<16x128xf32>
    %399 = arith.addf %331, %398 : vector<16x128xf32>
    %c1_152 = arith.constant 1 : index
    %c0_153 = arith.constant 0 : index
    %c2432_154 = arith.constant 2432 : index
    %400 = vector.load %arg5[%c1_152, %c0_153, %c2432_154] : memref<3x1x2944xf32, #tpu.memory_space<vmem>>, vector<1x1x128xf32>
    %401 = vector.shape_cast %400 : vector<1x1x128xf32> to vector<1x128xf32>
    %c1_155 = arith.constant 1 : index
    %c0_156 = arith.constant 0 : index
    %c2560_157 = arith.constant 2560 : index
    %402 = vector.load %arg5[%c1_155, %c0_156, %c2560_157] : memref<3x1x2944xf32, #tpu.memory_space<vmem>>, vector<1x1x128xf32>
    %403 = vector.shape_cast %402 : vector<1x1x128xf32> to vector<1x128xf32>
    %cst_158 = arith.constant dense<0.000000e+00> : vector<16xf32>
    %404 = vector.multi_reduction <add>, %399, %cst_158 [1] : vector<16x128xf32> to vector<16xf32>
    %405 = vector.shape_cast %404 : vector<16xf32> to vector<16x1xf32>
    %cst_159 = arith.constant 1.280000e+02 : f32
    %406 = vector.broadcast %cst_159 : f32 to vector<16x1xf32>
    %407 = arith.divf %405, %406 : vector<16x1xf32>
    %408 = vector.broadcast %407 : vector<16x1xf32> to vector<16x128xf32>
    %409 = arith.subf %399, %408 : vector<16x128xf32>
    %410 = arith.mulf %409, %409 : vector<16x128xf32>
    %cst_160 = arith.constant dense<0.000000e+00> : vector<16xf32>
    %411 = vector.multi_reduction <add>, %410, %cst_160 [1] : vector<16x128xf32> to vector<16xf32>
    %412 = vector.shape_cast %411 : vector<16xf32> to vector<16x1xf32>
    %cst_161 = arith.constant 1.280000e+02 : f32
    %413 = vector.broadcast %cst_161 : f32 to vector<16x1xf32>
    %414 = arith.divf %412, %413 : vector<16x1xf32>
    %cst_162 = arith.constant 9.99999974E-6 : f32
    %415 = vector.broadcast %cst_162 : f32 to vector<16x1xf32>
    %416 = arith.addf %414, %415 : vector<16x1xf32>
    %417 = math.rsqrt %416 : vector<16x1xf32>
    %418 = vector.broadcast %417 : vector<16x1xf32> to vector<16x128xf32>
    %419 = arith.mulf %409, %418 : vector<16x128xf32>
    %420 = vector.broadcast %401 : vector<1x128xf32> to vector<16x128xf32>
    %421 = arith.mulf %419, %420 : vector<16x128xf32>
    %422 = vector.broadcast %403 : vector<1x128xf32> to vector<16x128xf32>
    %423 = arith.addf %421, %422 : vector<16x128xf32>
    %424 = arith.truncf %423 : vector<16x128xf32> to vector<16x128xbf16>
    %c1_163 = arith.constant 1 : index
    %c0_164 = arith.constant 0 : index
    %c1536_165 = arith.constant 1536 : index
    %425 = vector.load %arg3[%c1_163, %c0_164, %c1536_165] : memref<3x128x1792xbf16, #tpu.memory_space<vmem>>, vector<1x128x256xbf16>
    %426 = vector.shape_cast %425 : vector<1x128x256xbf16> to vector<128x256xbf16>
    %cst_166 = arith.constant dense<0.000000e+00> : vector<16x256xf32>
    %427 = tpu.matmul %424, %426, %cst_166 {dimension_numbers = #tpu.dot_dimension_numbers<[1], [0], [0], [1], [0, 0, 1, 1], [], []>} : vector<16x128xbf16>, vector<128x256xbf16>, vector<16x256xf32> -> vector<16x256xf32>
    %c1_167 = arith.constant 1 : index
    %c0_168 = arith.constant 0 : index
    %c1536_169 = arith.constant 1536 : index
    %428 = vector.load %arg5[%c1_167, %c0_168, %c1536_169] : memref<3x1x2944xf32, #tpu.memory_space<vmem>>, vector<1x1x256xf32>
    %429 = vector.shape_cast %428 : vector<1x1x256xf32> to vector<1x256xf32>
    %430 = vector.broadcast %429 : vector<1x256xf32> to vector<16x256xf32>
    %431 = arith.addf %427, %430 : vector<16x256xf32>
    %cst_170 = arith.constant 0.000000e+00 : f32
    %432 = vector.broadcast %cst_170 : f32 to vector<16x256xf32>
    %433 = arith.maximumf %431, %432 : vector<16x256xf32>
    %434 = arith.truncf %433 : vector<16x256xf32> to vector<16x256xbf16>
    %c1_171 = arith.constant 1 : index
    %c0_172 = arith.constant 0 : index
    %c256_173 = arith.constant 256 : index
    %435 = vector.load %arg4[%c1_171, %c0_172, %c256_173] : memref<3x256x384xbf16, #tpu.memory_space<vmem>>, vector<1x256x128xbf16>
    %436 = vector.shape_cast %435 : vector<1x256x128xbf16> to vector<256x128xbf16>
    %cst_174 = arith.constant dense<0.000000e+00> : vector<16x128xf32>
    %437 = tpu.matmul %434, %436, %cst_174 {dimension_numbers = #tpu.dot_dimension_numbers<[1], [0], [0], [1], [0, 0, 1, 1], [], []>} : vector<16x256xbf16>, vector<256x128xbf16>, vector<16x128xf32> -> vector<16x128xf32>
    %c1_175 = arith.constant 1 : index
    %c0_176 = arith.constant 0 : index
    %c2048_177 = arith.constant 2048 : index
    %438 = vector.load %arg5[%c1_175, %c0_176, %c2048_177] : memref<3x1x2944xf32, #tpu.memory_space<vmem>>, vector<1x1x128xf32>
    %439 = vector.shape_cast %438 : vector<1x1x128xf32> to vector<1x128xf32>
    %440 = vector.broadcast %439 : vector<1x128xf32> to vector<16x128xf32>
    %441 = arith.addf %437, %440 : vector<16x128xf32>
    %442 = arith.addf %423, %441 : vector<16x128xf32>
    %c1_178 = arith.constant 1 : index
    %c0_179 = arith.constant 0 : index
    %c2688_180 = arith.constant 2688 : index
    %443 = vector.load %arg5[%c1_178, %c0_179, %c2688_180] : memref<3x1x2944xf32, #tpu.memory_space<vmem>>, vector<1x1x128xf32>
    %444 = vector.shape_cast %443 : vector<1x1x128xf32> to vector<1x128xf32>
    %c1_181 = arith.constant 1 : index
    %c0_182 = arith.constant 0 : index
    %c2816_183 = arith.constant 2816 : index
    %445 = vector.load %arg5[%c1_181, %c0_182, %c2816_183] : memref<3x1x2944xf32, #tpu.memory_space<vmem>>, vector<1x1x128xf32>
    %446 = vector.shape_cast %445 : vector<1x1x128xf32> to vector<1x128xf32>
    %cst_184 = arith.constant dense<0.000000e+00> : vector<16xf32>
    %447 = vector.multi_reduction <add>, %442, %cst_184 [1] : vector<16x128xf32> to vector<16xf32>
    %448 = vector.shape_cast %447 : vector<16xf32> to vector<16x1xf32>
    %cst_185 = arith.constant 1.280000e+02 : f32
    %449 = vector.broadcast %cst_185 : f32 to vector<16x1xf32>
    %450 = arith.divf %448, %449 : vector<16x1xf32>
    %451 = vector.broadcast %450 : vector<16x1xf32> to vector<16x128xf32>
    %452 = arith.subf %442, %451 : vector<16x128xf32>
    %453 = arith.mulf %452, %452 : vector<16x128xf32>
    %cst_186 = arith.constant dense<0.000000e+00> : vector<16xf32>
    %454 = vector.multi_reduction <add>, %453, %cst_186 [1] : vector<16x128xf32> to vector<16xf32>
    %455 = vector.shape_cast %454 : vector<16xf32> to vector<16x1xf32>
    %cst_187 = arith.constant 1.280000e+02 : f32
    %456 = vector.broadcast %cst_187 : f32 to vector<16x1xf32>
    %457 = arith.divf %455, %456 : vector<16x1xf32>
    %cst_188 = arith.constant 9.99999974E-6 : f32
    %458 = vector.broadcast %cst_188 : f32 to vector<16x1xf32>
    %459 = arith.addf %457, %458 : vector<16x1xf32>
    %460 = math.rsqrt %459 : vector<16x1xf32>
    %461 = vector.broadcast %460 : vector<16x1xf32> to vector<16x128xf32>
    %462 = arith.mulf %452, %461 : vector<16x128xf32>
    %463 = vector.broadcast %444 : vector<1x128xf32> to vector<16x128xf32>
    %464 = arith.mulf %462, %463 : vector<16x128xf32>
    %465 = vector.broadcast %446 : vector<1x128xf32> to vector<16x128xf32>
    %466 = arith.addf %464, %465 : vector<16x128xf32>
    %467 = arith.truncf %466 : vector<16x128xf32> to vector<16x128xbf16>
    %c2 = arith.constant 2 : index
    %c0_189 = arith.constant 0 : index
    %c0_190 = arith.constant 0 : index
    %468 = vector.load %arg3[%c2, %c0_189, %c0_190] : memref<3x128x1792xbf16, #tpu.memory_space<vmem>>, vector<1x128x768xbf16>
    %469 = vector.shape_cast %468 : vector<1x128x768xbf16> to vector<128x768xbf16>
    %cst_191 = arith.constant dense<0.000000e+00> : vector<16x768xf32>
    %470 = tpu.matmul %467, %469, %cst_191 {dimension_numbers = #tpu.dot_dimension_numbers<[1], [0], [0], [1], [0, 0, 1, 1], [], []>} : vector<16x128xbf16>, vector<128x768xbf16>, vector<16x768xf32> -> vector<16x768xf32>
    %c2_192 = arith.constant 2 : index
    %c0_193 = arith.constant 0 : index
    %c0_194 = arith.constant 0 : index
    %471 = vector.load %arg5[%c2_192, %c0_193, %c0_194] : memref<3x1x2944xf32, #tpu.memory_space<vmem>>, vector<1x1x768xf32>
    %472 = vector.shape_cast %471 : vector<1x1x768xf32> to vector<1x768xf32>
    %473 = vector.broadcast %472 : vector<1x768xf32> to vector<16x768xf32>
    %474 = arith.addf %470, %473 : vector<16x768xf32>
    %475 = vector.extract_strided_slice %474 {offsets = [0, 0], sizes = [16, 256], strides = [1, 1]} : vector<16x768xf32> to vector<16x256xf32>
    %476 = vector.shape_cast %475 : vector<16x256xf32> to vector<2x8x256xf32>
    %477 = vector.extract_strided_slice %474 {offsets = [0, 256], sizes = [16, 256], strides = [1, 1]} : vector<16x768xf32> to vector<16x256xf32>
    %478 = vector.shape_cast %477 : vector<16x256xf32> to vector<2x8x256xf32>
    %479 = vector.extract_strided_slice %474 {offsets = [0, 512], sizes = [16, 256], strides = [1, 1]} : vector<16x768xf32> to vector<16x256xf32>
    %480 = vector.shape_cast %479 : vector<16x256xf32> to vector<2x8x256xf32>
    %481 = vector.extract_strided_slice %476 {offsets = [0, 0, 0], sizes = [2, 8, 128], strides = [1, 1, 1]} : vector<2x8x256xf32> to vector<2x8x128xf32>
    %482 = arith.truncf %481 : vector<2x8x128xf32> to vector<2x8x128xbf16>
    %483 = vector.extract_strided_slice %478 {offsets = [0, 0, 0], sizes = [2, 8, 128], strides = [1, 1, 1]} : vector<2x8x256xf32> to vector<2x8x128xf32>
    %484 = arith.truncf %483 : vector<2x8x128xf32> to vector<2x8x128xbf16>
    %485 = vector.extract_strided_slice %480 {offsets = [0, 0, 0], sizes = [2, 8, 128], strides = [1, 1, 1]} : vector<2x8x256xf32> to vector<2x8x128xf32>
    %486 = arith.truncf %485 : vector<2x8x128xf32> to vector<2x8x128xbf16>
    "tpu.trace_start"() <{level = 10 : i32, message = "bqd,bkd->bqk"}> : () -> ()
    %cst_195 = arith.constant dense<0.000000e+00> : vector<2x8x8xf32>
    %487 = tpu.matmul %482, %484, %cst_195 {dimension_numbers = #tpu.dot_dimension_numbers<[2], [2], [1], [1], [0, 0, 0, 1, 1, 1], [0], [0]>} : vector<2x8x128xbf16>, vector<2x8x128xbf16>, vector<2x8x8xf32> -> vector<2x8x8xf32>
    "tpu.trace_stop"() : () -> ()
    %488 = vector.shape_cast %10 : vector<8x8xf32> to vector<1x8x8xf32>
    %489 = vector.broadcast %488 : vector<1x8x8xf32> to vector<2x8x8xf32>
    %490 = arith.addf %487, %489 : vector<2x8x8xf32>
    %cst_196 = arith.constant dense<0xFF800000> : vector<2x8xf32>
    %491 = vector.multi_reduction <maximumf>, %490, %cst_196 [2] : vector<2x8x8xf32> to vector<2x8xf32>
    %492 = vector.shape_cast %491 : vector<2x8xf32> to vector<2x8x1xf32>
    %493 = vector.broadcast %492 : vector<2x8x1xf32> to vector<2x8x8xf32>
    %494 = arith.subf %490, %493 : vector<2x8x8xf32>
    %495 = math.exp %494 : vector<2x8x8xf32>
    %cst_197 = arith.constant dense<0.000000e+00> : vector<2x8xf32>
    %496 = vector.multi_reduction <add>, %495, %cst_197 [2] : vector<2x8x8xf32> to vector<2x8xf32>
    %497 = vector.shape_cast %496 : vector<2x8xf32> to vector<2x8x1xf32>
    %498 = tpu.reciprocal %497 {approx = true} : vector<2x8x1xf32> -> vector<2x8x1xf32>
    %499 = vector.broadcast %498 : vector<2x8x1xf32> to vector<2x8x8xf32>
    %500 = arith.mulf %495, %499 : vector<2x8x8xf32>
    %501 = arith.truncf %500 : vector<2x8x8xf32> to vector<2x8x8xbf16>
    "tpu.trace_start"() <{level = 10 : i32, message = "bqk,bkd->bqd"}> : () -> ()
    %cst_198 = arith.constant dense<0.000000e+00> : vector<2x8x128xf32>
    %502 = tpu.matmul %501, %486, %cst_198 {dimension_numbers = #tpu.dot_dimension_numbers<[2], [1], [1], [2], [0, 0, 0, 1, 1, 2], [0], [0]>} : vector<2x8x8xbf16>, vector<2x8x128xbf16>, vector<2x8x128xf32> -> vector<2x8x128xf32>
    "tpu.trace_stop"() : () -> ()
    %503 = vector.extract_strided_slice %476 {offsets = [0, 0, 128], sizes = [2, 8, 128], strides = [1, 1, 1]} : vector<2x8x256xf32> to vector<2x8x128xf32>
    %504 = arith.truncf %503 : vector<2x8x128xf32> to vector<2x8x128xbf16>
    %505 = vector.extract_strided_slice %478 {offsets = [0, 0, 128], sizes = [2, 8, 128], strides = [1, 1, 1]} : vector<2x8x256xf32> to vector<2x8x128xf32>
    %506 = arith.truncf %505 : vector<2x8x128xf32> to vector<2x8x128xbf16>
    %507 = vector.extract_strided_slice %480 {offsets = [0, 0, 128], sizes = [2, 8, 128], strides = [1, 1, 1]} : vector<2x8x256xf32> to vector<2x8x128xf32>
    %508 = arith.truncf %507 : vector<2x8x128xf32> to vector<2x8x128xbf16>
    "tpu.trace_start"() <{level = 10 : i32, message = "bqd,bkd->bqk"}> : () -> ()
    %cst_199 = arith.constant dense<0.000000e+00> : vector<2x8x8xf32>
    %509 = tpu.matmul %504, %506, %cst_199 {dimension_numbers = #tpu.dot_dimension_numbers<[2], [2], [1], [1], [0, 0, 0, 1, 1, 1], [0], [0]>} : vector<2x8x128xbf16>, vector<2x8x128xbf16>, vector<2x8x8xf32> -> vector<2x8x8xf32>
    "tpu.trace_stop"() : () -> ()
    %510 = vector.shape_cast %10 : vector<8x8xf32> to vector<1x8x8xf32>
    %511 = vector.broadcast %510 : vector<1x8x8xf32> to vector<2x8x8xf32>
    %512 = arith.addf %509, %511 : vector<2x8x8xf32>
    %cst_200 = arith.constant dense<0xFF800000> : vector<2x8xf32>
    %513 = vector.multi_reduction <maximumf>, %512, %cst_200 [2] : vector<2x8x8xf32> to vector<2x8xf32>
    %514 = vector.shape_cast %513 : vector<2x8xf32> to vector<2x8x1xf32>
    %515 = vector.broadcast %514 : vector<2x8x1xf32> to vector<2x8x8xf32>
    %516 = arith.subf %512, %515 : vector<2x8x8xf32>
    %517 = math.exp %516 : vector<2x8x8xf32>
    %cst_201 = arith.constant dense<0.000000e+00> : vector<2x8xf32>
    %518 = vector.multi_reduction <add>, %517, %cst_201 [2] : vector<2x8x8xf32> to vector<2x8xf32>
    %519 = vector.shape_cast %518 : vector<2x8xf32> to vector<2x8x1xf32>
    %520 = tpu.reciprocal %519 {approx = true} : vector<2x8x1xf32> -> vector<2x8x1xf32>
    %521 = vector.broadcast %520 : vector<2x8x1xf32> to vector<2x8x8xf32>
    %522 = arith.mulf %517, %521 : vector<2x8x8xf32>
    %523 = arith.truncf %522 : vector<2x8x8xf32> to vector<2x8x8xbf16>
    "tpu.trace_start"() <{level = 10 : i32, message = "bqk,bkd->bqd"}> : () -> ()
    %cst_202 = arith.constant dense<0.000000e+00> : vector<2x8x128xf32>
    %524 = tpu.matmul %523, %508, %cst_202 {dimension_numbers = #tpu.dot_dimension_numbers<[2], [1], [1], [2], [0, 0, 0, 1, 1, 2], [0], [0]>} : vector<2x8x8xbf16>, vector<2x8x128xbf16>, vector<2x8x128xf32> -> vector<2x8x128xf32>
    "tpu.trace_stop"() : () -> ()
    %525 = tpu.concatenate %502, %524 in 2 : vector<2x8x128xf32>, vector<2x8x128xf32> -> vector<2x8x256xf32>
    %526 = vector.shape_cast %525 : vector<2x8x256xf32> to vector<16x256xf32>
    %527 = arith.truncf %526 : vector<16x256xf32> to vector<16x256xbf16>
    %c2_203 = arith.constant 2 : index
    %c0_204 = arith.constant 0 : index
    %c0_205 = arith.constant 0 : index
    %528 = vector.load %arg4[%c2_203, %c0_204, %c0_205] : memref<3x256x384xbf16, #tpu.memory_space<vmem>>, vector<1x256x128xbf16>
    %529 = vector.shape_cast %528 : vector<1x256x128xbf16> to vector<256x128xbf16>
    %cst_206 = arith.constant dense<0.000000e+00> : vector<16x128xf32>
    %530 = tpu.matmul %527, %529, %cst_206 {dimension_numbers = #tpu.dot_dimension_numbers<[1], [0], [0], [1], [0, 0, 1, 1], [], []>} : vector<16x256xbf16>, vector<256x128xbf16>, vector<16x128xf32> -> vector<16x128xf32>
    %c2_207 = arith.constant 2 : index
    %c0_208 = arith.constant 0 : index
    %c1792_209 = arith.constant 1792 : index
    %531 = vector.load %arg5[%c2_207, %c0_208, %c1792_209] : memref<3x1x2944xf32, #tpu.memory_space<vmem>>, vector<1x1x128xf32>
    %532 = vector.shape_cast %531 : vector<1x1x128xf32> to vector<1x128xf32>
    %533 = vector.broadcast %532 : vector<1x128xf32> to vector<16x128xf32>
    %534 = arith.addf %530, %533 : vector<16x128xf32>
    %535 = arith.addf %466, %534 : vector<16x128xf32>
    %c2_210 = arith.constant 2 : index
    %c0_211 = arith.constant 0 : index
    %c2176_212 = arith.constant 2176 : index
    %536 = vector.load %arg5[%c2_210, %c0_211, %c2176_212] : memref<3x1x2944xf32, #tpu.memory_space<vmem>>, vector<1x1x128xf32>
    %537 = vector.shape_cast %536 : vector<1x1x128xf32> to vector<1x128xf32>
    %c2_213 = arith.constant 2 : index
    %c0_214 = arith.constant 0 : index
    %c2304_215 = arith.constant 2304 : index
    %538 = vector.load %arg5[%c2_213, %c0_214, %c2304_215] : memref<3x1x2944xf32, #tpu.memory_space<vmem>>, vector<1x1x128xf32>
    %539 = vector.shape_cast %538 : vector<1x1x128xf32> to vector<1x128xf32>
    %cst_216 = arith.constant dense<0.000000e+00> : vector<16xf32>
    %540 = vector.multi_reduction <add>, %535, %cst_216 [1] : vector<16x128xf32> to vector<16xf32>
    %541 = vector.shape_cast %540 : vector<16xf32> to vector<16x1xf32>
    %cst_217 = arith.constant 1.280000e+02 : f32
    %542 = vector.broadcast %cst_217 : f32 to vector<16x1xf32>
    %543 = arith.divf %541, %542 : vector<16x1xf32>
    %544 = vector.broadcast %543 : vector<16x1xf32> to vector<16x128xf32>
    %545 = arith.subf %535, %544 : vector<16x128xf32>
    %546 = arith.mulf %545, %545 : vector<16x128xf32>
    %cst_218 = arith.constant dense<0.000000e+00> : vector<16xf32>
    %547 = vector.multi_reduction <add>, %546, %cst_218 [1] : vector<16x128xf32> to vector<16xf32>
    %548 = vector.shape_cast %547 : vector<16xf32> to vector<16x1xf32>
    %cst_219 = arith.constant 1.280000e+02 : f32
    %549 = vector.broadcast %cst_219 : f32 to vector<16x1xf32>
    %550 = arith.divf %548, %549 : vector<16x1xf32>
    %cst_220 = arith.constant 9.99999974E-6 : f32
    %551 = vector.broadcast %cst_220 : f32 to vector<16x1xf32>
    %552 = arith.addf %550, %551 : vector<16x1xf32>
    %553 = math.rsqrt %552 : vector<16x1xf32>
    %554 = vector.broadcast %553 : vector<16x1xf32> to vector<16x128xf32>
    %555 = arith.mulf %545, %554 : vector<16x128xf32>
    %556 = vector.broadcast %537 : vector<1x128xf32> to vector<16x128xf32>
    %557 = arith.mulf %555, %556 : vector<16x128xf32>
    %558 = vector.broadcast %539 : vector<1x128xf32> to vector<16x128xf32>
    %559 = arith.addf %557, %558 : vector<16x128xf32>
    %560 = arith.truncf %559 : vector<16x128xf32> to vector<16x128xbf16>
    %c2_221 = arith.constant 2 : index
    %c0_222 = arith.constant 0 : index
    %c768_223 = arith.constant 768 : index
    %561 = vector.load %arg3[%c2_221, %c0_222, %c768_223] : memref<3x128x1792xbf16, #tpu.memory_space<vmem>>, vector<1x128x256xbf16>
    %562 = vector.shape_cast %561 : vector<1x128x256xbf16> to vector<128x256xbf16>
    %cst_224 = arith.constant dense<0.000000e+00> : vector<16x256xf32>
    %563 = tpu.matmul %560, %562, %cst_224 {dimension_numbers = #tpu.dot_dimension_numbers<[1], [0], [0], [1], [0, 0, 1, 1], [], []>} : vector<16x128xbf16>, vector<128x256xbf16>, vector<16x256xf32> -> vector<16x256xf32>
    %c2_225 = arith.constant 2 : index
    %c0_226 = arith.constant 0 : index
    %c768_227 = arith.constant 768 : index
    %564 = vector.load %arg5[%c2_225, %c0_226, %c768_227] : memref<3x1x2944xf32, #tpu.memory_space<vmem>>, vector<1x1x256xf32>
    %565 = vector.shape_cast %564 : vector<1x1x256xf32> to vector<1x256xf32>
    %566 = vector.broadcast %565 : vector<1x256xf32> to vector<16x256xf32>
    %567 = arith.addf %563, %566 : vector<16x256xf32>
    %c2_228 = arith.constant 2 : index
    %c0_229 = arith.constant 0 : index
    %c1024_230 = arith.constant 1024 : index
    %568 = vector.load %arg3[%c2_228, %c0_229, %c1024_230] : memref<3x128x1792xbf16, #tpu.memory_space<vmem>>, vector<1x128x512xbf16>
    %569 = vector.shape_cast %568 : vector<1x128x512xbf16> to vector<128x512xbf16>
    %cst_231 = arith.constant dense<0.000000e+00> : vector<32x512xf32>
    %570 = tpu.matmul %4, %569, %cst_231 {dimension_numbers = #tpu.dot_dimension_numbers<[1], [0], [0], [1], [0, 0, 1, 1], [], []>} : vector<32x128xbf16>, vector<128x512xbf16>, vector<32x512xf32> -> vector<32x512xf32>
    %c2_232 = arith.constant 2 : index
    %c0_233 = arith.constant 0 : index
    %c1024_234 = arith.constant 1024 : index
    %571 = vector.load %arg5[%c2_232, %c0_233, %c1024_234] : memref<3x1x2944xf32, #tpu.memory_space<vmem>>, vector<1x1x512xf32>
    %572 = vector.shape_cast %571 : vector<1x1x512xf32> to vector<1x512xf32>
    %573 = vector.broadcast %572 : vector<1x512xf32> to vector<32x512xf32>
    %574 = arith.addf %570, %573 : vector<32x512xf32>
    %575 = vector.shape_cast %567 : vector<16x256xf32> to vector<2x8x256xf32>
    %576 = vector.shape_cast %574 : vector<32x512xf32> to vector<2x16x512xf32>
    %577 = vector.extract_strided_slice %576 {offsets = [0, 0, 0], sizes = [2, 16, 256], strides = [1, 1, 1]} : vector<2x16x512xf32> to vector<2x16x256xf32>
    %578 = vector.extract_strided_slice %576 {offsets = [0, 0, 256], sizes = [2, 16, 256], strides = [1, 1, 1]} : vector<2x16x512xf32> to vector<2x16x256xf32>
    %579 = vector.extract_strided_slice %575 {offsets = [0, 0, 0], sizes = [2, 8, 128], strides = [1, 1, 1]} : vector<2x8x256xf32> to vector<2x8x128xf32>
    %580 = arith.truncf %579 : vector<2x8x128xf32> to vector<2x8x128xbf16>
    %581 = vector.extract_strided_slice %577 {offsets = [0, 0, 0], sizes = [2, 16, 128], strides = [1, 1, 1]} : vector<2x16x256xf32> to vector<2x16x128xf32>
    %582 = arith.truncf %581 : vector<2x16x128xf32> to vector<2x16x128xbf16>
    %583 = vector.extract_strided_slice %578 {offsets = [0, 0, 0], sizes = [2, 16, 128], strides = [1, 1, 1]} : vector<2x16x256xf32> to vector<2x16x128xf32>
    %584 = arith.truncf %583 : vector<2x16x128xf32> to vector<2x16x128xbf16>
    "tpu.trace_start"() <{level = 10 : i32, message = "bqd,bkd->bqk"}> : () -> ()
    %cst_235 = arith.constant dense<0.000000e+00> : vector<2x8x16xf32>
    %585 = tpu.matmul %580, %582, %cst_235 {dimension_numbers = #tpu.dot_dimension_numbers<[2], [2], [1], [1], [0, 0, 0, 1, 1, 1], [0], [0]>} : vector<2x8x128xbf16>, vector<2x16x128xbf16>, vector<2x8x16xf32> -> vector<2x8x16xf32>
    "tpu.trace_stop"() : () -> ()
    %cst_236 = arith.constant dense<0xFF800000> : vector<2x8xf32>
    %586 = vector.multi_reduction <maximumf>, %585, %cst_236 [2] : vector<2x8x16xf32> to vector<2x8xf32>
    %587 = vector.shape_cast %586 : vector<2x8xf32> to vector<2x8x1xf32>
    %588 = vector.broadcast %587 : vector<2x8x1xf32> to vector<2x8x16xf32>
    %589 = arith.subf %585, %588 : vector<2x8x16xf32>
    %590 = math.exp %589 : vector<2x8x16xf32>
    %cst_237 = arith.constant dense<0.000000e+00> : vector<2x8xf32>
    %591 = vector.multi_reduction <add>, %590, %cst_237 [2] : vector<2x8x16xf32> to vector<2x8xf32>
    %592 = vector.shape_cast %591 : vector<2x8xf32> to vector<2x8x1xf32>
    %593 = tpu.reciprocal %592 {approx = true} : vector<2x8x1xf32> -> vector<2x8x1xf32>
    %594 = vector.broadcast %593 : vector<2x8x1xf32> to vector<2x8x16xf32>
    %595 = arith.mulf %590, %594 : vector<2x8x16xf32>
    %596 = arith.truncf %595 : vector<2x8x16xf32> to vector<2x8x16xbf16>
    "tpu.trace_start"() <{level = 10 : i32, message = "bqk,bkd->bqd"}> : () -> ()
    %cst_238 = arith.constant dense<0.000000e+00> : vector<2x8x128xf32>
    %597 = tpu.matmul %596, %584, %cst_238 {dimension_numbers = #tpu.dot_dimension_numbers<[2], [1], [1], [2], [0, 0, 0, 1, 1, 2], [0], [0]>} : vector<2x8x16xbf16>, vector<2x16x128xbf16>, vector<2x8x128xf32> -> vector<2x8x128xf32>
    "tpu.trace_stop"() : () -> ()
    %598 = vector.extract_strided_slice %575 {offsets = [0, 0, 128], sizes = [2, 8, 128], strides = [1, 1, 1]} : vector<2x8x256xf32> to vector<2x8x128xf32>
    %599 = arith.truncf %598 : vector<2x8x128xf32> to vector<2x8x128xbf16>
    %600 = vector.extract_strided_slice %577 {offsets = [0, 0, 128], sizes = [2, 16, 128], strides = [1, 1, 1]} : vector<2x16x256xf32> to vector<2x16x128xf32>
    %601 = arith.truncf %600 : vector<2x16x128xf32> to vector<2x16x128xbf16>
    %602 = vector.extract_strided_slice %578 {offsets = [0, 0, 128], sizes = [2, 16, 128], strides = [1, 1, 1]} : vector<2x16x256xf32> to vector<2x16x128xf32>
    %603 = arith.truncf %602 : vector<2x16x128xf32> to vector<2x16x128xbf16>
    "tpu.trace_start"() <{level = 10 : i32, message = "bqd,bkd->bqk"}> : () -> ()
    %cst_239 = arith.constant dense<0.000000e+00> : vector<2x8x16xf32>
    %604 = tpu.matmul %599, %601, %cst_239 {dimension_numbers = #tpu.dot_dimension_numbers<[2], [2], [1], [1], [0, 0, 0, 1, 1, 1], [0], [0]>} : vector<2x8x128xbf16>, vector<2x16x128xbf16>, vector<2x8x16xf32> -> vector<2x8x16xf32>
    "tpu.trace_stop"() : () -> ()
    %cst_240 = arith.constant dense<0xFF800000> : vector<2x8xf32>
    %605 = vector.multi_reduction <maximumf>, %604, %cst_240 [2] : vector<2x8x16xf32> to vector<2x8xf32>
    %606 = vector.shape_cast %605 : vector<2x8xf32> to vector<2x8x1xf32>
    %607 = vector.broadcast %606 : vector<2x8x1xf32> to vector<2x8x16xf32>
    %608 = arith.subf %604, %607 : vector<2x8x16xf32>
    %609 = math.exp %608 : vector<2x8x16xf32>
    %cst_241 = arith.constant dense<0.000000e+00> : vector<2x8xf32>
    %610 = vector.multi_reduction <add>, %609, %cst_241 [2] : vector<2x8x16xf32> to vector<2x8xf32>
    %611 = vector.shape_cast %610 : vector<2x8xf32> to vector<2x8x1xf32>
    %612 = tpu.reciprocal %611 {approx = true} : vector<2x8x1xf32> -> vector<2x8x1xf32>
    %613 = vector.broadcast %612 : vector<2x8x1xf32> to vector<2x8x16xf32>
    %614 = arith.mulf %609, %613 : vector<2x8x16xf32>
    %615 = arith.truncf %614 : vector<2x8x16xf32> to vector<2x8x16xbf16>
    "tpu.trace_start"() <{level = 10 : i32, message = "bqk,bkd->bqd"}> : () -> ()
    %cst_242 = arith.constant dense<0.000000e+00> : vector<2x8x128xf32>
    %616 = tpu.matmul %615, %603, %cst_242 {dimension_numbers = #tpu.dot_dimension_numbers<[2], [1], [1], [2], [0, 0, 0, 1, 1, 2], [0], [0]>} : vector<2x8x16xbf16>, vector<2x16x128xbf16>, vector<2x8x128xf32> -> vector<2x8x128xf32>
    "tpu.trace_stop"() : () -> ()
    %617 = tpu.concatenate %597, %616 in 2 : vector<2x8x128xf32>, vector<2x8x128xf32> -> vector<2x8x256xf32>
    %618 = vector.shape_cast %617 : vector<2x8x256xf32> to vector<16x256xf32>
    %619 = arith.truncf %618 : vector<16x256xf32> to vector<16x256xbf16>
    %c2_243 = arith.constant 2 : index
    %c0_244 = arith.constant 0 : index
    %c128_245 = arith.constant 128 : index
    %620 = vector.load %arg4[%c2_243, %c0_244, %c128_245] : memref<3x256x384xbf16, #tpu.memory_space<vmem>>, vector<1x256x128xbf16>
    %621 = vector.shape_cast %620 : vector<1x256x128xbf16> to vector<256x128xbf16>
    %cst_246 = arith.constant dense<0.000000e+00> : vector<16x128xf32>
    %622 = tpu.matmul %619, %621, %cst_246 {dimension_numbers = #tpu.dot_dimension_numbers<[1], [0], [0], [1], [0, 0, 1, 1], [], []>} : vector<16x256xbf16>, vector<256x128xbf16>, vector<16x128xf32> -> vector<16x128xf32>
    %c2_247 = arith.constant 2 : index
    %c0_248 = arith.constant 0 : index
    %c1920_249 = arith.constant 1920 : index
    %623 = vector.load %arg5[%c2_247, %c0_248, %c1920_249] : memref<3x1x2944xf32, #tpu.memory_space<vmem>>, vector<1x1x128xf32>
    %624 = vector.shape_cast %623 : vector<1x1x128xf32> to vector<1x128xf32>
    %625 = vector.broadcast %624 : vector<1x128xf32> to vector<16x128xf32>
    %626 = arith.addf %622, %625 : vector<16x128xf32>
    %627 = arith.addf %559, %626 : vector<16x128xf32>
    %c2_250 = arith.constant 2 : index
    %c0_251 = arith.constant 0 : index
    %c2432_252 = arith.constant 2432 : index
    %628 = vector.load %arg5[%c2_250, %c0_251, %c2432_252] : memref<3x1x2944xf32, #tpu.memory_space<vmem>>, vector<1x1x128xf32>
    %629 = vector.shape_cast %628 : vector<1x1x128xf32> to vector<1x128xf32>
    %c2_253 = arith.constant 2 : index
    %c0_254 = arith.constant 0 : index
    %c2560_255 = arith.constant 2560 : index
    %630 = vector.load %arg5[%c2_253, %c0_254, %c2560_255] : memref<3x1x2944xf32, #tpu.memory_space<vmem>>, vector<1x1x128xf32>
    %631 = vector.shape_cast %630 : vector<1x1x128xf32> to vector<1x128xf32>
    %cst_256 = arith.constant dense<0.000000e+00> : vector<16xf32>
    %632 = vector.multi_reduction <add>, %627, %cst_256 [1] : vector<16x128xf32> to vector<16xf32>
    %633 = vector.shape_cast %632 : vector<16xf32> to vector<16x1xf32>
    %cst_257 = arith.constant 1.280000e+02 : f32
    %634 = vector.broadcast %cst_257 : f32 to vector<16x1xf32>
    %635 = arith.divf %633, %634 : vector<16x1xf32>
    %636 = vector.broadcast %635 : vector<16x1xf32> to vector<16x128xf32>
    %637 = arith.subf %627, %636 : vector<16x128xf32>
    %638 = arith.mulf %637, %637 : vector<16x128xf32>
    %cst_258 = arith.constant dense<0.000000e+00> : vector<16xf32>
    %639 = vector.multi_reduction <add>, %638, %cst_258 [1] : vector<16x128xf32> to vector<16xf32>
    %640 = vector.shape_cast %639 : vector<16xf32> to vector<16x1xf32>
    %cst_259 = arith.constant 1.280000e+02 : f32
    %641 = vector.broadcast %cst_259 : f32 to vector<16x1xf32>
    %642 = arith.divf %640, %641 : vector<16x1xf32>
    %cst_260 = arith.constant 9.99999974E-6 : f32
    %643 = vector.broadcast %cst_260 : f32 to vector<16x1xf32>
    %644 = arith.addf %642, %643 : vector<16x1xf32>
    %645 = math.rsqrt %644 : vector<16x1xf32>
    %646 = vector.broadcast %645 : vector<16x1xf32> to vector<16x128xf32>
    %647 = arith.mulf %637, %646 : vector<16x128xf32>
    %648 = vector.broadcast %629 : vector<1x128xf32> to vector<16x128xf32>
    %649 = arith.mulf %647, %648 : vector<16x128xf32>
    %650 = vector.broadcast %631 : vector<1x128xf32> to vector<16x128xf32>
    %651 = arith.addf %649, %650 : vector<16x128xf32>
    %652 = arith.truncf %651 : vector<16x128xf32> to vector<16x128xbf16>
    %c2_261 = arith.constant 2 : index
    %c0_262 = arith.constant 0 : index
    %c1536_263 = arith.constant 1536 : index
    %653 = vector.load %arg3[%c2_261, %c0_262, %c1536_263] : memref<3x128x1792xbf16, #tpu.memory_space<vmem>>, vector<1x128x256xbf16>
    %654 = vector.shape_cast %653 : vector<1x128x256xbf16> to vector<128x256xbf16>
    %cst_264 = arith.constant dense<0.000000e+00> : vector<16x256xf32>
    %655 = tpu.matmul %652, %654, %cst_264 {dimension_numbers = #tpu.dot_dimension_numbers<[1], [0], [0], [1], [0, 0, 1, 1], [], []>} : vector<16x128xbf16>, vector<128x256xbf16>, vector<16x256xf32> -> vector<16x256xf32>
    %c2_265 = arith.constant 2 : index
    %c0_266 = arith.constant 0 : index
    %c1536_267 = arith.constant 1536 : index
    %656 = vector.load %arg5[%c2_265, %c0_266, %c1536_267] : memref<3x1x2944xf32, #tpu.memory_space<vmem>>, vector<1x1x256xf32>
    %657 = vector.shape_cast %656 : vector<1x1x256xf32> to vector<1x256xf32>
    %658 = vector.broadcast %657 : vector<1x256xf32> to vector<16x256xf32>
    %659 = arith.addf %655, %658 : vector<16x256xf32>
    %cst_268 = arith.constant 0.000000e+00 : f32
    %660 = vector.broadcast %cst_268 : f32 to vector<16x256xf32>
    %661 = arith.maximumf %659, %660 : vector<16x256xf32>
    %662 = arith.truncf %661 : vector<16x256xf32> to vector<16x256xbf16>
    %c2_269 = arith.constant 2 : index
    %c0_270 = arith.constant 0 : index
    %c256_271 = arith.constant 256 : index
    %663 = vector.load %arg4[%c2_269, %c0_270, %c256_271] : memref<3x256x384xbf16, #tpu.memory_space<vmem>>, vector<1x256x128xbf16>
    %664 = vector.shape_cast %663 : vector<1x256x128xbf16> to vector<256x128xbf16>
    %cst_272 = arith.constant dense<0.000000e+00> : vector<16x128xf32>
    %665 = tpu.matmul %662, %664, %cst_272 {dimension_numbers = #tpu.dot_dimension_numbers<[1], [0], [0], [1], [0, 0, 1, 1], [], []>} : vector<16x256xbf16>, vector<256x128xbf16>, vector<16x128xf32> -> vector<16x128xf32>
    %c2_273 = arith.constant 2 : index
    %c0_274 = arith.constant 0 : index
    %c2048_275 = arith.constant 2048 : index
    %666 = vector.load %arg5[%c2_273, %c0_274, %c2048_275] : memref<3x1x2944xf32, #tpu.memory_space<vmem>>, vector<1x1x128xf32>
    %667 = vector.shape_cast %666 : vector<1x1x128xf32> to vector<1x128xf32>
    %668 = vector.broadcast %667 : vector<1x128xf32> to vector<16x128xf32>
    %669 = arith.addf %665, %668 : vector<16x128xf32>
    %670 = arith.addf %651, %669 : vector<16x128xf32>
    %c2_276 = arith.constant 2 : index
    %c0_277 = arith.constant 0 : index
    %c2688_278 = arith.constant 2688 : index
    %671 = vector.load %arg5[%c2_276, %c0_277, %c2688_278] : memref<3x1x2944xf32, #tpu.memory_space<vmem>>, vector<1x1x128xf32>
    %672 = vector.shape_cast %671 : vector<1x1x128xf32> to vector<1x128xf32>
    %c2_279 = arith.constant 2 : index
    %c0_280 = arith.constant 0 : index
    %c2816_281 = arith.constant 2816 : index
    %673 = vector.load %arg5[%c2_279, %c0_280, %c2816_281] : memref<3x1x2944xf32, #tpu.memory_space<vmem>>, vector<1x1x128xf32>
    %674 = vector.shape_cast %673 : vector<1x1x128xf32> to vector<1x128xf32>
    %cst_282 = arith.constant dense<0.000000e+00> : vector<16xf32>
    %675 = vector.multi_reduction <add>, %670, %cst_282 [1] : vector<16x128xf32> to vector<16xf32>
    %676 = vector.shape_cast %675 : vector<16xf32> to vector<16x1xf32>
    %cst_283 = arith.constant 1.280000e+02 : f32
    %677 = vector.broadcast %cst_283 : f32 to vector<16x1xf32>
    %678 = arith.divf %676, %677 : vector<16x1xf32>
    %679 = vector.broadcast %678 : vector<16x1xf32> to vector<16x128xf32>
    %680 = arith.subf %670, %679 : vector<16x128xf32>
    %681 = arith.mulf %680, %680 : vector<16x128xf32>
    %cst_284 = arith.constant dense<0.000000e+00> : vector<16xf32>
    %682 = vector.multi_reduction <add>, %681, %cst_284 [1] : vector<16x128xf32> to vector<16xf32>
    %683 = vector.shape_cast %682 : vector<16xf32> to vector<16x1xf32>
    %cst_285 = arith.constant 1.280000e+02 : f32
    %684 = vector.broadcast %cst_285 : f32 to vector<16x1xf32>
    %685 = arith.divf %683, %684 : vector<16x1xf32>
    %cst_286 = arith.constant 9.99999974E-6 : f32
    %686 = vector.broadcast %cst_286 : f32 to vector<16x1xf32>
    %687 = arith.addf %685, %686 : vector<16x1xf32>
    %688 = math.rsqrt %687 : vector<16x1xf32>
    %689 = vector.broadcast %688 : vector<16x1xf32> to vector<16x128xf32>
    %690 = arith.mulf %680, %689 : vector<16x128xf32>
    %691 = vector.broadcast %672 : vector<1x128xf32> to vector<16x128xf32>
    %692 = arith.mulf %690, %691 : vector<16x128xf32>
    %693 = vector.broadcast %674 : vector<1x128xf32> to vector<16x128xf32>
    %694 = arith.addf %692, %693 : vector<16x128xf32>
    %695 = arith.truncf %694 : vector<16x128xf32> to vector<16x128xbf16>
    %c0_287 = arith.constant 0 : index
    %c0_288 = arith.constant 0 : index
    %696 = vector.load %arg6[%c0_287, %c0_288] : memref<128x128xbf16, #tpu.memory_space<vmem>>, vector<128x128xbf16>
    %cst_289 = arith.constant dense<0.000000e+00> : vector<16x128xf32>
    %697 = tpu.matmul %695, %696, %cst_289 {dimension_numbers = #tpu.dot_dimension_numbers<[1], [0], [0], [1], [0, 0, 1, 1], [], []>} : vector<16x128xbf16>, vector<128x128xbf16>, vector<16x128xf32> -> vector<16x128xf32>
    %c0_290 = arith.constant 0 : index
    %c0_291 = arith.constant 0 : index
    %698 = vector.load %arg7[%c0_290, %c0_291] : memref<1x128xf32, #tpu.memory_space<vmem>>, vector<1x128xf32>
    %699 = vector.broadcast %698 : vector<1x128xf32> to vector<16x128xf32>
    %700 = arith.addf %697, %699 : vector<16x128xf32>
    %701 = vector.shape_cast %700 : vector<16x128xf32> to vector<2x8x128xf32>
    %c0_292 = arith.constant 0 : index
    %c0_293 = arith.constant 0 : index
    %c0_294 = arith.constant 0 : index
    %702 = vector.load %arg8[%c0_292, %c0_293, %c0_294] : memref<2x8x128xf32, #tpu.memory_space<vmem>>, vector<2x8x128xf32>
    tpu.vector_store %arg8[%c0_292, %c0_293, %c0_294], %701 {strides = array<i32>} : memref<2x8x128xf32, #tpu.memory_space<vmem>>, vector<2x8x128xf32>,
    return
  }
  func.func @transform_0(%arg0: i32) -> (i32, i32, i32) {
    %c0_i32 = arith.constant 0 : i32
    %c0_i32_0 = arith.constant 0 : i32
    %c0_i32_1 = arith.constant 0 : i32
    %c0_i32_2 = arith.constant 0 : i32
    return %c0_i32, %c0_i32_0, %c0_i32_1 : i32, i32, i32
  }
  func.func @transform_1(%arg0: i32) -> (i32, i32, i32) {
    %c0_i32 = arith.constant 0 : i32
    %c0_i32_0 = arith.constant 0 : i32
    %c0_i32_1 = arith.constant 0 : i32
    %c0_i32_2 = arith.constant 0 : i32
    return %c0_i32, %c0_i32_0, %c0_i32_1 : i32, i32, i32
  }
  func.func @transform_2(%arg0: i32) -> (i32, i32, i32) {
    %c0_i32 = arith.constant 0 : i32
    %c0_i32_0 = arith.constant 0 : i32
    %c0_i32_1 = arith.constant 0 : i32
    %c0_i32_2 = arith.constant 0 : i32
    return %c0_i32, %c0_i32_0, %c0_i32_1 : i32, i32, i32
  }
  func.func @transform_3(%arg0: i32) -> (i32, i32, i32) {
    %c0_i32 = arith.constant 0 : i32
    %c0_i32_0 = arith.constant 0 : i32
    %c0_i32_1 = arith.constant 0 : i32
    %c0_i32_2 = arith.constant 0 : i32
    return %c0_i32, %c0_i32_0, %c0_i32_1 : i32, i32, i32
  }
  func.func @transform_4(%arg0: i32) -> (i32, i32, i32) {
    %c0_i32 = arith.constant 0 : i32
    %c0_i32_0 = arith.constant 0 : i32
    %c0_i32_1 = arith.constant 0 : i32
    %c0_i32_2 = arith.constant 0 : i32
    return %c0_i32, %c0_i32_0, %c0_i32_1 : i32, i32, i32
  }
  func.func @transform_5(%arg0: i32) -> (i32, i32) {
    %c0_i32 = arith.constant 0 : i32
    %c0_i32_0 = arith.constant 0 : i32
    %c0_i32_1 = arith.constant 0 : i32
    return %c0_i32, %c0_i32_0 : i32, i32
  }
  func.func @transform_6(%arg0: i32) -> (i32, i32) {
    %c0_i32 = arith.constant 0 : i32
    %c0_i32_0 = arith.constant 0 : i32
    %c0_i32_1 = arith.constant 0 : i32
    return %c0_i32, %c0_i32_0 : i32, i32
  }
  func.func @transform_7(%arg0: i32) -> (i32, i32, i32) {
    %c0_i32 = arith.constant 0 : i32
    %c0_i32_0 = arith.constant 0 : i32
    %c0_i32_1 = arith.constant 0 : i32
    %c0_i32_2 = arith.constant 0 : i32
    return %c0_i32, %c0_i32_0, %c0_i32_1 : i32, i32, i32
  }
}

</mosaic_0001>

<llo_original>
// kernel: tfdecoder_forward.1
$region0: #{tfdecoder_forward.1}
  #allocation0 [shape = 'u32[]', space=smem, size = 0x4, offset = 0x4, fixed_abs, tag = 'smem constant byte address 0x4 - core index']
  #allocation1 [shape = 'u32[144,128]{1,0:T(1,128)}', space=vmem, size = 0x12000, scoped, tag = 'internal scratch']
  %s0 = inlined_call_operand.vmem [shape: f32[2,8,128], index: 0, kind: input, shape index: {}]
  %s1 = inlined_call_operand.vmem [shape: f32[2,16,128], index: 1, kind: input, shape index: {}]
  %s2 = inlined_call_operand.hbm [shape: bf16[3,128,1792], index: 2, kind: input, shape index: {}]
  %s3 = inlined_call_operand.hbm [shape: bf16[3,256,384], index: 3, kind: input, shape index: {}]
  %s4 = inlined_call_operand.hbm [shape: f32[3,1,2944], index: 4, kind: input, shape index: {}]
  %s5 = inlined_call_operand.hbm [shape: bf16[128,128], index: 5, kind: input, shape index: {}]
  %s6 = inlined_call_operand.hbm [shape: f32[1,128], index: 6, kind: input, shape index: {}]
  %s7 = inlined_call_operand.vmem [shape: f32[2,8,128], index: 7, kind: output, shape index: {}]
  %s8 = sld [smem:[#allocation0]]
  $region58: #{tfdecoder_forward.1} parent=0
    _
  %s10 = ssub.s32 1, %s8
  %s11 = scalar_select 0, %s10, %s8
  $region1: #{tfdecoder_forward.1} parent=0
    #allocation2 [shape = 'u8[1376256]{0}', space=vmem, size = 0x150000, scoped, tag = 'input window, operand 2, single buffered']
    #allocation3 [shape = 's32[1]{0}', space=sflag, size = 0x4, scoped, tag = 'scoped memory for tfdecoder_forward.1']
    #allocation4 [shape = 'u8[589824]{0}', space=vmem, size = 0x90000, scoped, tag = 'input window, operand 3, single buffered']
    #allocation5 [shape = 's32[1]{0}', space=sflag, size = 0x4, scoped, tag = 'scoped memory for tfdecoder_forward.1']
    #allocation6 [shape = 'u8[35328]{0}', space=vmem, size = 0x8c00, scoped, tag = 'input window, operand 4, single buffered']
    #allocation7 [shape = 'u8[32768]{0}', space=vmem, size = 0x8000, scoped, tag = 'input window, operand 5, single buffered']
    #allocation8 [shape = 's32[1]{0}', space=sflag, size = 0x4, scoped, tag = 'scoped memory for tfdecoder_forward.1']
    #allocation9 [shape = 'u8[512]{0}', space=vmem, size = 0x400, scoped, tag = 'input window, operand 6, single buffered']
    %12 = vsyncpa [#allocation3], 0
    %13 = vsyncpa [#allocation5], 0
    %14 = vsyncpa [#allocation8], 0
    // Predicated region
    $region2: #{tfdecoder_forward.1} parent=1 // pred_check
      _
    $region3: #{tfdecoder_forward.1} parent=1 // pred_check_branch
      %16 = sbr.rel (0) target = $region5
    $region4: #{tfdecoder_forward.1} parent=1 // pred_region
      _
    $region5: #{tfdecoder_forward.1} parent=1 // pred_fallthru
      _
    // Predicated region
    $region6: #{tfdecoder_forward.1} parent=1 // pred_check
      _
    $region7: #{tfdecoder_forward.1} parent=1 // pred_check_branch
      %18 = sbr.rel (0) target = $region9
    $region8: #{tfdecoder_forward.1} parent=1 // pred_region
      _
    $region9: #{tfdecoder_forward.1} parent=1 // pred_fallthru
      _
    // Predicated region
    $region10: #{tfdecoder_forward.1} parent=1 // pred_check
      _
    $region11: #{tfdecoder_forward.1} parent=1 // pred_check_branch
      %20 = sbr.rel (0) target = $region13
    $region12: #{tfdecoder_forward.1} parent=1 // pred_region
      %s22 = ssub.s32 43008, 43008
      %23 = vsyncadd [#allocation3], %s22
      %s24 = sshll.u32 [#allocation2], 4
      %s25 = int_to_ptr.vmem [resolvable:$true] %s24
      %30 = dma.hbm_to_vmem [thread:$0]  %s2, 43008, %s25, [#allocation3], 896, 896, 56
    $region13: #{tfdecoder_forward.1} parent=1 // pred_fallthru
      _
    // Predicated region
    $region14: #{tfdecoder_forward.1} parent=1 // pred_check
      _
    $region15: #{tfdecoder_forward.1} parent=1 // pred_check_branch
      %32 = sbr.rel (0) target = $region17
    $region16: #{tfdecoder_forward.1} parent=1 // pred_region
      %s34 = ssub.s32 18432, 18432
      %35 = vsyncadd [#allocation5], %s34
      %s36 = sshll.u32 [#allocation4], 4
      %s37 = int_to_ptr.vmem [resolvable:$true] %s36
      %42 = dma.hbm_to_vmem [thread:$0]  %s3, 18432, %s37, [#allocation5], 192, 192, 12
    $region17: #{tfdecoder_forward.1} parent=1 // pred_fallthru
      _
    // Predicated region
    $region18: #{tfdecoder_forward.1} parent=1 // pred_check
      _
    $region19: #{tfdecoder_forward.1} parent=1 // pred_check_branch
      %44 = sbr.rel (0) target = $region21
    $region20: #{tfdecoder_forward.1} parent=1 // pred_region
      %s46 = ssub.s32 1104, 1104
      %47 = vsyncadd [#allocation5], %s46
      %s48 = sshll.u32 [#allocation6], 4
      %s49 = int_to_ptr.vmem [resolvable:$true] %s48
      %54 = dma.hbm_to_vmem [thread:$0]  %s4, 1104, %s49, [#allocation5], 368, 368, 23
    $region21: #{tfdecoder_forward.1} parent=1 // pred_fallthru
      _
    // Predicated region
    $region22: #{tfdecoder_forward.1} parent=1 // pred_check
      _
    $region23: #{tfdecoder_forward.1} parent=1 // pred_check_branch
      %56 = sbr.rel (0) target = $region25
    $region24: #{tfdecoder_forward.1} parent=1 // pred_region
      %s58 = ssub.s32 1024, 1024
      %59 = vsyncadd [#allocation8], %s58
      %s60 = sshll.u32 [#allocation7], 4
      %s61 = int_to_ptr.vmem [resolvable:$true] %s60
      %66 = dma.hbm_to_vmem [thread:$0]  %s5, 1024, %s61, [#allocation8], 64, 64, 4
    $region25: #{tfdecoder_forward.1} parent=1 // pred_fallthru
      _
    // Predicated region
    $region26: #{tfdecoder_forward.1} parent=1 // pred_check
      _
    $region27: #{tfdecoder_forward.1} parent=1 // pred_check_branch
      %68 = sbr.rel (0) target = $region29
    $region28: #{tfdecoder_forward.1} parent=1 // pred_region
      %s70 = ssub.s32 16, 16
      %71 = vsyncadd [#allocation8], %s70
      %s73 = sshll.u32 [#allocation9], 4
      %s74 = int_to_ptr.vmem [resolvable:$true] %s73
      %76 = dma.hbm_to_vmem [thread:$0]  %s6, 16, %s74, [#allocation8]
    $region29: #{tfdecoder_forward.1} parent=1 // pred_fallthru
      _
    // Predicated region
    $region30: #{tfdecoder_forward.1} parent=1 // pred_check
      _
    $region31: #{tfdecoder_forward.1} parent=1 // pred_check_branch
      %78 = sbr.rel (0) target = $region33
    $region32: #{tfdecoder_forward.1} parent=1 // pred_region
      %79 = dma.done [#allocation3], 43008
    $region33: #{tfdecoder_forward.1} parent=1 // pred_fallthru
      _
    // Predicated region
    $region34: #{tfdecoder_forward.1} parent=1 // pred_check
      _
    $region35: #{tfdecoder_forward.1} parent=1 // pred_check_branch
      %81 = sbr.rel (0) target = $region37
    $region36: #{tfdecoder_forward.1} parent=1 // pred_region
      %82 = dma.done [#allocation5], 18432
    $region37: #{tfdecoder_forward.1} parent=1 // pred_fallthru
      _
    // Predicated region
    $region38: #{tfdecoder_forward.1} parent=1 // pred_check
      _
    $region39: #{tfdecoder_forward.1} parent=1 // pred_check_branch
      %84 = sbr.rel (0) target = $region41
    $region40: #{tfdecoder_forward.1} parent=1 // pred_region
      %85 = dma.done [#allocation5], 1104
    $region41: #{tfdecoder_forward.1} parent=1 // pred_fallthru
      _
    // Predicated region
    $region42: #{tfdecoder_forward.1} parent=1 // pred_check
      _
    $region43: #{tfdecoder_forward.1} parent=1 // pred_check_branch
      %87 = sbr.rel (0) target = $region45
    $region44: #{tfdecoder_forward.1} parent=1 // pred_region
      %88 = dma.done [#allocation8], 1024
    $region45: #{tfdecoder_forward.1} parent=1 // pred_fallthru
      _
    // Predicated region
    $region46: #{tfdecoder_forward.1} parent=1 // pred_check
      _
    $region47: #{tfdecoder_forward.1} parent=1 // pred_check_branch
      %90 = sbr.rel (0) target = $region49
    $region48: #{tfdecoder_forward.1} parent=1 // pred_region
      %91 = dma.done [#allocation8], 16
    $region49: #{tfdecoder_forward.1} parent=1 // pred_fallthru
      _
    %v93 = vld [vmem:[%s0] sm:$0xff]
    %v94 = vld [vmem:[%s0 + $0x8] sm:$0xff]
    %v95 = vld [vmem:[%s1] sm:$0xff]
    %v96 = vld [vmem:[%s1 + $0x8] sm:$0xff]
    %v97 = vld [vmem:[%s1 + $0x10] sm:$0xff]
    %v98 = vld [vmem:[%s1 + $0x18] sm:$0xff]
    %v99 = vpack.c.bf16 %v96, %v95
    %v100 = vpack.c.bf16 %v98, %v97
    %v101 = vlaneseq
    %v102 = vshrl.u32 %v101, 7
    %v103 = vlaneseq
    %v104 = vand.u32 %v103, 127
    %vm105 = vcmp.le.s32.totalorder %v104, %v102
    %v106 = vsel %vm105, 0.0, -1e+30
    %v107 = vpack.c.bf16 %v94, %v93
    %v108 = vld [vmem:[#allocation2] sm:$0xff]
    %v109 = vld [vmem:[#allocation2 + $0x8] sm:$0xff]
    %v110 = vld [vmem:[#allocation2 + $0x10] sm:$0xff]
    %v111 = vld [vmem:[#allocation2 + $0x38] sm:$0xff]
    %v112 = vld [vmem:[#allocation2 + $0x40] sm:$0xff]
    %v113 = vld [vmem:[#allocation2 + $0x48] sm:$0xff]
    %v114 = vld [vmem:[#allocation2 + $0x70] sm:$0xff]
    %v115 = vld [vmem:[#allocation2 + $0x78] sm:$0xff]
    %v116 = vld [vmem:[#allocation2 + $0x80] sm:$0xff]
    %v117 = vld [vmem:[#allocation2 + $0xa8] sm:$0xff]
    %v118 = vld [vmem:[#allocation2 + $0xb0] sm:$0xff]
    %v119 = vld [vmem:[#allocation2 + $0xb8] sm:$0xff]
    %v120 = vld [vmem:[#allocation2 + $0xe0] sm:$0xff]
    %v121 = vld [vmem:[#allocation2 + $0xe8] sm:$0xff]
    %v122 = vld [vmem:[#allocation2 + $0xf0] sm:$0xff]
    %v123 = vld [vmem:[#allocation2 + $0x118] sm:$0xff]
    %v124 = vld [vmem:[#allocation2 + $0x120] sm:$0xff]
    %v125 = vld [vmem:[#allocation2 + $0x128] sm:$0xff]
    %v126 = vld [vmem:[#allocation2 + $0x150] sm:$0xff]
    %v127 = vld [vmem:[#allocation2 + $0x158] sm:$0xff]
    %v128 = vld [vmem:[#allocation2 + $0x160] sm:$0xff]
    %v129 = vld [vmem:[#allocation2 + $0x188] sm:$0xff]
    %v130 = vld [vmem:[#allocation2 + $0x190] sm:$0xff]
    %v131 = vld [vmem:[#allocation2 + $0x198] sm:$0xff]
    %v132 = vld [vmem:[#allocation2 + $0x1c0] sm:$0xff]
    %v133 = vld [vmem:[#allocation2 + $0x1c8] sm:$0xff]
    %v134 = vld [vmem:[#allocation2 + $0x1d0] sm:$0xff]
    %v135 = vld [vmem:[#allocation2 + $0x1f8] sm:$0xff]
    %v136 = vld [vmem:[#allocation2 + $0x200] sm:$0xff]
    %v137 = vld [vmem:[#allocation2 + $0x208] sm:$0xff]
    %v138 = vld [vmem:[#allocation2 + $0x230] sm:$0xff]
    %v139 = vld [vmem:[#allocation2 + $0x238] sm:$0xff]
    %v140 = vld [vmem:[#allocation2 + $0x240] sm:$0xff]
    %v141 = vld [vmem:[#allocation2 + $0x268] sm:$0xff]
    %v142 = vld [vmem:[#allocation2 + $0x270] sm:$0xff]
    %v143 = vld [vmem:[#allocation2 + $0x278] sm:$0xff]
    %v144 = vld [vmem:[#allocation2 + $0x2a0] sm:$0xff]
    %v145 = vld [vmem:[#allocation2 + $0x2a8] sm:$0xff]
    %v146 = vld [vmem:[#allocation2 + $0x2b0] sm:$0xff]
    %v147 = vld [vmem:[#allocation2 + $0x2d8] sm:$0xff]
    %v148 = vld [vmem:[#allocation2 + $0x2e0] sm:$0xff]
    %v149 = vld [vmem:[#allocation2 + $0x2e8] sm:$0xff]
    %v150 = vld [vmem:[#allocation2 + $0x310] sm:$0xff]
    %v151 = vld [vmem:[#allocation2 + $0x318] sm:$0xff]
    %v152 = vld [vmem:[#allocation2 + $0x320] sm:$0xff]
    %v153 = vld [vmem:[#allocation2 + $0x348] sm:$0xff]
    %v154 = vld [vmem:[#allocation2 + $0x350] sm:$0xff]
    %v155 = vld [vmem:[#allocation2 + $0x358] sm:$0xff]
    %v156 = vld [vmem:[#allocation6] sm:$0x3f]
    %v158 = vlaneseq
    %v159 = vshrl.u32 %v158, 7
    %v160 = vsub.s32 0, %v159
    %v161 = vrot.slane %v156, %v160
    %v162 = vlaneseq
    %v163 = vshrl.u32 %v162, 7
    %v164 = vsub.s32 1, %v163
    %v165 = vrot.slane %v156, %v164
    %v166 = vlaneseq
    %v167 = vshrl.u32 %v166, 7
    %v168 = vsub.s32 2, %v167
    %v169 = vrot.slane %v156, %v168
    %v170 = vlaneseq
    %v171 = vshrl.u32 %v170, 7
    %v172 = vsub.s32 3, %v171
    %v173 = vrot.slane %v156, %v172
    %v174 = vlaneseq
    %v175 = vshrl.u32 %v174, 7
    %v176 = vsub.s32 4, %v175
    %v177 = vrot.slane %v156, %v176
    %v178 = vlaneseq
    %v179 = vshrl.u32 %v178, 7
    %v180 = vsub.s32 5, %v179
    %v181 = vrot.slane %v156, %v180
    %v236 = vunpack.c.l.b16 %v108
    %v237 = vunpack.c.h.b16 %v108
    %v238 = vunpack.c.l.b16 %v109
    %v239 = vunpack.c.h.b16 %v109
    %v240 = vunpack.c.l.b16 %v110
    %v241 = vunpack.c.h.b16 %v110
    %v242 = vunpack.c.l.b16 %v111
    %v243 = vunpack.c.h.b16 %v111
    %v244 = vunpack.c.l.b16 %v112
    %v245 = vunpack.c.h.b16 %v112
    %v246 = vunpack.c.l.b16 %v113
    %v247 = vunpack.c.h.b16 %v113
    %v248 = vunpack.c.l.b16 %v114
    %v249 = vunpack.c.h.b16 %v114
    %v250 = vunpack.c.l.b16 %v115
    %v251 = vunpack.c.h.b16 %v115
    %v252 = vunpack.c.l.b16 %v116
    %v253 = vunpack.c.h.b16 %v116
    %v254 = vunpack.c.l.b16 %v117
    %v255 = vunpack.c.h.b16 %v117
    %v256 = vunpack.c.l.b16 %v118
    %v257 = vunpack.c.h.b16 %v118
    %v258 = vunpack.c.l.b16 %v119
    %v259 = vunpack.c.h.b16 %v119
    %v260 = vunpack.c.l.b16 %v120
    %v261 = vunpack.c.h.b16 %v120
    %v262 = vunpack.c.l.b16 %v121
    %v263 = vunpack.c.h.b16 %v121
    %v264 = vunpack.c.l.b16 %v122
    %v265 = vunpack.c.h.b16 %v122
    %v266 = vunpack.c.l.b16 %v123
    %v267 = vunpack.c.h.b16 %v123
    %v268 = vunpack.c.l.b16 %v124
    %v269 = vunpack.c.h.b16 %v124
    %v270 = vunpack.c.l.b16 %v125
    %v271 = vunpack.c.h.b16 %v125
    %v272 = vunpack.c.l.b16 %v126
    %v273 = vunpack.c.h.b16 %v126
    %v274 = vunpack.c.l.b16 %v127
    %v275 = vunpack.c.h.b16 %v127
    %v276 = vunpack.c.l.b16 %v128
    %v277 = vunpack.c.h.b16 %v128
    %v278 = vunpack.c.l.b16 %v129
    %v279 = vunpack.c.h.b16 %v129
    %v280 = vunpack.c.l.b16 %v130
    %v281 = vunpack.c.h.b16 %v130
    %v282 = vunpack.c.l.b16 %v131
    %v283 = vunpack.c.h.b16 %v131
    %v284 = vunpack.c.l.b16 %v132
    %v285 = vunpack.c.h.b16 %v132
    %v286 = vunpack.c.l.b16 %v133
    %v287 = vunpack.c.h.b16 %v133
    %v288 = vunpack.c.l.b16 %v134
    %v289 = vunpack.c.h.b16 %v134
    %v290 = vunpack.c.l.b16 %v135
    %v291 = vunpack.c.h.b16 %v135
    %v292 = vunpack.c.l.b16 %v136
    %v293 = vunpack.c.h.b16 %v136
    %v294 = vunpack.c.l.b16 %v137
    %v295 = vunpack.c.h.b16 %v137
    %v296 = vunpack.c.l.b16 %v138
    %v297 = vunpack.c.h.b16 %v138
    %v298 = vunpack.c.l.b16 %v139
    %v299 = vunpack.c.h.b16 %v139
    %v300 = vunpack.c.l.b16 %v140
    %v301 = vunpack.c.h.b16 %v140
    %v302 = vunpack.c.l.b16 %v141
    %v303 = vunpack.c.h.b16 %v141
    %v304 = vunpack.c.l.b16 %v142
    %v305 = vunpack.c.h.b16 %v142
    %v306 = vunpack.c.l.b16 %v143
    %v307 = vunpack.c.h.b16 %v143
    %v308 = vunpack.c.l.b16 %v144
    %v309 = vunpack.c.h.b16 %v144
    %v310 = vunpack.c.l.b16 %v145
    %v311 = vunpack.c.h.b16 %v145
    %v312 = vunpack.c.l.b16 %v146
    %v313 = vunpack.c.h.b16 %v146
    %v314 = vunpack.c.l.b16 %v147
    %v315 = vunpack.c.h.b16 %v147
    %v316 = vunpack.c.l.b16 %v148
    %v317 = vunpack.c.h.b16 %v148
    %v318 = vunpack.c.l.b16 %v149
    %v319 = vunpack.c.h.b16 %v149
    %v320 = vunpack.c.l.b16 %v150
    %v321 = vunpack.c.h.b16 %v150
    %v322 = vunpack.c.l.b16 %v151
    %v323 = vunpack.c.h.b16 %v151
    %v324 = vunpack.c.l.b16 %v152
    %v325 = vunpack.c.h.b16 %v152
    %v326 = vunpack.c.l.b16 %v153
    %v327 = vunpack.c.h.b16 %v153
    %v328 = vunpack.c.l.b16 %v154
    %v329 = vunpack.c.h.b16 %v154
    %v330 = vunpack.c.l.b16 %v155
    %v331 = vunpack.c.h.b16 %v155
    %v332 = vpack.c.b16 %v242, %v236
    %v333 = vpack.c.b16 %v243, %v237
    %v334 = vpack.c.b16 %v244, %v238
    %v335 = vpack.c.b16 %v245, %v239
    %v336 = vpack.c.b16 %v246, %v240
    %v337 = vpack.c.b16 %v247, %v241
    %v338 = vpack.c.b16 %v254, %v248
    %v339 = vpack.c.b16 %v255, %v249
    %v340 = vpack.c.b16 %v256, %v250
    %v341 = vpack.c.b16 %v257, %v251
    %v342 = vpack.c.b16 %v258, %v252
    %v343 = vpack.c.b16 %v259, %v253
    %v344 = vpack.c.b16 %v266, %v260
    %v345 = vpack.c.b16 %v267, %v261
    %v346 = vpack.c.b16 %v268, %v262
    %v347 = vpack.c.b16 %v269, %v263
    %v348 = vpack.c.b16 %v270, %v264
    %v349 = vpack.c.b16 %v271, %v265
    %v350 = vpack.c.b16 %v278, %v272
    %v351 = vpack.c.b16 %v279, %v273
    %v352 = vpack.c.b16 %v280, %v274
    %v353 = vpack.c.b16 %v281, %v275
    %v354 = vpack.c.b16 %v282, %v276
    %v355 = vpack.c.b16 %v283, %v277
    %v356 = vpack.c.b16 %v290, %v284
    %v357 = vpack.c.b16 %v291, %v285
    %v358 = vpack.c.b16 %v292, %v286
    %v359 = vpack.c.b16 %v293, %v287
    %v360 = vpack.c.b16 %v294, %v288
    %v361 = vpack.c.b16 %v295, %v289
    %v362 = vpack.c.b16 %v302, %v296
    %v363 = vpack.c.b16 %v303, %v297
    %v364 = vpack.c.b16 %v304, %v298
    %v365 = vpack.c.b16 %v305, %v299
    %v366 = vpack.c.b16 %v306, %v300
    %v367 = vpack.c.b16 %v307, %v301
    %v368 = vpack.c.b16 %v314, %v308
    %v369 = vpack.c.b16 %v315, %v309
    %v370 = vpack.c.b16 %v316, %v310
    %v371 = vpack.c.b16 %v317, %v311
    %v372 = vpack.c.b16 %v318, %v312
    %v373 = vpack.c.b16 %v319, %v313
    %v374 = vpack.c.b16 %v326, %v320
    %v375 = vpack.c.b16 %v327, %v321
    %v376 = vpack.c.b16 %v328, %v322
    %v377 = vpack.c.b16 %v329, %v323
    %v378 = vpack.c.b16 %v330, %v324
    %v379 = vpack.c.b16 %v331, %v325
    %428 = vmatprep.subr.bf16.mxu0 %v333
    %429 = vmatpush1.bf16.msra.mxu0 %v332
    %430 = vmatprep.subr.bf16.mxu0 %v339
    %431 = vmatpush1.bf16.msra.mxu0 %v338
    %432 = vmatprep.subr.bf16.mxu0 %v345
    %433 = vmatpush1.bf16.msra.mxu0 %v344
    %434 = vmatprep.subr.bf16.mxu0 %v351
    %435 = vmatpush1.bf16.msra.mxu0 %v350
    %436 = vmatprep.subr.bf16.mxu0 %v357
    %437 = vmatpush1.bf16.msra.mxu0 %v356
    %438 = vmatprep.subr.bf16.mxu0 %v363
    %439 = vmatpush1.bf16.msra.mxu0 %v362
    %440 = vmatprep.subr.bf16.mxu0 %v369
    %441 = vmatpush1.bf16.msra.mxu0 %v368
    %442 = vmatprep.subr.bf16.mxu0 %v375
    %443 = vmatpush1.bf16.msra.mxu0 %v374
    %444 = vmatprep.subr.bf16.mxu0 0
    %445 = vmatpush1.bf16.msra.mxu0 0
    %446 = vmatprep.subr.bf16.mxu0 0
    %447 = vmatpush1.bf16.msra.mxu0 0
    %448 = vmatprep.subr.bf16.mxu0 0
    %449 = vmatpush1.bf16.msra.mxu0 0
    %450 = vmatprep.subr.bf16.mxu0 0
    %451 = vmatpush1.bf16.msra.mxu0 0
    %452 = vmatprep.subr.bf16.mxu0 0
    %453 = vmatpush1.bf16.msra.mxu0 0
    %454 = vmatprep.subr.bf16.mxu0 0
    %455 = vmatpush1.bf16.msra.mxu0 0
    %456 = vmatprep.subr.bf16.mxu0 0
    %457 = vmatpush1.bf16.msra.mxu0 0
    %458 = vmatprep.subr.bf16.mxu0 0
    %459 = vmatpush1.bf16.msra.mxu0 0
    %460 = vmatprep.mubr.bf16.mxu0 0
    %461 = vmatmul.mubr.bf16.gmra.mrb[0].mxu0 %v107
    %v462 = vpop.f32.mrb[0].mxu0
    %v463 = vadd.f32 %v161, %v462
    %v464 = vpop.f32.mrb[0].mxu0
    %v465 = vadd.f32 %v165, %v464
    %v466 = vpop.f32.mrb[0].mxu0
    %v467 = vadd.f32 %v161, %v466
    %v468 = vpop.f32.mrb[0].mxu0
    %v469 = vadd.f32 %v165, %v468
    %470 = vdwg.mxu0
    %471 = vmatprep.subr.bf16.mxu0 %v335
    %472 = vmatpush1.bf16.msra.mxu0 %v334
    %473 = vmatprep.subr.bf16.mxu0 %v341
    %474 = vmatpush1.bf16.msra.mxu0 %v340
    %475 = vmatprep.subr.bf16.mxu0 %v347
    %476 = vmatpush1.bf16.msra.mxu0 %v346
    %477 = vmatprep.subr.bf16.mxu0 %v353
    %478 = vmatpush1.bf16.msra.mxu0 %v352
    %479 = vmatprep.subr.bf16.mxu0 %v359
    %480 = vmatpush1.bf16.msra.mxu0 %v358
    %481 = vmatprep.subr.bf16.mxu0 %v365
    %482 = vmatpush1.bf16.msra.mxu0 %v364
    %483 = vmatprep.subr.bf16.mxu0 %v371
    %484 = vmatpush1.bf16.msra.mxu0 %v370
    %485 = vmatprep.subr.bf16.mxu0 %v377
    %486 = vmatpush1.bf16.msra.mxu0 %v376
    %487 = vmatprep.subr.bf16.mxu0 0
    %488 = vmatpush1.bf16.msra.mxu0 0
    %489 = vmatprep.subr.bf16.mxu0 0
    %490 = vmatpush1.bf16.msra.mxu0 0
    %491 = vmatprep.subr.bf16.mxu0 0
    %492 = vmatpush1.bf16.msra.mxu0 0
    %493 = vmatprep.subr.bf16.mxu0 0
    %494 = vmatpush1.bf16.msra.mxu0 0
    %495 = vmatprep.subr.bf16.mxu0 0
    %496 = vmatpush1.bf16.msra.mxu0 0
    %497 = vmatprep.subr.bf16.mxu0 0
    %498 = vmatpush1.bf16.msra.mxu0 0
    %499 = vmatprep.subr.bf16.mxu0 0
    %500 = vmatpush1.bf16.msra.mxu0 0
    %501 = vmatprep.subr.bf16.mxu0 0
    %502 = vmatpush1.bf16.msra.mxu0 0
    %503 = vmatprep.mubr.bf16.mxu0 0
    %504 = vmatmul.mubr.bf16.gmra.mrb[0].mxu0 %v107
    %v505 = vpop.f32.mrb[0].mxu0
    %v506 = vadd.f32 %v169, %v505
    %v507 = vpop.f32.mrb[0].mxu0
    %v508 = vadd.f32 %v173, %v507
    %v509 = vpop.f32.mrb[0].mxu0
    %v510 = vadd.f32 %v169, %v509
    %v511 = vpop.f32.mrb[0].mxu0
    %v512 = vadd.f32 %v173, %v511
    %513 = vdwg.mxu0
    %514 = vmatprep.subr.bf16.mxu0 %v337
    %515 = vmatpush1.bf16.msra.mxu0 %v336
    %516 = vmatprep.subr.bf16.mxu0 %v343
    %517 = vmatpush1.bf16.msra.mxu0 %v342
    %518 = vmatprep.subr.bf16.mxu0 %v349
    %519 = vmatpush1.bf16.msra.mxu0 %v348
    %520 = vmatprep.subr.bf16.mxu0 %v355
    %521 = vmatpush1.bf16.msra.mxu0 %v354
    %522 = vmatprep.subr.bf16.mxu0 %v361
    %523 = vmatpush1.bf16.msra.mxu0 %v360
    %524 = vmatprep.subr.bf16.mxu0 %v367
    %525 = vmatpush1.bf16.msra.mxu0 %v366
    %526 = vmatprep.subr.bf16.mxu0 %v373
    %527 = vmatpush1.bf16.msra.mxu0 %v372
    %528 = vmatprep.subr.bf16.mxu0 %v379
    %529 = vmatpush1.bf16.msra.mxu0 %v378
    %530 = vmatprep.subr.bf16.mxu0 0
    %531 = vmatpush1.bf16.msra.mxu0 0
    %532 = vmatprep.subr.bf16.mxu0 0
    %533 = vmatpush1.bf16.msra.mxu0 0
    %534 = vmatprep.subr.bf16.mxu0 0
    %535 = vmatpush1.bf16.msra.mxu0 0
    %536 = vmatprep.subr.bf16.mxu0 0
    %537 = vmatpush1.bf16.msra.mxu0 0
    %538 = vmatprep.subr.bf16.mxu0 0
    %539 = vmatpush1.bf16.msra.mxu0 0
    %540 = vmatprep.subr.bf16.mxu0 0
    %541 = vmatpush1.bf16.msra.mxu0 0
    %542 = vmatprep.subr.bf16.mxu0 0
    %543 = vmatpush1.bf16.msra.mxu0 0
    %544 = vmatprep.subr.bf16.mxu0 0
    %545 = vmatpush1.bf16.msra.mxu0 0
    %546 = vmatprep.mubr.bf16.mxu0 0
    %547 = vmatmul.mubr.bf16.gmra.mrb[0].mxu0 %v107
    %v548 = vpop.f32.mrb[0].mxu0
    %v549 = vadd.f32 %v177, %v548
    %v550 = vpop.f32.mrb[0].mxu0
    %v551 = vadd.f32 %v181, %v550
    %v552 = vpop.f32.mrb[0].mxu0
    %v553 = vadd.f32 %v177, %v552
    %v554 = vpop.f32.mrb[0].mxu0
    %v555 = vadd.f32 %v181, %v554
    %556 = vdwg.mxu0
    %v557 = vpack.c.bf16 %v463, %v463
    %v558 = vpack.c.bf16 %v467, %v467
    %v559 = vpack.c.bf16 %v506, %v506
    %v560 = vpack.c.bf16 %v510, %v510
    %v561 = vpack.c.bf16 %v549, %v549
    %v562 = vpack.c.bf16 %v553, %v553
    %563 = vmatprep.subr.bf16.mxu0 0
    %564 = vmatpush1.bf16.xpose.msra.mxu0 %v559
    %565 = vmatprep.subr.bf16.mxu0 0
    %566 = vmatpush1.bf16.xpose.msra.mxu0 0
    %567 = vmatprep.subr.bf16.mxu0 0
    %568 = vmatpush1.bf16.xpose.msra.mxu0 0
    %569 = vmatprep.subr.bf16.mxu0 0
    %570 = vmatpush1.bf16.xpose.msra.mxu0 0
    %571 = vmatprep.subr.bf16.mxu0 0
    %572 = vmatpush1.bf16.xpose.msra.mxu0 0
    %573 = vmatprep.subr.bf16.mxu0 0
    %574 = vmatpush1.bf16.xpose.msra.mxu0 0
    %575 = vmatprep.subr.bf16.mxu0 0
    %576 = vmatpush1.bf16.xpose.msra.mxu0 0
    %577 = vmatprep.subr.bf16.mxu0 0
    %578 = vmatpush1.bf16.xpose.msra.mxu0 0
    %579 = vmatprep.subr.bf16.mxu0 0
    %580 = vmatpush1.bf16.xpose.msra.mxu0 0
    %581 = vmatprep.subr.bf16.mxu0 0
    %582 = vmatpush1.bf16.xpose.msra.mxu0 0
    %583 = vmatprep.subr.bf16.mxu0 0
    %584 = vmatpush1.bf16.xpose.msra.mxu0 0
    %585 = vmatprep.subr.bf16.mxu0 0
    %586 = vmatpush1.bf16.xpose.msra.mxu0 0
    %587 = vmatprep.subr.bf16.mxu0 0
    %588 = vmatpush1.bf16.xpose.msra.mxu0 0
    %589 = vmatprep.subr.bf16.mxu0 0
    %590 = vmatpush1.bf16.xpose.msra.mxu0 0
    %591 = vmatprep.subr.bf16.mxu0 0
    %592 = vmatpush1.bf16.xpose.msra.mxu0 0
    %593 = vmatprep.subr.bf16.mxu0 0
    %594 = vmatpush1.bf16.xpose.msra.mxu0 0
    %595 = vmatprep.mubr.bf16.mxu0 0
    %596 = vmatmul.mubr.bf16.gmra.mrb[0].mxu0 %v557
    %v597 = vpop.f32.mrb[0].mxu0
    %v598 = vadd.f32 %v106, %v597
    %v599 = vpop.f32.mrb[0].mxu0
    %v600 = vpop.f32.mrb[0].mxu0
    %v601 = vpop.f32.mrb[0].mxu0
    %602 = vdwg.mxu0
    %603 = vmatprep.subr.bf16.mxu0 0
    %604 = vmatpush1.bf16.xpose.msra.mxu0 %v560
    %605 = vmatprep.subr.bf16.mxu0 0
    %606 = vmatpush1.bf16.xpose.msra.mxu0 0
    %607 = vmatprep.subr.bf16.mxu0 0
    %608 = vmatpush1.bf16.xpose.msra.mxu0 0
    %609 = vmatprep.subr.bf16.mxu0 0
    %610 = vmatpush1.bf16.xpose.msra.mxu0 0
    %611 = vmatprep.subr.bf16.mxu0 0
    %612 = vmatpush1.bf16.xpose.msra.mxu0 0
    %613 = vmatprep.subr.bf16.mxu0 0
    %614 = vmatpush1.bf16.xpose.msra.mxu0 0
    %615 = vmatprep.subr.bf16.mxu0 0
    %616 = vmatpush1.bf16.xpose.msra.mxu0 0
    %617 = vmatprep.subr.bf16.mxu0 0
    %618 = vmatpush1.bf16.xpose.msra.mxu0 0
    %619 = vmatprep.subr.bf16.mxu0 0
    %620 = vmatpush1.bf16.xpose.msra.mxu0 0
    %621 = vmatprep.subr.bf16.mxu0 0
    %622 = vmatpush1.bf16.xpose.msra.mxu0 0
    %623 = vmatprep.subr.bf16.mxu0 0
    %624 = vmatpush1.bf16.xpose.msra.mxu0 0
    %625 = vmatprep.subr.bf16.mxu0 0
    %626 = vmatpush1.bf16.xpose.msra.mxu0 0
    %627 = vmatprep.subr.bf16.mxu0 0
    %628 = vmatpush1.bf16.xpose.msra.mxu0 0
    %629 = vmatprep.subr.bf16.mxu0 0
    %630 = vmatpush1.bf16.xpose.msra.mxu0 0
    %631 = vmatprep.subr.bf16.mxu0 0
    %632 = vmatpush1.bf16.xpose.msra.mxu0 0
    %633 = vmatprep.subr.bf16.mxu0 0
    %634 = vmatpush1.bf16.xpose.msra.mxu0 0
    %635 = vmatprep.mubr.bf16.mxu0 0
    %636 = vmatmul.mubr.bf16.gmra.mrb[0].mxu0 %v558
    %v637 = vpop.f32.mrb[0].mxu0
    %v638 = vadd.f32 %v106, %v637
    %v639 = vpop.f32.mrb[0].mxu0
    %v640 = vpop.f32.mrb[0].mxu0
    %v641 = vpop.f32.mrb[0].mxu0
    %642 = vdwg.mxu0
    %vm643 = vcmask 64512
    %v644 = vsel %vm643, %v598, -inf
    %645 = vmax.xlane.f32.xlu0 %v644
    %v646 = vpop.xlane.xlu0 %645
    %v647 = vsel %vm643, %v638, -inf
    %648 = vmax.xlane.f32.xlu0 %v647
    %v649 = vpop.xlane.xlu0 %648
    %v650 = vsub.f32 %v598, %v646
    %v651 = vsub.f32 %v638, %v649
    %v652 = vmul.f32 %v650, 1.442695
    %v653 = vpow.pop %v652
    %v654 = vmul.f32 %v651, 1.442695
    %v655 = vpow.pop %v654
    %v656 = vsel %vm643, %v653, 0.0
    %657 = vadd.xlane.f32.xlu0 %v656
    %v658 = vpop.xlane.xlu0 %657
    %v659 = vsel %vm643, %v655, 0.0
    %660 = vadd.xlane.f32.xlu0 %v659
    %v661 = vpop.xlane.xlu0 %660
    %v662 = vrcp.pop %v658
    %v663 = vrcp.pop %v661
    %v664 = vmul.f32 %v653, %v662
    %v665 = vmul.f32 %v655, %v663
    %v666 = vpack.c.bf16 %v664, %v664
    %v667 = vpack.c.bf16 %v665, %v665
    %v669 = vsel %vm643, %v666, 0
    %vm671 = vcmask 1043456
    %v673 = vsel %vm671, %v561, 0
    %675 = vmatprep.subr.bf16.mxu0 0
    %676 = vmatpush1.bf16.msra.mxu0 %v673
    %677 = vmatprep.subr.bf16.mxu0 0
    %678 = vmatpush1.bf16.msra.mxu0 0
    %679 = vmatprep.subr.bf16.mxu0 0
    %680 = vmatpush1.bf16.msra.mxu0 0
    %681 = vmatprep.subr.bf16.mxu0 0
    %682 = vmatpush1.bf16.msra.mxu0 0
    %683 = vmatprep.subr.bf16.mxu0 0
    %684 = vmatpush1.bf16.msra.mxu0 0
    %685 = vmatprep.subr.bf16.mxu0 0
    %686 = vmatpush1.bf16.msra.mxu0 0
    %687 = vmatprep.subr.bf16.mxu0 0
    %688 = vmatpush1.bf16.msra.mxu0 0
    %689 = vmatprep.subr.bf16.mxu0 0
    %690 = vmatpush1.bf16.msra.mxu0 0
    %691 = vmatprep.subr.bf16.mxu0 0
    %692 = vmatpush1.bf16.msra.mxu0 0
    %693 = vmatprep.subr.bf16.mxu0 0
    %694 = vmatpush1.bf16.msra.mxu0 0
    %695 = vmatprep.subr.bf16.mxu0 0
    %696 = vmatpush1.bf16.msra.mxu0 0
    %697 = vmatprep.subr.bf16.mxu0 0
    %698 = vmatpush1.bf16.msra.mxu0 0
    %699 = vmatprep.subr.bf16.mxu0 0
    %700 = vmatpush1.bf16.msra.mxu0 0
    %701 = vmatprep.subr.bf16.mxu0 0
    %702 = vmatpush1.bf16.msra.mxu0 0
    %703 = vmatprep.subr.bf16.mxu0 0
    %704 = vmatpush1.bf16.msra.mxu0 0
    %705 = vmatprep.subr.bf16.mxu0 0
    %706 = vmatpush1.bf16.msra.mxu0 0
    %707 = vmatprep.mubr.bf16.mxu0 0
    %708 = vmatmul.mubr.bf16.gmra.mrb[0].mxu0 %v669
    %v709 = vpop.f32.mrb[0].mxu0
    %v710 = vadd.f32 0.0, %v709
    %v711 = vpop.f32.mrb[0].mxu0
    %v712 = vpop.f32.mrb[0].mxu0
    %v713 = vpop.f32.mrb[0].mxu0
    %714 = vdwg.mxu0
    %v716 = vsel %vm643, %v667, 0
    %v719 = vsel %vm671, %v562, 0
    %721 = vmatprep.subr.bf16.mxu0 0
    %722 = vmatpush1.bf16.msra.mxu0 %v719
    %723 = vmatprep.subr.bf16.mxu0 0
    %724 = vmatpush1.bf16.msra.mxu0 0
    %725 = vmatprep.subr.bf16.mxu0 0
    %726 = vmatpush1.bf16.msra.mxu0 0
    %727 = vmatprep.subr.bf16.mxu0 0
    %728 = vmatpush1.bf16.msra.mxu0 0
    %729 = vmatprep.subr.bf16.mxu0 0
    %730 = vmatpush1.bf16.msra.mxu0 0
    %731 = vmatprep.subr.bf16.mxu0 0
    %732 = vmatpush1.bf16.msra.mxu0 0
    %733 = vmatprep.subr.bf16.mxu0 0
    %734 = vmatpush1.bf16.msra.mxu0 0
    %735 = vmatprep.subr.bf16.mxu0 0
    %736 = vmatpush1.bf16.msra.mxu0 0
    %737 = vmatprep.subr.bf16.mxu0 0
    %738 = vmatpush1.bf16.msra.mxu0 0
    %739 = vmatprep.subr.bf16.mxu0 0
    %740 = vmatpush1.bf16.msra.mxu0 0
    %741 = vmatprep.subr.bf16.mxu0 0
    %742 = vmatpush1.bf16.msra.mxu0 0
    %743 = vmatprep.subr.bf16.mxu0 0
    %744 = vmatpush1.bf16.msra.mxu0 0
    %745 = vmatprep.subr.bf16.mxu0 0
    %746 = vmatpush1.bf16.msra.mxu0 0
    %747 = vmatprep.subr.bf16.mxu0 0
    %748 = vmatpush1.bf16.msra.mxu0 0
    %749 = vmatprep.subr.bf16.mxu0 0
    %750 = vmatpush1.bf16.msra.mxu0 0
    %751 = vmatprep.subr.bf16.mxu0 0
    %752 = vmatpush1.bf16.msra.mxu0 0
    %753 = vmatprep.mubr.bf16.mxu0 0
    %754 = vmatmul.mubr.bf16.gmra.mrb[0].mxu0 %v716
    %v755 = vpop.f32.mrb[0].mxu0
    %v756 = vadd.f32 0.0, %v755
    %v757 = vpop.f32.mrb[0].mxu0
    %v758 = vpop.f32.mrb[0].mxu0
    %v759 = vpop.f32.mrb[0].mxu0
    %760 = vdwg.mxu0
    %v761 = vpack.c.bf16 %v465, %v465
    %v762 = vpack.c.bf16 %v469, %v469
    %v763 = vpack.c.bf16 %v508, %v508
    %v764 = vpack.c.bf16 %v512, %v512
    %v765 = vpack.c.bf16 %v551, %v551
    %v766 = vpack.c.bf16 %v555, %v555
    %767 = vmatprep.subr.bf16.mxu0 0
    %768 = vmatpush1.bf16.xpose.msra.mxu0 %v763
    %769 = vmatprep.subr.bf16.mxu0 0
    %770 = vmatpush1.bf16.xpose.msra.mxu0 0
    %771 = vmatprep.subr.bf16.mxu0 0
    %772 = vmatpush1.bf16.xpose.msra.mxu0 0
    %773 = vmatprep.subr.bf16.mxu0 0
    %774 = vmatpush1.bf16.xpose.msra.mxu0 0
    %775 = vmatprep.subr.bf16.mxu0 0
    %776 = vmatpush1.bf16.xpose.msra.mxu0 0
    %777 = vmatprep.subr.bf16.mxu0 0
    %778 = vmatpush1.bf16.xpose.msra.mxu0 0
    %779 = vmatprep.subr.bf16.mxu0 0
    %780 = vmatpush1.bf16.xpose.msra.mxu0 0
    %781 = vmatprep.subr.bf16.mxu0 0
    %782 = vmatpush1.bf16.xpose.msra.mxu0 0
    %783 = vmatprep.subr.bf16.mxu0 0
    %784 = vmatpush1.bf16.xpose.msra.mxu0 0
    %785 = vmatprep.subr.bf16.mxu0 0
    %786 = vmatpush1.bf16.xpose.msra.mxu0 0
    %787 = vmatprep.subr.bf16.mxu0 0
    %788 = vmatpush1.bf16.xpose.msra.mxu0 0
    %789 = vmatprep.subr.bf16.mxu0 0
    %790 = vmatpush1.bf16.xpose.msra.mxu0 0
    %791 = vmatprep.subr.bf16.mxu0 0
    %792 = vmatpush1.bf16.xpose.msra.mxu0 0
    %793 = vmatprep.subr.bf16.mxu0 0
    %794 = vmatpush1.bf16.xpose.msra.mxu0 0
    %795 = vmatprep.subr.bf16.mxu0 0
    %796 = vmatpush1.bf16.xpose.msra.mxu0 0
    %797 = vmatprep.subr.bf16.mxu0 0
    %798 = vmatpush1.bf16.xpose.msra.mxu0 0
    %799 = vmatprep.mubr.bf16.mxu0 0
    %800 = vmatmul.mubr.bf16.gmra.mrb[0].mxu0 %v761
    %v801 = vpop.f32.mrb[0].mxu0
    %v802 = vadd.f32 %v106, %v801
    %v803 = vpop.f32.mrb[0].mxu0
    %v804 = vpop.f32.mrb[0].mxu0
    %v805 = vpop.f32.mrb[0].mxu0
    %806 = vdwg.mxu0
    %807 = vmatprep.subr.bf16.mxu0 0
    %808 = vmatpush1.bf16.xpose.msra.mxu0 %v764
    %809 = vmatprep.subr.bf16.mxu0 0
    %810 = vmatpush1.bf16.xpose.msra.mxu0 0
    %811 = vmatprep.subr.bf16.mxu0 0
    %812 = vmatpush1.bf16.xpose.msra.mxu0 0
    %813 = vmatprep.subr.bf16.mxu0 0
    %814 = vmatpush1.bf16.xpose.msra.mxu0 0
    %815 = vmatprep.subr.bf16.mxu0 0
    %816 = vmatpush1.bf16.xpose.msra.mxu0 0
    %817 = vmatprep.subr.bf16.mxu0 0
    %818 = vmatpush1.bf16.xpose.msra.mxu0 0
    %819 = vmatprep.subr.bf16.mxu0 0
    %820 = vmatpush1.bf16.xpose.msra.mxu0 0
    %821 = vmatprep.subr.bf16.mxu0 0
    %822 = vmatpush1.bf16.xpose.msra.mxu0 0
    %823 = vmatprep.subr.bf16.mxu0 0
    %824 = vmatpush1.bf16.xpose.msra.mxu0 0
    %825 = vmatprep.subr.bf16.mxu0 0
    %826 = vmatpush1.bf16.xpose.msra.mxu0 0
    %827 = vmatprep.subr.bf16.mxu0 0
    %828 = vmatpush1.bf16.xpose.msra.mxu0 0
    %829 = vmatprep.subr.bf16.mxu0 0
    %830 = vmatpush1.bf16.xpose.msra.mxu0 0
    %831 = vmatprep.subr.bf16.mxu0 0
    %832 = vmatpush1.bf16.xpose.msra.mxu0 0
    %833 = vmatprep.subr.bf16.mxu0 0
    %834 = vmatpush1.bf16.xpose.msra.mxu0 0
    %835 = vmatprep.subr.bf16.mxu0 0
    %836 = vmatpush1.bf16.xpose.msra.mxu0 0
    %837 = vmatprep.subr.bf16.mxu0 0
    %838 = vmatpush1.bf16.xpose.msra.mxu0 0
    %839 = vmatprep.mubr.bf16.mxu0 0
    %840 = vmatmul.mubr.bf16.gmra.mrb[0].mxu0 %v762
    %v841 = vpop.f32.mrb[0].mxu0
    %v842 = vadd.f32 %v106, %v841
    %v843 = vpop.f32.mrb[0].mxu0
    %v844 = vpop.f32.mrb[0].mxu0
    %v845 = vpop.f32.mrb[0].mxu0
    %846 = vdwg.mxu0
    %v847 = vsel %vm643, %v802, -inf
    %848 = vmax.xlane.f32.xlu0 %v847
    %v849 = vpop.xlane.xlu0 %848
    %v850 = vsel %vm643, %v842, -inf
    %851 = vmax.xlane.f32.xlu0 %v850
    %v852 = vpop.xlane.xlu0 %851
    %v853 = vsub.f32 %v802, %v849
    %v854 = vsub.f32 %v842, %v852
    %v855 = vmul.f32 %v853, 1.442695
    %v856 = vpow.pop %v855
    %v857 = vmul.f32 %v854, 1.442695
    %v858 = vpow.pop %v857
    %v859 = vsel %vm643, %v856, 0.0
    %860 = vadd.xlane.f32.xlu0 %v859
    %v861 = vpop.xlane.xlu0 %860
    %v862 = vsel %vm643, %v858, 0.0
    %863 = vadd.xlane.f32.xlu0 %v862
    %v864 = vpop.xlane.xlu0 %863
    %v865 = vrcp.pop %v861
    %v866 = vrcp.pop %v864
    %v867 = vmul.f32 %v856, %v865
    %v868 = vmul.f32 %v858, %v866
    %v869 = vpack.c.bf16 %v867, %v867
    %v870 = vpack.c.bf16 %v868, %v868
    %v872 = vsel %vm643, %v869, 0
    %v875 = vsel %vm671, %v765, 0
    %877 = vmatprep.subr.bf16.mxu0 0
    %878 = vmatpush1.bf16.msra.mxu0 %v875
    %879 = vmatprep.subr.bf16.mxu0 0
    %880 = vmatpush1.bf16.msra.mxu0 0
    %881 = vmatprep.subr.bf16.mxu0 0
    %882 = vmatpush1.bf16.msra.mxu0 0
    %883 = vmatprep.subr.bf16.mxu0 0
    %884 = vmatpush1.bf16.msra.mxu0 0
    %885 = vmatprep.subr.bf16.mxu0 0
    %886 = vmatpush1.bf16.msra.mxu0 0
    %887 = vmatprep.subr.bf16.mxu0 0
    %888 = vmatpush1.bf16.msra.mxu0 0
    %889 = vmatprep.subr.bf16.mxu0 0
    %890 = vmatpush1.bf16.msra.mxu0 0
    %891 = vmatprep.subr.bf16.mxu0 0
    %892 = vmatpush1.bf16.msra.mxu0 0
    %893 = vmatprep.subr.bf16.mxu0 0
    %894 = vmatpush1.bf16.msra.mxu0 0
    %895 = vmatprep.subr.bf16.mxu0 0
    %896 = vmatpush1.bf16.msra.mxu0 0
    %897 = vmatprep.subr.bf16.mxu0 0
    %898 = vmatpush1.bf16.msra.mxu0 0
    %899 = vmatprep.subr.bf16.mxu0 0
    %900 = vmatpush1.bf16.msra.mxu0 0
    %901 = vmatprep.subr.bf16.mxu0 0
    %902 = vmatpush1.bf16.msra.mxu0 0
    %903 = vmatprep.subr.bf16.mxu0 0
    %904 = vmatpush1.bf16.msra.mxu0 0
    %905 = vmatprep.subr.bf16.mxu0 0
    %906 = vmatpush1.bf16.msra.mxu0 0
    %907 = vmatprep.subr.bf16.mxu0 0
    %908 = vmatpush1.bf16.msra.mxu0 0
    %909 = vmatprep.mubr.bf16.mxu0 0
    %910 = vmatmul.mubr.bf16.gmra.mrb[0].mxu0 %v872
    %v911 = vpop.f32.mrb[0].mxu0
    %v912 = vadd.f32 0.0, %v911
    %v913 = vpop.f32.mrb[0].mxu0
    %v914 = vpop.f32.mrb[0].mxu0
    %v915 = vpop.f32.mrb[0].mxu0
    %916 = vdwg.mxu0
    %v918 = vsel %vm643, %v870, 0
    %v921 = vsel %vm671, %v766, 0
    %923 = vmatprep.subr.bf16.mxu0 0
    %924 = vmatpush1.bf16.msra.mxu0 %v921
    %925 = vmatprep.subr.bf16.mxu0 0
    %926 = vmatpush1.bf16.msra.mxu0 0
    %927 = vmatprep.subr.bf16.mxu0 0
    %928 = vmatpush1.bf16.msra.mxu0 0
    %929 = vmatprep.subr.bf16.mxu0 0
    %930 = vmatpush1.bf16.msra.mxu0 0
    %931 = vmatprep.subr.bf16.mxu0 0
    %932 = vmatpush1.bf16.msra.mxu0 0
    %933 = vmatprep.subr.bf16.mxu0 0
    %934 = vmatpush1.bf16.msra.mxu0 0
    %935 = vmatprep.subr.bf16.mxu0 0
    %936 = vmatpush1.bf16.msra.mxu0 0
    %937 = vmatprep.subr.bf16.mxu0 0
    %938 = vmatpush1.bf16.msra.mxu0 0
    %939 = vmatprep.subr.bf16.mxu0 0
    %940 = vmatpush1.bf16.msra.mxu0 0
    %941 = vmatprep.subr.bf16.mxu0 0
    %942 = vmatpush1.bf16.msra.mxu0 0
    %943 = vmatprep.subr.bf16.mxu0 0
    %944 = vmatpush1.bf16.msra.mxu0 0
    %945 = vmatprep.subr.bf16.mxu0 0
    %946 = vmatpush1.bf16.msra.mxu0 0
    %947 = vmatprep.subr.bf16.mxu0 0
    %948 = vmatpush1.bf16.msra.mxu0 0
    %949 = vmatprep.subr.bf16.mxu0 0
    %950 = vmatpush1.bf16.msra.mxu0 0
    %951 = vmatprep.subr.bf16.mxu0 0
    %952 = vmatpush1.bf16.msra.mxu0 0
    %953 = vmatprep.subr.bf16.mxu0 0
    %954 = vmatpush1.bf16.msra.mxu0 0
    %955 = vmatprep.mubr.bf16.mxu0 0
    %956 = vmatmul.mubr.bf16.gmra.mrb[0].mxu0 %v918
    %v957 = vpop.f32.mrb[0].mxu0
    %v958 = vadd.f32 0.0, %v957
    %v959 = vpop.f32.mrb[0].mxu0
    %v960 = vpop.f32.mrb[0].mxu0
    %v961 = vpop.f32.mrb[0].mxu0
    %962 = vdwg.mxu0
    %v963 = vpack.c.bf16 %v756, %v710
    %v964 = vpack.c.bf16 %v958, %v912
    %v965 = vld [vmem:[#allocation4] sm:$0xf]
    %v966 = vld [vmem:[#allocation4 + $0xc] sm:$0xf]
    %v967 = vld [vmem:[#allocation4 + $0x18] sm:$0xf]
    %v968 = vld [vmem:[#allocation4 + $0x24] sm:$0xf]
    %v969 = vld [vmem:[#allocation4 + $0x30] sm:$0xf]
    %v970 = vld [vmem:[#allocation4 + $0x3c] sm:$0xf]
    %v971 = vld [vmem:[#allocation4 + $0x48] sm:$0xf]
    %v972 = vld [vmem:[#allocation4 + $0x54] sm:$0xf]
    %v973 = vld [vmem:[#allocation4 + $0x60] sm:$0xf]
    %v974 = vld [vmem:[#allocation4 + $0x6c] sm:$0xf]
    %v975 = vld [vmem:[#allocation4 + $0x78] sm:$0xf]
    %v976 = vld [vmem:[#allocation4 + $0x84] sm:$0xf]
    %v977 = vld [vmem:[#allocation4 + $0x90] sm:$0xf]
    %v978 = vld [vmem:[#allocation4 + $0x9c] sm:$0xf]
    %v979 = vld [vmem:[#allocation4 + $0xa8] sm:$0xf]
    %v980 = vld [vmem:[#allocation4 + $0xb4] sm:$0xf]
    %v981 = vld [vmem:[#allocation4 + $0xc0] sm:$0xf]
    %v982 = vld [vmem:[#allocation4 + $0xcc] sm:$0xf]
    %v983 = vld [vmem:[#allocation4 + $0xd8] sm:$0xf]
    %v984 = vld [vmem:[#allocation4 + $0xe4] sm:$0xf]
    %v985 = vld [vmem:[#allocation4 + $0xf0] sm:$0xf]
    %v986 = vld [vmem:[#allocation4 + $0xfc] sm:$0xf]
    %v987 = vld [vmem:[#allocation4 + $0x108] sm:$0xf]
    %v988 = vld [vmem:[#allocation4 + $0x114] sm:$0xf]
    %v989 = vld [vmem:[#allocation4 + $0x120] sm:$0xf]
    %v990 = vld [vmem:[#allocation4 + $0x12c] sm:$0xf]
    %v991 = vld [vmem:[#allocation4 + $0x138] sm:$0xf]
    %v992 = vld [vmem:[#allocation4 + $0x144] sm:$0xf]
    %v993 = vld [vmem:[#allocation4 + $0x150] sm:$0xf]
    %v994 = vld [vmem:[#allocation4 + $0x15c] sm:$0xf]
    %v995 = vld [vmem:[#allocation4 + $0x168] sm:$0xf]
    %v996 = vld [vmem:[#allocation4 + $0x174] sm:$0xf]
    %v997 = vld [vmem:[#allocation6 + $0xe] sm:$0x1]
    %v999 = vlaneseq
    %v1000 = vshrl.u32 %v999, 7
    %v1001 = vsub.s32 0, %v1000
    %v1002 = vrot.slane %v997, %v1001
    %v1036 = vunpack.c.l.b16 %v965
    %v1037 = vunpack.c.l.b16 %v966
    %v1038 = vunpack.c.l.b16 %v967
    %v1039 = vunpack.c.l.b16 %v968
    %v1040 = vunpack.c.l.b16 %v969
    %v1041 = vunpack.c.l.b16 %v970
    %v1042 = vunpack.c.l.b16 %v971
    %v1043 = vunpack.c.l.b16 %v972
    %v1044 = vunpack.c.l.b16 %v973
    %v1045 = vunpack.c.l.b16 %v974
    %v1046 = vunpack.c.l.b16 %v975
    %v1047 = vunpack.c.l.b16 %v976
    %v1048 = vunpack.c.l.b16 %v977
    %v1049 = vunpack.c.l.b16 %v978
    %v1050 = vunpack.c.l.b16 %v979
    %v1051 = vunpack.c.l.b16 %v980
    %v1052 = vunpack.c.l.b16 %v981
    %v1053 = vunpack.c.l.b16 %v982
    %v1054 = vunpack.c.l.b16 %v983
    %v1055 = vunpack.c.l.b16 %v984
    %v1056 = vunpack.c.l.b16 %v985
    %v1057 = vunpack.c.l.b16 %v986
    %v1058 = vunpack.c.l.b16 %v987
    %v1059 = vunpack.c.l.b16 %v988
    %v1060 = vunpack.c.l.b16 %v989
    %v1061 = vunpack.c.l.b16 %v990
    %v1062 = vunpack.c.l.b16 %v991
    %v1063 = vunpack.c.l.b16 %v992
    %v1064 = vunpack.c.l.b16 %v993
    %v1065 = vunpack.c.l.b16 %v994
    %v1066 = vunpack.c.l.b16 %v995
    %v1067 = vunpack.c.l.b16 %v996
    %v1068 = vpack.c.b16 %v1037, %v1036
    %v1069 = vpack.c.b16 %v1039, %v1038
    %v1070 = vpack.c.b16 %v1041, %v1040
    %v1071 = vpack.c.b16 %v1043, %v1042
    %v1072 = vpack.c.b16 %v1045, %v1044
    %v1073 = vpack.c.b16 %v1047, %v1046
    %v1074 = vpack.c.b16 %v1049, %v1048
    %v1075 = vpack.c.b16 %v1051, %v1050
    %v1076 = vpack.c.b16 %v1053, %v1052
    %v1077 = vpack.c.b16 %v1055, %v1054
    %v1078 = vpack.c.b16 %v1057, %v1056
    %v1079 = vpack.c.b16 %v1059, %v1058
    %v1080 = vpack.c.b16 %v1061, %v1060
    %v1081 = vpack.c.b16 %v1063, %v1062
    %v1082 = vpack.c.b16 %v1065, %v1064
    %v1083 = vpack.c.b16 %v1067, %v1066
    %1100 = vmatprep.subr.bf16.mxu0 0
    %1101 = vmatpush1.bf16.msra.mxu0 %v1068
    %1102 = vmatprep.subr.bf16.mxu0 0
    %1103 = vmatpush1.bf16.msra.mxu0 %v1069
    %1104 = vmatprep.subr.bf16.mxu0 0
    %1105 = vmatpush1.bf16.msra.mxu0 %v1070
    %1106 = vmatprep.subr.bf16.mxu0 0
    %1107 = vmatpush1.bf16.msra.mxu0 %v1071
    %1108 = vmatprep.subr.bf16.mxu0 0
    %1109 = vmatpush1.bf16.msra.mxu0 %v1072
    %1110 = vmatprep.subr.bf16.mxu0 0
    %1111 = vmatpush1.bf16.msra.mxu0 %v1073
    %1112 = vmatprep.subr.bf16.mxu0 0
    %1113 = vmatpush1.bf16.msra.mxu0 %v1074
    %1114 = vmatprep.subr.bf16.mxu0 0
    %1115 = vmatpush1.bf16.msra.mxu0 %v1075
    %1116 = vmatprep.subr.bf16.mxu0 0
    %1117 = vmatpush1.bf16.msra.mxu0 %v1076
    %1118 = vmatprep.subr.bf16.mxu0 0
    %1119 = vmatpush1.bf16.msra.mxu0 %v1077
    %1120 = vmatprep.subr.bf16.mxu0 0
    %1121 = vmatpush1.bf16.msra.mxu0 %v1078
    %1122 = vmatprep.subr.bf16.mxu0 0
    %1123 = vmatpush1.bf16.msra.mxu0 %v1079
    %1124 = vmatprep.subr.bf16.mxu0 0
    %1125 = vmatpush1.bf16.msra.mxu0 %v1080
    %1126 = vmatprep.subr.bf16.mxu0 0
    %1127 = vmatpush1.bf16.msra.mxu0 %v1081
    %1128 = vmatprep.subr.bf16.mxu0 0
    %1129 = vmatpush1.bf16.msra.mxu0 %v1082
    %1130 = vmatprep.subr.bf16.mxu0 0
    %1131 = vmatpush1.bf16.msra.mxu0 %v1083
    %1132 = vmatprep.mubr.bf16.mxu0 %v964
    %1133 = vmatmul.mubr.bf16.gmra.mrb[0].mxu0 %v963
    %v1134 = vpop.f32.mrb[0].mxu0
    %v1135 = vadd.f32 %v1002, %v1134
    %v1136 = vpop.f32.mrb[0].mxu0
    %v1137 = vpop.f32.mrb[0].mxu0
    %v1138 = vadd.f32 %v1002, %v1137
    %v1139 = vpop.f32.mrb[0].mxu0
    %1140 = vdwg.mxu0
    %v1141 = vadd.f32 %v93, %v1135
    %v1142 = vadd.f32 %v94, %v1138
    %v1143 = vld [vmem:[#allocation6 + $0x11] sm:$0x1]
    %v1144 = vld [vmem:[#allocation6 + $0x12] sm:$0x1]
    %1145 = vadd.xlane.f32.xlu0 %v1141
    %v1146 = vpop.xlane.xlu0 %1145
    %1147 = vadd.xlane.f32.xlu0 %v1142
    %v1148 = vpop.xlane.xlu0 %1147
    %v1149 = vrcp.pop 128.0
    %v1150 = vmul.f32 %v1146, %v1149
    %v1151 = vmul.f32 %v1148, %v1149
    %v1152 = vsub.f32 %v1141, %v1150
    %v1153 = vsub.f32 %v1142, %v1151
    %v1154 = vmul.f32 %v1152, %v1152
    %v1155 = vmul.f32 %v1153, %v1153
    %1156 = vadd.xlane.f32.xlu0 %v1154
    %v1157 = vpop.xlane.xlu0 %1156
    %1158 = vadd.xlane.f32.xlu0 %v1155
    %v1159 = vpop.xlane.xlu0 %1158
    %v1160 = vmul.f32 %v1157, %v1149
    %v1161 = vmul.f32 %v1159, %v1149
    %v1162 = vadd.f32 %v1160, 1e-05
    %v1163 = vadd.f32 %v1161, 1e-05
    %v1164 = vrsqrt.pop %v1162
    %v1165 = vrsqrt.pop %v1163
    %v1166 = vmul.f32 %v1152, %v1164
    %v1167 = vmul.f32 %v1153, %v1165
    %v1169 = vlaneseq
    %v1170 = vshrl.u32 %v1169, 7
    %v1171 = vsub.s32 0, %v1170
    %v1172 = vrot.slane %v1143, %v1171
    %v1174 = vmul.f32 %v1166, %v1172
    %v1175 = vmul.f32 %v1167, %v1172
    %v1177 = vlaneseq
    %v1178 = vshrl.u32 %v1177, 7
    %v1179 = vsub.s32 0, %v1178
    %v1180 = vrot.slane %v1144, %v1179
    %v1182 = vadd.f32 %v1174, %v1180
    %v1183 = vadd.f32 %v1175, %v1180
    %v1184 = vpack.c.bf16 %v1183, %v1182
    %v1185 = vld [vmem:[#allocation2 + $0x18] sm:$0xff]
    %v1186 = vld [vmem:[#allocation2 + $0x50] sm:$0xff]
    %v1187 = vld [vmem:[#allocation2 + $0x88] sm:$0xff]
    %v1188 = vld [vmem:[#allocation2 + $0xc0] sm:$0xff]
    %v1189 = vld [vmem:[#allocation2 + $0xf8] sm:$0xff]
    %v1190 = vld [vmem:[#allocation2 + $0x130] sm:$0xff]
    %v1191 = vld [vmem:[#allocation2 + $0x168] sm:$0xff]
    %v1192 = vld [vmem:[#allocation2 + $0x1a0] sm:$0xff]
    %v1193 = vld [vmem:[#allocation2 + $0x1d8] sm:$0xff]
    %v1194 = vld [vmem:[#allocation2 + $0x210] sm:$0xff]
    %v1195 = vld [vmem:[#allocation2 + $0x248] sm:$0xff]
    %v1196 = vld [vmem:[#allocation2 + $0x280] sm:$0xff]
    %v1197 = vld [vmem:[#allocation2 + $0x2b8] sm:$0xff]
    %v1198 = vld [vmem:[#allocation2 + $0x2f0] sm:$0xff]
    %v1199 = vld [vmem:[#allocation2 + $0x328] sm:$0xff]
    %v1200 = vld [vmem:[#allocation2 + $0x360] sm:$0xff]
    %v1201 = vld [vmem:[#allocation6 + $0x6] sm:$0x3]
    %v1203 = vlaneseq
    %v1204 = vshrl.u32 %v1203, 7
    %v1205 = vsub.s32 0, %v1204
    %v1206 = vrot.slane %v1201, %v1205
    %v1207 = vlaneseq
    %v1208 = vshrl.u32 %v1207, 7
    %v1209 = vsub.s32 1, %v1208
    %v1210 = vrot.slane %v1201, %v1209
    %v1229 = vunpack.c.l.b16 %v1185
    %v1230 = vunpack.c.h.b16 %v1185
    %v1231 = vunpack.c.l.b16 %v1186
    %v1232 = vunpack.c.h.b16 %v1186
    %v1233 = vunpack.c.l.b16 %v1187
    %v1234 = vunpack.c.h.b16 %v1187
    %v1235 = vunpack.c.l.b16 %v1188
    %v1236 = vunpack.c.h.b16 %v1188
    %v1237 = vunpack.c.l.b16 %v1189
    %v1238 = vunpack.c.h.b16 %v1189
    %v1239 = vunpack.c.l.b16 %v1190
    %v1240 = vunpack.c.h.b16 %v1190
    %v1241 = vunpack.c.l.b16 %v1191
    %v1242 = vunpack.c.h.b16 %v1191
    %v1243 = vunpack.c.l.b16 %v1192
    %v1244 = vunpack.c.h.b16 %v1192
    %v1245 = vunpack.c.l.b16 %v1193
    %v1246 = vunpack.c.h.b16 %v1193
    %v1247 = vunpack.c.l.b16 %v1194
    %v1248 = vunpack.c.h.b16 %v1194
    %v1249 = vunpack.c.l.b16 %v1195
    %v1250 = vunpack.c.h.b16 %v1195
    %v1251 = vunpack.c.l.b16 %v1196
    %v1252 = vunpack.c.h.b16 %v1196
    %v1253 = vunpack.c.l.b16 %v1197
    %v1254 = vunpack.c.h.b16 %v1197
    %v1255 = vunpack.c.l.b16 %v1198
    %v1256 = vunpack.c.h.b16 %v1198
    %v1257 = vunpack.c.l.b16 %v1199
    %v1258 = vunpack.c.h.b16 %v1199
    %v1259 = vunpack.c.l.b16 %v1200
    %v1260 = vunpack.c.h.b16 %v1200
    %v1261 = vpack.c.b16 %v1231, %v1229
    %v1262 = vpack.c.b16 %v1232, %v1230
    %v1263 = vpack.c.b16 %v1235, %v1233
    %v1264 = vpack.c.b16 %v1236, %v1234
    %v1265 = vpack.c.b16 %v1239, %v1237
    %v1266 = vpack.c.b16 %v1240, %v1238
    %v1267 = vpack.c.b16 %v1243, %v1241
    %v1268 = vpack.c.b16 %v1244, %v1242
    %v1269 = vpack.c.b16 %v1247, %v1245
    %v1270 = vpack.c.b16 %v1248, %v1246
    %v1271 = vpack.c.b16 %v1251, %v1249
    %v1272 = vpack.c.b16 %v1252, %v1250
    %v1273 = vpack.c.b16 %v1255, %v1253
    %v1274 = vpack.c.b16 %v1256, %v1254
    %v1275 = vpack.c.b16 %v1259, %v1257
    %v1276 = vpack.c.b16 %v1260, %v1258
    %1293 = vmatprep.subr.bf16.mxu0 %v1262
    %1294 = vmatpush1.bf16.msra.mxu0 %v1261
    %1295 = vmatprep.subr.bf16.mxu0 %v1264
    %1296 = vmatpush1.bf16.msra.mxu0 %v1263
    %1297 = vmatprep.subr.bf16.mxu0 %v1266
    %1298 = vmatpush1.bf16.msra.mxu0 %v1265
    %1299 = vmatprep.subr.bf16.mxu0 %v1268
    %1300 = vmatpush1.bf16.msra.mxu0 %v1267
    %1301 = vmatprep.subr.bf16.mxu0 %v1270
    %1302 = vmatpush1.bf16.msra.mxu0 %v1269
    %1303 = vmatprep.subr.bf16.mxu0 %v1272
    %1304 = vmatpush1.bf16.msra.mxu0 %v1271
    %1305 = vmatprep.subr.bf16.mxu0 %v1274
    %1306 = vmatpush1.bf16.msra.mxu0 %v1273
    %1307 = vmatprep.subr.bf16.mxu0 %v1276
    %1308 = vmatpush1.bf16.msra.mxu0 %v1275
    %1309 = vmatprep.subr.bf16.mxu0 0
    %1310 = vmatpush1.bf16.msra.mxu0 0
    %1311 = vmatprep.subr.bf16.mxu0 0
    %1312 = vmatpush1.bf16.msra.mxu0 0
    %1313 = vmatprep.subr.bf16.mxu0 0
    %1314 = vmatpush1.bf16.msra.mxu0 0
    %1315 = vmatprep.subr.bf16.mxu0 0
    %1316 = vmatpush1.bf16.msra.mxu0 0
    %1317 = vmatprep.subr.bf16.mxu0 0
    %1318 = vmatpush1.bf16.msra.mxu0 0
    %1319 = vmatprep.subr.bf16.mxu0 0
    %1320 = vmatpush1.bf16.msra.mxu0 0
    %1321 = vmatprep.subr.bf16.mxu0 0
    %1322 = vmatpush1.bf16.msra.mxu0 0
    %1323 = vmatprep.subr.bf16.mxu0 0
    %1324 = vmatpush1.bf16.msra.mxu0 0
    %1325 = vmatprep.mubr.bf16.mxu0 0
    %1326 = vmatmul.mubr.bf16.gmra.mrb[0].mxu0 %v1184
    %v1327 = vpop.f32.mrb[0].mxu0
    %v1328 = vadd.f32 %v1206, %v1327
    %v1329 = vpop.f32.mrb[0].mxu0
    %v1330 = vadd.f32 %v1210, %v1329
    %v1331 = vpop.f32.mrb[0].mxu0
    %v1332 = vadd.f32 %v1206, %v1331
    %v1333 = vpop.f32.mrb[0].mxu0
    %v1334 = vadd.f32 %v1210, %v1333
    %1335 = vdwg.mxu0
    %v1336 = vld [vmem:[#allocation2 + $0x20] sm:$0xff]
    %v1337 = vld [vmem:[#allocation2 + $0x28] sm:$0xff]
    %v1338 = vld [vmem:[#allocation2 + $0x58] sm:$0xff]
    %v1339 = vld [vmem:[#allocation2 + $0x60] sm:$0xff]
    %v1340 = vld [vmem:[#allocation2 + $0x90] sm:$0xff]
    %v1341 = vld [vmem:[#allocation2 + $0x98] sm:$0xff]
    %v1342 = vld [vmem:[#allocation2 + $0xc8] sm:$0xff]
    %v1343 = vld [vmem:[#allocation2 + $0xd0] sm:$0xff]
    %v1344 = vld [vmem:[#allocation2 + $0x100] sm:$0xff]
    %v1345 = vld [vmem:[#allocation2 + $0x108] sm:$0xff]
    %v1346 = vld [vmem:[#allocation2 + $0x138] sm:$0xff]
    %v1347 = vld [vmem:[#allocation2 + $0x140] sm:$0xff]
    %v1348 = vld [vmem:[#allocation2 + $0x170] sm:$0xff]
    %v1349 = vld [vmem:[#allocation2 + $0x178] sm:$0xff]
    %v1350 = vld [vmem:[#allocation2 + $0x1a8] sm:$0xff]
    %v1351 = vld [vmem:[#allocation2 + $0x1b0] sm:$0xff]
    %v1352 = vld [vmem:[#allocation2 + $0x1e0] sm:$0xff]
    %v1353 = vld [vmem:[#allocation2 + $0x1e8] sm:$0xff]
    %v1354 = vld [vmem:[#allocation2 + $0x218] sm:$0xff]
    %v1355 = vld [vmem:[#allocation2 + $0x220] sm:$0xff]
    %v1356 = vld [vmem:[#allocation2 + $0x250] sm:$0xff]
    %v1357 = vld [vmem:[#allocation2 + $0x258] sm:$0xff]
    %v1358 = vld [vmem:[#allocation2 + $0x288] sm:$0xff]
    %v1359 = vld [vmem:[#allocation2 + $0x290] sm:$0xff]
    %v1360 = vld [vmem:[#allocation2 + $0x2c0] sm:$0xff]
    %v1361 = vld [vmem:[#allocation2 + $0x2c8] sm:$0xff]
    %v1362 = vld [vmem:[#allocation2 + $0x2f8] sm:$0xff]
    %v1363 = vld [vmem:[#allocation2 + $0x300] sm:$0xff]
    %v1364 = vld [vmem:[#allocation2 + $0x330] sm:$0xff]
    %v1365 = vld [vmem:[#allocation2 + $0x338] sm:$0xff]
    %v1366 = vld [vmem:[#allocation2 + $0x368] sm:$0xff]
    %v1367 = vld [vmem:[#allocation2 + $0x370] sm:$0xff]
    %v1368 = vld [vmem:[#allocation6 + $0x8] sm:$0xf]
    %v1370 = vlaneseq
    %v1371 = vshrl.u32 %v1370, 7
    %v1372 = vsub.s32 0, %v1371
    %v1373 = vrot.slane %v1368, %v1372
    %v1374 = vlaneseq
    %v1375 = vshrl.u32 %v1374, 7
    %v1376 = vsub.s32 1, %v1375
    %v1377 = vrot.slane %v1368, %v1376
    %v1378 = vlaneseq
    %v1379 = vshrl.u32 %v1378, 7
    %v1380 = vsub.s32 2, %v1379
    %v1381 = vrot.slane %v1368, %v1380
    %v1382 = vlaneseq
    %v1383 = vshrl.u32 %v1382, 7
    %v1384 = vsub.s32 3, %v1383
    %v1385 = vrot.slane %v1368, %v1384
    %v1422 = vunpack.c.l.b16 %v1336
    %v1423 = vunpack.c.h.b16 %v1336
    %v1424 = vunpack.c.l.b16 %v1337
    %v1425 = vunpack.c.h.b16 %v1337
    %v1426 = vunpack.c.l.b16 %v1338
    %v1427 = vunpack.c.h.b16 %v1338
    %v1428 = vunpack.c.l.b16 %v1339
    %v1429 = vunpack.c.h.b16 %v1339
    %v1430 = vunpack.c.l.b16 %v1340
    %v1431 = vunpack.c.h.b16 %v1340
    %v1432 = vunpack.c.l.b16 %v1341
    %v1433 = vunpack.c.h.b16 %v1341
    %v1434 = vunpack.c.l.b16 %v1342
    %v1435 = vunpack.c.h.b16 %v1342
    %v1436 = vunpack.c.l.b16 %v1343
    %v1437 = vunpack.c.h.b16 %v1343
    %v1438 = vunpack.c.l.b16 %v1344
    %v1439 = vunpack.c.h.b16 %v1344
    %v1440 = vunpack.c.l.b16 %v1345
    %v1441 = vunpack.c.h.b16 %v1345
    %v1442 = vunpack.c.l.b16 %v1346
    %v1443 = vunpack.c.h.b16 %v1346
    %v1444 = vunpack.c.l.b16 %v1347
    %v1445 = vunpack.c.h.b16 %v1347
    %v1446 = vunpack.c.l.b16 %v1348
    %v1447 = vunpack.c.h.b16 %v1348
    %v1448 = vunpack.c.l.b16 %v1349
    %v1449 = vunpack.c.h.b16 %v1349
    %v1450 = vunpack.c.l.b16 %v1350
    %v1451 = vunpack.c.h.b16 %v1350
    %v1452 = vunpack.c.l.b16 %v1351
    %v1453 = vunpack.c.h.b16 %v1351
    %v1454 = vunpack.c.l.b16 %v1352
    %v1455 = vunpack.c.h.b16 %v1352
    %v1456 = vunpack.c.l.b16 %v1353
    %v1457 = vunpack.c.h.b16 %v1353
    %v1458 = vunpack.c.l.b16 %v1354
    %v1459 = vunpack.c.h.b16 %v1354
    %v1460 = vunpack.c.l.b16 %v1355
    %v1461 = vunpack.c.h.b16 %v1355
    %v1462 = vunpack.c.l.b16 %v1356
    %v1463 = vunpack.c.h.b16 %v1356
    %v1464 = vunpack.c.l.b16 %v1357
    %v1465 = vunpack.c.h.b16 %v1357
    %v1466 = vunpack.c.l.b16 %v1358
    %v1467 = vunpack.c.h.b16 %v1358
    %v1468 = vunpack.c.l.b16 %v1359
    %v1469 = vunpack.c.h.b16 %v1359
    %v1470 = vunpack.c.l.b16 %v1360
    %v1471 = vunpack.c.h.b16 %v1360
    %v1472 = vunpack.c.l.b16 %v1361
    %v1473 = vunpack.c.h.b16 %v1361
    %v1474 = vunpack.c.l.b16 %v1362
    %v1475 = vunpack.c.h.b16 %v1362
    %v1476 = vunpack.c.l.b16 %v1363
    %v1477 = vunpack.c.h.b16 %v1363
    %v1478 = vunpack.c.l.b16 %v1364
    %v1479 = vunpack.c.h.b16 %v1364
    %v1480 = vunpack.c.l.b16 %v1365
    %v1481 = vunpack.c.h.b16 %v1365
    %v1482 = vunpack.c.l.b16 %v1366
    %v1483 = vunpack.c.h.b16 %v1366
    %v1484 = vunpack.c.l.b16 %v1367
    %v1485 = vunpack.c.h.b16 %v1367
    %v1486 = vpack.c.b16 %v1426, %v1422
    %v1487 = vpack.c.b16 %v1427, %v1423
    %v1488 = vpack.c.b16 %v1428, %v1424
    %v1489 = vpack.c.b16 %v1429, %v1425
    %v1490 = vpack.c.b16 %v1434, %v1430
    %v1491 = vpack.c.b16 %v1435, %v1431
    %v1492 = vpack.c.b16 %v1436, %v1432
    %v1493 = vpack.c.b16 %v1437, %v1433
    %v1494 = vpack.c.b16 %v1442, %v1438
    %v1495 = vpack.c.b16 %v1443, %v1439
    %v1496 = vpack.c.b16 %v1444, %v1440
    %v1497 = vpack.c.b16 %v1445, %v1441
    %v1498 = vpack.c.b16 %v1450, %v1446
    %v1499 = vpack.c.b16 %v1451, %v1447
    %v1500 = vpack.c.b16 %v1452, %v1448
    %v1501 = vpack.c.b16 %v1453, %v1449
    %v1502 = vpack.c.b16 %v1458, %v1454
    %v1503 = vpack.c.b16 %v1459, %v1455
    %v1504 = vpack.c.b16 %v1460, %v1456
    %v1505 = vpack.c.b16 %v1461, %v1457
    %v1506 = vpack.c.b16 %v1466, %v1462
    %v1507 = vpack.c.b16 %v1467, %v1463
    %v1508 = vpack.c.b16 %v1468, %v1464
    %v1509 = vpack.c.b16 %v1469, %v1465
    %v1510 = vpack.c.b16 %v1474, %v1470
    %v1511 = vpack.c.b16 %v1475, %v1471
    %v1512 = vpack.c.b16 %v1476, %v1472
    %v1513 = vpack.c.b16 %v1477, %v1473
    %v1514 = vpack.c.b16 %v1482, %v1478
    %v1515 = vpack.c.b16 %v1483, %v1479
    %v1516 = vpack.c.b16 %v1484, %v1480
    %v1517 = vpack.c.b16 %v1485, %v1481
    %1550 = vmatprep.subr.bf16.mxu0 %v1487
    %1551 = vmatpush1.bf16.msra.mxu0 %v1486
    %1552 = vmatprep.subr.bf16.mxu0 %v1491
    %1553 = vmatpush1.bf16.msra.mxu0 %v1490
    %1554 = vmatprep.subr.bf16.mxu0 %v1495
    %1555 = vmatpush1.bf16.msra.mxu0 %v1494
    %1556 = vmatprep.subr.bf16.mxu0 %v1499
    %1557 = vmatpush1.bf16.msra.mxu0 %v1498
    %1558 = vmatprep.subr.bf16.mxu0 %v1503
    %1559 = vmatpush1.bf16.msra.mxu0 %v1502
    %1560 = vmatprep.subr.bf16.mxu0 %v1507
    %1561 = vmatpush1.bf16.msra.mxu0 %v1506
    %1562 = vmatprep.subr.bf16.mxu0 %v1511
    %1563 = vmatpush1.bf16.msra.mxu0 %v1510
    %1564 = vmatprep.subr.bf16.mxu0 %v1515
    %1565 = vmatpush1.bf16.msra.mxu0 %v1514
    %1566 = vmatprep.subr.bf16.mxu0 0
    %1567 = vmatpush1.bf16.msra.mxu0 0
    %1568 = vmatprep.subr.bf16.mxu0 0
    %1569 = vmatpush1.bf16.msra.mxu0 0
    %1570 = vmatprep.subr.bf16.mxu0 0
    %1571 = vmatpush1.bf16.msra.mxu0 0
    %1572 = vmatprep.subr.bf16.mxu0 0
    %1573 = vmatpush1.bf16.msra.mxu0 0
    %1574 = vmatprep.subr.bf16.mxu0 0
    %1575 = vmatpush1.bf16.msra.mxu0 0
    %1576 = vmatprep.subr.bf16.mxu0 0
    %1577 = vmatpush1.bf16.msra.mxu0 0
    %1578 = vmatprep.subr.bf16.mxu0 0
    %1579 = vmatpush1.bf16.msra.mxu0 0
    %1580 = vmatprep.subr.bf16.mxu0 0
    %1581 = vmatpush1.bf16.msra.mxu0 0
    %1582 = vmatprep.mubr.bf16.mxu0 0
    %1583 = vmatmul.mubr.bf16.gmra.mrb[0].mxu0 %v99
    %v1584 = vpop.f32.mrb[0].mxu0
    %v1585 = vadd.f32 %v1373, %v1584
    %v1586 = vpop.f32.mrb[0].mxu0
    %v1587 = vadd.f32 %v1377, %v1586
    %v1588 = vpop.f32.mrb[0].mxu0
    %v1589 = vadd.f32 %v1373, %v1588
    %v1590 = vpop.f32.mrb[0].mxu0
    %v1591 = vadd.f32 %v1377, %v1590
    %1592 = vmatprep.mubr.bf16.mxu0 0
    %1593 = vmatmul.mubr.bf16.gmra.mrb[0].mxu0 %v100
    %v1594 = vpop.f32.mrb[0].mxu0
    %v1595 = vadd.f32 %v1373, %v1594
    %v1596 = vpop.f32.mrb[0].mxu0
    %v1597 = vadd.f32 %v1377, %v1596
    %v1598 = vpop.f32.mrb[0].mxu0
    %v1599 = vadd.f32 %v1373, %v1598
    %v1600 = vpop.f32.mrb[0].mxu0
    %v1601 = vadd.f32 %v1377, %v1600
    %1602 = vdwg.mxu0
    %1603 = vmatprep.subr.bf16.mxu0 %v1489
    %1604 = vmatpush1.bf16.msra.mxu0 %v1488
    %1605 = vmatprep.subr.bf16.mxu0 %v1493
    %1606 = vmatpush1.bf16.msra.mxu0 %v1492
    %1607 = vmatprep.subr.bf16.mxu0 %v1497
    %1608 = vmatpush1.bf16.msra.mxu0 %v1496
    %1609 = vmatprep.subr.bf16.mxu0 %v1501
    %1610 = vmatpush1.bf16.msra.mxu0 %v1500
    %1611 = vmatprep.subr.bf16.mxu0 %v1505
    %1612 = vmatpush1.bf16.msra.mxu0 %v1504
    %1613 = vmatprep.subr.bf16.mxu0 %v1509
    %1614 = vmatpush1.bf16.msra.mxu0 %v1508
    %1615 = vmatprep.subr.bf16.mxu0 %v1513
    %1616 = vmatpush1.bf16.msra.mxu0 %v1512
    %1617 = vmatprep.subr.bf16.mxu0 %v1517
    %1618 = vmatpush1.bf16.msra.mxu0 %v1516
    %1619 = vmatprep.subr.bf16.mxu0 0
    %1620 = vmatpush1.bf16.msra.mxu0 0
    %1621 = vmatprep.subr.bf16.mxu0 0
    %1622 = vmatpush1.bf16.msra.mxu0 0
    %1623 = vmatprep.subr.bf16.mxu0 0
    %1624 = vmatpush1.bf16.msra.mxu0 0
    %1625 = vmatprep.subr.bf16.mxu0 0
    %1626 = vmatpush1.bf16.msra.mxu0 0
    %1627 = vmatprep.subr.bf16.mxu0 0
    %1628 = vmatpush1.bf16.msra.mxu0 0
    %1629 = vmatprep.subr.bf16.mxu0 0
    %1630 = vmatpush1.bf16.msra.mxu0 0
    %1631 = vmatprep.subr.bf16.mxu0 0
    %1632 = vmatpush1.bf16.msra.mxu0 0
    %1633 = vmatprep.subr.bf16.mxu0 0
    %1634 = vmatpush1.bf16.msra.mxu0 0
    %1635 = vmatprep.mubr.bf16.mxu0 0
    %1636 = vmatmul.mubr.bf16.gmra.mrb[0].mxu0 %v99
    %v1637 = vpop.f32.mrb[0].mxu0
    %v1638 = vadd.f32 %v1381, %v1637
    %v1639 = vpop.f32.mrb[0].mxu0
    %v1640 = vadd.f32 %v1385, %v1639
    %v1641 = vpop.f32.mrb[0].mxu0
    %v1642 = vadd.f32 %v1381, %v1641
    %v1643 = vpop.f32.mrb[0].mxu0
    %v1644 = vadd.f32 %v1385, %v1643
    %1645 = vmatprep.mubr.bf16.mxu0 0
    %1646 = vmatmul.mubr.bf16.gmra.mrb[0].mxu0 %v100
    %v1647 = vpop.f32.mrb[0].mxu0
    %v1648 = vadd.f32 %v1381, %v1647
    %v1649 = vpop.f32.mrb[0].mxu0
    %v1650 = vadd.f32 %v1385, %v1649
    %v1651 = vpop.f32.mrb[0].mxu0
    %v1652 = vadd.f32 %v1381, %v1651
    %v1653 = vpop.f32.mrb[0].mxu0
    %v1654 = vadd.f32 %v1385, %v1653
    %1655 = vdwg.mxu0
    %v1656 = vpack.c.bf16 %v1328, %v1328
    %v1657 = vpack.c.bf16 %v1332, %v1332
    %v1658 = vpack.c.bf16 %v1589, %v1585
    %v1659 = vpack.c.bf16 %v1599, %v1595
    %v1660 = vpack.c.bf16 %v1642, %v1638
    %v1661 = vpack.c.bf16 %v1652, %v1648
    %1662 = vmatprep.subr.bf16.mxu0 0
    %1663 = vmatpush1.bf16.xpose.msra.mxu0 %v1658
    %1664 = vmatprep.subr.bf16.mxu0 0
    %1665 = vmatpush1.bf16.xpose.msra.mxu0 0
    %1666 = vmatprep.subr.bf16.mxu0 0
    %1667 = vmatpush1.bf16.xpose.msra.mxu0 0
    %1668 = vmatprep.subr.bf16.mxu0 0
    %1669 = vmatpush1.bf16.xpose.msra.mxu0 0
    %1670 = vmatprep.subr.bf16.mxu0 0
    %1671 = vmatpush1.bf16.xpose.msra.mxu0 0
    %1672 = vmatprep.subr.bf16.mxu0 0
    %1673 = vmatpush1.bf16.xpose.msra.mxu0 0
    %1674 = vmatprep.subr.bf16.mxu0 0
    %1675 = vmatpush1.bf16.xpose.msra.mxu0 0
    %1676 = vmatprep.subr.bf16.mxu0 0
    %1677 = vmatpush1.bf16.xpose.msra.mxu0 0
    %1678 = vmatprep.subr.bf16.mxu0 0
    %1679 = vmatpush1.bf16.xpose.msra.mxu0 0
    %1680 = vmatprep.subr.bf16.mxu0 0
    %1681 = vmatpush1.bf16.xpose.msra.mxu0 0
    %1682 = vmatprep.subr.bf16.mxu0 0
    %1683 = vmatpush1.bf16.xpose.msra.mxu0 0
    %1684 = vmatprep.subr.bf16.mxu0 0
    %1685 = vmatpush1.bf16.xpose.msra.mxu0 0
    %1686 = vmatprep.subr.bf16.mxu0 0
    %1687 = vmatpush1.bf16.xpose.msra.mxu0 0
    %1688 = vmatprep.subr.bf16.mxu0 0
    %1689 = vmatpush1.bf16.xpose.msra.mxu0 0
    %1690 = vmatprep.subr.bf16.mxu0 0
    %1691 = vmatpush1.bf16.xpose.msra.mxu0 0
    %1692 = vmatprep.subr.bf16.mxu0 0
    %1693 = vmatpush1.bf16.xpose.msra.mxu0 0
    %1694 = vmatprep.mubr.bf16.mxu0 0
    %1695 = vmatmul.mubr.bf16.gmra.mrb[0].mxu0 %v1656
    %v1696 = vpop.f32.mrb[0].mxu0
    %v1697 = vadd.f32 0.0, %v1696
    %v1698 = vpop.f32.mrb[0].mxu0
    %v1699 = vpop.f32.mrb[0].mxu0
    %v1700 = vpop.f32.mrb[0].mxu0
    %1701 = vdwg.mxu0
    %1702 = vmatprep.subr.bf16.mxu0 0
    %1703 = vmatpush1.bf16.xpose.msra.mxu0 %v1659
    %1704 = vmatprep.subr.bf16.mxu0 0
    %1705 = vmatpush1.bf16.xpose.msra.mxu0 0
    %1706 = vmatprep.subr.bf16.mxu0 0
    %1707 = vmatpush1.bf16.xpose.msra.mxu0 0
    %1708 = vmatprep.subr.bf16.mxu0 0
    %1709 = vmatpush1.bf16.xpose.msra.mxu0 0
    %1710 = vmatprep.subr.bf16.mxu0 0
    %1711 = vmatpush1.bf16.xpose.msra.mxu0 0
    %1712 = vmatprep.subr.bf16.mxu0 0
    %1713 = vmatpush1.bf16.xpose.msra.mxu0 0
    %1714 = vmatprep.subr.bf16.mxu0 0
    %1715 = vmatpush1.bf16.xpose.msra.mxu0 0
    %1716 = vmatprep.subr.bf16.mxu0 0
    %1717 = vmatpush1.bf16.xpose.msra.mxu0 0
    %1718 = vmatprep.subr.bf16.mxu0 0
    %1719 = vmatpush1.bf16.xpose.msra.mxu0 0
    %1720 = vmatprep.subr.bf16.mxu0 0
    %1721 = vmatpush1.bf16.xpose.msra.mxu0 0
    %1722 = vmatprep.subr.bf16.mxu0 0
    %1723 = vmatpush1.bf16.xpose.msra.mxu0 0
    %1724 = vmatprep.subr.bf16.mxu0 0
    %1725 = vmatpush1.bf16.xpose.msra.mxu0 0
    %1726 = vmatprep.subr.bf16.mxu0 0
    %1727 = vmatpush1.bf16.xpose.msra.mxu0 0
    %1728 = vmatprep.subr.bf16.mxu0 0
    %1729 = vmatpush1.bf16.xpose.msra.mxu0 0
    %1730 = vmatprep.subr.bf16.mxu0 0
    %1731 = vmatpush1.bf16.xpose.msra.mxu0 0
    %1732 = vmatprep.subr.bf16.mxu0 0
    %1733 = vmatpush1.bf16.xpose.msra.mxu0 0
    %1734 = vmatprep.mubr.bf16.mxu0 0
    %1735 = vmatmul.mubr.bf16.gmra.mrb[0].mxu0 %v1657
    %v1736 = vpop.f32.mrb[0].mxu0
    %v1737 = vadd.f32 0.0, %v1736
    %v1738 = vpop.f32.mrb[0].mxu0
    %v1739 = vpop.f32.mrb[0].mxu0
    %v1740 = vpop.f32.mrb[0].mxu0
    %1741 = vdwg.mxu0
    %vm1742 = vcmask 130048
    %v1743 = vsel %vm1742, %v1697, -inf
    %1744 = vmax.xlane.f32.xlu0 %v1743
    %v1745 = vpop.xlane.xlu0 %1744
    %v1746 = vsel %vm1742, %v1737, -inf
    %1747 = vmax.xlane.f32.xlu0 %v1746
    %v1748 = vpop.xlane.xlu0 %1747
    %v1749 = vsub.f32 %v1697, %v1745
    %v1750 = vsub.f32 %v1737, %v1748
    %v1751 = vmul.f32 %v1749, 1.442695
    %v1752 = vpow.pop %v1751
    %v1753 = vmul.f32 %v1750, 1.442695
    %v1754 = vpow.pop %v1753
    %v1755 = vsel %vm1742, %v1752, 0.0
    %1756 = vadd.xlane.f32.xlu0 %v1755
    %v1757 = vpop.xlane.xlu0 %1756
    %v1758 = vsel %vm1742, %v1754, 0.0
    %1759 = vadd.xlane.f32.xlu0 %v1758
    %v1760 = vpop.xlane.xlu0 %1759
    %v1761 = vrcp.pop %v1757
    %v1762 = vrcp.pop %v1760
    %v1763 = vmul.f32 %v1752, %v1761
    %v1764 = vmul.f32 %v1754, %v1762
    %v1765 = vpack.c.bf16 %v1763, %v1763
    %v1766 = vpack.c.bf16 %v1764, %v1764
    %v1768 = vsel %vm1742, %v1765, 0
    %1770 = vmatprep.subr.bf16.mxu0 0
    %1771 = vmatpush1.bf16.msra.mxu0 %v1660
    %1772 = vmatprep.subr.bf16.mxu0 0
    %1773 = vmatpush1.bf16.msra.mxu0 0
    %1774 = vmatprep.subr.bf16.mxu0 0
    %1775 = vmatpush1.bf16.msra.mxu0 0
    %1776 = vmatprep.subr.bf16.mxu0 0
    %1777 = vmatpush1.bf16.msra.mxu0 0
    %1778 = vmatprep.subr.bf16.mxu0 0
    %1779 = vmatpush1.bf16.msra.mxu0 0
    %1780 = vmatprep.subr.bf16.mxu0 0
    %1781 = vmatpush1.bf16.msra.mxu0 0
    %1782 = vmatprep.subr.bf16.mxu0 0
    %1783 = vmatpush1.bf16.msra.mxu0 0
    %1784 = vmatprep.subr.bf16.mxu0 0
    %1785 = vmatpush1.bf16.msra.mxu0 0
    %1786 = vmatprep.subr.bf16.mxu0 0
    %1787 = vmatpush1.bf16.msra.mxu0 0
    %1788 = vmatprep.subr.bf16.mxu0 0
    %1789 = vmatpush1.bf16.msra.mxu0 0
    %1790 = vmatprep.subr.bf16.mxu0 0
    %1791 = vmatpush1.bf16.msra.mxu0 0
    %1792 = vmatprep.subr.bf16.mxu0 0
    %1793 = vmatpush1.bf16.msra.mxu0 0
    %1794 = vmatprep.subr.bf16.mxu0 0
    %1795 = vmatpush1.bf16.msra.mxu0 0
    %1796 = vmatprep.subr.bf16.mxu0 0
    %1797 = vmatpush1.bf16.msra.mxu0 0
    %1798 = vmatprep.subr.bf16.mxu0 0
    %1799 = vmatpush1.bf16.msra.mxu0 0
    %1800 = vmatprep.subr.bf16.mxu0 0
    %1801 = vmatpush1.bf16.msra.mxu0 0
    %1802 = vmatprep.mubr.bf16.mxu0 0
    %1803 = vmatmul.mubr.bf16.gmra.mrb[0].mxu0 %v1768
    %v1804 = vpop.f32.mrb[0].mxu0
    %v1805 = vadd.f32 0.0, %v1804
    %v1806 = vpop.f32.mrb[0].mxu0
    %v1807 = vpop.f32.mrb[0].mxu0
    %v1808 = vpop.f32.mrb[0].mxu0
    %1809 = vdwg.mxu0
    %v1811 = vsel %vm1742, %v1766, 0
    %1813 = vmatprep.subr.bf16.mxu0 0
    %1814 = vmatpush1.bf16.msra.mxu0 %v1661
    %1815 = vmatprep.subr.bf16.mxu0 0
    %1816 = vmatpush1.bf16.msra.mxu0 0
    %1817 = vmatprep.subr.bf16.mxu0 0
    %1818 = vmatpush1.bf16.msra.mxu0 0
    %1819 = vmatprep.subr.bf16.mxu0 0
    %1820 = vmatpush1.bf16.msra.mxu0 0
    %1821 = vmatprep.subr.bf16.mxu0 0
    %1822 = vmatpush1.bf16.msra.mxu0 0
    %1823 = vmatprep.subr.bf16.mxu0 0
    %1824 = vmatpush1.bf16.msra.mxu0 0
    %1825 = vmatprep.subr.bf16.mxu0 0
    %1826 = vmatpush1.bf16.msra.mxu0 0
    %1827 = vmatprep.subr.bf16.mxu0 0
    %1828 = vmatpush1.bf16.msra.mxu0 0
    %1829 = vmatprep.subr.bf16.mxu0 0
    %1830 = vmatpush1.bf16.msra.mxu0 0
    %1831 = vmatprep.subr.bf16.mxu0 0
    %1832 = vmatpush1.bf16.msra.mxu0 0
    %1833 = vmatprep.subr.bf16.mxu0 0
    %1834 = vmatpush1.bf16.msra.mxu0 0
    %1835 = vmatprep.subr.bf16.mxu0 0
    %1836 = vmatpush1.bf16.msra.mxu0 0
    %1837 = vmatprep.subr.bf16.mxu0 0
    %1838 = vmatpush1.bf16.msra.mxu0 0
    %1839 = vmatprep.subr.bf16.mxu0 0
    %1840 = vmatpush1.bf16.msra.mxu0 0
    %1841 = vmatprep.subr.bf16.mxu0 0
    %1842 = vmatpush1.bf16.msra.mxu0 0
    %1843 = vmatprep.subr.bf16.mxu0 0
    %1844 = vmatpush1.bf16.msra.mxu0 0
    %1845 = vmatprep.mubr.bf16.mxu0 0
    %1846 = vmatmul.mubr.bf16.gmra.mrb[0].mxu0 %v1811
    %v1847 = vpop.f32.mrb[0].mxu0
    %v1848 = vadd.f32 0.0, %v1847
    %v1849 = vpop.f32.mrb[0].mxu0
    %v1850 = vpop.f32.mrb[0].mxu0
    %v1851 = vpop.f32.mrb[0].mxu0
    %1852 = vdwg.mxu0
    %v1853 = vpack.c.bf16 %v1330, %v1330
    %v1854 = vpack.c.bf16 %v1334, %v1334
    %v1855 = vpack.c.bf16 %v1591, %v1587
    %v1856 = vpack.c.bf16 %v1601, %v1597
    %v1857 = vpack.c.bf16 %v1644, %v1640
    %v1858 = vpack.c.bf16 %v1654, %v1650
    %1859 = vmatprep.subr.bf16.mxu0 0
    %1860 = vmatpush1.bf16.xpose.msra.mxu0 %v1855
    %1861 = vmatprep.subr.bf16.mxu0 0
    %1862 = vmatpush1.bf16.xpose.msra.mxu0 0
    %1863 = vmatprep.subr.bf16.mxu0 0
    %1864 = vmatpush1.bf16.xpose.msra.mxu0 0
    %1865 = vmatprep.subr.bf16.mxu0 0
    %1866 = vmatpush1.bf16.xpose.msra.mxu0 0
    %1867 = vmatprep.subr.bf16.mxu0 0
    %1868 = vmatpush1.bf16.xpose.msra.mxu0 0
    %1869 = vmatprep.subr.bf16.mxu0 0
    %1870 = vmatpush1.bf16.xpose.msra.mxu0 0
    %1871 = vmatprep.subr.bf16.mxu0 0
    %1872 = vmatpush1.bf16.xpose.msra.mxu0 0
    %1873 = vmatprep.subr.bf16.mxu0 0
    %1874 = vmatpush1.bf16.xpose.msra.mxu0 0
    %1875 = vmatprep.subr.bf16.mxu0 0
    %1876 = vmatpush1.bf16.xpose.msra.mxu0 0
    %1877 = vmatprep.subr.bf16.mxu0 0
    %1878 = vmatpush1.bf16.xpose.msra.mxu0 0
    %1879 = vmatprep.subr.bf16.mxu0 0
    %1880 = vmatpush1.bf16.xpose.msra.mxu0 0
    %1881 = vmatprep.subr.bf16.mxu0 0
    %1882 = vmatpush1.bf16.xpose.msra.mxu0 0
    %1883 = vmatprep.subr.bf16.mxu0 0
    %1884 = vmatpush1.bf16.xpose.msra.mxu0 0
    %1885 = vmatprep.subr.bf16.mxu0 0
    %1886 = vmatpush1.bf16.xpose.msra.mxu0 0
    %1887 = vmatprep.subr.bf16.mxu0 0
    %1888 = vmatpush1.bf16.xpose.msra.mxu0 0
    %1889 = vmatprep.subr.bf16.mxu0 0
    %1890 = vmatpush1.bf16.xpose.msra.mxu0 0
    %1891 = vmatprep.mubr.bf16.mxu0 0
    %1892 = vmatmul.mubr.bf16.gmra.mrb[0].mxu0 %v1853
    %v1893 = vpop.f32.mrb[0].mxu0
    %v1894 = vadd.f32 0.0, %v1893
    %v1895 = vpop.f32.mrb[0].mxu0
    %v1896 = vpop.f32.mrb[0].mxu0
    %v1897 = vpop.f32.mrb[0].mxu0
    %1898 = vdwg.mxu0
    %1899 = vmatprep.subr.bf16.mxu0 0
    %1900 = vmatpush1.bf16.xpose.msra.mxu0 %v1856
    %1901 = vmatprep.subr.bf16.mxu0 0
    %1902 = vmatpush1.bf16.xpose.msra.mxu0 0
    %1903 = vmatprep.subr.bf16.mxu0 0
    %1904 = vmatpush1.bf16.xpose.msra.mxu0 0
    %1905 = vmatprep.subr.bf16.mxu0 0
    %1906 = vmatpush1.bf16.xpose.msra.mxu0 0
    %1907 = vmatprep.subr.bf16.mxu0 0
    %1908 = vmatpush1.bf16.xpose.msra.mxu0 0
    %1909 = vmatprep.subr.bf16.mxu0 0
    %1910 = vmatpush1.bf16.xpose.msra.mxu0 0
    %1911 = vmatprep.subr.bf16.mxu0 0
    %1912 = vmatpush1.bf16.xpose.msra.mxu0 0
    %1913 = vmatprep.subr.bf16.mxu0 0
    %1914 = vmatpush1.bf16.xpose.msra.mxu0 0
    %1915 = vmatprep.subr.bf16.mxu0 0
    %1916 = vmatpush1.bf16.xpose.msra.mxu0 0
    %1917 = vmatprep.subr.bf16.mxu0 0
    %1918 = vmatpush1.bf16.xpose.msra.mxu0 0
    %1919 = vmatprep.subr.bf16.mxu0 0
    %1920 = vmatpush1.bf16.xpose.msra.mxu0 0
    %1921 = vmatprep.subr.bf16.mxu0 0
    %1922 = vmatpush1.bf16.xpose.msra.mxu0 0
    %1923 = vmatprep.subr.bf16.mxu0 0
    %1924 = vmatpush1.bf16.xpose.msra.mxu0 0
    %1925 = vmatprep.subr.bf16.mxu0 0
    %1926 = vmatpush1.bf16.xpose.msra.mxu0 0
    %1927 = vmatprep.subr.bf16.mxu0 0
    %1928 = vmatpush1.bf16.xpose.msra.mxu0 0
    %1929 = vmatprep.subr.bf16.mxu0 0
    %1930 = vmatpush1.bf16.xpose.msra.mxu0 0
    %1931 = vmatprep.mubr.bf16.mxu0 0
    %1932 = vmatmul.mubr.bf16.gmra.mrb[0].mxu0 %v1854
    %v1933 = vpop.f32.mrb[0].mxu0
    %v1934 = vadd.f32 0.0, %v1933
    %v1935 = vpop.f32.mrb[0].mxu0
    %v1936 = vpop.f32.mrb[0].mxu0
    %v1937 = vpop.f32.mrb[0].mxu0
    %1938 = vdwg.mxu0
    %v1939 = vsel %vm1742, %v1894, -inf
    %1940 = vmax.xlane.f32.xlu0 %v1939
    %v1941 = vpop.xlane.xlu0 %1940
    %v1942 = vsel %vm1742, %v1934, -inf
    %1943 = vmax.xlane.f32.xlu0 %v1942
    %v1944 = vpop.xlane.xlu0 %1943
    %v1945 = vsub.f32 %v1894, %v1941
    %v1946 = vsub.f32 %v1934, %v1944
    %v1947 = vmul.f32 %v1945, 1.442695
    %v1948 = vpow.pop %v1947
    %v1949 = vmul.f32 %v1946, 1.442695
    %v1950 = vpow.pop %v1949
    %v1951 = vsel %vm1742, %v1948, 0.0
    %1952 = vadd.xlane.f32.xlu0 %v1951
    %v1953 = vpop.xlane.xlu0 %1952
    %v1954 = vsel %vm1742, %v1950, 0.0
    %1955 = vadd.xlane.f32.xlu0 %v1954
    %v1956 = vpop.xlane.xlu0 %1955
    %v1957 = vrcp.pop %v1953
    %v1958 = vrcp.pop %v1956
    %v1959 = vmul.f32 %v1948, %v1957
    %v1960 = vmul.f32 %v1950, %v1958
    %v1961 = vpack.c.bf16 %v1959, %v1959
    %v1962 = vpack.c.bf16 %v1960, %v1960
    %v1964 = vsel %vm1742, %v1961, 0
    %1966 = vmatprep.subr.bf16.mxu0 0
    %1967 = vmatpush1.bf16.msra.mxu0 %v1857
    %1968 = vmatprep.subr.bf16.mxu0 0
    %1969 = vmatpush1.bf16.msra.mxu0 0
    %1970 = vmatprep.subr.bf16.mxu0 0
    %1971 = vmatpush1.bf16.msra.mxu0 0
    %1972 = vmatprep.subr.bf16.mxu0 0
    %1973 = vmatpush1.bf16.msra.mxu0 0
    %1974 = vmatprep.subr.bf16.mxu0 0
    %1975 = vmatpush1.bf16.msra.mxu0 0
    %1976 = vmatprep.subr.bf16.mxu0 0
    %1977 = vmatpush1.bf16.msra.mxu0 0
    %1978 = vmatprep.subr.bf16.mxu0 0
    %1979 = vmatpush1.bf16.msra.mxu0 0
    %1980 = vmatprep.subr.bf16.mxu0 0
    %1981 = vmatpush1.bf16.msra.mxu0 0
    %1982 = vmatprep.subr.bf16.mxu0 0
    %1983 = vmatpush1.bf16.msra.mxu0 0
    %1984 = vmatprep.subr.bf16.mxu0 0
    %1985 = vmatpush1.bf16.msra.mxu0 0
    %1986 = vmatprep.subr.bf16.mxu0 0
    %1987 = vmatpush1.bf16.msra.mxu0 0
    %1988 = vmatprep.subr.bf16.mxu0 0
    %1989 = vmatpush1.bf16.msra.mxu0 0
    %1990 = vmatprep.subr.bf16.mxu0 0
    %1991 = vmatpush1.bf16.msra.mxu0 0
    %1992 = vmatprep.subr.bf16.mxu0 0
    %1993 = vmatpush1.bf16.msra.mxu0 0
    %1994 = vmatprep.subr.bf16.mxu0 0
    %1995 = vmatpush1.bf16.msra.mxu0 0
    %1996 = vmatprep.subr.bf16.mxu0 0
    %1997 = vmatpush1.bf16.msra.mxu0 0
    %1998 = vmatprep.mubr.bf16.mxu0 0
    %1999 = vmatmul.mubr.bf16.gmra.mrb[0].mxu0 %v1964
    %v2000 = vpop.f32.mrb[0].mxu0
    %v2001 = vadd.f32 0.0, %v2000
    %v2002 = vpop.f32.mrb[0].mxu0
    %v2003 = vpop.f32.mrb[0].mxu0
    %v2004 = vpop.f32.mrb[0].mxu0
    %2005 = vdwg.mxu0
    %v2007 = vsel %vm1742, %v1962, 0
    %2009 = vmatprep.subr.bf16.mxu0 0
    %2010 = vmatpush1.bf16.msra.mxu0 %v1858
    %2011 = vmatprep.subr.bf16.mxu0 0
    %2012 = vmatpush1.bf16.msra.mxu0 0
    %2013 = vmatprep.subr.bf16.mxu0 0
    %2014 = vmatpush1.bf16.msra.mxu0 0
    %2015 = vmatprep.subr.bf16.mxu0 0
    %2016 = vmatpush1.bf16.msra.mxu0 0
    %2017 = vmatprep.subr.bf16.mxu0 0
    %2018 = vmatpush1.bf16.msra.mxu0 0
    %2019 = vmatprep.subr.bf16.mxu0 0
    %2020 = vmatpush1.bf16.msra.mxu0 0
    %2021 = vmatprep.subr.bf16.mxu0 0
    %2022 = vmatpush1.bf16.msra.mxu0 0
    %2023 = vmatprep.subr.bf16.mxu0 0
    %2024 = vmatpush1.bf16.msra.mxu0 0
    %2025 = vmatprep.subr.bf16.mxu0 0
    %2026 = vmatpush1.bf16.msra.mxu0 0
    %2027 = vmatprep.subr.bf16.mxu0 0
    %2028 = vmatpush1.bf16.msra.mxu0 0
    %2029 = vmatprep.subr.bf16.mxu0 0
    %2030 = vmatpush1.bf16.msra.mxu0 0
    %2031 = vmatprep.subr.bf16.mxu0 0
    %2032 = vmatpush1.bf16.msra.mxu0 0
    %2033 = vmatprep.subr.bf16.mxu0 0
    %2034 = vmatpush1.bf16.msra.mxu0 0
    %2035 = vmatprep.subr.bf16.mxu0 0
    %2036 = vmatpush1.bf16.msra.mxu0 0
    %2037 = vmatprep.subr.bf16.mxu0 0
    %2038 = vmatpush1.bf16.msra.mxu0 0
    %2039 = vmatprep.subr.bf16.mxu0 0
    %2040 = vmatpush1.bf16.msra.mxu0 0
    %2041 = vmatprep.mubr.bf16.mxu0 0
    %2042 = vmatmul.mubr.bf16.gmra.mrb[0].mxu0 %v2007
    %v2043 = vpop.f32.mrb[0].mxu0
    %v2044 = vadd.f32 0.0, %v2043
    %v2045 = vpop.f32.mrb[0].mxu0
    %v2046 = vpop.f32.mrb[0].mxu0
    %v2047 = vpop.f32.mrb[0].mxu0
    %2048 = vdwg.mxu0
    %v2049 = vpack.c.bf16 %v1848, %v1805
    %v2050 = vpack.c.bf16 %v2044, %v2001
    %v2051 = vld [vmem:[#allocation4 + $0x4] sm:$0xf]
    %v2052 = vld [vmem:[#allocation4 + $0x10] sm:$0xf]
    %v2053 = vld [vmem:[#allocation4 + $0x1c] sm:$0xf]
    %v2054 = vld [vmem:[#allocation4 + $0x28] sm:$0xf]
    %v2055 = vld [vmem:[#allocation4 + $0x34] sm:$0xf]
    %v2056 = vld [vmem:[#allocation4 + $0x40] sm:$0xf]
    %v2057 = vld [vmem:[#allocation4 + $0x4c] sm:$0xf]
    %v2058 = vld [vmem:[#allocation4 + $0x58] sm:$0xf]
    %v2059 = vld [vmem:[#allocation4 + $0x64] sm:$0xf]
    %v2060 = vld [vmem:[#allocation4 + $0x70] sm:$0xf]
    %v2061 = vld [vmem:[#allocation4 + $0x7c] sm:$0xf]
    %v2062 = vld [vmem:[#allocation4 + $0x88] sm:$0xf]
    %v2063 = vld [vmem:[#allocation4 + $0x94] sm:$0xf]
    %v2064 = vld [vmem:[#allocation4 + $0xa0] sm:$0xf]
    %v2065 = vld [vmem:[#allocation4 + $0xac] sm:$0xf]
    %v2066 = vld [vmem:[#allocation4 + $0xb8] sm:$0xf]
    %v2067 = vld [vmem:[#allocation4 + $0xc4] sm:$0xf]
    %v2068 = vld [vmem:[#allocation4 + $0xd0] sm:$0xf]
    %v2069 = vld [vmem:[#allocation4 + $0xdc] sm:$0xf]
    %v2070 = vld [vmem:[#allocation4 + $0xe8] sm:$0xf]
    %v2071 = vld [vmem:[#allocation4 + $0xf4] sm:$0xf]
    %v2072 = vld [vmem:[#allocation4 + $0x100] sm:$0xf]
    %v2073 = vld [vmem:[#allocation4 + $0x10c] sm:$0xf]
    %v2074 = vld [vmem:[#allocation4 + $0x118] sm:$0xf]
    %v2075 = vld [vmem:[#allocation4 + $0x124] sm:$0xf]
    %v2076 = vld [vmem:[#allocation4 + $0x130] sm:$0xf]
    %v2077 = vld [vmem:[#allocation4 + $0x13c] sm:$0xf]
    %v2078 = vld [vmem:[#allocation4 + $0x148] sm:$0xf]
    %v2079 = vld [vmem:[#allocation4 + $0x154] sm:$0xf]
    %v2080 = vld [vmem:[#allocation4 + $0x160] sm:$0xf]
    %v2081 = vld [vmem:[#allocation4 + $0x16c] sm:$0xf]
    %v2082 = vld [vmem:[#allocation4 + $0x178] sm:$0xf]
    %v2083 = vld [vmem:[#allocation6 + $0xf] sm:$0x1]
    %v2085 = vlaneseq
    %v2086 = vshrl.u32 %v2085, 7
    %v2087 = vsub.s32 0, %v2086
    %v2088 = vrot.slane %v2083, %v2087
    %v2122 = vunpack.c.l.b16 %v2051
    %v2123 = vunpack.c.l.b16 %v2052
    %v2124 = vunpack.c.l.b16 %v2053
    %v2125 = vunpack.c.l.b16 %v2054
    %v2126 = vunpack.c.l.b16 %v2055
    %v2127 = vunpack.c.l.b16 %v2056
    %v2128 = vunpack.c.l.b16 %v2057
    %v2129 = vunpack.c.l.b16 %v2058
    %v2130 = vunpack.c.l.b16 %v2059
    %v2131 = vunpack.c.l.b16 %v2060
    %v2132 = vunpack.c.l.b16 %v2061
    %v2133 = vunpack.c.l.b16 %v2062
    %v2134 = vunpack.c.l.b16 %v2063
    %v2135 = vunpack.c.l.b16 %v2064
    %v2136 = vunpack.c.l.b16 %v2065
    %v2137 = vunpack.c.l.b16 %v2066
    %v2138 = vunpack.c.l.b16 %v2067
    %v2139 = vunpack.c.l.b16 %v2068
    %v2140 = vunpack.c.l.b16 %v2069
    %v2141 = vunpack.c.l.b16 %v2070
    %v2142 = vunpack.c.l.b16 %v2071
    %v2143 = vunpack.c.l.b16 %v2072
    %v2144 = vunpack.c.l.b16 %v2073
    %v2145 = vunpack.c.l.b16 %v2074
    %v2146 = vunpack.c.l.b16 %v2075
    %v2147 = vunpack.c.l.b16 %v2076
    %v2148 = vunpack.c.l.b16 %v2077
    %v2149 = vunpack.c.l.b16 %v2078
    %v2150 = vunpack.c.l.b16 %v2079
    %v2151 = vunpack.c.l.b16 %v2080
    %v2152 = vunpack.c.l.b16 %v2081
    %v2153 = vunpack.c.l.b16 %v2082
    %v2154 = vpack.c.b16 %v2123, %v2122
    %v2155 = vpack.c.b16 %v2125, %v2124
    %v2156 = vpack.c.b16 %v2127, %v2126
    %v2157 = vpack.c.b16 %v2129, %v2128
    %v2158 = vpack.c.b16 %v2131, %v2130
    %v2159 = vpack.c.b16 %v2133, %v2132
    %v2160 = vpack.c.b16 %v2135, %v2134
    %v2161 = vpack.c.b16 %v2137, %v2136
    %v2162 = vpack.c.b16 %v2139, %v2138
    %v2163 = vpack.c.b16 %v2141, %v2140
    %v2164 = vpack.c.b16 %v2143, %v2142
    %v2165 = vpack.c.b16 %v2145, %v2144
    %v2166 = vpack.c.b16 %v2147, %v2146
    %v2167 = vpack.c.b16 %v2149, %v2148
    %v2168 = vpack.c.b16 %v2151, %v2150
    %v2169 = vpack.c.b16 %v2153, %v2152
    %2186 = vmatprep.subr.bf16.mxu0 0
    %2187 = vmatpush1.bf16.msra.mxu0 %v2154
    %2188 = vmatprep.subr.bf16.mxu0 0
    %2189 = vmatpush1.bf16.msra.mxu0 %v2155
    %2190 = vmatprep.subr.bf16.mxu0 0
    %2191 = vmatpush1.bf16.msra.mxu0 %v2156
    %2192 = vmatprep.subr.bf16.mxu0 0
    %2193 = vmatpush1.bf16.msra.mxu0 %v2157
    %2194 = vmatprep.subr.bf16.mxu0 0
    %2195 = vmatpush1.bf16.msra.mxu0 %v2158
    %2196 = vmatprep.subr.bf16.mxu0 0
    %2197 = vmatpush1.bf16.msra.mxu0 %v2159
    %2198 = vmatprep.subr.bf16.mxu0 0
    %2199 = vmatpush1.bf16.msra.mxu0 %v2160
    %2200 = vmatprep.subr.bf16.mxu0 0
    %2201 = vmatpush1.bf16.msra.mxu0 %v2161
    %2202 = vmatprep.subr.bf16.mxu0 0
    %2203 = vmatpush1.bf16.msra.mxu0 %v2162
    %2204 = vmatprep.subr.bf16.mxu0 0
    %2205 = vmatpush1.bf16.msra.mxu0 %v2163
    %2206 = vmatprep.subr.bf16.mxu0 0
    %2207 = vmatpush1.bf16.msra.mxu0 %v2164
    %2208 = vmatprep.subr.bf16.mxu0 0
    %2209 = vmatpush1.bf16.msra.mxu0 %v2165
    %2210 = vmatprep.subr.bf16.mxu0 0
    %2211 = vmatpush1.bf16.msra.mxu0 %v2166
    %2212 = vmatprep.subr.bf16.mxu0 0
    %2213 = vmatpush1.bf16.msra.mxu0 %v2167
    %2214 = vmatprep.subr.bf16.mxu0 0
    %2215 = vmatpush1.bf16.msra.mxu0 %v2168
    %2216 = vmatprep.subr.bf16.mxu0 0
    %2217 = vmatpush1.bf16.msra.mxu0 %v2169
    %2218 = vmatprep.mubr.bf16.mxu0 %v2050
    %2219 = vmatmul.mubr.bf16.gmra.mrb[0].mxu0 %v2049
    %v2220 = vpop.f32.mrb[0].mxu0
    %v2221 = vadd.f32 %v2088, %v2220
    %v2222 = vpop.f32.mrb[0].mxu0
    %v2223 = vpop.f32.mrb[0].mxu0
    %v2224 = vadd.f32 %v2088, %v2223
    %v2225 = vpop.f32.mrb[0].mxu0
    %2226 = vdwg.mxu0
    %v2227 = vadd.f32 %v1182, %v2221
    %v2228 = vadd.f32 %v1183, %v2224
    %v2229 = vld [vmem:[#allocation6 + $0x13] sm:$0x1]
    %v2230 = vld [vmem:[#allocation6 + $0x14] sm:$0x1]
    %2231 = vadd.xlane.f32.xlu0 %v2227
    %v2232 = vpop.xlane.xlu0 %2231
    %2233 = vadd.xlane.f32.xlu0 %v2228
    %v2234 = vpop.xlane.xlu0 %2233
    %v2235 = vmul.f32 %v2232, %v1149
    %v2236 = vmul.f32 %v2234, %v1149
    %v2237 = vsub.f32 %v2227, %v2235
    %v2238 = vsub.f32 %v2228, %v2236
    %v2239 = vmul.f32 %v2237, %v2237
    %v2240 = vmul.f32 %v2238, %v2238
    %2241 = vadd.xlane.f32.xlu0 %v2239
    %v2242 = vpop.xlane.xlu0 %2241
    %2243 = vadd.xlane.f32.xlu0 %v2240
    %v2244 = vpop.xlane.xlu0 %2243
    %v2245 = vmul.f32 %v2242, %v1149
    %v2246 = vmul.f32 %v2244, %v1149
    %v2247 = vadd.f32 %v2245, 1e-05
    %v2248 = vadd.f32 %v2246, 1e-05
    %v2249 = vrsqrt.pop %v2247
    %v2250 = vrsqrt.pop %v2248
    %v2251 = vmul.f32 %v2237, %v2249
    %v2252 = vmul.f32 %v2238, %v2250
    %v2254 = vlaneseq
    %v2255 = vshrl.u32 %v2254, 7
    %v2256 = vsub.s32 0, %v2255
    %v2257 = vrot.slane %v2229, %v2256
    %v2259 = vmul.f32 %v2251, %v2257
    %v2260 = vmul.f32 %v2252, %v2257
    %v2262 = vlaneseq
    %v2263 = vshrl.u32 %v2262, 7
    %v2264 = vsub.s32 0, %v2263
    %v2265 = vrot.slane %v2230, %v2264
    %v2267 = vadd.f32 %v2259, %v2265
    %v2268 = vadd.f32 %v2260, %v2265
    %v2269 = vpack.c.bf16 %v2268, %v2267
    %v2270 = vld [vmem:[#allocation2 + $0x30] sm:$0xff]
    %v2271 = vld [vmem:[#allocation2 + $0x68] sm:$0xff]
    %v2272 = vld [vmem:[#allocation2 + $0xa0] sm:$0xff]
    %v2273 = vld [vmem:[#allocation2 + $0xd8] sm:$0xff]
    %v2274 = vld [vmem:[#allocation2 + $0x110] sm:$0xff]
    %v2275 = vld [vmem:[#allocation2 + $0x148] sm:$0xff]
    %v2276 = vld [vmem:[#allocation2 + $0x180] sm:$0xff]
    %v2277 = vld [vmem:[#allocation2 + $0x1b8] sm:$0xff]
    %v2278 = vld [vmem:[#allocation2 + $0x1f0] sm:$0xff]
    %v2279 = vld [vmem:[#allocation2 + $0x228] sm:$0xff]
    %v2280 = vld [vmem:[#allocation2 + $0x260] sm:$0xff]
    %v2281 = vld [vmem:[#allocation2 + $0x298] sm:$0xff]
    %v2282 = vld [vmem:[#allocation2 + $0x2d0] sm:$0xff]
    %v2283 = vld [vmem:[#allocation2 + $0x308] sm:$0xff]
    %v2284 = vld [vmem:[#allocation2 + $0x340] sm:$0xff]
    %v2285 = vld [vmem:[#allocation2 + $0x378] sm:$0xff]
    %v2286 = vld [vmem:[#allocation6 + $0xc] sm:$0x3]
    %v2288 = vlaneseq
    %v2289 = vshrl.u32 %v2288, 7
    %v2290 = vsub.s32 0, %v2289
    %v2291 = vrot.slane %v2286, %v2290
    %v2292 = vlaneseq
    %v2293 = vshrl.u32 %v2292, 7
    %v2294 = vsub.s32 1, %v2293
    %v2295 = vrot.slane %v2286, %v2294
    %v2314 = vunpack.c.l.b16 %v2270
    %v2315 = vunpack.c.h.b16 %v2270
    %v2316 = vunpack.c.l.b16 %v2271
    %v2317 = vunpack.c.h.b16 %v2271
    %v2318 = vunpack.c.l.b16 %v2272
    %v2319 = vunpack.c.h.b16 %v2272
    %v2320 = vunpack.c.l.b16 %v2273
    %v2321 = vunpack.c.h.b16 %v2273
    %v2322 = vunpack.c.l.b16 %v2274
    %v2323 = vunpack.c.h.b16 %v2274
    %v2324 = vunpack.c.l.b16 %v2275
    %v2325 = vunpack.c.h.b16 %v2275
    %v2326 = vunpack.c.l.b16 %v2276
    %v2327 = vunpack.c.h.b16 %v2276
    %v2328 = vunpack.c.l.b16 %v2277
    %v2329 = vunpack.c.h.b16 %v2277
    %v2330 = vunpack.c.l.b16 %v2278
    %v2331 = vunpack.c.h.b16 %v2278
    %v2332 = vunpack.c.l.b16 %v2279
    %v2333 = vunpack.c.h.b16 %v2279
    %v2334 = vunpack.c.l.b16 %v2280
    %v2335 = vunpack.c.h.b16 %v2280
    %v2336 = vunpack.c.l.b16 %v2281
    %v2337 = vunpack.c.h.b16 %v2281
    %v2338 = vunpack.c.l.b16 %v2282
    %v2339 = vunpack.c.h.b16 %v2282
    %v2340 = vunpack.c.l.b16 %v2283
    %v2341 = vunpack.c.h.b16 %v2283
    %v2342 = vunpack.c.l.b16 %v2284
    %v2343 = vunpack.c.h.b16 %v2284
    %v2344 = vunpack.c.l.b16 %v2285
    %v2345 = vunpack.c.h.b16 %v2285
    %v2346 = vpack.c.b16 %v2316, %v2314
    %v2347 = vpack.c.b16 %v2317, %v2315
    %v2348 = vpack.c.b16 %v2320, %v2318
    %v2349 = vpack.c.b16 %v2321, %v2319
    %v2350 = vpack.c.b16 %v2324, %v2322
    %v2351 = vpack.c.b16 %v2325, %v2323
    %v2352 = vpack.c.b16 %v2328, %v2326
    %v2353 = vpack.c.b16 %v2329, %v2327
    %v2354 = vpack.c.b16 %v2332, %v2330
    %v2355 = vpack.c.b16 %v2333, %v2331
    %v2356 = vpack.c.b16 %v2336, %v2334
    %v2357 = vpack.c.b16 %v2337, %v2335
    %v2358 = vpack.c.b16 %v2340, %v2338
    %v2359 = vpack.c.b16 %v2341, %v2339
    %v2360 = vpack.c.b16 %v2344, %v2342
    %v2361 = vpack.c.b16 %v2345, %v2343
    %2378 = vmatprep.subr.bf16.mxu0 %v2347
    %2379 = vmatpush1.bf16.msra.mxu0 %v2346
    %2380 = vmatprep.subr.bf16.mxu0 %v2349
    %2381 = vmatpush1.bf16.msra.mxu0 %v2348
    %2382 = vmatprep.subr.bf16.mxu0 %v2351
    %2383 = vmatpush1.bf16.msra.mxu0 %v2350
    %2384 = vmatprep.subr.bf16.mxu0 %v2353
    %2385 = vmatpush1.bf16.msra.mxu0 %v2352
    %2386 = vmatprep.subr.bf16.mxu0 %v2355
    %2387 = vmatpush1.bf16.msra.mxu0 %v2354
    %2388 = vmatprep.subr.bf16.mxu0 %v2357
    %2389 = vmatpush1.bf16.msra.mxu0 %v2356
    %2390 = vmatprep.subr.bf16.mxu0 %v2359
    %2391 = vmatpush1.bf16.msra.mxu0 %v2358
    %2392 = vmatprep.subr.bf16.mxu0 %v2361
    %2393 = vmatpush1.bf16.msra.mxu0 %v2360
    %2394 = vmatprep.subr.bf16.mxu0 0
    %2395 = vmatpush1.bf16.msra.mxu0 0
    %2396 = vmatprep.subr.bf16.mxu0 0
    %2397 = vmatpush1.bf16.msra.mxu0 0
    %2398 = vmatprep.subr.bf16.mxu0 0
    %2399 = vmatpush1.bf16.msra.mxu0 0
    %2400 = vmatprep.subr.bf16.mxu0 0
    %2401 = vmatpush1.bf16.msra.mxu0 0
    %2402 = vmatprep.subr.bf16.mxu0 0
    %2403 = vmatpush1.bf16.msra.mxu0 0
    %2404 = vmatprep.subr.bf16.mxu0 0
    %2405 = vmatpush1.bf16.msra.mxu0 0
    %2406 = vmatprep.subr.bf16.mxu0 0
    %2407 = vmatpush1.bf16.msra.mxu0 0
    %2408 = vmatprep.subr.bf16.mxu0 0
    %2409 = vmatpush1.bf16.msra.mxu0 0
    %2410 = vmatprep.mubr.bf16.mxu0 0
    %2411 = vmatmul.mubr.bf16.gmra.mrb[0].mxu0 %v2269
    %v2412 = vpop.f32.mrb[0].mxu0
    %v2413 = vadd.f32 %v2291, %v2412
    %v2414 = vpop.f32.mrb[0].mxu0
    %v2415 = vadd.f32 %v2295, %v2414
    %v2416 = vpop.f32.mrb[0].mxu0
    %v2417 = vadd.f32 %v2291, %v2416
    %v2418 = vpop.f32.mrb[0].mxu0
    %v2419 = vadd.f32 %v2295, %v2418
    %2420 = vdwg.mxu0
    %v2421 = vmax.f32 %v2413, 0.0
    %v2422 = vmax.f32 %v2415, 0.0
    %v2423 = vmax.f32 %v2417, 0.0
    %v2424 = vmax.f32 %v2419, 0.0
    %v2425 = vpack.c.bf16 %v2423, %v2421
    %v2426 = vpack.c.bf16 %v2424, %v2422
    %v2427 = vld [vmem:[#allocation4 + $0x8] sm:$0xf]
    %v2428 = vld [vmem:[#allocation4 + $0x14] sm:$0xf]
    %v2429 = vld [vmem:[#allocation4 + $0x20] sm:$0xf]
    %v2430 = vld [vmem:[#allocation4 + $0x2c] sm:$0xf]
    %v2431 = vld [vmem:[#allocation4 + $0x38] sm:$0xf]
    %v2432 = vld [vmem:[#allocation4 + $0x44] sm:$0xf]
    %v2433 = vld [vmem:[#allocation4 + $0x50] sm:$0xf]
    %v2434 = vld [vmem:[#allocation4 + $0x5c] sm:$0xf]
    %v2435 = vld [vmem:[#allocation4 + $0x68] sm:$0xf]
    %v2436 = vld [vmem:[#allocation4 + $0x74] sm:$0xf]
    %v2437 = vld [vmem:[#allocation4 + $0x80] sm:$0xf]
    %v2438 = vld [vmem:[#allocation4 + $0x8c] sm:$0xf]
    %v2439 = vld [vmem:[#allocation4 + $0x98] sm:$0xf]
    %v2440 = vld [vmem:[#allocation4 + $0xa4] sm:$0xf]
    %v2441 = vld [vmem:[#allocation4 + $0xb0] sm:$0xf]
    %v2442 = vld [vmem:[#allocation4 + $0xbc] sm:$0xf]
    %v2443 = vld [vmem:[#allocation4 + $0xc8] sm:$0xf]
    %v2444 = vld [vmem:[#allocation4 + $0xd4] sm:$0xf]
    %v2445 = vld [vmem:[#allocation4 + $0xe0] sm:$0xf]
    %v2446 = vld [vmem:[#allocation4 + $0xec] sm:$0xf]
    %v2447 = vld [vmem:[#allocation4 + $0xf8] sm:$0xf]
    %v2448 = vld [vmem:[#allocation4 + $0x104] sm:$0xf]
    %v2449 = vld [vmem:[#allocation4 + $0x110] sm:$0xf]
    %v2450 = vld [vmem:[#allocation4 + $0x11c] sm:$0xf]
    %v2451 = vld [vmem:[#allocation4 + $0x128] sm:$0xf]
    %v2452 = vld [vmem:[#allocation4 + $0x134] sm:$0xf]
    %v2453 = vld [vmem:[#allocation4 + $0x140] sm:$0xf]
    %v2454 = vld [vmem:[#allocation4 + $0x14c] sm:$0xf]
    %v2455 = vld [vmem:[#allocation4 + $0x158] sm:$0xf]
    %v2456 = vld [vmem:[#allocation4 + $0x164] sm:$0xf]
    %v2457 = vld [vmem:[#allocation4 + $0x170] sm:$0xf]
    %v2458 = vld [vmem:[#allocation4 + $0x17c] sm:$0xf]
    %v2459 = vld [vmem:[#allocation6 + $0x10] sm:$0x1]
    %v2461 = vlaneseq
    %v2462 = vshrl.u32 %v2461, 7
    %v2463 = vsub.s32 0, %v2462
    %v2464 = vrot.slane %v2459, %v2463
    %v2498 = vunpack.c.l.b16 %v2427
    %v2499 = vunpack.c.l.b16 %v2428
    %v2500 = vunpack.c.l.b16 %v2429
    %v2501 = vunpack.c.l.b16 %v2430
    %v2502 = vunpack.c.l.b16 %v2431
    %v2503 = vunpack.c.l.b16 %v2432
    %v2504 = vunpack.c.l.b16 %v2433
    %v2505 = vunpack.c.l.b16 %v2434
    %v2506 = vunpack.c.l.b16 %v2435
    %v2507 = vunpack.c.l.b16 %v2436
    %v2508 = vunpack.c.l.b16 %v2437
    %v2509 = vunpack.c.l.b16 %v2438
    %v2510 = vunpack.c.l.b16 %v2439
    %v2511 = vunpack.c.l.b16 %v2440
    %v2512 = vunpack.c.l.b16 %v2441
    %v2513 = vunpack.c.l.b16 %v2442
    %v2514 = vunpack.c.l.b16 %v2443
    %v2515 = vunpack.c.l.b16 %v2444
    %v2516 = vunpack.c.l.b16 %v2445
    %v2517 = vunpack.c.l.b16 %v2446
    %v2518 = vunpack.c.l.b16 %v2447
    %v2519 = vunpack.c.l.b16 %v2448
    %v2520 = vunpack.c.l.b16 %v2449
    %v2521 = vunpack.c.l.b16 %v2450
    %v2522 = vunpack.c.l.b16 %v2451
    %v2523 = vunpack.c.l.b16 %v2452
    %v2524 = vunpack.c.l.b16 %v2453
    %v2525 = vunpack.c.l.b16 %v2454
    %v2526 = vunpack.c.l.b16 %v2455
    %v2527 = vunpack.c.l.b16 %v2456
    %v2528 = vunpack.c.l.b16 %v2457
    %v2529 = vunpack.c.l.b16 %v2458
    %v2530 = vpack.c.b16 %v2499, %v2498
    %v2531 = vpack.c.b16 %v2501, %v2500
    %v2532 = vpack.c.b16 %v2503, %v2502
    %v2533 = vpack.c.b16 %v2505, %v2504
    %v2534 = vpack.c.b16 %v2507, %v2506
    %v2535 = vpack.c.b16 %v2509, %v2508
    %v2536 = vpack.c.b16 %v2511, %v2510
    %v2537 = vpack.c.b16 %v2513, %v2512
    %v2538 = vpack.c.b16 %v2515, %v2514
    %v2539 = vpack.c.b16 %v2517, %v2516
    %v2540 = vpack.c.b16 %v2519, %v2518
    %v2541 = vpack.c.b16 %v2521, %v2520
    %v2542 = vpack.c.b16 %v2523, %v2522
    %v2543 = vpack.c.b16 %v2525, %v2524
    %v2544 = vpack.c.b16 %v2527, %v2526
    %v2545 = vpack.c.b16 %v2529, %v2528
    %2562 = vmatprep.subr.bf16.mxu0 0
    %2563 = vmatpush1.bf16.msra.mxu0 %v2530
    %2564 = vmatprep.subr.bf16.mxu0 0
    %2565 = vmatpush1.bf16.msra.mxu0 %v2531
    %2566 = vmatprep.subr.bf16.mxu0 0
    %2567 = vmatpush1.bf16.msra.mxu0 %v2532
    %2568 = vmatprep.subr.bf16.mxu0 0
    %2569 = vmatpush1.bf16.msra.mxu0 %v2533
    %2570 = vmatprep.subr.bf16.mxu0 0
    %2571 = vmatpush1.bf16.msra.mxu0 %v2534
    %2572 = vmatprep.subr.bf16.mxu0 0
    %2573 = vmatpush1.bf16.msra.mxu0 %v2535
    %2574 = vmatprep.subr.bf16.mxu0 0
    %2575 = vmatpush1.bf16.msra.mxu0 %v2536
    %2576 = vmatprep.subr.bf16.mxu0 0
    %2577 = vmatpush1.bf16.msra.mxu0 %v2537
    %2578 = vmatprep.subr.bf16.mxu0 0
    %2579 = vmatpush1.bf16.msra.mxu0 %v2538
    %2580 = vmatprep.subr.bf16.mxu0 0
    %2581 = vmatpush1.bf16.msra.mxu0 %v2539
    %2582 = vmatprep.subr.bf16.mxu0 0
    %2583 = vmatpush1.bf16.msra.mxu0 %v2540
    %2584 = vmatprep.subr.bf16.mxu0 0
    %2585 = vmatpush1.bf16.msra.mxu0 %v2541
    %2586 = vmatprep.subr.bf16.mxu0 0
    %2587 = vmatpush1.bf16.msra.mxu0 %v2542
    %2588 = vmatprep.subr.bf16.mxu0 0
    %2589 = vmatpush1.bf16.msra.mxu0 %v2543
    %2590 = vmatprep.subr.bf16.mxu0 0
    %2591 = vmatpush1.bf16.msra.mxu0 %v2544
    %2592 = vmatprep.subr.bf16.mxu0 0
    %2593 = vmatpush1.bf16.msra.mxu0 %v2545
    %2594 = vmatprep.mubr.bf16.mxu0 %v2426
    %2595 = vmatmul.mubr.bf16.gmra.mrb[0].mxu0 %v2425
    %v2596 = vpop.f32.mrb[0].mxu0
    %v2597 = vadd.f32 %v2464, %v2596
    %v2598 = vpop.f32.mrb[0].mxu0
    %v2599 = vpop.f32.mrb[0].mxu0
    %v2600 = vadd.f32 %v2464, %v2599
    %v2601 = vpop.f32.mrb[0].mxu0
    %2602 = vdwg.mxu0
    %v2603 = vadd.f32 %v2267, %v2597
    %v2604 = vadd.f32 %v2268, %v2600
    %v2605 = vld [vmem:[#allocation6 + $0x15] sm:$0x1]
    %v2606 = vld [vmem:[#allocation6 + $0x16] sm:$0x1]
    %2607 = vadd.xlane.f32.xlu0 %v2603
    %v2608 = vpop.xlane.xlu0 %2607
    %2609 = vadd.xlane.f32.xlu0 %v2604
    %v2610 = vpop.xlane.xlu0 %2609
    %v2611 = vmul.f32 %v2608, %v1149
    %v2612 = vmul.f32 %v2610, %v1149
    %v2613 = vsub.f32 %v2603, %v2611
    %v2614 = vsub.f32 %v2604, %v2612
    %v2615 = vmul.f32 %v2613, %v2613
    %v2616 = vmul.f32 %v2614, %v2614
    %2617 = vadd.xlane.f32.xlu0 %v2615
    %v2618 = vpop.xlane.xlu0 %2617
    %2619 = vadd.xlane.f32.xlu0 %v2616
    %v2620 = vpop.xlane.xlu0 %2619
    %v2621 = vmul.f32 %v2618, %v1149
    %v2622 = vmul.f32 %v2620, %v1149
    %v2623 = vadd.f32 %v2621, 1e-05
    %v2624 = vadd.f32 %v2622, 1e-05
    %v2625 = vrsqrt.pop %v2623
    %v2626 = vrsqrt.pop %v2624
    %v2627 = vmul.f32 %v2613, %v2625
    %v2628 = vmul.f32 %v2614, %v2626
    %v2630 = vlaneseq
    %v2631 = vshrl.u32 %v2630, 7
    %v2632 = vsub.s32 0, %v2631
    %v2633 = vrot.slane %v2605, %v2632
    %v2635 = vmul.f32 %v2627, %v2633
    %v2636 = vmul.f32 %v2628, %v2633
    %v2638 = vlaneseq
    %v2639 = vshrl.u32 %v2638, 7
    %v2640 = vsub.s32 0, %v2639
    %v2641 = vrot.slane %v2606, %v2640
    %v2643 = vadd.f32 %v2635, %v2641
    %v2644 = vadd.f32 %v2636, %v2641
    %v2645 = vpack.c.bf16 %v2644, %v2643
    %s2646 = scalar_lea.vmem [#allocation2], 896
    %v2647 = vld [vmem:[%s2646] sm:$0xff]
    %v2648 = vld [vmem:[%s2646 + $0x8] sm:$0xff]
    %v2649 = vld [vmem:[%s2646 + $0x10] sm:$0xff]
    %v2650 = vld [vmem:[%s2646 + $0x38] sm:$0xff]
    %v2651 = vld [vmem:[%s2646 + $0x40] sm:$0xff]
    %v2652 = vld [vmem:[%s2646 + $0x48] sm:$0xff]
    %v2653 = vld [vmem:[%s2646 + $0x70] sm:$0xff]
    %v2654 = vld [vmem:[%s2646 + $0x78] sm:$0xff]
    %v2655 = vld [vmem:[%s2646 + $0x80] sm:$0xff]
    %v2656 = vld [vmem:[%s2646 + $0xa8] sm:$0xff]
    %v2657 = vld [vmem:[%s2646 + $0xb0] sm:$0xff]
    %v2658 = vld [vmem:[%s2646 + $0xb8] sm:$0xff]
    %v2659 = vld [vmem:[%s2646 + $0xe0] sm:$0xff]
    %v2660 = vld [vmem:[%s2646 + $0xe8] sm:$0xff]
    %v2661 = vld [vmem:[%s2646 + $0xf0] sm:$0xff]
    %v2662 = vld [vmem:[%s2646 + $0x118] sm:$0xff]
    %v2663 = vld [vmem:[%s2646 + $0x120] sm:$0xff]
    %v2664 = vld [vmem:[%s2646 + $0x128] sm:$0xff]
    %v2665 = vld [vmem:[%s2646 + $0x150] sm:$0xff]
    %v2666 = vld [vmem:[%s2646 + $0x158] sm:$0xff]
    %v2667 = vld [vmem:[%s2646 + $0x160] sm:$0xff]
    %v2668 = vld [vmem:[%s2646 + $0x188] sm:$0xff]
    %v2669 = vld [vmem:[%s2646 + $0x190] sm:$0xff]
    %v2670 = vld [vmem:[%s2646 + $0x198] sm:$0xff]
    %v2671 = vld [vmem:[%s2646 + $0x1c0] sm:$0xff]
    %v2672 = vld [vmem:[%s2646 + $0x1c8] sm:$0xff]
    %v2673 = vld [vmem:[%s2646 + $0x1d0] sm:$0xff]
    %v2674 = vld [vmem:[%s2646 + $0x1f8] sm:$0xff]
    %v2675 = vld [vmem:[%s2646 + $0x200] sm:$0xff]
    %v2676 = vld [vmem:[%s2646 + $0x208] sm:$0xff]
    %v2677 = vld [vmem:[%s2646 + $0x230] sm:$0xff]
    %v2678 = vld [vmem:[%s2646 + $0x238] sm:$0xff]
    %v2679 = vld [vmem:[%s2646 + $0x240] sm:$0xff]
    %v2680 = vld [vmem:[%s2646 + $0x268] sm:$0xff]
    %v2681 = vld [vmem:[%s2646 + $0x270] sm:$0xff]
    %v2682 = vld [vmem:[%s2646 + $0x278] sm:$0xff]
    %v2683 = vld [vmem:[%s2646 + $0x2a0] sm:$0xff]
    %v2684 = vld [vmem:[%s2646 + $0x2a8] sm:$0xff]
    %v2685 = vld [vmem:[%s2646 + $0x2b0] sm:$0xff]
    %v2686 = vld [vmem:[%s2646 + $0x2d8] sm:$0xff]
    %v2687 = vld [vmem:[%s2646 + $0x2e0] sm:$0xff]
    %v2688 = vld [vmem:[%s2646 + $0x2e8] sm:$0xff]
    %v2689 = vld [vmem:[%s2646 + $0x310] sm:$0xff]
    %v2690 = vld [vmem:[%s2646 + $0x318] sm:$0xff]
    %v2691 = vld [vmem:[%s2646 + $0x320] sm:$0xff]
    %v2692 = vld [vmem:[%s2646 + $0x348] sm:$0xff]
    %v2693 = vld [vmem:[%s2646 + $0x350] sm:$0xff]
    %v2694 = vld [vmem:[%s2646 + $0x358] sm:$0xff]
    %s2695 = scalar_lea.vmem [#allocation6], 23
    %v2696 = vld [vmem:[%s2695] sm:$0x3f]
    %v2698 = vlaneseq
    %v2699 = vshrl.u32 %v2698, 7
    %v2700 = vsub.s32 0, %v2699
    %v2701 = vrot.slane %v2696, %v2700
    %v2702 = vlaneseq
    %v2703 = vshrl.u32 %v2702, 7
    %v2704 = vsub.s32 1, %v2703
    %v2705 = vrot.slane %v2696, %v2704
    %v2706 = vlaneseq
    %v2707 = vshrl.u32 %v2706, 7
    %v2708 = vsub.s32 2, %v2707
    %v2709 = vrot.slane %v2696, %v2708
    %v2710 = vlaneseq
    %v2711 = vshrl.u32 %v2710, 7
    %v2712 = vsub.s32 3, %v2711
    %v2713 = vrot.slane %v2696, %v2712
    %v2714 = vlaneseq
    %v2715 = vshrl.u32 %v2714, 7
    %v2716 = vsub.s32 4, %v2715
    %v2717 = vrot.slane %v2696, %v2716
    %v2718 = vlaneseq
    %v2719 = vshrl.u32 %v2718, 7
    %v2720 = vsub.s32 5, %v2719
    %v2721 = vrot.slane %v2696, %v2720
    %v2776 = vunpack.c.l.b16 %v2647
    %v2777 = vunpack.c.h.b16 %v2647
    %v2778 = vunpack.c.l.b16 %v2648
    %v2779 = vunpack.c.h.b16 %v2648
    %v2780 = vunpack.c.l.b16 %v2649
    %v2781 = vunpack.c.h.b16 %v2649
    %v2782 = vunpack.c.l.b16 %v2650
    %v2783 = vunpack.c.h.b16 %v2650
    %v2784 = vunpack.c.l.b16 %v2651
    %v2785 = vunpack.c.h.b16 %v2651
    %v2786 = vunpack.c.l.b16 %v2652
    %v2787 = vunpack.c.h.b16 %v2652
    %v2788 = vunpack.c.l.b16 %v2653
    %v2789 = vunpack.c.h.b16 %v2653
    %v2790 = vunpack.c.l.b16 %v2654
    %v2791 = vunpack.c.h.b16 %v2654
    %v2792 = vunpack.c.l.b16 %v2655
    %v2793 = vunpack.c.h.b16 %v2655
    %v2794 = vunpack.c.l.b16 %v2656
    %v2795 = vunpack.c.h.b16 %v2656
    %v2796 = vunpack.c.l.b16 %v2657
    %v2797 = vunpack.c.h.b16 %v2657
    %v2798 = vunpack.c.l.b16 %v2658
    %v2799 = vunpack.c.h.b16 %v2658
    %v2800 = vunpack.c.l.b16 %v2659
    %v2801 = vunpack.c.h.b16 %v2659
    %v2802 = vunpack.c.l.b16 %v2660
    %v2803 = vunpack.c.h.b16 %v2660
    %v2804 = vunpack.c.l.b16 %v2661
    %v2805 = vunpack.c.h.b16 %v2661
    %v2806 = vunpack.c.l.b16 %v2662
    %v2807 = vunpack.c.h.b16 %v2662
    %v2808 = vunpack.c.l.b16 %v2663
    %v2809 = vunpack.c.h.b16 %v2663
    %v2810 = vunpack.c.l.b16 %v2664
    %v2811 = vunpack.c.h.b16 %v2664
    %v2812 = vunpack.c.l.b16 %v2665
    %v2813 = vunpack.c.h.b16 %v2665
    %v2814 = vunpack.c.l.b16 %v2666
    %v2815 = vunpack.c.h.b16 %v2666
    %v2816 = vunpack.c.l.b16 %v2667
    %v2817 = vunpack.c.h.b16 %v2667
    %v2818 = vunpack.c.l.b16 %v2668
    %v2819 = vunpack.c.h.b16 %v2668
    %v2820 = vunpack.c.l.b16 %v2669
    %v2821 = vunpack.c.h.b16 %v2669
    %v2822 = vunpack.c.l.b16 %v2670
    %v2823 = vunpack.c.h.b16 %v2670
    %v2824 = vunpack.c.l.b16 %v2671
    %v2825 = vunpack.c.h.b16 %v2671
    %v2826 = vunpack.c.l.b16 %v2672
    %v2827 = vunpack.c.h.b16 %v2672
    %v2828 = vunpack.c.l.b16 %v2673
    %v2829 = vunpack.c.h.b16 %v2673
    %v2830 = vunpack.c.l.b16 %v2674
    %v2831 = vunpack.c.h.b16 %v2674
    %v2832 = vunpack.c.l.b16 %v2675
    %v2833 = vunpack.c.h.b16 %v2675
    %v2834 = vunpack.c.l.b16 %v2676
    %v2835 = vunpack.c.h.b16 %v2676
    %v2836 = vunpack.c.l.b16 %v2677
    %v2837 = vunpack.c.h.b16 %v2677
    %v2838 = vunpack.c.l.b16 %v2678
    %v2839 = vunpack.c.h.b16 %v2678
    %v2840 = vunpack.c.l.b16 %v2679
    %v2841 = vunpack.c.h.b16 %v2679
    %v2842 = vunpack.c.l.b16 %v2680
    %v2843 = vunpack.c.h.b16 %v2680
    %v2844 = vunpack.c.l.b16 %v2681
    %v2845 = vunpack.c.h.b16 %v2681
    %v2846 = vunpack.c.l.b16 %v2682
    %v2847 = vunpack.c.h.b16 %v2682
    %v2848 = vunpack.c.l.b16 %v2683
    %v2849 = vunpack.c.h.b16 %v2683
    %v2850 = vunpack.c.l.b16 %v2684
    %v2851 = vunpack.c.h.b16 %v2684
    %v2852 = vunpack.c.l.b16 %v2685
    %v2853 = vunpack.c.h.b16 %v2685
    %v2854 = vunpack.c.l.b16 %v2686
    %v2855 = vunpack.c.h.b16 %v2686
    %v2856 = vunpack.c.l.b16 %v2687
    %v2857 = vunpack.c.h.b16 %v2687
    %v2858 = vunpack.c.l.b16 %v2688
    %v2859 = vunpack.c.h.b16 %v2688
    %v2860 = vunpack.c.l.b16 %v2689
    %v2861 = vunpack.c.h.b16 %v2689
    %v2862 = vunpack.c.l.b16 %v2690
    %v2863 = vunpack.c.h.b16 %v2690
    %v2864 = vunpack.c.l.b16 %v2691
    %v2865 = vunpack.c.h.b16 %v2691
    %v2866 = vunpack.c.l.b16 %v2692
    %v2867 = vunpack.c.h.b16 %v2692
    %v2868 = vunpack.c.l.b16 %v2693
    %v2869 = vunpack.c.h.b16 %v2693
    %v2870 = vunpack.c.l.b16 %v2694
    %v2871 = vunpack.c.h.b16 %v2694
    %v2872 = vpack.c.b16 %v2782, %v2776
    %v2873 = vpack.c.b16 %v2783, %v2777
    %v2874 = vpack.c.b16 %v2784, %v2778
    %v2875 = vpack.c.b16 %v2785, %v2779
    %v2876 = vpack.c.b16 %v2786, %v2780
    %v2877 = vpack.c.b16 %v2787, %v2781
    %v2878 = vpack.c.b16 %v2794, %v2788
    %v2879 = vpack.c.b16 %v2795, %v2789
    %v2880 = vpack.c.b16 %v2796, %v2790
    %v2881 = vpack.c.b16 %v2797, %v2791
    %v2882 = vpack.c.b16 %v2798, %v2792
    %v2883 = vpack.c.b16 %v2799, %v2793
    %v2884 = vpack.c.b16 %v2806, %v2800
    %v2885 = vpack.c.b16 %v2807, %v2801
    %v2886 = vpack.c.b16 %v2808, %v2802
    %v2887 = vpack.c.b16 %v2809, %v2803
    %v2888 = vpack.c.b16 %v2810, %v2804
    %v2889 = vpack.c.b16 %v2811, %v2805
    %v2890 = vpack.c.b16 %v2818, %v2812
    %v2891 = vpack.c.b16 %v2819, %v2813
    %v2892 = vpack.c.b16 %v2820, %v2814
    %v2893 = vpack.c.b16 %v2821, %v2815
    %v2894 = vpack.c.b16 %v2822, %v2816
    %v2895 = vpack.c.b16 %v2823, %v2817
    %v2896 = vpack.c.b16 %v2830, %v2824
    %v2897 = vpack.c.b16 %v2831, %v2825
    %v2898 = vpack.c.b16 %v2832, %v2826
    %v2899 = vpack.c.b16 %v2833, %v2827
    %v2900 = vpack.c.b16 %v2834, %v2828
    %v2901 = vpack.c.b16 %v2835, %v2829
    %v2902 = vpack.c.b16 %v2842, %v2836
    %v2903 = vpack.c.b16 %v2843, %v2837
    %v2904 = vpack.c.b16 %v2844, %v2838
    %v2905 = vpack.c.b16 %v2845, %v2839
    %v2906 = vpack.c.b16 %v2846, %v2840
    %v2907 = vpack.c.b16 %v2847, %v2841
    %v2908 = vpack.c.b16 %v2854, %v2848
    %v2909 = vpack.c.b16 %v2855, %v2849
    %v2910 = vpack.c.b16 %v2856, %v2850
    %v2911 = vpack.c.b16 %v2857, %v2851
    %v2912 = vpack.c.b16 %v2858, %v2852
    %v2913 = vpack.c.b16 %v2859, %v2853
    %v2914 = vpack.c.b16 %v2866, %v2860
    %v2915 = vpack.c.b16 %v2867, %v2861
    %v2916 = vpack.c.b16 %v2868, %v2862
    %v2917 = vpack.c.b16 %v2869, %v2863
    %v2918 = vpack.c.b16 %v2870, %v2864
    %v2919 = vpack.c.b16 %v2871, %v2865
    %2968 = vmatprep.subr.bf16.mxu0 %v2873
    %2969 = vmatpush1.bf16.msra.mxu0 %v2872
    %2970 = vmatprep.subr.bf16.mxu0 %v2879
    %2971 = vmatpush1.bf16.msra.mxu0 %v2878
    %2972 = vmatprep.subr.bf16.mxu0 %v2885
    %2973 = vmatpush1.bf16.msra.mxu0 %v2884
    %2974 = vmatprep.subr.bf16.mxu0 %v2891
    %2975 = vmatpush1.bf16.msra.mxu0 %v2890
    %2976 = vmatprep.subr.bf16.mxu0 %v2897
    %2977 = vmatpush1.bf16.msra.mxu0 %v2896
    %2978 = vmatprep.subr.bf16.mxu0 %v2903
    %2979 = vmatpush1.bf16.msra.mxu0 %v2902
    %2980 = vmatprep.subr.bf16.mxu0 %v2909
    %2981 = vmatpush1.bf16.msra.mxu0 %v2908
    %2982 = vmatprep.subr.bf16.mxu0 %v2915
    %2983 = vmatpush1.bf16.msra.mxu0 %v2914
    %2984 = vmatprep.subr.bf16.mxu0 0
    %2985 = vmatpush1.bf16.msra.mxu0 0
    %2986 = vmatprep.subr.bf16.mxu0 0
    %2987 = vmatpush1.bf16.msra.mxu0 0
    %2988 = vmatprep.subr.bf16.mxu0 0
    %2989 = vmatpush1.bf16.msra.mxu0 0
    %2990 = vmatprep.subr.bf16.mxu0 0
    %2991 = vmatpush1.bf16.msra.mxu0 0
    %2992 = vmatprep.subr.bf16.mxu0 0
    %2993 = vmatpush1.bf16.msra.mxu0 0
    %2994 = vmatprep.subr.bf16.mxu0 0
    %2995 = vmatpush1.bf16.msra.mxu0 0
    %2996 = vmatprep.subr.bf16.mxu0 0
    %2997 = vmatpush1.bf16.msra.mxu0 0
    %2998 = vmatprep.subr.bf16.mxu0 0
    %2999 = vmatpush1.bf16.msra.mxu0 0
    %3000 = vmatprep.mubr.bf16.mxu0 0
    %3001 = vmatmul.mubr.bf16.gmra.mrb[0].mxu0 %v2645
    %v3002 = vpop.f32.mrb[0].mxu0
    %v3003 = vadd.f32 %v2701, %v3002
    %v3004 = vpop.f32.mrb[0].mxu0
    %v3005 = vadd.f32 %v2705, %v3004
    %v3006 = vpop.f32.mrb[0].mxu0
    %v3007 = vadd.f32 %v2701, %v3006
    %v3008 = vpop.f32.mrb[0].mxu0
    %v3009 = vadd.f32 %v2705, %v3008
    %3010 = vdwg.mxu0
    %3011 = vmatprep.subr.bf16.mxu0 %v2875
    %3012 = vmatpush1.bf16.msra.mxu0 %v2874
    %3013 = vmatprep.subr.bf16.mxu0 %v2881
    %3014 = vmatpush1.bf16.msra.mxu0 %v2880
    %3015 = vmatprep.subr.bf16.mxu0 %v2887
    %3016 = vmatpush1.bf16.msra.mxu0 %v2886
    %3017 = vmatprep.subr.bf16.mxu0 %v2893
    %3018 = vmatpush1.bf16.msra.mxu0 %v2892
    %3019 = vmatprep.subr.bf16.mxu0 %v2899
    %3020 = vmatpush1.bf16.msra.mxu0 %v2898
    %3021 = vmatprep.subr.bf16.mxu0 %v2905
    %3022 = vmatpush1.bf16.msra.mxu0 %v2904
    %3023 = vmatprep.subr.bf16.mxu0 %v2911
    %3024 = vmatpush1.bf16.msra.mxu0 %v2910
    %3025 = vmatprep.subr.bf16.mxu0 %v2917
    %3026 = vmatpush1.bf16.msra.mxu0 %v2916
    %3027 = vmatprep.subr.bf16.mxu0 0
    %3028 = vmatpush1.bf16.msra.mxu0 0
    %3029 = vmatprep.subr.bf16.mxu0 0
    %3030 = vmatpush1.bf16.msra.mxu0 0
    %3031 = vmatprep.subr.bf16.mxu0 0
    %3032 = vmatpush1.bf16.msra.mxu0 0
    %3033 = vmatprep.subr.bf16.mxu0 0
    %3034 = vmatpush1.bf16.msra.mxu0 0
    %3035 = vmatprep.subr.bf16.mxu0 0
    %3036 = vmatpush1.bf16.msra.mxu0 0
    %3037 = vmatprep.subr.bf16.mxu0 0
    %3038 = vmatpush1.bf16.msra.mxu0 0
    %3039 = vmatprep.subr.bf16.mxu0 0
    %3040 = vmatpush1.bf16.msra.mxu0 0
    %3041 = vmatprep.subr.bf16.mxu0 0
    %3042 = vmatpush1.bf16.msra.mxu0 0
    %3043 = vmatprep.mubr.bf16.mxu0 0
    %3044 = vmatmul.mubr.bf16.gmra.mrb[0].mxu0 %v2645
    %v3045 = vpop.f32.mrb[0].mxu0
    %v3046 = vadd.f32 %v2709, %v3045
    %v3047 = vpop.f32.mrb[0].mxu0
    %v3048 = vadd.f32 %v2713, %v3047
    %v3049 = vpop.f32.mrb[0].mxu0
    %v3050 = vadd.f32 %v2709, %v3049
    %v3051 = vpop.f32.mrb[0].mxu0
    %v3052 = vadd.f32 %v2713, %v3051
    %3053 = vdwg.mxu0
    %3054 = vmatprep.subr.bf16.mxu0 %v2877
    %3055 = vmatpush1.bf16.msra.mxu0 %v2876
    %3056 = vmatprep.subr.bf16.mxu0 %v2883
    %3057 = vmatpush1.bf16.msra.mxu0 %v2882
    %3058 = vmatprep.subr.bf16.mxu0 %v2889
    %3059 = vmatpush1.bf16.msra.mxu0 %v2888
    %3060 = vmatprep.subr.bf16.mxu0 %v2895
    %3061 = vmatpush1.bf16.msra.mxu0 %v2894
    %3062 = vmatprep.subr.bf16.mxu0 %v2901
    %3063 = vmatpush1.bf16.msra.mxu0 %v2900
    %3064 = vmatprep.subr.bf16.mxu0 %v2907
    %3065 = vmatpush1.bf16.msra.mxu0 %v2906
    %3066 = vmatprep.subr.bf16.mxu0 %v2913
    %3067 = vmatpush1.bf16.msra.mxu0 %v2912
    %3068 = vmatprep.subr.bf16.mxu0 %v2919
    %3069 = vmatpush1.bf16.msra.mxu0 %v2918
    %3070 = vmatprep.subr.bf16.mxu0 0
    %3071 = vmatpush1.bf16.msra.mxu0 0
    %3072 = vmatprep.subr.bf16.mxu0 0
    %3073 = vmatpush1.bf16.msra.mxu0 0
    %3074 = vmatprep.subr.bf16.mxu0 0
    %3075 = vmatpush1.bf16.msra.mxu0 0
    %3076 = vmatprep.subr.bf16.mxu0 0
    %3077 = vmatpush1.bf16.msra.mxu0 0
    %3078 = vmatprep.subr.bf16.mxu0 0
    %3079 = vmatpush1.bf16.msra.mxu0 0
    %3080 = vmatprep.subr.bf16.mxu0 0
    %3081 = vmatpush1.bf16.msra.mxu0 0
    %3082 = vmatprep.subr.bf16.mxu0 0
    %3083 = vmatpush1.bf16.msra.mxu0 0
    %3084 = vmatprep.subr.bf16.mxu0 0
    %3085 = vmatpush1.bf16.msra.mxu0 0
    %3086 = vmatprep.mubr.bf16.mxu0 0
    %3087 = vmatmul.mubr.bf16.gmra.mrb[0].mxu0 %v2645
    %v3088 = vpop.f32.mrb[0].mxu0
    %v3089 = vadd.f32 %v2717, %v3088
    %v3090 = vpop.f32.mrb[0].mxu0
    %v3091 = vadd.f32 %v2721, %v3090
    %v3092 = vpop.f32.mrb[0].mxu0
    %v3093 = vadd.f32 %v2717, %v3092
    %v3094 = vpop.f32.mrb[0].mxu0
    %v3095 = vadd.f32 %v2721, %v3094
    %3096 = vdwg.mxu0
    %v3097 = vpack.c.bf16 %v3003, %v3003
    %v3098 = vpack.c.bf16 %v3007, %v3007
    %v3099 = vpack.c.bf16 %v3046, %v3046
    %v3100 = vpack.c.bf16 %v3050, %v3050
    %v3101 = vpack.c.bf16 %v3089, %v3089
    %v3102 = vpack.c.bf16 %v3093, %v3093
    %3103 = vmatprep.subr.bf16.mxu0 0
    %3104 = vmatpush1.bf16.xpose.msra.mxu0 %v3099
    %3105 = vmatprep.subr.bf16.mxu0 0
    %3106 = vmatpush1.bf16.xpose.msra.mxu0 0
    %3107 = vmatprep.subr.bf16.mxu0 0
    %3108 = vmatpush1.bf16.xpose.msra.mxu0 0
    %3109 = vmatprep.subr.bf16.mxu0 0
    %3110 = vmatpush1.bf16.xpose.msra.mxu0 0
    %3111 = vmatprep.subr.bf16.mxu0 0
    %3112 = vmatpush1.bf16.xpose.msra.mxu0 0
    %3113 = vmatprep.subr.bf16.mxu0 0
    %3114 = vmatpush1.bf16.xpose.msra.mxu0 0
    %3115 = vmatprep.subr.bf16.mxu0 0
    %3116 = vmatpush1.bf16.xpose.msra.mxu0 0
    %3117 = vmatprep.subr.bf16.mxu0 0
    %3118 = vmatpush1.bf16.xpose.msra.mxu0 0
    %3119 = vmatprep.subr.bf16.mxu0 0
    %3120 = vmatpush1.bf16.xpose.msra.mxu0 0
    %3121 = vmatprep.subr.bf16.mxu0 0
    %3122 = vmatpush1.bf16.xpose.msra.mxu0 0
    %3123 = vmatprep.subr.bf16.mxu0 0
    %3124 = vmatpush1.bf16.xpose.msra.mxu0 0
    %3125 = vmatprep.subr.bf16.mxu0 0
    %3126 = vmatpush1.bf16.xpose.msra.mxu0 0
    %3127 = vmatprep.subr.bf16.mxu0 0
    %3128 = vmatpush1.bf16.xpose.msra.mxu0 0
    %3129 = vmatprep.subr.bf16.mxu0 0
    %3130 = vmatpush1.bf16.xpose.msra.mxu0 0
    %3131 = vmatprep.subr.bf16.mxu0 0
    %3132 = vmatpush1.bf16.xpose.msra.mxu0 0
    %3133 = vmatprep.subr.bf16.mxu0 0
    %3134 = vmatpush1.bf16.xpose.msra.mxu0 0
    %3135 = vmatprep.mubr.bf16.mxu0 0
    %3136 = vmatmul.mubr.bf16.gmra.mrb[0].mxu0 %v3097
    %v3137 = vpop.f32.mrb[0].mxu0
    %v3138 = vadd.f32 %v106, %v3137
    %v3139 = vpop.f32.mrb[0].mxu0
    %v3140 = vpop.f32.mrb[0].mxu0
    %v3141 = vpop.f32.mrb[0].mxu0
    %3142 = vdwg.mxu0
    %3143 = vmatprep.subr.bf16.mxu0 0
    %3144 = vmatpush1.bf16.xpose.msra.mxu0 %v3100
    %3145 = vmatprep.subr.bf16.mxu0 0
    %3146 = vmatpush1.bf16.xpose.msra.mxu0 0
    %3147 = vmatprep.subr.bf16.mxu0 0
    %3148 = vmatpush1.bf16.xpose.msra.mxu0 0
    %3149 = vmatprep.subr.bf16.mxu0 0
    %3150 = vmatpush1.bf16.xpose.msra.mxu0 0
    %3151 = vmatprep.subr.bf16.mxu0 0
    %3152 = vmatpush1.bf16.xpose.msra.mxu0 0
    %3153 = vmatprep.subr.bf16.mxu0 0
    %3154 = vmatpush1.bf16.xpose.msra.mxu0 0
    %3155 = vmatprep.subr.bf16.mxu0 0
    %3156 = vmatpush1.bf16.xpose.msra.mxu0 0
    %3157 = vmatprep.subr.bf16.mxu0 0
    %3158 = vmatpush1.bf16.xpose.msra.mxu0 0
    %3159 = vmatprep.subr.bf16.mxu0 0
    %3160 = vmatpush1.bf16.xpose.msra.mxu0 0
    %3161 = vmatprep.subr.bf16.mxu0 0
    %3162 = vmatpush1.bf16.xpose.msra.mxu0 0
    %3163 = vmatprep.subr.bf16.mxu0 0
    %3164 = vmatpush1.bf16.xpose.msra.mxu0 0
    %3165 = vmatprep.subr.bf16.mxu0 0
    %3166 = vmatpush1.bf16.xpose.msra.mxu0 0
    %3167 = vmatprep.subr.bf16.mxu0 0
    %3168 = vmatpush1.bf16.xpose.msra.mxu0 0
    %3169 = vmatprep.subr.bf16.mxu0 0
    %3170 = vmatpush1.bf16.xpose.msra.mxu0 0
    %3171 = vmatprep.subr.bf16.mxu0 0
    %3172 = vmatpush1.bf16.xpose.msra.mxu0 0
    %3173 = vmatprep.subr.bf16.mxu0 0
    %3174 = vmatpush1.bf16.xpose.msra.mxu0 0
    %3175 = vmatprep.mubr.bf16.mxu0 0
    %3176 = vmatmul.mubr.bf16.gmra.mrb[0].mxu0 %v3098
    %v3177 = vpop.f32.mrb[0].mxu0
    %v3178 = vadd.f32 %v106, %v3177
    %v3179 = vpop.f32.mrb[0].mxu0
    %v3180 = vpop.f32.mrb[0].mxu0
    %v3181 = vpop.f32.mrb[0].mxu0
    %3182 = vdwg.mxu0
    %v3183 = vsel %vm643, %v3138, -inf
    %3184 = vmax.xlane.f32.xlu0 %v3183
    %v3185 = vpop.xlane.xlu0 %3184
    %v3186 = vsel %vm643, %v3178, -inf
    %3187 = vmax.xlane.f32.xlu0 %v3186
    %v3188 = vpop.xlane.xlu0 %3187
    %v3189 = vsub.f32 %v3138, %v3185
    %v3190 = vsub.f32 %v3178, %v3188
    %v3191 = vmul.f32 %v3189, 1.442695
    %v3192 = vpow.pop %v3191
    %v3193 = vmul.f32 %v3190, 1.442695
    %v3194 = vpow.pop %v3193
    %v3195 = vsel %vm643, %v3192, 0.0
    %3196 = vadd.xlane.f32.xlu0 %v3195
    %v3197 = vpop.xlane.xlu0 %3196
    %v3198 = vsel %vm643, %v3194, 0.0
    %3199 = vadd.xlane.f32.xlu0 %v3198
    %v3200 = vpop.xlane.xlu0 %3199
    %v3201 = vrcp.pop %v3197
    %v3202 = vrcp.pop %v3200
    %v3203 = vmul.f32 %v3192, %v3201
    %v3204 = vmul.f32 %v3194, %v3202
    %v3205 = vpack.c.bf16 %v3203, %v3203
    %v3206 = vpack.c.bf16 %v3204, %v3204
    %v3208 = vsel %vm643, %v3205, 0
    %v3211 = vsel %vm671, %v3101, 0
    %3213 = vmatprep.subr.bf16.mxu0 0
    %3214 = vmatpush1.bf16.msra.mxu0 %v3211
    %3215 = vmatprep.subr.bf16.mxu0 0
    %3216 = vmatpush1.bf16.msra.mxu0 0
    %3217 = vmatprep.subr.bf16.mxu0 0
    %3218 = vmatpush1.bf16.msra.mxu0 0
    %3219 = vmatprep.subr.bf16.mxu0 0
    %3220 = vmatpush1.bf16.msra.mxu0 0
    %3221 = vmatprep.subr.bf16.mxu0 0
    %3222 = vmatpush1.bf16.msra.mxu0 0
    %3223 = vmatprep.subr.bf16.mxu0 0
    %3224 = vmatpush1.bf16.msra.mxu0 0
    %3225 = vmatprep.subr.bf16.mxu0 0
    %3226 = vmatpush1.bf16.msra.mxu0 0
    %3227 = vmatprep.subr.bf16.mxu0 0
    %3228 = vmatpush1.bf16.msra.mxu0 0
    %3229 = vmatprep.subr.bf16.mxu0 0
    %3230 = vmatpush1.bf16.msra.mxu0 0
    %3231 = vmatprep.subr.bf16.mxu0 0
    %3232 = vmatpush1.bf16.msra.mxu0 0
    %3233 = vmatprep.subr.bf16.mxu0 0
    %3234 = vmatpush1.bf16.msra.mxu0 0
    %3235 = vmatprep.subr.bf16.mxu0 0
    %3236 = vmatpush1.bf16.msra.mxu0 0
    %3237 = vmatprep.subr.bf16.mxu0 0
    %3238 = vmatpush1.bf16.msra.mxu0 0
    %3239 = vmatprep.subr.bf16.mxu0 0
    %3240 = vmatpush1.bf16.msra.mxu0 0
    %3241 = vmatprep.subr.bf16.mxu0 0
    %3242 = vmatpush1.bf16.msra.mxu0 0
    %3243 = vmatprep.subr.bf16.mxu0 0
    %3244 = vmatpush1.bf16.msra.mxu0 0
    %3245 = vmatprep.mubr.bf16.mxu0 0
    %3246 = vmatmul.mubr.bf16.gmra.mrb[0].mxu0 %v3208
    %v3247 = vpop.f32.mrb[0].mxu0
    %v3248 = vadd.f32 0.0, %v3247
    %v3249 = vpop.f32.mrb[0].mxu0
    %v3250 = vpop.f32.mrb[0].mxu0
    %v3251 = vpop.f32.mrb[0].mxu0
    %3252 = vdwg.mxu0
    %v3254 = vsel %vm643, %v3206, 0
    %v3257 = vsel %vm671, %v3102, 0
    %3259 = vmatprep.subr.bf16.mxu0 0
    %3260 = vmatpush1.bf16.msra.mxu0 %v3257
    %3261 = vmatprep.subr.bf16.mxu0 0
    %3262 = vmatpush1.bf16.msra.mxu0 0
    %3263 = vmatprep.subr.bf16.mxu0 0
    %3264 = vmatpush1.bf16.msra.mxu0 0
    %3265 = vmatprep.subr.bf16.mxu0 0
    %3266 = vmatpush1.bf16.msra.mxu0 0
    %3267 = vmatprep.subr.bf16.mxu0 0
    %3268 = vmatpush1.bf16.msra.mxu0 0
    %3269 = vmatprep.subr.bf16.mxu0 0
    %3270 = vmatpush1.bf16.msra.mxu0 0
    %3271 = vmatprep.subr.bf16.mxu0 0
    %3272 = vmatpush1.bf16.msra.mxu0 0
    %3273 = vmatprep.subr.bf16.mxu0 0
    %3274 = vmatpush1.bf16.msra.mxu0 0
    %3275 = vmatprep.subr.bf16.mxu0 0
    %3276 = vmatpush1.bf16.msra.mxu0 0
    %3277 = vmatprep.subr.bf16.mxu0 0
    %3278 = vmatpush1.bf16.msra.mxu0 0
    %3279 = vmatprep.subr.bf16.mxu0 0
    %3280 = vmatpush1.bf16.msra.mxu0 0
    %3281 = vmatprep.subr.bf16.mxu0 0
    %3282 = vmatpush1.bf16.msra.mxu0 0
    %3283 = vmatprep.subr.bf16.mxu0 0
    %3284 = vmatpush1.bf16.msra.mxu0 0
    %3285 = vmatprep.subr.bf16.mxu0 0
    %3286 = vmatpush1.bf16.msra.mxu0 0
    %3287 = vmatprep.subr.bf16.mxu0 0
    %3288 = vmatpush1.bf16.msra.mxu0 0
    %3289 = vmatprep.subr.bf16.mxu0 0
    %3290 = vmatpush1.bf16.msra.mxu0 0
    %3291 = vmatprep.mubr.bf16.mxu0 0
    %3292 = vmatmul.mubr.bf16.gmra.mrb[0].mxu0 %v3254
    %v3293 = vpop.f32.mrb[0].mxu0
    %v3294 = vadd.f32 0.0, %v3293
    %v3295 = vpop.f32.mrb[0].mxu0
    %v3296 = vpop.f32.mrb[0].mxu0
    %v3297 = vpop.f32.mrb[0].mxu0
    %3298 = vdwg.mxu0
    %v3299 = vpack.c.bf16 %v3005, %v3005
    %v3300 = vpack.c.bf16 %v3009, %v3009
    %v3301 = vpack.c.bf16 %v3048, %v3048
    %v3302 = vpack.c.bf16 %v3052, %v3052
    %v3303 = vpack.c.bf16 %v3091, %v3091
    %v3304 = vpack.c.bf16 %v3095, %v3095
    %3305 = vmatprep.subr.bf16.mxu0 0
    %3306 = vmatpush1.bf16.xpose.msra.mxu0 %v3301
    %3307 = vmatprep.subr.bf16.mxu0 0
    %3308 = vmatpush1.bf16.xpose.msra.mxu0 0
    %3309 = vmatprep.subr.bf16.mxu0 0
    %3310 = vmatpush1.bf16.xpose.msra.mxu0 0
    %3311 = vmatprep.subr.bf16.mxu0 0
    %3312 = vmatpush1.bf16.xpose.msra.mxu0 0
    %3313 = vmatprep.subr.bf16.mxu0 0
    %3314 = vmatpush1.bf16.xpose.msra.mxu0 0
    %3315 = vmatprep.subr.bf16.mxu0 0
    %3316 = vmatpush1.bf16.xpose.msra.mxu0 0
    %3317 = vmatprep.subr.bf16.mxu0 0
    %3318 = vmatpush1.bf16.xpose.msra.mxu0 0
    %3319 = vmatprep.subr.bf16.mxu0 0
    %3320 = vmatpush1.bf16.xpose.msra.mxu0 0
    %3321 = vmatprep.subr.bf16.mxu0 0
    %3322 = vmatpush1.bf16.xpose.msra.mxu0 0
    %3323 = vmatprep.subr.bf16.mxu0 0
    %3324 = vmatpush1.bf16.xpose.msra.mxu0 0
    %3325 = vmatprep.subr.bf16.mxu0 0
    %3326 = vmatpush1.bf16.xpose.msra.mxu0 0
    %3327 = vmatprep.subr.bf16.mxu0 0
    %3328 = vmatpush1.bf16.xpose.msra.mxu0 0
    %3329 = vmatprep.subr.bf16.mxu0 0
    %3330 = vmatpush1.bf16.xpose.msra.mxu0 0
    %3331 = vmatprep.subr.bf16.mxu0 0
    %3332 = vmatpush1.bf16.xpose.msra.mxu0 0
    %3333 = vmatprep.subr.bf16.mxu0 0
    %3334 = vmatpush1.bf16.xpose.msra.mxu0 0
    %3335 = vmatprep.subr.bf16.mxu0 0
    %3336 = vmatpush1.bf16.xpose.msra.mxu0 0
    %3337 = vmatprep.mubr.bf16.mxu0 0
    %3338 = vmatmul.mubr.bf16.gmra.mrb[0].mxu0 %v3299
    %v3339 = vpop.f32.mrb[0].mxu0
    %v3340 = vadd.f32 %v106, %v3339
    %v3341 = vpop.f32.mrb[0].mxu0
    %v3342 = vpop.f32.mrb[0].mxu0
    %v3343 = vpop.f32.mrb[0].mxu0
    %3344 = vdwg.mxu0
    %3345 = vmatprep.subr.bf16.mxu0 0
    %3346 = vmatpush1.bf16.xpose.msra.mxu0 %v3302
    %3347 = vmatprep.subr.bf16.mxu0 0
    %3348 = vmatpush1.bf16.xpose.msra.mxu0 0
    %3349 = vmatprep.subr.bf16.mxu0 0
    %3350 = vmatpush1.bf16.xpose.msra.mxu0 0
    %3351 = vmatprep.subr.bf16.mxu0 0
    %3352 = vmatpush1.bf16.xpose.msra.mxu0 0
    %3353 = vmatprep.subr.bf16.mxu0 0
    %3354 = vmatpush1.bf16.xpose.msra.mxu0 0
    %3355 = vmatprep.subr.bf16.mxu0 0
    %3356 = vmatpush1.bf16.xpose.msra.mxu0 0
    %3357 = vmatprep.subr.bf16.mxu0 0
    %3358 = vmatpush1.bf16.xpose.msra.mxu0 0
    %3359 = vmatprep.subr.bf16.mxu0 0
    %3360 = vmatpush1.bf16.xpose.msra.mxu0 0
    %3361 = vmatprep.subr.bf16.mxu0 0
    %3362 = vmatpush1.bf16.xpose.msra.mxu0 0
    %3363 = vmatprep.subr.bf16.mxu0 0
    %3364 = vmatpush1.bf16.xpose.msra.mxu0 0
    %3365 = vmatprep.subr.bf16.mxu0 0
    %3366 = vmatpush1.bf16.xpose.msra.mxu0 0
    %3367 = vmatprep.subr.bf16.mxu0 0
    %3368 = vmatpush1.bf16.xpose.msra.mxu0 0
    %3369 = vmatprep.subr.bf16.mxu0 0
    %3370 = vmatpush1.bf16.xpose.msra.mxu0 0
    %3371 = vmatprep.subr.bf16.mxu0 0
    %3372 = vmatpush1.bf16.xpose.msra.mxu0 0
    %3373 = vmatprep.subr.bf16.mxu0 0
    %3374 = vmatpush1.bf16.xpose.msra.mxu0 0
    %3375 = vmatprep.subr.bf16.mxu0 0
    %3376 = vmatpush1.bf16.xpose.msra.mxu0 0
    %3377 = vmatprep.mubr.bf16.mxu0 0
    %3378 = vmatmul.mubr.bf16.gmra.mrb[0].mxu0 %v3300
    %v3379 = vpop.f32.mrb[0].mxu0
    %v3380 = vadd.f32 %v106, %v3379
    %v3381 = vpop.f32.mrb[0].mxu0
    %v3382 = vpop.f32.mrb[0].mxu0
    %v3383 = vpop.f32.mrb[0].mxu0
    %3384 = vdwg.mxu0
    %v3385 = vsel %vm643, %v3340, -inf
    %3386 = vmax.xlane.f32.xlu0 %v3385
    %v3387 = vpop.xlane.xlu0 %3386
    %v3388 = vsel %vm643, %v3380, -inf
    %3389 = vmax.xlane.f32.xlu0 %v3388
    %v3390 = vpop.xlane.xlu0 %3389
    %v3391 = vsub.f32 %v3340, %v3387
    %v3392 = vsub.f32 %v3380, %v3390
    %v3393 = vmul.f32 %v3391, 1.442695
    %v3394 = vpow.pop %v3393
    %v3395 = vmul.f32 %v3392, 1.442695
    %v3396 = vpow.pop %v3395
    %v3397 = vsel %vm643, %v3394, 0.0
    %3398 = vadd.xlane.f32.xlu0 %v3397
    %v3399 = vpop.xlane.xlu0 %3398
    %v3400 = vsel %vm643, %v3396, 0.0
    %3401 = vadd.xlane.f32.xlu0 %v3400
    %v3402 = vpop.xlane.xlu0 %3401
    %v3403 = vrcp.pop %v3399
    %v3404 = vrcp.pop %v3402
    %v3405 = vmul.f32 %v3394, %v3403
    %v3406 = vmul.f32 %v3396, %v3404
    %v3407 = vpack.c.bf16 %v3405, %v3405
    %v3408 = vpack.c.bf16 %v3406, %v3406
    %v3410 = vsel %vm643, %v3407, 0
    %v3413 = vsel %vm671, %v3303, 0
    %3415 = vmatprep.subr.bf16.mxu0 0
    %3416 = vmatpush1.bf16.msra.mxu0 %v3413
    %3417 = vmatprep.subr.bf16.mxu0 0
    %3418 = vmatpush1.bf16.msra.mxu0 0
    %3419 = vmatprep.subr.bf16.mxu0 0
    %3420 = vmatpush1.bf16.msra.mxu0 0
    %3421 = vmatprep.subr.bf16.mxu0 0
    %3422 = vmatpush1.bf16.msra.mxu0 0
    %3423 = vmatprep.subr.bf16.mxu0 0
    %3424 = vmatpush1.bf16.msra.mxu0 0
    %3425 = vmatprep.subr.bf16.mxu0 0
    %3426 = vmatpush1.bf16.msra.mxu0 0
    %3427 = vmatprep.subr.bf16.mxu0 0
    %3428 = vmatpush1.bf16.msra.mxu0 0
    %3429 = vmatprep.subr.bf16.mxu0 0
    %3430 = vmatpush1.bf16.msra.mxu0 0
    %3431 = vmatprep.subr.bf16.mxu0 0
    %3432 = vmatpush1.bf16.msra.mxu0 0
    %3433 = vmatprep.subr.bf16.mxu0 0
    %3434 = vmatpush1.bf16.msra.mxu0 0
    %3435 = vmatprep.subr.bf16.mxu0 0
    %3436 = vmatpush1.bf16.msra.mxu0 0
    %3437 = vmatprep.subr.bf16.mxu0 0
    %3438 = vmatpush1.bf16.msra.mxu0 0
    %3439 = vmatprep.subr.bf16.mxu0 0
    %3440 = vmatpush1.bf16.msra.mxu0 0
    %3441 = vmatprep.subr.bf16.mxu0 0
    %3442 = vmatpush1.bf16.msra.mxu0 0
    %3443 = vmatprep.subr.bf16.mxu0 0
    %3444 = vmatpush1.bf16.msra.mxu0 0
    %3445 = vmatprep.subr.bf16.mxu0 0
    %3446 = vmatpush1.bf16.msra.mxu0 0
    %3447 = vmatprep.mubr.bf16.mxu0 0
    %3448 = vmatmul.mubr.bf16.gmra.mrb[0].mxu0 %v3410
    %v3449 = vpop.f32.mrb[0].mxu0
    %v3450 = vadd.f32 0.0, %v3449
    %v3451 = vpop.f32.mrb[0].mxu0
    %v3452 = vpop.f32.mrb[0].mxu0
    %v3453 = vpop.f32.mrb[0].mxu0
    %3454 = vdwg.mxu0
    %v3456 = vsel %vm643, %v3408, 0
    %v3459 = vsel %vm671, %v3304, 0
    %3461 = vmatprep.subr.bf16.mxu0 0
    %3462 = vmatpush1.bf16.msra.mxu0 %v3459
    %3463 = vmatprep.subr.bf16.mxu0 0
    %3464 = vmatpush1.bf16.msra.mxu0 0
    %3465 = vmatprep.subr.bf16.mxu0 0
    %3466 = vmatpush1.bf16.msra.mxu0 0
    %3467 = vmatprep.subr.bf16.mxu0 0
    %3468 = vmatpush1.bf16.msra.mxu0 0
    %3469 = vmatprep.subr.bf16.mxu0 0
    %3470 = vmatpush1.bf16.msra.mxu0 0
    %3471 = vmatprep.subr.bf16.mxu0 0
    %3472 = vmatpush1.bf16.msra.mxu0 0
    %3473 = vmatprep.subr.bf16.mxu0 0
    %3474 = vmatpush1.bf16.msra.mxu0 0
    %3475 = vmatprep.subr.bf16.mxu0 0
    %3476 = vmatpush1.bf16.msra.mxu0 0
    %3477 = vmatprep.subr.bf16.mxu0 0
    %3478 = vmatpush1.bf16.msra.mxu0 0
    %3479 = vmatprep.subr.bf16.mxu0 0
    %3480 = vmatpush1.bf16.msra.mxu0 0
    %3481 = vmatprep.subr.bf16.mxu0 0
    %3482 = vmatpush1.bf16.msra.mxu0 0
    %3483 = vmatprep.subr.bf16.mxu0 0
    %3484 = vmatpush1.bf16.msra.mxu0 0
    %3485 = vmatprep.subr.bf16.mxu0 0
    %3486 = vmatpush1.bf16.msra.mxu0 0
    %3487 = vmatprep.subr.bf16.mxu0 0
    %3488 = vmatpush1.bf16.msra.mxu0 0
    %3489 = vmatprep.subr.bf16.mxu0 0
    %3490 = vmatpush1.bf16.msra.mxu0 0
    %3491 = vmatprep.subr.bf16.mxu0 0
    %3492 = vmatpush1.bf16.msra.mxu0 0
    %3493 = vmatprep.mubr.bf16.mxu0 0
    %3494 = vmatmul.mubr.bf16.gmra.mrb[0].mxu0 %v3456
    %v3495 = vpop.f32.mrb[0].mxu0
    %v3496 = vadd.f32 0.0, %v3495
    %v3497 = vpop.f32.mrb[0].mxu0
    %v3498 = vpop.f32.mrb[0].mxu0
    %v3499 = vpop.f32.mrb[0].mxu0
    %3500 = vdwg.mxu0
    %v3501 = vpack.c.bf16 %v3294, %v3248
    %v3502 = vpack.c.bf16 %v3496, %v3450
    %s3503 = scalar_lea.vmem [#allocation4], 384
    %v3504 = vld [vmem:[%s3503] sm:$0xf]
    %v3505 = vld [vmem:[%s3503 + $0xc] sm:$0xf]
    %v3506 = vld [vmem:[%s3503 + $0x18] sm:$0xf]
    %v3507 = vld [vmem:[%s3503 + $0x24] sm:$0xf]
    %v3508 = vld [vmem:[%s3503 + $0x30] sm:$0xf]
    %v3509 = vld [vmem:[%s3503 + $0x3c] sm:$0xf]
    %v3510 = vld [vmem:[%s3503 + $0x48] sm:$0xf]
    %v3511 = vld [vmem:[%s3503 + $0x54] sm:$0xf]
    %v3512 = vld [vmem:[%s3503 + $0x60] sm:$0xf]
    %v3513 = vld [vmem:[%s3503 + $0x6c] sm:$0xf]
    %v3514 = vld [vmem:[%s3503 + $0x78] sm:$0xf]
    %v3515 = vld [vmem:[%s3503 + $0x84] sm:$0xf]
    %v3516 = vld [vmem:[%s3503 + $0x90] sm:$0xf]
    %v3517 = vld [vmem:[%s3503 + $0x9c] sm:$0xf]
    %v3518 = vld [vmem:[%s3503 + $0xa8] sm:$0xf]
    %v3519 = vld [vmem:[%s3503 + $0xb4] sm:$0xf]
    %v3520 = vld [vmem:[%s3503 + $0xc0] sm:$0xf]
    %v3521 = vld [vmem:[%s3503 + $0xcc] sm:$0xf]
    %v3522 = vld [vmem:[%s3503 + $0xd8] sm:$0xf]
    %v3523 = vld [vmem:[%s3503 + $0xe4] sm:$0xf]
    %v3524 = vld [vmem:[%s3503 + $0xf0] sm:$0xf]
    %v3525 = vld [vmem:[%s3503 + $0xfc] sm:$0xf]
    %v3526 = vld [vmem:[%s3503 + $0x108] sm:$0xf]
    %v3527 = vld [vmem:[%s3503 + $0x114] sm:$0xf]
    %v3528 = vld [vmem:[%s3503 + $0x120] sm:$0xf]
    %v3529 = vld [vmem:[%s3503 + $0x12c] sm:$0xf]
    %v3530 = vld [vmem:[%s3503 + $0x138] sm:$0xf]
    %v3531 = vld [vmem:[%s3503 + $0x144] sm:$0xf]
    %v3532 = vld [vmem:[%s3503 + $0x150] sm:$0xf]
    %v3533 = vld [vmem:[%s3503 + $0x15c] sm:$0xf]
    %v3534 = vld [vmem:[%s3503 + $0x168] sm:$0xf]
    %v3535 = vld [vmem:[%s3503 + $0x174] sm:$0xf]
    %v3536 = vld [vmem:[%s2695 + $0xe] sm:$0x1]
    %v3538 = vlaneseq
    %v3539 = vshrl.u32 %v3538, 7
    %v3540 = vsub.s32 0, %v3539
    %v3541 = vrot.slane %v3536, %v3540
    %v3575 = vunpack.c.l.b16 %v3504
    %v3576 = vunpack.c.l.b16 %v3505
    %v3577 = vunpack.c.l.b16 %v3506
    %v3578 = vunpack.c.l.b16 %v3507
    %v3579 = vunpack.c.l.b16 %v3508
    %v3580 = vunpack.c.l.b16 %v3509
    %v3581 = vunpack.c.l.b16 %v3510
    %v3582 = vunpack.c.l.b16 %v3511
    %v3583 = vunpack.c.l.b16 %v3512
    %v3584 = vunpack.c.l.b16 %v3513
    %v3585 = vunpack.c.l.b16 %v3514
    %v3586 = vunpack.c.l.b16 %v3515
    %v3587 = vunpack.c.l.b16 %v3516
    %v3588 = vunpack.c.l.b16 %v3517
    %v3589 = vunpack.c.l.b16 %v3518
    %v3590 = vunpack.c.l.b16 %v3519
    %v3591 = vunpack.c.l.b16 %v3520
    %v3592 = vunpack.c.l.b16 %v3521
    %v3593 = vunpack.c.l.b16 %v3522
    %v3594 = vunpack.c.l.b16 %v3523
    %v3595 = vunpack.c.l.b16 %v3524
    %v3596 = vunpack.c.l.b16 %v3525
    %v3597 = vunpack.c.l.b16 %v3526
    %v3598 = vunpack.c.l.b16 %v3527
    %v3599 = vunpack.c.l.b16 %v3528
    %v3600 = vunpack.c.l.b16 %v3529
    %v3601 = vunpack.c.l.b16 %v3530
    %v3602 = vunpack.c.l.b16 %v3531
    %v3603 = vunpack.c.l.b16 %v3532
    %v3604 = vunpack.c.l.b16 %v3533
    %v3605 = vunpack.c.l.b16 %v3534
    %v3606 = vunpack.c.l.b16 %v3535
    %v3607 = vpack.c.b16 %v3576, %v3575
    %v3608 = vpack.c.b16 %v3578, %v3577
    %v3609 = vpack.c.b16 %v3580, %v3579
    %v3610 = vpack.c.b16 %v3582, %v3581
    %v3611 = vpack.c.b16 %v3584, %v3583
    %v3612 = vpack.c.b16 %v3586, %v3585
    %v3613 = vpack.c.b16 %v3588, %v3587
    %v3614 = vpack.c.b16 %v3590, %v3589
    %v3615 = vpack.c.b16 %v3592, %v3591
    %v3616 = vpack.c.b16 %v3594, %v3593
    %v3617 = vpack.c.b16 %v3596, %v3595
    %v3618 = vpack.c.b16 %v3598, %v3597
    %v3619 = vpack.c.b16 %v3600, %v3599
    %v3620 = vpack.c.b16 %v3602, %v3601
    %v3621 = vpack.c.b16 %v3604, %v3603
    %v3622 = vpack.c.b16 %v3606, %v3605
    %3639 = vmatprep.subr.bf16.mxu0 0
    %3640 = vmatpush1.bf16.msra.mxu0 %v3607
    %3641 = vmatprep.subr.bf16.mxu0 0
    %3642 = vmatpush1.bf16.msra.mxu0 %v3608
    %3643 = vmatprep.subr.bf16.mxu0 0
    %3644 = vmatpush1.bf16.msra.mxu0 %v3609
    %3645 = vmatprep.subr.bf16.mxu0 0
    %3646 = vmatpush1.bf16.msra.mxu0 %v3610
    %3647 = vmatprep.subr.bf16.mxu0 0
    %3648 = vmatpush1.bf16.msra.mxu0 %v3611
    %3649 = vmatprep.subr.bf16.mxu0 0
    %3650 = vmatpush1.bf16.msra.mxu0 %v3612
    %3651 = vmatprep.subr.bf16.mxu0 0
    %3652 = vmatpush1.bf16.msra.mxu0 %v3613
    %3653 = vmatprep.subr.bf16.mxu0 0
    %3654 = vmatpush1.bf16.msra.mxu0 %v3614
    %3655 = vmatprep.subr.bf16.mxu0 0
    %3656 = vmatpush1.bf16.msra.mxu0 %v3615
    %3657 = vmatprep.subr.bf16.mxu0 0
    %3658 = vmatpush1.bf16.msra.mxu0 %v3616
    %3659 = vmatprep.subr.bf16.mxu0 0
    %3660 = vmatpush1.bf16.msra.mxu0 %v3617
    %3661 = vmatprep.subr.bf16.mxu0 0
    %3662 = vmatpush1.bf16.msra.mxu0 %v3618
    %3663 = vmatprep.subr.bf16.mxu0 0
    %3664 = vmatpush1.bf16.msra.mxu0 %v3619
    %3665 = vmatprep.subr.bf16.mxu0 0
    %3666 = vmatpush1.bf16.msra.mxu0 %v3620
    %3667 = vmatprep.subr.bf16.mxu0 0
    %3668 = vmatpush1.bf16.msra.mxu0 %v3621
    %3669 = vmatprep.subr.bf16.mxu0 0
    %3670 = vmatpush1.bf16.msra.mxu0 %v3622
    %3671 = vmatprep.mubr.bf16.mxu0 %v3502
    %3672 = vmatmul.mubr.bf16.gmra.mrb[0].mxu0 %v3501
    %v3673 = vpop.f32.mrb[0].mxu0
    %v3674 = vadd.f32 %v3541, %v3673
    %v3675 = vpop.f32.mrb[0].mxu0
    %v3676 = vpop.f32.mrb[0].mxu0
    %v3677 = vadd.f32 %v3541, %v3676
    %v3678 = vpop.f32.mrb[0].mxu0
    %3679 = vdwg.mxu0
    %v3680 = vadd.f32 %v2643, %v3674
    %v3681 = vadd.f32 %v2644, %v3677
    %v3682 = vld [vmem:[%s2695 + $0x11] sm:$0x1]
    %v3683 = vld [vmem:[%s2695 + $0x12] sm:$0x1]
    %3684 = vadd.xlane.f32.xlu0 %v3680
    %v3685 = vpop.xlane.xlu0 %3684
    %3686 = vadd.xlane.f32.xlu0 %v3681
    %v3687 = vpop.xlane.xlu0 %3686
    %v3688 = vmul.f32 %v3685, %v1149
    %v3689 = vmul.f32 %v3687, %v1149
    %v3690 = vsub.f32 %v3680, %v3688
    %v3691 = vsub.f32 %v3681, %v3689
    %v3692 = vmul.f32 %v3690, %v3690
    %v3693 = vmul.f32 %v3691, %v3691
    %3694 = vadd.xlane.f32.xlu0 %v3692
    %v3695 = vpop.xlane.xlu0 %3694
    %3696 = vadd.xlane.f32.xlu0 %v3693
    %v3697 = vpop.xlane.xlu0 %3696
    %v3698 = vmul.f32 %v3695, %v1149
    %v3699 = vmul.f32 %v3697, %v1149
    %v3700 = vadd.f32 %v3698, 1e-05
    %v3701 = vadd.f32 %v3699, 1e-05
    %v3702 = vrsqrt.pop %v3700
    %v3703 = vrsqrt.pop %v3701
    %v3704 = vmul.f32 %v3690, %v3702
    %v3705 = vmul.f32 %v3691, %v3703
    %v3707 = vlaneseq
    %v3708 = vshrl.u32 %v3707, 7
    %v3709 = vsub.s32 0, %v3708
    %v3710 = vrot.slane %v3682, %v3709
    %v3712 = vmul.f32 %v3704, %v3710
    %v3713 = vmul.f32 %v3705, %v3710
    %v3715 = vlaneseq
    %v3716 = vshrl.u32 %v3715, 7
    %v3717 = vsub.s32 0, %v3716
    %v3718 = vrot.slane %v3683, %v3717
    %v3720 = vadd.f32 %v3712, %v3718
    %v3721 = vadd.f32 %v3713, %v3718
    %v3722 = vpack.c.bf16 %v3721, %v3720
    %v3723 = vld [vmem:[%s2646 + $0x18] sm:$0xff]
    %v3724 = vld [vmem:[%s2646 + $0x50] sm:$0xff]
    %v3725 = vld [vmem:[%s2646 + $0x88] sm:$0xff]
    %v3726 = vld [vmem:[%s2646 + $0xc0] sm:$0xff]
    %v3727 = vld [vmem:[%s2646 + $0xf8] sm:$0xff]
    %v3728 = vld [vmem:[%s2646 + $0x130] sm:$0xff]
    %v3729 = vld [vmem:[%s2646 + $0x168] sm:$0xff]
    %v3730 = vld [vmem:[%s2646 + $0x1a0] sm:$0xff]
    %v3731 = vld [vmem:[%s2646 + $0x1d8] sm:$0xff]
    %v3732 = vld [vmem:[%s2646 + $0x210] sm:$0xff]
    %v3733 = vld [vmem:[%s2646 + $0x248] sm:$0xff]
    %v3734 = vld [vmem:[%s2646 + $0x280] sm:$0xff]
    %v3735 = vld [vmem:[%s2646 + $0x2b8] sm:$0xff]
    %v3736 = vld [vmem:[%s2646 + $0x2f0] sm:$0xff]
    %v3737 = vld [vmem:[%s2646 + $0x328] sm:$0xff]
    %v3738 = vld [vmem:[%s2646 + $0x360] sm:$0xff]
    %v3739 = vld [vmem:[%s2695 + $0x6] sm:$0x3]
    %v3741 = vlaneseq
    %v3742 = vshrl.u32 %v3741, 7
    %v3743 = vsub.s32 0, %v3742
    %v3744 = vrot.slane %v3739, %v3743
    %v3745 = vlaneseq
    %v3746 = vshrl.u32 %v3745, 7
    %v3747 = vsub.s32 1, %v3746
    %v3748 = vrot.slane %v3739, %v3747
    %v3767 = vunpack.c.l.b16 %v3723
    %v3768 = vunpack.c.h.b16 %v3723
    %v3769 = vunpack.c.l.b16 %v3724
    %v3770 = vunpack.c.h.b16 %v3724
    %v3771 = vunpack.c.l.b16 %v3725
    %v3772 = vunpack.c.h.b16 %v3725
    %v3773 = vunpack.c.l.b16 %v3726
    %v3774 = vunpack.c.h.b16 %v3726
    %v3775 = vunpack.c.l.b16 %v3727
    %v3776 = vunpack.c.h.b16 %v3727
    %v3777 = vunpack.c.l.b16 %v3728
    %v3778 = vunpack.c.h.b16 %v3728
    %v3779 = vunpack.c.l.b16 %v3729
    %v3780 = vunpack.c.h.b16 %v3729
    %v3781 = vunpack.c.l.b16 %v3730
    %v3782 = vunpack.c.h.b16 %v3730
    %v3783 = vunpack.c.l.b16 %v3731
    %v3784 = vunpack.c.h.b16 %v3731
    %v3785 = vunpack.c.l.b16 %v3732
    %v3786 = vunpack.c.h.b16 %v3732
    %v3787 = vunpack.c.l.b16 %v3733
    %v3788 = vunpack.c.h.b16 %v3733
    %v3789 = vunpack.c.l.b16 %v3734
    %v3790 = vunpack.c.h.b16 %v3734
    %v3791 = vunpack.c.l.b16 %v3735
    %v3792 = vunpack.c.h.b16 %v3735
    %v3793 = vunpack.c.l.b16 %v3736
    %v3794 = vunpack.c.h.b16 %v3736
    %v3795 = vunpack.c.l.b16 %v3737
    %v3796 = vunpack.c.h.b16 %v3737
    %v3797 = vunpack.c.l.b16 %v3738
    %v3798 = vunpack.c.h.b16 %v3738
    %v3799 = vpack.c.b16 %v3769, %v3767
    %v3800 = vpack.c.b16 %v3770, %v3768
    %v3801 = vpack.c.b16 %v3773, %v3771
    %v3802 = vpack.c.b16 %v3774, %v3772
    %v3803 = vpack.c.b16 %v3777, %v3775
    %v3804 = vpack.c.b16 %v3778, %v3776
    %v3805 = vpack.c.b16 %v3781, %v3779
    %v3806 = vpack.c.b16 %v3782, %v3780
    %v3807 = vpack.c.b16 %v3785, %v3783
    %v3808 = vpack.c.b16 %v3786, %v3784
    %v3809 = vpack.c.b16 %v3789, %v3787
    %v3810 = vpack.c.b16 %v3790, %v3788
    %v3811 = vpack.c.b16 %v3793, %v3791
    %v3812 = vpack.c.b16 %v3794, %v3792
    %v3813 = vpack.c.b16 %v3797, %v3795
    %v3814 = vpack.c.b16 %v3798, %v3796
    %3831 = vmatprep.subr.bf16.mxu0 %v3800
    %3832 = vmatpush1.bf16.msra.mxu0 %v3799
    %3833 = vmatprep.subr.bf16.mxu0 %v3802
    %3834 = vmatpush1.bf16.msra.mxu0 %v3801
    %3835 = vmatprep.subr.bf16.mxu0 %v3804
    %3836 = vmatpush1.bf16.msra.mxu0 %v3803
    %3837 = vmatprep.subr.bf16.mxu0 %v3806
    %3838 = vmatpush1.bf16.msra.mxu0 %v3805
    %3839 = vmatprep.subr.bf16.mxu0 %v3808
    %3840 = vmatpush1.bf16.msra.mxu0 %v3807
    %3841 = vmatprep.subr.bf16.mxu0 %v3810
    %3842 = vmatpush1.bf16.msra.mxu0 %v3809
    %3843 = vmatprep.subr.bf16.mxu0 %v3812
    %3844 = vmatpush1.bf16.msra.mxu0 %v3811
    %3845 = vmatprep.subr.bf16.mxu0 %v3814
    %3846 = vmatpush1.bf16.msra.mxu0 %v3813
    %3847 = vmatprep.subr.bf16.mxu0 0
    %3848 = vmatpush1.bf16.msra.mxu0 0
    %3849 = vmatprep.subr.bf16.mxu0 0
    %3850 = vmatpush1.bf16.msra.mxu0 0
    %3851 = vmatprep.subr.bf16.mxu0 0
    %3852 = vmatpush1.bf16.msra.mxu0 0
    %3853 = vmatprep.subr.bf16.mxu0 0
    %3854 = vmatpush1.bf16.msra.mxu0 0
    %3855 = vmatprep.subr.bf16.mxu0 0
    %3856 = vmatpush1.bf16.msra.mxu0 0
    %3857 = vmatprep.subr.bf16.mxu0 0
    %3858 = vmatpush1.bf16.msra.mxu0 0
    %3859 = vmatprep.subr.bf16.mxu0 0
    %3860 = vmatpush1.bf16.msra.mxu0 0
    %3861 = vmatprep.subr.bf16.mxu0 0
    %3862 = vmatpush1.bf16.msra.mxu0 0
    %3863 = vmatprep.mubr.bf16.mxu0 0
    %3864 = vmatmul.mubr.bf16.gmra.mrb[0].mxu0 %v3722
    %v3865 = vpop.f32.mrb[0].mxu0
    %v3866 = vadd.f32 %v3744, %v3865
    %v3867 = vpop.f32.mrb[0].mxu0
    %v3868 = vadd.f32 %v3748, %v3867
    %v3869 = vpop.f32.mrb[0].mxu0
    %v3870 = vadd.f32 %v3744, %v3869
    %v3871 = vpop.f32.mrb[0].mxu0
    %v3872 = vadd.f32 %v3748, %v3871
    %3873 = vdwg.mxu0
    %v3874 = vld [vmem:[%s2646 + $0x20] sm:$0xff]
    %v3875 = vld [vmem:[%s2646 + $0x28] sm:$0xff]
    %v3876 = vld [vmem:[%s2646 + $0x58] sm:$0xff]
    %v3877 = vld [vmem:[%s2646 + $0x60] sm:$0xff]
    %v3878 = vld [vmem:[%s2646 + $0x90] sm:$0xff]
    %v3879 = vld [vmem:[%s2646 + $0x98] sm:$0xff]
    %v3880 = vld [vmem:[%s2646 + $0xc8] sm:$0xff]
    %v3881 = vld [vmem:[%s2646 + $0xd0] sm:$0xff]
    %v3882 = vld [vmem:[%s2646 + $0x100] sm:$0xff]
    %v3883 = vld [vmem:[%s2646 + $0x108] sm:$0xff]
    %v3884 = vld [vmem:[%s2646 + $0x138] sm:$0xff]
    %v3885 = vld [vmem:[%s2646 + $0x140] sm:$0xff]
    %v3886 = vld [vmem:[%s2646 + $0x170] sm:$0xff]
    %v3887 = vld [vmem:[%s2646 + $0x178] sm:$0xff]
    %v3888 = vld [vmem:[%s2646 + $0x1a8] sm:$0xff]
    %v3889 = vld [vmem:[%s2646 + $0x1b0] sm:$0xff]
    %v3890 = vld [vmem:[%s2646 + $0x1e0] sm:$0xff]
    %v3891 = vld [vmem:[%s2646 + $0x1e8] sm:$0xff]
    %v3892 = vld [vmem:[%s2646 + $0x218] sm:$0xff]
    %v3893 = vld [vmem:[%s2646 + $0x220] sm:$0xff]
    %v3894 = vld [vmem:[%s2646 + $0x250] sm:$0xff]
    %v3895 = vld [vmem:[%s2646 + $0x258] sm:$0xff]
    %v3896 = vld [vmem:[%s2646 + $0x288] sm:$0xff]
    %v3897 = vld [vmem:[%s2646 + $0x290] sm:$0xff]
    %v3898 = vld [vmem:[%s2646 + $0x2c0] sm:$0xff]
    %v3899 = vld [vmem:[%s2646 + $0x2c8] sm:$0xff]
    %v3900 = vld [vmem:[%s2646 + $0x2f8] sm:$0xff]
    %v3901 = vld [vmem:[%s2646 + $0x300] sm:$0xff]
    %v3902 = vld [vmem:[%s2646 + $0x330] sm:$0xff]
    %v3903 = vld [vmem:[%s2646 + $0x338] sm:$0xff]
    %v3904 = vld [vmem:[%s2646 + $0x368] sm:$0xff]
    %v3905 = vld [vmem:[%s2646 + $0x370] sm:$0xff]
    %v3906 = vld [vmem:[%s2695 + $0x8] sm:$0xf]
    %v3908 = vlaneseq
    %v3909 = vshrl.u32 %v3908, 7
    %v3910 = vsub.s32 0, %v3909
    %v3911 = vrot.slane %v3906, %v3910
    %v3912 = vlaneseq
    %v3913 = vshrl.u32 %v3912, 7
    %v3914 = vsub.s32 1, %v3913
    %v3915 = vrot.slane %v3906, %v3914
    %v3916 = vlaneseq
    %v3917 = vshrl.u32 %v3916, 7
    %v3918 = vsub.s32 2, %v3917
    %v3919 = vrot.slane %v3906, %v3918
    %v3920 = vlaneseq
    %v3921 = vshrl.u32 %v3920, 7
    %v3922 = vsub.s32 3, %v3921
    %v3923 = vrot.slane %v3906, %v3922
    %v3960 = vunpack.c.l.b16 %v3874
    %v3961 = vunpack.c.h.b16 %v3874
    %v3962 = vunpack.c.l.b16 %v3875
    %v3963 = vunpack.c.h.b16 %v3875
    %v3964 = vunpack.c.l.b16 %v3876
    %v3965 = vunpack.c.h.b16 %v3876
    %v3966 = vunpack.c.l.b16 %v3877
    %v3967 = vunpack.c.h.b16 %v3877
    %v3968 = vunpack.c.l.b16 %v3878
    %v3969 = vunpack.c.h.b16 %v3878
    %v3970 = vunpack.c.l.b16 %v3879
    %v3971 = vunpack.c.h.b16 %v3879
    %v3972 = vunpack.c.l.b16 %v3880
    %v3973 = vunpack.c.h.b16 %v3880
    %v3974 = vunpack.c.l.b16 %v3881
    %v3975 = vunpack.c.h.b16 %v3881
    %v3976 = vunpack.c.l.b16 %v3882
    %v3977 = vunpack.c.h.b16 %v3882
    %v3978 = vunpack.c.l.b16 %v3883
    %v3979 = vunpack.c.h.b16 %v3883
    %v3980 = vunpack.c.l.b16 %v3884
    %v3981 = vunpack.c.h.b16 %v3884
    %v3982 = vunpack.c.l.b16 %v3885
    %v3983 = vunpack.c.h.b16 %v3885
    %v3984 = vunpack.c.l.b16 %v3886
    %v3985 = vunpack.c.h.b16 %v3886
    %v3986 = vunpack.c.l.b16 %v3887
    %v3987 = vunpack.c.h.b16 %v3887
    %v3988 = vunpack.c.l.b16 %v3888
    %v3989 = vunpack.c.h.b16 %v3888
    %v3990 = vunpack.c.l.b16 %v3889
    %v3991 = vunpack.c.h.b16 %v3889
    %v3992 = vunpack.c.l.b16 %v3890
    %v3993 = vunpack.c.h.b16 %v3890
    %v3994 = vunpack.c.l.b16 %v3891
    %v3995 = vunpack.c.h.b16 %v3891
    %v3996 = vunpack.c.l.b16 %v3892
    %v3997 = vunpack.c.h.b16 %v3892
    %v3998 = vunpack.c.l.b16 %v3893
    %v3999 = vunpack.c.h.b16 %v3893
    %v4000 = vunpack.c.l.b16 %v3894
    %v4001 = vunpack.c.h.b16 %v3894
    %v4002 = vunpack.c.l.b16 %v3895
    %v4003 = vunpack.c.h.b16 %v3895
    %v4004 = vunpack.c.l.b16 %v3896
    %v4005 = vunpack.c.h.b16 %v3896
    %v4006 = vunpack.c.l.b16 %v3897
    %v4007 = vunpack.c.h.b16 %v3897
    %v4008 = vunpack.c.l.b16 %v3898
    %v4009 = vunpack.c.h.b16 %v3898
    %v4010 = vunpack.c.l.b16 %v3899
    %v4011 = vunpack.c.h.b16 %v3899
    %v4012 = vunpack.c.l.b16 %v3900
    %v4013 = vunpack.c.h.b16 %v3900
    %v4014 = vunpack.c.l.b16 %v3901
    %v4015 = vunpack.c.h.b16 %v3901
    %v4016 = vunpack.c.l.b16 %v3902
    %v4017 = vunpack.c.h.b16 %v3902
    %v4018 = vunpack.c.l.b16 %v3903
    %v4019 = vunpack.c.h.b16 %v3903
    %v4020 = vunpack.c.l.b16 %v3904
    %v4021 = vunpack.c.h.b16 %v3904
    %v4022 = vunpack.c.l.b16 %v3905
    %v4023 = vunpack.c.h.b16 %v3905
    %v4024 = vpack.c.b16 %v3964, %v3960
    %v4025 = vpack.c.b16 %v3965, %v3961
    %v4026 = vpack.c.b16 %v3966, %v3962
    %v4027 = vpack.c.b16 %v3967, %v3963
    %v4028 = vpack.c.b16 %v3972, %v3968
    %v4029 = vpack.c.b16 %v3973, %v3969
    %v4030 = vpack.c.b16 %v3974, %v3970
    %v4031 = vpack.c.b16 %v3975, %v3971
    %v4032 = vpack.c.b16 %v3980, %v3976
    %v4033 = vpack.c.b16 %v3981, %v3977
    %v4034 = vpack.c.b16 %v3982, %v3978
    %v4035 = vpack.c.b16 %v3983, %v3979
    %v4036 = vpack.c.b16 %v3988, %v3984
    %v4037 = vpack.c.b16 %v3989, %v3985
    %v4038 = vpack.c.b16 %v3990, %v3986
    %v4039 = vpack.c.b16 %v3991, %v3987
    %v4040 = vpack.c.b16 %v3996, %v3992
    %v4041 = vpack.c.b16 %v3997, %v3993
    %v4042 = vpack.c.b16 %v3998, %v3994
    %v4043 = vpack.c.b16 %v3999, %v3995
    %v4044 = vpack.c.b16 %v4004, %v4000
    %v4045 = vpack.c.b16 %v4005, %v4001
    %v4046 = vpack.c.b16 %v4006, %v4002
    %v4047 = vpack.c.b16 %v4007, %v4003
    %v4048 = vpack.c.b16 %v4012, %v4008
    %v4049 = vpack.c.b16 %v4013, %v4009
    %v4050 = vpack.c.b16 %v4014, %v4010
    %v4051 = vpack.c.b16 %v4015, %v4011
    %v4052 = vpack.c.b16 %v4020, %v4016
    %v4053 = vpack.c.b16 %v4021, %v4017
    %v4054 = vpack.c.b16 %v4022, %v4018
    %v4055 = vpack.c.b16 %v4023, %v4019
    %4088 = vmatprep.subr.bf16.mxu0 %v4025
    %4089 = vmatpush1.bf16.msra.mxu0 %v4024
    %4090 = vmatprep.subr.bf16.mxu0 %v4029
    %4091 = vmatpush1.bf16.msra.mxu0 %v4028
    %4092 = vmatprep.subr.bf16.mxu0 %v4033
    %4093 = vmatpush1.bf16.msra.mxu0 %v4032
    %4094 = vmatprep.subr.bf16.mxu0 %v4037
    %4095 = vmatpush1.bf16.msra.mxu0 %v4036
    %4096 = vmatprep.subr.bf16.mxu0 %v4041
    %4097 = vmatpush1.bf16.msra.mxu0 %v4040
    %4098 = vmatprep.subr.bf16.mxu0 %v4045
    %4099 = vmatpush1.bf16.msra.mxu0 %v4044
    %4100 = vmatprep.subr.bf16.mxu0 %v4049
    %4101 = vmatpush1.bf16.msra.mxu0 %v4048
    %4102 = vmatprep.subr.bf16.mxu0 %v4053
    %4103 = vmatpush1.bf16.msra.mxu0 %v4052
    %4104 = vmatprep.subr.bf16.mxu0 0
    %4105 = vmatpush1.bf16.msra.mxu0 0
    %4106 = vmatprep.subr.bf16.mxu0 0
    %4107 = vmatpush1.bf16.msra.mxu0 0
    %4108 = vmatprep.subr.bf16.mxu0 0
    %4109 = vmatpush1.bf16.msra.mxu0 0
    %4110 = vmatprep.subr.bf16.mxu0 0
    %4111 = vmatpush1.bf16.msra.mxu0 0
    %4112 = vmatprep.subr.bf16.mxu0 0
    %4113 = vmatpush1.bf16.msra.mxu0 0
    %4114 = vmatprep.subr.bf16.mxu0 0
    %4115 = vmatpush1.bf16.msra.mxu0 0
    %4116 = vmatprep.subr.bf16.mxu0 0
    %4117 = vmatpush1.bf16.msra.mxu0 0
    %4118 = vmatprep.subr.bf16.mxu0 0
    %4119 = vmatpush1.bf16.msra.mxu0 0
    %4120 = vmatprep.mubr.bf16.mxu0 0
    %4121 = vmatmul.mubr.bf16.gmra.mrb[0].mxu0 %v99
    %v4122 = vpop.f32.mrb[0].mxu0
    %v4123 = vadd.f32 %v3911, %v4122
    %v4124 = vpop.f32.mrb[0].mxu0
    %v4125 = vadd.f32 %v3915, %v4124
    %v4126 = vpop.f32.mrb[0].mxu0
    %v4127 = vadd.f32 %v3911, %v4126
    %v4128 = vpop.f32.mrb[0].mxu0
    %v4129 = vadd.f32 %v3915, %v4128
    %4130 = vmatprep.mubr.bf16.mxu0 0
    %4131 = vmatmul.mubr.bf16.gmra.mrb[0].mxu0 %v100
    %v4132 = vpop.f32.mrb[0].mxu0
    %v4133 = vadd.f32 %v3911, %v4132
    %v4134 = vpop.f32.mrb[0].mxu0
    %v4135 = vadd.f32 %v3915, %v4134
    %v4136 = vpop.f32.mrb[0].mxu0
    %v4137 = vadd.f32 %v3911, %v4136
    %v4138 = vpop.f32.mrb[0].mxu0
    %v4139 = vadd.f32 %v3915, %v4138
    %4140 = vdwg.mxu0
    %4141 = vmatprep.subr.bf16.mxu0 %v4027
    %4142 = vmatpush1.bf16.msra.mxu0 %v4026
    %4143 = vmatprep.subr.bf16.mxu0 %v4031
    %4144 = vmatpush1.bf16.msra.mxu0 %v4030
    %4145 = vmatprep.subr.bf16.mxu0 %v4035
    %4146 = vmatpush1.bf16.msra.mxu0 %v4034
    %4147 = vmatprep.subr.bf16.mxu0 %v4039
    %4148 = vmatpush1.bf16.msra.mxu0 %v4038
    %4149 = vmatprep.subr.bf16.mxu0 %v4043
    %4150 = vmatpush1.bf16.msra.mxu0 %v4042
    %4151 = vmatprep.subr.bf16.mxu0 %v4047
    %4152 = vmatpush1.bf16.msra.mxu0 %v4046
    %4153 = vmatprep.subr.bf16.mxu0 %v4051
    %4154 = vmatpush1.bf16.msra.mxu0 %v4050
    %4155 = vmatprep.subr.bf16.mxu0 %v4055
    %4156 = vmatpush1.bf16.msra.mxu0 %v4054
    %4157 = vmatprep.subr.bf16.mxu0 0
    %4158 = vmatpush1.bf16.msra.mxu0 0
    %4159 = vmatprep.subr.bf16.mxu0 0
    %4160 = vmatpush1.bf16.msra.mxu0 0
    %4161 = vmatprep.subr.bf16.mxu0 0
    %4162 = vmatpush1.bf16.msra.mxu0 0
    %4163 = vmatprep.subr.bf16.mxu0 0
    %4164 = vmatpush1.bf16.msra.mxu0 0
    %4165 = vmatprep.subr.bf16.mxu0 0
    %4166 = vmatpush1.bf16.msra.mxu0 0
    %4167 = vmatprep.subr.bf16.mxu0 0
    %4168 = vmatpush1.bf16.msra.mxu0 0
    %4169 = vmatprep.subr.bf16.mxu0 0
    %4170 = vmatpush1.bf16.msra.mxu0 0
    %4171 = vmatprep.subr.bf16.mxu0 0
    %4172 = vmatpush1.bf16.msra.mxu0 0
    %4173 = vmatprep.mubr.bf16.mxu0 0
    %4174 = vmatmul.mubr.bf16.gmra.mrb[0].mxu0 %v99
    %v4175 = vpop.f32.mrb[0].mxu0
    %v4176 = vadd.f32 %v3919, %v4175
    %v4177 = vpop.f32.mrb[0].mxu0
    %v4178 = vadd.f32 %v3923, %v4177
    %v4179 = vpop.f32.mrb[0].mxu0
    %v4180 = vadd.f32 %v3919, %v4179
    %v4181 = vpop.f32.mrb[0].mxu0
    %v4182 = vadd.f32 %v3923, %v4181
    %4183 = vmatprep.mubr.bf16.mxu0 0
    %4184 = vmatmul.mubr.bf16.gmra.mrb[0].mxu0 %v100
    %v4185 = vpop.f32.mrb[0].mxu0
    %v4186 = vadd.f32 %v3919, %v4185
    %v4187 = vpop.f32.mrb[0].mxu0
    %v4188 = vadd.f32 %v3923, %v4187
    %v4189 = vpop.f32.mrb[0].mxu0
    %v4190 = vadd.f32 %v3919, %v4189
    %v4191 = vpop.f32.mrb[0].mxu0
    %v4192 = vadd.f32 %v3923, %v4191
    %4193 = vdwg.mxu0
    %v4194 = vpack.c.bf16 %v3866, %v3866
    %v4195 = vpack.c.bf16 %v3870, %v3870
    %v4196 = vpack.c.bf16 %v4127, %v4123
    %v4197 = vpack.c.bf16 %v4137, %v4133
    %v4198 = vpack.c.bf16 %v4180, %v4176
    %v4199 = vpack.c.bf16 %v4190, %v4186
    %4200 = vmatprep.subr.bf16.mxu0 0
    %4201 = vmatpush1.bf16.xpose.msra.mxu0 %v4196
    %4202 = vmatprep.subr.bf16.mxu0 0
    %4203 = vmatpush1.bf16.xpose.msra.mxu0 0
    %4204 = vmatprep.subr.bf16.mxu0 0
    %4205 = vmatpush1.bf16.xpose.msra.mxu0 0
    %4206 = vmatprep.subr.bf16.mxu0 0
    %4207 = vmatpush1.bf16.xpose.msra.mxu0 0
    %4208 = vmatprep.subr.bf16.mxu0 0
    %4209 = vmatpush1.bf16.xpose.msra.mxu0 0
    %4210 = vmatprep.subr.bf16.mxu0 0
    %4211 = vmatpush1.bf16.xpose.msra.mxu0 0
    %4212 = vmatprep.subr.bf16.mxu0 0
    %4213 = vmatpush1.bf16.xpose.msra.mxu0 0
    %4214 = vmatprep.subr.bf16.mxu0 0
    %4215 = vmatpush1.bf16.xpose.msra.mxu0 0
    %4216 = vmatprep.subr.bf16.mxu0 0
    %4217 = vmatpush1.bf16.xpose.msra.mxu0 0
    %4218 = vmatprep.subr.bf16.mxu0 0
    %4219 = vmatpush1.bf16.xpose.msra.mxu0 0
    %4220 = vmatprep.subr.bf16.mxu0 0
    %4221 = vmatpush1.bf16.xpose.msra.mxu0 0
    %4222 = vmatprep.subr.bf16.mxu0 0
    %4223 = vmatpush1.bf16.xpose.msra.mxu0 0
    %4224 = vmatprep.subr.bf16.mxu0 0
    %4225 = vmatpush1.bf16.xpose.msra.mxu0 0
    %4226 = vmatprep.subr.bf16.mxu0 0
    %4227 = vmatpush1.bf16.xpose.msra.mxu0 0
    %4228 = vmatprep.subr.bf16.mxu0 0
    %4229 = vmatpush1.bf16.xpose.msra.mxu0 0
    %4230 = vmatprep.subr.bf16.mxu0 0
    %4231 = vmatpush1.bf16.xpose.msra.mxu0 0
    %4232 = vmatprep.mubr.bf16.mxu0 0
    %4233 = vmatmul.mubr.bf16.gmra.mrb[0].mxu0 %v4194
    %v4234 = vpop.f32.mrb[0].mxu0
    %v4235 = vadd.f32 0.0, %v4234
    %v4236 = vpop.f32.mrb[0].mxu0
    %v4237 = vpop.f32.mrb[0].mxu0
    %v4238 = vpop.f32.mrb[0].mxu0
    %4239 = vdwg.mxu0
    %4240 = vmatprep.subr.bf16.mxu0 0
    %4241 = vmatpush1.bf16.xpose.msra.mxu0 %v4197
    %4242 = vmatprep.subr.bf16.mxu0 0
    %4243 = vmatpush1.bf16.xpose.msra.mxu0 0
    %4244 = vmatprep.subr.bf16.mxu0 0
    %4245 = vmatpush1.bf16.xpose.msra.mxu0 0
    %4246 = vmatprep.subr.bf16.mxu0 0
    %4247 = vmatpush1.bf16.xpose.msra.mxu0 0
    %4248 = vmatprep.subr.bf16.mxu0 0
    %4249 = vmatpush1.bf16.xpose.msra.mxu0 0
    %4250 = vmatprep.subr.bf16.mxu0 0
    %4251 = vmatpush1.bf16.xpose.msra.mxu0 0
    %4252 = vmatprep.subr.bf16.mxu0 0
    %4253 = vmatpush1.bf16.xpose.msra.mxu0 0
    %4254 = vmatprep.subr.bf16.mxu0 0
    %4255 = vmatpush1.bf16.xpose.msra.mxu0 0
    %4256 = vmatprep.subr.bf16.mxu0 0
    %4257 = vmatpush1.bf16.xpose.msra.mxu0 0
    %4258 = vmatprep.subr.bf16.mxu0 0
    %4259 = vmatpush1.bf16.xpose.msra.mxu0 0
    %4260 = vmatprep.subr.bf16.mxu0 0
    %4261 = vmatpush1.bf16.xpose.msra.mxu0 0
    %4262 = vmatprep.subr.bf16.mxu0 0
    %4263 = vmatpush1.bf16.xpose.msra.mxu0 0
    %4264 = vmatprep.subr.bf16.mxu0 0
    %4265 = vmatpush1.bf16.xpose.msra.mxu0 0
    %4266 = vmatprep.subr.bf16.mxu0 0
    %4267 = vmatpush1.bf16.xpose.msra.mxu0 0
    %4268 = vmatprep.subr.bf16.mxu0 0
    %4269 = vmatpush1.bf16.xpose.msra.mxu0 0
    %4270 = vmatprep.subr.bf16.mxu0 0
    %4271 = vmatpush1.bf16.xpose.msra.mxu0 0
    %4272 = vmatprep.mubr.bf16.mxu0 0
    %4273 = vmatmul.mubr.bf16.gmra.mrb[0].mxu0 %v4195
    %v4274 = vpop.f32.mrb[0].mxu0
    %v4275 = vadd.f32 0.0, %v4274
    %v4276 = vpop.f32.mrb[0].mxu0
    %v4277 = vpop.f32.mrb[0].mxu0
    %v4278 = vpop.f32.mrb[0].mxu0
    %4279 = vdwg.mxu0
    %v4280 = vsel %vm1742, %v4235, -inf
    %4281 = vmax.xlane.f32.xlu0 %v4280
    %v4282 = vpop.xlane.xlu0 %4281
    %v4283 = vsel %vm1742, %v4275, -inf
    %4284 = vmax.xlane.f32.xlu0 %v4283
    %v4285 = vpop.xlane.xlu0 %4284
    %v4286 = vsub.f32 %v4235, %v4282
    %v4287 = vsub.f32 %v4275, %v4285
    %v4288 = vmul.f32 %v4286, 1.442695
    %v4289 = vpow.pop %v4288
    %v4290 = vmul.f32 %v4287, 1.442695
    %v4291 = vpow.pop %v4290
    %v4292 = vsel %vm1742, %v4289, 0.0
    %4293 = vadd.xlane.f32.xlu0 %v4292
    %v4294 = vpop.xlane.xlu0 %4293
    %v4295 = vsel %vm1742, %v4291, 0.0
    %4296 = vadd.xlane.f32.xlu0 %v4295
    %v4297 = vpop.xlane.xlu0 %4296
    %v4298 = vrcp.pop %v4294
    %v4299 = vrcp.pop %v4297
    %v4300 = vmul.f32 %v4289, %v4298
    %v4301 = vmul.f32 %v4291, %v4299
    %v4302 = vpack.c.bf16 %v4300, %v4300
    %v4303 = vpack.c.bf16 %v4301, %v4301
    %v4305 = vsel %vm1742, %v4302, 0
    %4307 = vmatprep.subr.bf16.mxu0 0
    %4308 = vmatpush1.bf16.msra.mxu0 %v4198
    %4309 = vmatprep.subr.bf16.mxu0 0
    %4310 = vmatpush1.bf16.msra.mxu0 0
    %4311 = vmatprep.subr.bf16.mxu0 0
    %4312 = vmatpush1.bf16.msra.mxu0 0
    %4313 = vmatprep.subr.bf16.mxu0 0
    %4314 = vmatpush1.bf16.msra.mxu0 0
    %4315 = vmatprep.subr.bf16.mxu0 0
    %4316 = vmatpush1.bf16.msra.mxu0 0
    %4317 = vmatprep.subr.bf16.mxu0 0
    %4318 = vmatpush1.bf16.msra.mxu0 0
    %4319 = vmatprep.subr.bf16.mxu0 0
    %4320 = vmatpush1.bf16.msra.mxu0 0
    %4321 = vmatprep.subr.bf16.mxu0 0
    %4322 = vmatpush1.bf16.msra.mxu0 0
    %4323 = vmatprep.subr.bf16.mxu0 0
    %4324 = vmatpush1.bf16.msra.mxu0 0
    %4325 = vmatprep.subr.bf16.mxu0 0
    %4326 = vmatpush1.bf16.msra.mxu0 0
    %4327 = vmatprep.subr.bf16.mxu0 0
    %4328 = vmatpush1.bf16.msra.mxu0 0
    %4329 = vmatprep.subr.bf16.mxu0 0
    %4330 = vmatpush1.bf16.msra.mxu0 0
    %4331 = vmatprep.subr.bf16.mxu0 0
    %4332 = vmatpush1.bf16.msra.mxu0 0
    %4333 = vmatprep.subr.bf16.mxu0 0
    %4334 = vmatpush1.bf16.msra.mxu0 0
    %4335 = vmatprep.subr.bf16.mxu0 0
    %4336 = vmatpush1.bf16.msra.mxu0 0
    %4337 = vmatprep.subr.bf16.mxu0 0
    %4338 = vmatpush1.bf16.msra.mxu0 0
    %4339 = vmatprep.mubr.bf16.mxu0 0
    %4340 = vmatmul.mubr.bf16.gmra.mrb[0].mxu0 %v4305
    %v4341 = vpop.f32.mrb[0].mxu0
    %v4342 = vadd.f32 0.0, %v4341
    %v4343 = vpop.f32.mrb[0].mxu0
    %v4344 = vpop.f32.mrb[0].mxu0
    %v4345 = vpop.f32.mrb[0].mxu0
    %4346 = vdwg.mxu0
    %v4348 = vsel %vm1742, %v4303, 0
    %4350 = vmatprep.subr.bf16.mxu0 0
    %4351 = vmatpush1.bf16.msra.mxu0 %v4199
    %4352 = vmatprep.subr.bf16.mxu0 0
    %4353 = vmatpush1.bf16.msra.mxu0 0
    %4354 = vmatprep.subr.bf16.mxu0 0
    %4355 = vmatpush1.bf16.msra.mxu0 0
    %4356 = vmatprep.subr.bf16.mxu0 0
    %4357 = vmatpush1.bf16.msra.mxu0 0
    %4358 = vmatprep.subr.bf16.mxu0 0
    %4359 = vmatpush1.bf16.msra.mxu0 0
    %4360 = vmatprep.subr.bf16.mxu0 0
    %4361 = vmatpush1.bf16.msra.mxu0 0
    %4362 = vmatprep.subr.bf16.mxu0 0
    %4363 = vmatpush1.bf16.msra.mxu0 0
    %4364 = vmatprep.subr.bf16.mxu0 0
    %4365 = vmatpush1.bf16.msra.mxu0 0
    %4366 = vmatprep.subr.bf16.mxu0 0
    %4367 = vmatpush1.bf16.msra.mxu0 0
    %4368 = vmatprep.subr.bf16.mxu0 0
    %4369 = vmatpush1.bf16.msra.mxu0 0
    %4370 = vmatprep.subr.bf16.mxu0 0
    %4371 = vmatpush1.bf16.msra.mxu0 0
    %4372 = vmatprep.subr.bf16.mxu0 0
    %4373 = vmatpush1.bf16.msra.mxu0 0
    %4374 = vmatprep.subr.bf16.mxu0 0
    %4375 = vmatpush1.bf16.msra.mxu0 0
    %4376 = vmatprep.subr.bf16.mxu0 0
    %4377 = vmatpush1.bf16.msra.mxu0 0
    %4378 = vmatprep.subr.bf16.mxu0 0
    %4379 = vmatpush1.bf16.msra.mxu0 0
    %4380 = vmatprep.subr.bf16.mxu0 0
    %4381 = vmatpush1.bf16.msra.mxu0 0
    %4382 = vmatprep.mubr.bf16.mxu0 0
    %4383 = vmatmul.mubr.bf16.gmra.mrb[0].mxu0 %v4348
    %v4384 = vpop.f32.mrb[0].mxu0
    %v4385 = vadd.f32 0.0, %v4384
    %v4386 = vpop.f32.mrb[0].mxu0
    %v4387 = vpop.f32.mrb[0].mxu0
    %v4388 = vpop.f32.mrb[0].mxu0
    %4389 = vdwg.mxu0
    %v4390 = vpack.c.bf16 %v3868, %v3868
    %v4391 = vpack.c.bf16 %v3872, %v3872
    %v4392 = vpack.c.bf16 %v4129, %v4125
    %v4393 = vpack.c.bf16 %v4139, %v4135
    %v4394 = vpack.c.bf16 %v4182, %v4178
    %v4395 = vpack.c.bf16 %v4192, %v4188
    %4396 = vmatprep.subr.bf16.mxu0 0
    %4397 = vmatpush1.bf16.xpose.msra.mxu0 %v4392
    %4398 = vmatprep.subr.bf16.mxu0 0
    %4399 = vmatpush1.bf16.xpose.msra.mxu0 0
    %4400 = vmatprep.subr.bf16.mxu0 0
    %4401 = vmatpush1.bf16.xpose.msra.mxu0 0
    %4402 = vmatprep.subr.bf16.mxu0 0
    %4403 = vmatpush1.bf16.xpose.msra.mxu0 0
    %4404 = vmatprep.subr.bf16.mxu0 0
    %4405 = vmatpush1.bf16.xpose.msra.mxu0 0
    %4406 = vmatprep.subr.bf16.mxu0 0
    %4407 = vmatpush1.bf16.xpose.msra.mxu0 0
    %4408 = vmatprep.subr.bf16.mxu0 0
    %4409 = vmatpush1.bf16.xpose.msra.mxu0 0
    %4410 = vmatprep.subr.bf16.mxu0 0
    %4411 = vmatpush1.bf16.xpose.msra.mxu0 0
    %4412 = vmatprep.subr.bf16.mxu0 0
    %4413 = vmatpush1.bf16.xpose.msra.mxu0 0
    %4414 = vmatprep.subr.bf16.mxu0 0
    %4415 = vmatpush1.bf16.xpose.msra.mxu0 0
    %4416 = vmatprep.subr.bf16.mxu0 0
    %4417 = vmatpush1.bf16.xpose.msra.mxu0 0
    %4418 = vmatprep.subr.bf16.mxu0 0
    %4419 = vmatpush1.bf16.xpose.msra.mxu0 0
    %4420 = vmatprep.subr.bf16.mxu0 0
    %4421 = vmatpush1.bf16.xpose.msra.mxu0 0
    %4422 = vmatprep.subr.bf16.mxu0 0
    %4423 = vmatpush1.bf16.xpose.msra.mxu0 0
    %4424 = vmatprep.subr.bf16.mxu0 0
    %4425 = vmatpush1.bf16.xpose.msra.mxu0 0
    %4426 = vmatprep.subr.bf16.mxu0 0
    %4427 = vmatpush1.bf16.xpose.msra.mxu0 0
    %4428 = vmatprep.mubr.bf16.mxu0 0
    %4429 = vmatmul.mubr.bf16.gmra.mrb[0].mxu0 %v4390
    %v4430 = vpop.f32.mrb[0].mxu0
    %v4431 = vadd.f32 0.0, %v4430
    %v4432 = vpop.f32.mrb[0].mxu0
    %v4433 = vpop.f32.mrb[0].mxu0
    %v4434 = vpop.f32.mrb[0].mxu0
    %4435 = vdwg.mxu0
    %4436 = vmatprep.subr.bf16.mxu0 0
    %4437 = vmatpush1.bf16.xpose.msra.mxu0 %v4393
    %4438 = vmatprep.subr.bf16.mxu0 0
    %4439 = vmatpush1.bf16.xpose.msra.mxu0 0
    %4440 = vmatprep.subr.bf16.mxu0 0
    %4441 = vmatpush1.bf16.xpose.msra.mxu0 0
    %4442 = vmatprep.subr.bf16.mxu0 0
    %4443 = vmatpush1.bf16.xpose.msra.mxu0 0
    %4444 = vmatprep.subr.bf16.mxu0 0
    %4445 = vmatpush1.bf16.xpose.msra.mxu0 0
    %4446 = vmatprep.subr.bf16.mxu0 0
    %4447 = vmatpush1.bf16.xpose.msra.mxu0 0
    %4448 = vmatprep.subr.bf16.mxu0 0
    %4449 = vmatpush1.bf16.xpose.msra.mxu0 0
    %4450 = vmatprep.subr.bf16.mxu0 0
    %4451 = vmatpush1.bf16.xpose.msra.mxu0 0
    %4452 = vmatprep.subr.bf16.mxu0 0
    %4453 = vmatpush1.bf16.xpose.msra.mxu0 0
    %4454 = vmatprep.subr.bf16.mxu0 0
    %4455 = vmatpush1.bf16.xpose.msra.mxu0 0
    %4456 = vmatprep.subr.bf16.mxu0 0
    %4457 = vmatpush1.bf16.xpose.msra.mxu0 0
    %4458 = vmatprep.subr.bf16.mxu0 0
    %4459 = vmatpush1.bf16.xpose.msra.mxu0 0
    %4460 = vmatprep.subr.bf16.mxu0 0
    %4461 = vmatpush1.bf16.xpose.msra.mxu0 0
    %4462 = vmatprep.subr.bf16.mxu0 0
    %4463 = vmatpush1.bf16.xpose.msra.mxu0 0
    %4464 = vmatprep.subr.bf16.mxu0 0
    %4465 = vmatpush1.bf16.xpose.msra.mxu0 0
    %4466 = vmatprep.subr.bf16.mxu0 0
    %4467 = vmatpush1.bf16.xpose.msra.mxu0 0
    %4468 = vmatprep.mubr.bf16.mxu0 0
    %4469 = vmatmul.mubr.bf16.gmra.mrb[0].mxu0 %v4391
    %v4470 = vpop.f32.mrb[0].mxu0
    %v4471 = vadd.f32 0.0, %v4470
    %v4472 = vpop.f32.mrb[0].mxu0
    %v4473 = vpop.f32.mrb[0].mxu0
    %v4474 = vpop.f32.mrb[0].mxu0
    %4475 = vdwg.mxu0
    %v4476 = vsel %vm1742, %v4431, -inf
    %4477 = vmax.xlane.f32.xlu0 %v4476
    %v4478 = vpop.xlane.xlu0 %4477
    %v4479 = vsel %vm1742, %v4471, -inf
    %4480 = vmax.xlane.f32.xlu0 %v4479
    %v4481 = vpop.xlane.xlu0 %4480
    %v4482 = vsub.f32 %v4431, %v4478
    %v4483 = vsub.f32 %v4471, %v4481
    %v4484 = vmul.f32 %v4482, 1.442695
    %v4485 = vpow.pop %v4484
    %v4486 = vmul.f32 %v4483, 1.442695
    %v4487 = vpow.pop %v4486
    %v4488 = vsel %vm1742, %v4485, 0.0
    %4489 = vadd.xlane.f32.xlu0 %v4488
    %v4490 = vpop.xlane.xlu0 %4489
    %v4491 = vsel %vm1742, %v4487, 0.0
    %4492 = vadd.xlane.f32.xlu0 %v4491
    %v4493 = vpop.xlane.xlu0 %4492
    %v4494 = vrcp.pop %v4490
    %v4495 = vrcp.pop %v4493
    %v4496 = vmul.f32 %v4485, %v4494
    %v4497 = vmul.f32 %v4487, %v4495
    %v4498 = vpack.c.bf16 %v4496, %v4496
    %v4499 = vpack.c.bf16 %v4497, %v4497
    %v4501 = vsel %vm1742, %v4498, 0
    %4503 = vmatprep.subr.bf16.mxu0 0
    %4504 = vmatpush1.bf16.msra.mxu0 %v4394
    %4505 = vmatprep.subr.bf16.mxu0 0
    %4506 = vmatpush1.bf16.msra.mxu0 0
    %4507 = vmatprep.subr.bf16.mxu0 0
    %4508 = vmatpush1.bf16.msra.mxu0 0
    %4509 = vmatprep.subr.bf16.mxu0 0
    %4510 = vmatpush1.bf16.msra.mxu0 0
    %4511 = vmatprep.subr.bf16.mxu0 0
    %4512 = vmatpush1.bf16.msra.mxu0 0
    %4513 = vmatprep.subr.bf16.mxu0 0
    %4514 = vmatpush1.bf16.msra.mxu0 0
    %4515 = vmatprep.subr.bf16.mxu0 0
    %4516 = vmatpush1.bf16.msra.mxu0 0
    %4517 = vmatprep.subr.bf16.mxu0 0
    %4518 = vmatpush1.bf16.msra.mxu0 0
    %4519 = vmatprep.subr.bf16.mxu0 0
    %4520 = vmatpush1.bf16.msra.mxu0 0
    %4521 = vmatprep.subr.bf16.mxu0 0
    %4522 = vmatpush1.bf16.msra.mxu0 0
    %4523 = vmatprep.subr.bf16.mxu0 0
    %4524 = vmatpush1.bf16.msra.mxu0 0
    %4525 = vmatprep.subr.bf16.mxu0 0
    %4526 = vmatpush1.bf16.msra.mxu0 0
    %4527 = vmatprep.subr.bf16.mxu0 0
    %4528 = vmatpush1.bf16.msra.mxu0 0
    %4529 = vmatprep.subr.bf16.mxu0 0
    %4530 = vmatpush1.bf16.msra.mxu0 0
    %4531 = vmatprep.subr.bf16.mxu0 0
    %4532 = vmatpush1.bf16.msra.mxu0 0
    %4533 = vmatprep.subr.bf16.mxu0 0
    %4534 = vmatpush1.bf16.msra.mxu0 0
    %4535 = vmatprep.mubr.bf16.mxu0 0
    %4536 = vmatmul.mubr.bf16.gmra.mrb[0].mxu0 %v4501
    %v4537 = vpop.f32.mrb[0].mxu0
    %v4538 = vadd.f32 0.0, %v4537
    %v4539 = vpop.f32.mrb[0].mxu0
    %v4540 = vpop.f32.mrb[0].mxu0
    %v4541 = vpop.f32.mrb[0].mxu0
    %4542 = vdwg.mxu0
    %v4544 = vsel %vm1742, %v4499, 0
    %4546 = vmatprep.subr.bf16.mxu0 0
    %4547 = vmatpush1.bf16.msra.mxu0 %v4395
    %4548 = vmatprep.subr.bf16.mxu0 0
    %4549 = vmatpush1.bf16.msra.mxu0 0
    %4550 = vmatprep.subr.bf16.mxu0 0
    %4551 = vmatpush1.bf16.msra.mxu0 0
    %4552 = vmatprep.subr.bf16.mxu0 0
    %4553 = vmatpush1.bf16.msra.mxu0 0
    %4554 = vmatprep.subr.bf16.mxu0 0
    %4555 = vmatpush1.bf16.msra.mxu0 0
    %4556 = vmatprep.subr.bf16.mxu0 0
    %4557 = vmatpush1.bf16.msra.mxu0 0
    %4558 = vmatprep.subr.bf16.mxu0 0
    %4559 = vmatpush1.bf16.msra.mxu0 0
    %4560 = vmatprep.subr.bf16.mxu0 0
    %4561 = vmatpush1.bf16.msra.mxu0 0
    %4562 = vmatprep.subr.bf16.mxu0 0
    %4563 = vmatpush1.bf16.msra.mxu0 0
    %4564 = vmatprep.subr.bf16.mxu0 0
    %4565 = vmatpush1.bf16.msra.mxu0 0
    %4566 = vmatprep.subr.bf16.mxu0 0
    %4567 = vmatpush1.bf16.msra.mxu0 0
    %4568 = vmatprep.subr.bf16.mxu0 0
    %4569 = vmatpush1.bf16.msra.mxu0 0
    %4570 = vmatprep.subr.bf16.mxu0 0
    %4571 = vmatpush1.bf16.msra.mxu0 0
    %4572 = vmatprep.subr.bf16.mxu0 0
    %4573 = vmatpush1.bf16.msra.mxu0 0
    %4574 = vmatprep.subr.bf16.mxu0 0
    %4575 = vmatpush1.bf16.msra.mxu0 0
    %4576 = vmatprep.subr.bf16.mxu0 0
    %4577 = vmatpush1.bf16.msra.mxu0 0
    %4578 = vmatprep.mubr.bf16.mxu0 0
    %4579 = vmatmul.mubr.bf16.gmra.mrb[0].mxu0 %v4544
    %v4580 = vpop.f32.mrb[0].mxu0
    %v4581 = vadd.f32 0.0, %v4580
    %v4582 = vpop.f32.mrb[0].mxu0
    %v4583 = vpop.f32.mrb[0].mxu0
    %v4584 = vpop.f32.mrb[0].mxu0
    %4585 = vdwg.mxu0
    %v4586 = vpack.c.bf16 %v4385, %v4342
    %v4587 = vpack.c.bf16 %v4581, %v4538
    %v4588 = vld [vmem:[%s3503 + $0x4] sm:$0xf]
    %v4589 = vld [vmem:[%s3503 + $0x10] sm:$0xf]
    %v4590 = vld [vmem:[%s3503 + $0x1c] sm:$0xf]
    %v4591 = vld [vmem:[%s3503 + $0x28] sm:$0xf]
    %v4592 = vld [vmem:[%s3503 + $0x34] sm:$0xf]
    %v4593 = vld [vmem:[%s3503 + $0x40] sm:$0xf]
    %v4594 = vld [vmem:[%s3503 + $0x4c] sm:$0xf]
    %v4595 = vld [vmem:[%s3503 + $0x58] sm:$0xf]
    %v4596 = vld [vmem:[%s3503 + $0x64] sm:$0xf]
    %v4597 = vld [vmem:[%s3503 + $0x70] sm:$0xf]
    %v4598 = vld [vmem:[%s3503 + $0x7c] sm:$0xf]
    %v4599 = vld [vmem:[%s3503 + $0x88] sm:$0xf]
    %v4600 = vld [vmem:[%s3503 + $0x94] sm:$0xf]
    %v4601 = vld [vmem:[%s3503 + $0xa0] sm:$0xf]
    %v4602 = vld [vmem:[%s3503 + $0xac] sm:$0xf]
    %v4603 = vld [vmem:[%s3503 + $0xb8] sm:$0xf]
    %v4604 = vld [vmem:[%s3503 + $0xc4] sm:$0xf]
    %v4605 = vld [vmem:[%s3503 + $0xd0] sm:$0xf]
    %v4606 = vld [vmem:[%s3503 + $0xdc] sm:$0xf]
    %v4607 = vld [vmem:[%s3503 + $0xe8] sm:$0xf]
    %v4608 = vld [vmem:[%s3503 + $0xf4] sm:$0xf]
    %v4609 = vld [vmem:[%s3503 + $0x100] sm:$0xf]
    %v4610 = vld [vmem:[%s3503 + $0x10c] sm:$0xf]
    %v4611 = vld [vmem:[%s3503 + $0x118] sm:$0xf]
    %v4612 = vld [vmem:[%s3503 + $0x124] sm:$0xf]
    %v4613 = vld [vmem:[%s3503 + $0x130] sm:$0xf]
    %v4614 = vld [vmem:[%s3503 + $0x13c] sm:$0xf]
    %v4615 = vld [vmem:[%s3503 + $0x148] sm:$0xf]
    %v4616 = vld [vmem:[%s3503 + $0x154] sm:$0xf]
    %v4617 = vld [vmem:[%s3503 + $0x160] sm:$0xf]
    %v4618 = vld [vmem:[%s3503 + $0x16c] sm:$0xf]
    %v4619 = vld [vmem:[%s3503 + $0x178] sm:$0xf]
    %v4620 = vld [vmem:[%s2695 + $0xf] sm:$0x1]
    %v4622 = vlaneseq
    %v4623 = vshrl.u32 %v4622, 7
    %v4624 = vsub.s32 0, %v4623
    %v4625 = vrot.slane %v4620, %v4624
    %v4659 = vunpack.c.l.b16 %v4588
    %v4660 = vunpack.c.l.b16 %v4589
    %v4661 = vunpack.c.l.b16 %v4590
    %v4662 = vunpack.c.l.b16 %v4591
    %v4663 = vunpack.c.l.b16 %v4592
    %v4664 = vunpack.c.l.b16 %v4593
    %v4665 = vunpack.c.l.b16 %v4594
    %v4666 = vunpack.c.l.b16 %v4595
    %v4667 = vunpack.c.l.b16 %v4596
    %v4668 = vunpack.c.l.b16 %v4597
    %v4669 = vunpack.c.l.b16 %v4598
    %v4670 = vunpack.c.l.b16 %v4599
    %v4671 = vunpack.c.l.b16 %v4600
    %v4672 = vunpack.c.l.b16 %v4601
    %v4673 = vunpack.c.l.b16 %v4602
    %v4674 = vunpack.c.l.b16 %v4603
    %v4675 = vunpack.c.l.b16 %v4604
    %v4676 = vunpack.c.l.b16 %v4605
    %v4677 = vunpack.c.l.b16 %v4606
    %v4678 = vunpack.c.l.b16 %v4607
    %v4679 = vunpack.c.l.b16 %v4608
    %v4680 = vunpack.c.l.b16 %v4609
    %v4681 = vunpack.c.l.b16 %v4610
    %v4682 = vunpack.c.l.b16 %v4611
    %v4683 = vunpack.c.l.b16 %v4612
    %v4684 = vunpack.c.l.b16 %v4613
    %v4685 = vunpack.c.l.b16 %v4614
    %v4686 = vunpack.c.l.b16 %v4615
    %v4687 = vunpack.c.l.b16 %v4616
    %v4688 = vunpack.c.l.b16 %v4617
    %v4689 = vunpack.c.l.b16 %v4618
    %v4690 = vunpack.c.l.b16 %v4619
    %v4691 = vpack.c.b16 %v4660, %v4659
    %v4692 = vpack.c.b16 %v4662, %v4661
    %v4693 = vpack.c.b16 %v4664, %v4663
    %v4694 = vpack.c.b16 %v4666, %v4665
    %v4695 = vpack.c.b16 %v4668, %v4667
    %v4696 = vpack.c.b16 %v4670, %v4669
    %v4697 = vpack.c.b16 %v4672, %v4671
    %v4698 = vpack.c.b16 %v4674, %v4673
    %v4699 = vpack.c.b16 %v4676, %v4675
    %v4700 = vpack.c.b16 %v4678, %v4677
    %v4701 = vpack.c.b16 %v4680, %v4679
    %v4702 = vpack.c.b16 %v4682, %v4681
    %v4703 = vpack.c.b16 %v4684, %v4683
    %v4704 = vpack.c.b16 %v4686, %v4685
    %v4705 = vpack.c.b16 %v4688, %v4687
    %v4706 = vpack.c.b16 %v4690, %v4689
    %4723 = vmatprep.subr.bf16.mxu0 0
    %4724 = vmatpush1.bf16.msra.mxu0 %v4691
    %4725 = vmatprep.subr.bf16.mxu0 0
    %4726 = vmatpush1.bf16.msra.mxu0 %v4692
    %4727 = vmatprep.subr.bf16.mxu0 0
    %4728 = vmatpush1.bf16.msra.mxu0 %v4693
    %4729 = vmatprep.subr.bf16.mxu0 0
    %4730 = vmatpush1.bf16.msra.mxu0 %v4694
    %4731 = vmatprep.subr.bf16.mxu0 0
    %4732 = vmatpush1.bf16.msra.mxu0 %v4695
    %4733 = vmatprep.subr.bf16.mxu0 0
    %4734 = vmatpush1.bf16.msra.mxu0 %v4696
    %4735 = vmatprep.subr.bf16.mxu0 0
    %4736 = vmatpush1.bf16.msra.mxu0 %v4697
    %4737 = vmatprep.subr.bf16.mxu0 0
    %4738 = vmatpush1.bf16.msra.mxu0 %v4698
    %4739 = vmatprep.subr.bf16.mxu0 0
    %4740 = vmatpush1.bf16.msra.mxu0 %v4699
    %4741 = vmatprep.subr.bf16.mxu0 0
    %4742 = vmatpush1.bf16.msra.mxu0 %v4700
    %4743 = vmatprep.subr.bf16.mxu0 0
    %4744 = vmatpush1.bf16.msra.mxu0 %v4701
    %4745 = vmatprep.subr.bf16.mxu0 0
    %4746 = vmatpush1.bf16.msra.mxu0 %v4702
    %4747 = vmatprep.subr.bf16.mxu0 0
    %4748 = vmatpush1.bf16.msra.mxu0 %v4703
    %4749 = vmatprep.subr.bf16.mxu0 0
    %4750 = vmatpush1.bf16.msra.mxu0 %v4704
    %4751 = vmatprep.subr.bf16.mxu0 0
    %4752 = vmatpush1.bf16.msra.mxu0 %v4705
    %4753 = vmatprep.subr.bf16.mxu0 0
    %4754 = vmatpush1.bf16.msra.mxu0 %v4706
    %4755 = vmatprep.mubr.bf16.mxu0 %v4587
    %4756 = vmatmul.mubr.bf16.gmra.mrb[0].mxu0 %v4586
    %v4757 = vpop.f32.mrb[0].mxu0
    %v4758 = vadd.f32 %v4625, %v4757
    %v4759 = vpop.f32.mrb[0].mxu0
    %v4760 = vpop.f32.mrb[0].mxu0
    %v4761 = vadd.f32 %v4625, %v4760
    %v4762 = vpop.f32.mrb[0].mxu0
    %4763 = vdwg.mxu0
    %v4764 = vadd.f32 %v3720, %v4758
    %v4765 = vadd.f32 %v3721, %v4761
    %v4766 = vld [vmem:[%s2695 + $0x13] sm:$0x1]
    %v4767 = vld [vmem:[%s2695 + $0x14] sm:$0x1]
    %4768 = vadd.xlane.f32.xlu0 %v4764
    %v4769 = vpop.xlane.xlu0 %4768
    %4770 = vadd.xlane.f32.xlu0 %v4765
    %v4771 = vpop.xlane.xlu0 %4770
    %v4772 = vmul.f32 %v4769, %v1149
    %v4773 = vmul.f32 %v4771, %v1149
    %v4774 = vsub.f32 %v4764, %v4772
    %v4775 = vsub.f32 %v4765, %v4773
    %v4776 = vmul.f32 %v4774, %v4774
    %v4777 = vmul.f32 %v4775, %v4775
    %4778 = vadd.xlane.f32.xlu0 %v4776
    %v4779 = vpop.xlane.xlu0 %4778
    %4780 = vadd.xlane.f32.xlu0 %v4777
    %v4781 = vpop.xlane.xlu0 %4780
    %v4782 = vmul.f32 %v4779, %v1149
    %v4783 = vmul.f32 %v4781, %v1149
    %v4784 = vadd.f32 %v4782, 1e-05
    %v4785 = vadd.f32 %v4783, 1e-05
    %v4786 = vrsqrt.pop %v4784
    %v4787 = vrsqrt.pop %v4785
    %v4788 = vmul.f32 %v4774, %v4786
    %v4789 = vmul.f32 %v4775, %v4787
    %v4791 = vlaneseq
    %v4792 = vshrl.u32 %v4791, 7
    %v4793 = vsub.s32 0, %v4792
    %v4794 = vrot.slane %v4766, %v4793
    %v4796 = vmul.f32 %v4788, %v4794
    %v4797 = vmul.f32 %v4789, %v4794
    %v4799 = vlaneseq
    %v4800 = vshrl.u32 %v4799, 7
    %v4801 = vsub.s32 0, %v4800
    %v4802 = vrot.slane %v4767, %v4801
    %v4804 = vadd.f32 %v4796, %v4802
    %v4805 = vadd.f32 %v4797, %v4802
    %v4806 = vpack.c.bf16 %v4805, %v4804
    %v4807 = vld [vmem:[%s2646 + $0x30] sm:$0xff]
    %v4808 = vld [vmem:[%s2646 + $0x68] sm:$0xff]
    %v4809 = vld [vmem:[%s2646 + $0xa0] sm:$0xff]
    %v4810 = vld [vmem:[%s2646 + $0xd8] sm:$0xff]
    %v4811 = vld [vmem:[%s2646 + $0x110] sm:$0xff]
    %v4812 = vld [vmem:[%s2646 + $0x148] sm:$0xff]
    %v4813 = vld [vmem:[%s2646 + $0x180] sm:$0xff]
    %v4814 = vld [vmem:[%s2646 + $0x1b8] sm:$0xff]
    %v4815 = vld [vmem:[%s2646 + $0x1f0] sm:$0xff]
    %v4816 = vld [vmem:[%s2646 + $0x228] sm:$0xff]
    %v4817 = vld [vmem:[%s2646 + $0x260] sm:$0xff]
    %v4818 = vld [vmem:[%s2646 + $0x298] sm:$0xff]
    %v4819 = vld [vmem:[%s2646 + $0x2d0] sm:$0xff]
    %v4820 = vld [vmem:[%s2646 + $0x308] sm:$0xff]
    %v4821 = vld [vmem:[%s2646 + $0x340] sm:$0xff]
    %v4822 = vld [vmem:[%s2646 + $0x378] sm:$0xff]
    %v4823 = vld [vmem:[%s2695 + $0xc] sm:$0x3]
    %v4825 = vlaneseq
    %v4826 = vshrl.u32 %v4825, 7
    %v4827 = vsub.s32 0, %v4826
    %v4828 = vrot.slane %v4823, %v4827
    %v4829 = vlaneseq
    %v4830 = vshrl.u32 %v4829, 7
    %v4831 = vsub.s32 1, %v4830
    %v4832 = vrot.slane %v4823, %v4831
    %v4851 = vunpack.c.l.b16 %v4807
    %v4852 = vunpack.c.h.b16 %v4807
    %v4853 = vunpack.c.l.b16 %v4808
    %v4854 = vunpack.c.h.b16 %v4808
    %v4855 = vunpack.c.l.b16 %v4809
    %v4856 = vunpack.c.h.b16 %v4809
    %v4857 = vunpack.c.l.b16 %v4810
    %v4858 = vunpack.c.h.b16 %v4810
    %v4859 = vunpack.c.l.b16 %v4811
    %v4860 = vunpack.c.h.b16 %v4811
    %v4861 = vunpack.c.l.b16 %v4812
    %v4862 = vunpack.c.h.b16 %v4812
    %v4863 = vunpack.c.l.b16 %v4813
    %v4864 = vunpack.c.h.b16 %v4813
    %v4865 = vunpack.c.l.b16 %v4814
    %v4866 = vunpack.c.h.b16 %v4814
    %v4867 = vunpack.c.l.b16 %v4815
    %v4868 = vunpack.c.h.b16 %v4815
    %v4869 = vunpack.c.l.b16 %v4816
    %v4870 = vunpack.c.h.b16 %v4816
    %v4871 = vunpack.c.l.b16 %v4817
    %v4872 = vunpack.c.h.b16 %v4817
    %v4873 = vunpack.c.l.b16 %v4818
    %v4874 = vunpack.c.h.b16 %v4818
    %v4875 = vunpack.c.l.b16 %v4819
    %v4876 = vunpack.c.h.b16 %v4819
    %v4877 = vunpack.c.l.b16 %v4820
    %v4878 = vunpack.c.h.b16 %v4820
    %v4879 = vunpack.c.l.b16 %v4821
    %v4880 = vunpack.c.h.b16 %v4821
    %v4881 = vunpack.c.l.b16 %v4822
    %v4882 = vunpack.c.h.b16 %v4822
    %v4883 = vpack.c.b16 %v4853, %v4851
    %v4884 = vpack.c.b16 %v4854, %v4852
    %v4885 = vpack.c.b16 %v4857, %v4855
    %v4886 = vpack.c.b16 %v4858, %v4856
    %v4887 = vpack.c.b16 %v4861, %v4859
    %v4888 = vpack.c.b16 %v4862, %v4860
    %v4889 = vpack.c.b16 %v4865, %v4863
    %v4890 = vpack.c.b16 %v4866, %v4864
    %v4891 = vpack.c.b16 %v4869, %v4867
    %v4892 = vpack.c.b16 %v4870, %v4868
    %v4893 = vpack.c.b16 %v4873, %v4871
    %v4894 = vpack.c.b16 %v4874, %v4872
    %v4895 = vpack.c.b16 %v4877, %v4875
    %v4896 = vpack.c.b16 %v4878, %v4876
    %v4897 = vpack.c.b16 %v4881, %v4879
    %v4898 = vpack.c.b16 %v4882, %v4880
    %4915 = vmatprep.subr.bf16.mxu0 %v4884
    %4916 = vmatpush1.bf16.msra.mxu0 %v4883
    %4917 = vmatprep.subr.bf16.mxu0 %v4886
    %4918 = vmatpush1.bf16.msra.mxu0 %v4885
    %4919 = vmatprep.subr.bf16.mxu0 %v4888
    %4920 = vmatpush1.bf16.msra.mxu0 %v4887
    %4921 = vmatprep.subr.bf16.mxu0 %v4890
    %4922 = vmatpush1.bf16.msra.mxu0 %v4889
    %4923 = vmatprep.subr.bf16.mxu0 %v4892
    %4924 = vmatpush1.bf16.msra.mxu0 %v4891
    %4925 = vmatprep.subr.bf16.mxu0 %v4894
    %4926 = vmatpush1.bf16.msra.mxu0 %v4893
    %4927 = vmatprep.subr.bf16.mxu0 %v4896
    %4928 = vmatpush1.bf16.msra.mxu0 %v4895
    %4929 = vmatprep.subr.bf16.mxu0 %v4898
    %4930 = vmatpush1.bf16.msra.mxu0 %v4897
    %4931 = vmatprep.subr.bf16.mxu0 0
    %4932 = vmatpush1.bf16.msra.mxu0 0
    %4933 = vmatprep.subr.bf16.mxu0 0
    %4934 = vmatpush1.bf16.msra.mxu0 0
    %4935 = vmatprep.subr.bf16.mxu0 0
    %4936 = vmatpush1.bf16.msra.mxu0 0
    %4937 = vmatprep.subr.bf16.mxu0 0
    %4938 = vmatpush1.bf16.msra.mxu0 0
    %4939 = vmatprep.subr.bf16.mxu0 0
    %4940 = vmatpush1.bf16.msra.mxu0 0
    %4941 = vmatprep.subr.bf16.mxu0 0
    %4942 = vmatpush1.bf16.msra.mxu0 0
    %4943 = vmatprep.subr.bf16.mxu0 0
    %4944 = vmatpush1.bf16.msra.mxu0 0
    %4945 = vmatprep.subr.bf16.mxu0 0
    %4946 = vmatpush1.bf16.msra.mxu0 0
    %4947 = vmatprep.mubr.bf16.mxu0 0
    %4948 = vmatmul.mubr.bf16.gmra.mrb[0].mxu0 %v4806
    %v4949 = vpop.f32.mrb[0].mxu0
    %v4950 = vadd.f32 %v4828, %v4949
    %v4951 = vpop.f32.mrb[0].mxu0
    %v4952 = vadd.f32 %v4832, %v4951
    %v4953 = vpop.f32.mrb[0].mxu0
    %v4954 = vadd.f32 %v4828, %v4953
    %v4955 = vpop.f32.mrb[0].mxu0
    %v4956 = vadd.f32 %v4832, %v4955
    %4957 = vdwg.mxu0
    %v4958 = vmax.f32 %v4950, 0.0
    %v4959 = vmax.f32 %v4952, 0.0
    %v4960 = vmax.f32 %v4954, 0.0
    %v4961 = vmax.f32 %v4956, 0.0
    %v4962 = vpack.c.bf16 %v4960, %v4958
    %v4963 = vpack.c.bf16 %v4961, %v4959
    %v4964 = vld [vmem:[%s3503 + $0x8] sm:$0xf]
    %v4965 = vld [vmem:[%s3503 + $0x14] sm:$0xf]
    %v4966 = vld [vmem:[%s3503 + $0x20] sm:$0xf]
    %v4967 = vld [vmem:[%s3503 + $0x2c] sm:$0xf]
    %v4968 = vld [vmem:[%s3503 + $0x38] sm:$0xf]
    %v4969 = vld [vmem:[%s3503 + $0x44] sm:$0xf]
    %v4970 = vld [vmem:[%s3503 + $0x50] sm:$0xf]
    %v4971 = vld [vmem:[%s3503 + $0x5c] sm:$0xf]
    %v4972 = vld [vmem:[%s3503 + $0x68] sm:$0xf]
    %v4973 = vld [vmem:[%s3503 + $0x74] sm:$0xf]
    %v4974 = vld [vmem:[%s3503 + $0x80] sm:$0xf]
    %v4975 = vld [vmem:[%s3503 + $0x8c] sm:$0xf]
    %v4976 = vld [vmem:[%s3503 + $0x98] sm:$0xf]
    %v4977 = vld [vmem:[%s3503 + $0xa4] sm:$0xf]
    %v4978 = vld [vmem:[%s3503 + $0xb0] sm:$0xf]
    %v4979 = vld [vmem:[%s3503 + $0xbc] sm:$0xf]
    %v4980 = vld [vmem:[%s3503 + $0xc8] sm:$0xf]
    %v4981 = vld [vmem:[%s3503 + $0xd4] sm:$0xf]
    %v4982 = vld [vmem:[%s3503 + $0xe0] sm:$0xf]
    %v4983 = vld [vmem:[%s3503 + $0xec] sm:$0xf]
    %v4984 = vld [vmem:[%s3503 + $0xf8] sm:$0xf]
    %v4985 = vld [vmem:[%s3503 + $0x104] sm:$0xf]
    %v4986 = vld [vmem:[%s3503 + $0x110] sm:$0xf]
    %v4987 = vld [vmem:[%s3503 + $0x11c] sm:$0xf]
    %v4988 = vld [vmem:[%s3503 + $0x128] sm:$0xf]
    %v4989 = vld [vmem:[%s3503 + $0x134] sm:$0xf]
    %v4990 = vld [vmem:[%s3503 + $0x140] sm:$0xf]
    %v4991 = vld [vmem:[%s3503 + $0x14c] sm:$0xf]
    %v4992 = vld [vmem:[%s3503 + $0x158] sm:$0xf]
    %v4993 = vld [vmem:[%s3503 + $0x164] sm:$0xf]
    %v4994 = vld [vmem:[%s3503 + $0x170] sm:$0xf]
    %v4995 = vld [vmem:[%s3503 + $0x17c] sm:$0xf]
    %v4996 = vld [vmem:[%s2695 + $0x10] sm:$0x1]
    %v4998 = vlaneseq
    %v4999 = vshrl.u32 %v4998, 7
    %v5000 = vsub.s32 0, %v4999
    %v5001 = vrot.slane %v4996, %v5000
    %v5035 = vunpack.c.l.b16 %v4964
    %v5036 = vunpack.c.l.b16 %v4965
    %v5037 = vunpack.c.l.b16 %v4966
    %v5038 = vunpack.c.l.b16 %v4967
    %v5039 = vunpack.c.l.b16 %v4968
    %v5040 = vunpack.c.l.b16 %v4969
    %v5041 = vunpack.c.l.b16 %v4970
    %v5042 = vunpack.c.l.b16 %v4971
    %v5043 = vunpack.c.l.b16 %v4972
    %v5044 = vunpack.c.l.b16 %v4973
    %v5045 = vunpack.c.l.b16 %v4974
    %v5046 = vunpack.c.l.b16 %v4975
    %v5047 = vunpack.c.l.b16 %v4976
    %v5048 = vunpack.c.l.b16 %v4977
    %v5049 = vunpack.c.l.b16 %v4978
    %v5050 = vunpack.c.l.b16 %v4979
    %v5051 = vunpack.c.l.b16 %v4980
    %v5052 = vunpack.c.l.b16 %v4981
    %v5053 = vunpack.c.l.b16 %v4982
    %v5054 = vunpack.c.l.b16 %v4983
    %v5055 = vunpack.c.l.b16 %v4984
    %v5056 = vunpack.c.l.b16 %v4985
    %v5057 = vunpack.c.l.b16 %v4986
    %v5058 = vunpack.c.l.b16 %v4987
    %v5059 = vunpack.c.l.b16 %v4988
    %v5060 = vunpack.c.l.b16 %v4989
    %v5061 = vunpack.c.l.b16 %v4990
    %v5062 = vunpack.c.l.b16 %v4991
    %v5063 = vunpack.c.l.b16 %v4992
    %v5064 = vunpack.c.l.b16 %v4993
    %v5065 = vunpack.c.l.b16 %v4994
    %v5066 = vunpack.c.l.b16 %v4995
    %v5067 = vpack.c.b16 %v5036, %v5035
    %v5068 = vpack.c.b16 %v5038, %v5037
    %v5069 = vpack.c.b16 %v5040, %v5039
    %v5070 = vpack.c.b16 %v5042, %v5041
    %v5071 = vpack.c.b16 %v5044, %v5043
    %v5072 = vpack.c.b16 %v5046, %v5045
    %v5073 = vpack.c.b16 %v5048, %v5047
    %v5074 = vpack.c.b16 %v5050, %v5049
    %v5075 = vpack.c.b16 %v5052, %v5051
    %v5076 = vpack.c.b16 %v5054, %v5053
    %v5077 = vpack.c.b16 %v5056, %v5055
    %v5078 = vpack.c.b16 %v5058, %v5057
    %v5079 = vpack.c.b16 %v5060, %v5059
    %v5080 = vpack.c.b16 %v5062, %v5061
    %v5081 = vpack.c.b16 %v5064, %v5063
    %v5082 = vpack.c.b16 %v5066, %v5065
    %5099 = vmatprep.subr.bf16.mxu0 0
    %5100 = vmatpush1.bf16.msra.mxu0 %v5067
    %5101 = vmatprep.subr.bf16.mxu0 0
    %5102 = vmatpush1.bf16.msra.mxu0 %v5068
    %5103 = vmatprep.subr.bf16.mxu0 0
    %5104 = vmatpush1.bf16.msra.mxu0 %v5069
    %5105 = vmatprep.subr.bf16.mxu0 0
    %5106 = vmatpush1.bf16.msra.mxu0 %v5070
    %5107 = vmatprep.subr.bf16.mxu0 0
    %5108 = vmatpush1.bf16.msra.mxu0 %v5071
    %5109 = vmatprep.subr.bf16.mxu0 0
    %5110 = vmatpush1.bf16.msra.mxu0 %v5072
    %5111 = vmatprep.subr.bf16.mxu0 0
    %5112 = vmatpush1.bf16.msra.mxu0 %v5073
    %5113 = vmatprep.subr.bf16.mxu0 0
    %5114 = vmatpush1.bf16.msra.mxu0 %v5074
    %5115 = vmatprep.subr.bf16.mxu0 0
    %5116 = vmatpush1.bf16.msra.mxu0 %v5075
    %5117 = vmatprep.subr.bf16.mxu0 0
    %5118 = vmatpush1.bf16.msra.mxu0 %v5076
    %5119 = vmatprep.subr.bf16.mxu0 0
    %5120 = vmatpush1.bf16.msra.mxu0 %v5077
    %5121 = vmatprep.subr.bf16.mxu0 0
    %5122 = vmatpush1.bf16.msra.mxu0 %v5078
    %5123 = vmatprep.subr.bf16.mxu0 0
    %5124 = vmatpush1.bf16.msra.mxu0 %v5079
    %5125 = vmatprep.subr.bf16.mxu0 0
    %5126 = vmatpush1.bf16.msra.mxu0 %v5080
    %5127 = vmatprep.subr.bf16.mxu0 0
    %5128 = vmatpush1.bf16.msra.mxu0 %v5081
    %5129 = vmatprep.subr.bf16.mxu0 0
    %5130 = vmatpush1.bf16.msra.mxu0 %v5082
    %5131 = vmatprep.mubr.bf16.mxu0 %v4963
    %5132 = vmatmul.mubr.bf16.gmra.mrb[0].mxu0 %v4962
    %v5133 = vpop.f32.mrb[0].mxu0
    %v5134 = vadd.f32 %v5001, %v5133
    %v5135 = vpop.f32.mrb[0].mxu0
    %v5136 = vpop.f32.mrb[0].mxu0
    %v5137 = vadd.f32 %v5001, %v5136
    %v5138 = vpop.f32.mrb[0].mxu0
    %5139 = vdwg.mxu0
    %v5140 = vadd.f32 %v4804, %v5134
    %v5141 = vadd.f32 %v4805, %v5137
    %v5142 = vld [vmem:[%s2695 + $0x15] sm:$0x1]
    %v5143 = vld [vmem:[%s2695 + $0x16] sm:$0x1]
    %5144 = vadd.xlane.f32.xlu0 %v5140
    %v5145 = vpop.xlane.xlu0 %5144
    %5146 = vadd.xlane.f32.xlu0 %v5141
    %v5147 = vpop.xlane.xlu0 %5146
    %v5148 = vmul.f32 %v5145, %v1149
    %v5149 = vmul.f32 %v5147, %v1149
    %v5150 = vsub.f32 %v5140, %v5148
    %v5151 = vsub.f32 %v5141, %v5149
    %v5152 = vmul.f32 %v5150, %v5150
    %v5153 = vmul.f32 %v5151, %v5151
    %5154 = vadd.xlane.f32.xlu0 %v5152
    %v5155 = vpop.xlane.xlu0 %5154
    %5156 = vadd.xlane.f32.xlu0 %v5153
    %v5157 = vpop.xlane.xlu0 %5156
    %v5158 = vmul.f32 %v5155, %v1149
    %v5159 = vmul.f32 %v5157, %v1149
    %v5160 = vadd.f32 %v5158, 1e-05
    %v5161 = vadd.f32 %v5159, 1e-05
    %v5162 = vrsqrt.pop %v5160
    %v5163 = vrsqrt.pop %v5161
    %v5164 = vmul.f32 %v5150, %v5162
    %v5165 = vmul.f32 %v5151, %v5163
    %v5167 = vlaneseq
    %v5168 = vshrl.u32 %v5167, 7
    %v5169 = vsub.s32 0, %v5168
    %v5170 = vrot.slane %v5142, %v5169
    %v5172 = vmul.f32 %v5164, %v5170
    %v5173 = vmul.f32 %v5165, %v5170
    %v5175 = vlaneseq
    %v5176 = vshrl.u32 %v5175, 7
    %v5177 = vsub.s32 0, %v5176
    %v5178 = vrot.slane %v5143, %v5177
    %v5180 = vadd.f32 %v5172, %v5178
    %v5181 = vadd.f32 %v5173, %v5178
    %v5182 = vpack.c.bf16 %v5181, %v5180
    %s5183 = scalar_lea.vmem [#allocation2], 1792
    %v5184 = vld [vmem:[%s5183] sm:$0xff]
    %v5185 = vld [vmem:[%s5183 + $0x8] sm:$0xff]
    %v5186 = vld [vmem:[%s5183 + $0x10] sm:$0xff]
    %v5187 = vld [vmem:[%s5183 + $0x38] sm:$0xff]
    %v5188 = vld [vmem:[%s5183 + $0x40] sm:$0xff]
    %v5189 = vld [vmem:[%s5183 + $0x48] sm:$0xff]
    %v5190 = vld [vmem:[%s5183 + $0x70] sm:$0xff]
    %v5191 = vld [vmem:[%s5183 + $0x78] sm:$0xff]
    %v5192 = vld [vmem:[%s5183 + $0x80] sm:$0xff]
    %v5193 = vld [vmem:[%s5183 + $0xa8] sm:$0xff]
    %v5194 = vld [vmem:[%s5183 + $0xb0] sm:$0xff]
    %v5195 = vld [vmem:[%s5183 + $0xb8] sm:$0xff]
    %v5196 = vld [vmem:[%s5183 + $0xe0] sm:$0xff]
    %v5197 = vld [vmem:[%s5183 + $0xe8] sm:$0xff]
    %v5198 = vld [vmem:[%s5183 + $0xf0] sm:$0xff]
    %v5199 = vld [vmem:[%s5183 + $0x118] sm:$0xff]
    %v5200 = vld [vmem:[%s5183 + $0x120] sm:$0xff]
    %v5201 = vld [vmem:[%s5183 + $0x128] sm:$0xff]
    %v5202 = vld [vmem:[%s5183 + $0x150] sm:$0xff]
    %v5203 = vld [vmem:[%s5183 + $0x158] sm:$0xff]
    %v5204 = vld [vmem:[%s5183 + $0x160] sm:$0xff]
    %v5205 = vld [vmem:[%s5183 + $0x188] sm:$0xff]
    %v5206 = vld [vmem:[%s5183 + $0x190] sm:$0xff]
    %v5207 = vld [vmem:[%s5183 + $0x198] sm:$0xff]
    %v5208 = vld [vmem:[%s5183 + $0x1c0] sm:$0xff]
    %v5209 = vld [vmem:[%s5183 + $0x1c8] sm:$0xff]
    %v5210 = vld [vmem:[%s5183 + $0x1d0] sm:$0xff]
    %v5211 = vld [vmem:[%s5183 + $0x1f8] sm:$0xff]
    %v5212 = vld [vmem:[%s5183 + $0x200] sm:$0xff]
    %v5213 = vld [vmem:[%s5183 + $0x208] sm:$0xff]
    %v5214 = vld [vmem:[%s5183 + $0x230] sm:$0xff]
    %v5215 = vld [vmem:[%s5183 + $0x238] sm:$0xff]
    %v5216 = vld [vmem:[%s5183 + $0x240] sm:$0xff]
    %v5217 = vld [vmem:[%s5183 + $0x268] sm:$0xff]
    %v5218 = vld [vmem:[%s5183 + $0x270] sm:$0xff]
    %v5219 = vld [vmem:[%s5183 + $0x278] sm:$0xff]
    %v5220 = vld [vmem:[%s5183 + $0x2a0] sm:$0xff]
    %v5221 = vld [vmem:[%s5183 + $0x2a8] sm:$0xff]
    %v5222 = vld [vmem:[%s5183 + $0x2b0] sm:$0xff]
    %v5223 = vld [vmem:[%s5183 + $0x2d8] sm:$0xff]
    %v5224 = vld [vmem:[%s5183 + $0x2e0] sm:$0xff]
    %v5225 = vld [vmem:[%s5183 + $0x2e8] sm:$0xff]
    %v5226 = vld [vmem:[%s5183 + $0x310] sm:$0xff]
    %v5227 = vld [vmem:[%s5183 + $0x318] sm:$0xff]
    %v5228 = vld [vmem:[%s5183 + $0x320] sm:$0xff]
    %v5229 = vld [vmem:[%s5183 + $0x348] sm:$0xff]
    %v5230 = vld [vmem:[%s5183 + $0x350] sm:$0xff]
    %v5231 = vld [vmem:[%s5183 + $0x358] sm:$0xff]
    %s5232 = scalar_lea.vmem [#allocation6], 46
    %v5233 = vld [vmem:[%s5232] sm:$0x3f]
    %v5235 = vlaneseq
    %v5236 = vshrl.u32 %v5235, 7
    %v5237 = vsub.s32 0, %v5236
    %v5238 = vrot.slane %v5233, %v5237
    %v5239 = vlaneseq
    %v5240 = vshrl.u32 %v5239, 7
    %v5241 = vsub.s32 1, %v5240
    %v5242 = vrot.slane %v5233, %v5241
    %v5243 = vlaneseq
    %v5244 = vshrl.u32 %v5243, 7
    %v5245 = vsub.s32 2, %v5244
    %v5246 = vrot.slane %v5233, %v5245
    %v5247 = vlaneseq
    %v5248 = vshrl.u32 %v5247, 7
    %v5249 = vsub.s32 3, %v5248
    %v5250 = vrot.slane %v5233, %v5249
    %v5251 = vlaneseq
    %v5252 = vshrl.u32 %v5251, 7
    %v5253 = vsub.s32 4, %v5252
    %v5254 = vrot.slane %v5233, %v5253
    %v5255 = vlaneseq
    %v5256 = vshrl.u32 %v5255, 7
    %v5257 = vsub.s32 5, %v5256
    %v5258 = vrot.slane %v5233, %v5257
    %v5313 = vunpack.c.l.b16 %v5184
    %v5314 = vunpack.c.h.b16 %v5184
    %v5315 = vunpack.c.l.b16 %v5185
    %v5316 = vunpack.c.h.b16 %v5185
    %v5317 = vunpack.c.l.b16 %v5186
    %v5318 = vunpack.c.h.b16 %v5186
    %v5319 = vunpack.c.l.b16 %v5187
    %v5320 = vunpack.c.h.b16 %v5187
    %v5321 = vunpack.c.l.b16 %v5188
    %v5322 = vunpack.c.h.b16 %v5188
    %v5323 = vunpack.c.l.b16 %v5189
    %v5324 = vunpack.c.h.b16 %v5189
    %v5325 = vunpack.c.l.b16 %v5190
    %v5326 = vunpack.c.h.b16 %v5190
    %v5327 = vunpack.c.l.b16 %v5191
    %v5328 = vunpack.c.h.b16 %v5191
    %v5329 = vunpack.c.l.b16 %v5192
    %v5330 = vunpack.c.h.b16 %v5192
    %v5331 = vunpack.c.l.b16 %v5193
    %v5332 = vunpack.c.h.b16 %v5193
    %v5333 = vunpack.c.l.b16 %v5194
    %v5334 = vunpack.c.h.b16 %v5194
    %v5335 = vunpack.c.l.b16 %v5195
    %v5336 = vunpack.c.h.b16 %v5195
    %v5337 = vunpack.c.l.b16 %v5196
    %v5338 = vunpack.c.h.b16 %v5196
    %v5339 = vunpack.c.l.b16 %v5197
    %v5340 = vunpack.c.h.b16 %v5197
    %v5341 = vunpack.c.l.b16 %v5198
    %v5342 = vunpack.c.h.b16 %v5198
    %v5343 = vunpack.c.l.b16 %v5199
    %v5344 = vunpack.c.h.b16 %v5199
    %v5345 = vunpack.c.l.b16 %v5200
    %v5346 = vunpack.c.h.b16 %v5200
    %v5347 = vunpack.c.l.b16 %v5201
    %v5348 = vunpack.c.h.b16 %v5201
    %v5349 = vunpack.c.l.b16 %v5202
    %v5350 = vunpack.c.h.b16 %v5202
    %v5351 = vunpack.c.l.b16 %v5203
    %v5352 = vunpack.c.h.b16 %v5203
    %v5353 = vunpack.c.l.b16 %v5204
    %v5354 = vunpack.c.h.b16 %v5204
    %v5355 = vunpack.c.l.b16 %v5205
    %v5356 = vunpack.c.h.b16 %v5205
    %v5357 = vunpack.c.l.b16 %v5206
    %v5358 = vunpack.c.h.b16 %v5206
    %v5359 = vunpack.c.l.b16 %v5207
    %v5360 = vunpack.c.h.b16 %v5207
    %v5361 = vunpack.c.l.b16 %v5208
    %v5362 = vunpack.c.h.b16 %v5208
    %v5363 = vunpack.c.l.b16 %v5209
    %v5364 = vunpack.c.h.b16 %v5209
    %v5365 = vunpack.c.l.b16 %v5210
    %v5366 = vunpack.c.h.b16 %v5210
    %v5367 = vunpack.c.l.b16 %v5211
    %v5368 = vunpack.c.h.b16 %v5211
    %v5369 = vunpack.c.l.b16 %v5212
    %v5370 = vunpack.c.h.b16 %v5212
    %v5371 = vunpack.c.l.b16 %v5213
    %v5372 = vunpack.c.h.b16 %v5213
    %v5373 = vunpack.c.l.b16 %v5214
    %v5374 = vunpack.c.h.b16 %v5214
    %v5375 = vunpack.c.l.b16 %v5215
    %v5376 = vunpack.c.h.b16 %v5215
    %v5377 = vunpack.c.l.b16 %v5216
    %v5378 = vunpack.c.h.b16 %v5216
    %v5379 = vunpack.c.l.b16 %v5217
    %v5380 = vunpack.c.h.b16 %v5217
    %v5381 = vunpack.c.l.b16 %v5218
    %v5382 = vunpack.c.h.b16 %v5218
    %v5383 = vunpack.c.l.b16 %v5219
    %v5384 = vunpack.c.h.b16 %v5219
    %v5385 = vunpack.c.l.b16 %v5220
    %v5386 = vunpack.c.h.b16 %v5220
    %v5387 = vunpack.c.l.b16 %v5221
    %v5388 = vunpack.c.h.b16 %v5221
    %v5389 = vunpack.c.l.b16 %v5222
    %v5390 = vunpack.c.h.b16 %v5222
    %v5391 = vunpack.c.l.b16 %v5223
    %v5392 = vunpack.c.h.b16 %v5223
    %v5393 = vunpack.c.l.b16 %v5224
    %v5394 = vunpack.c.h.b16 %v5224
    %v5395 = vunpack.c.l.b16 %v5225
    %v5396 = vunpack.c.h.b16 %v5225
    %v5397 = vunpack.c.l.b16 %v5226
    %v5398 = vunpack.c.h.b16 %v5226
    %v5399 = vunpack.c.l.b16 %v5227
    %v5400 = vunpack.c.h.b16 %v5227
    %v5401 = vunpack.c.l.b16 %v5228
    %v5402 = vunpack.c.h.b16 %v5228
    %v5403 = vunpack.c.l.b16 %v5229
    %v5404 = vunpack.c.h.b16 %v5229
    %v5405 = vunpack.c.l.b16 %v5230
    %v5406 = vunpack.c.h.b16 %v5230
    %v5407 = vunpack.c.l.b16 %v5231
    %v5408 = vunpack.c.h.b16 %v5231
    %v5409 = vpack.c.b16 %v5319, %v5313
    %v5410 = vpack.c.b16 %v5320, %v5314
    %v5411 = vpack.c.b16 %v5321, %v5315
    %v5412 = vpack.c.b16 %v5322, %v5316
    %v5413 = vpack.c.b16 %v5323, %v5317
    %v5414 = vpack.c.b16 %v5324, %v5318
    %v5415 = vpack.c.b16 %v5331, %v5325
    %v5416 = vpack.c.b16 %v5332, %v5326
    %v5417 = vpack.c.b16 %v5333, %v5327
    %v5418 = vpack.c.b16 %v5334, %v5328
    %v5419 = vpack.c.b16 %v5335, %v5329
    %v5420 = vpack.c.b16 %v5336, %v5330
    %v5421 = vpack.c.b16 %v5343, %v5337
    %v5422 = vpack.c.b16 %v5344, %v5338
    %v5423 = vpack.c.b16 %v5345, %v5339
    %v5424 = vpack.c.b16 %v5346, %v5340
    %v5425 = vpack.c.b16 %v5347, %v5341
    %v5426 = vpack.c.b16 %v5348, %v5342
    %v5427 = vpack.c.b16 %v5355, %v5349
    %v5428 = vpack.c.b16 %v5356, %v5350
    %v5429 = vpack.c.b16 %v5357, %v5351
    %v5430 = vpack.c.b16 %v5358, %v5352
    %v5431 = vpack.c.b16 %v5359, %v5353
    %v5432 = vpack.c.b16 %v5360, %v5354
    %v5433 = vpack.c.b16 %v5367, %v5361
    %v5434 = vpack.c.b16 %v5368, %v5362
    %v5435 = vpack.c.b16 %v5369, %v5363
    %v5436 = vpack.c.b16 %v5370, %v5364
    %v5437 = vpack.c.b16 %v5371, %v5365
    %v5438 = vpack.c.b16 %v5372, %v5366
    %v5439 = vpack.c.b16 %v5379, %v5373
    %v5440 = vpack.c.b16 %v5380, %v5374
    %v5441 = vpack.c.b16 %v5381, %v5375
    %v5442 = vpack.c.b16 %v5382, %v5376
    %v5443 = vpack.c.b16 %v5383, %v5377
    %v5444 = vpack.c.b16 %v5384, %v5378
    %v5445 = vpack.c.b16 %v5391, %v5385
    %v5446 = vpack.c.b16 %v5392, %v5386
    %v5447 = vpack.c.b16 %v5393, %v5387
    %v5448 = vpack.c.b16 %v5394, %v5388
    %v5449 = vpack.c.b16 %v5395, %v5389
    %v5450 = vpack.c.b16 %v5396, %v5390
    %v5451 = vpack.c.b16 %v5403, %v5397
    %v5452 = vpack.c.b16 %v5404, %v5398
    %v5453 = vpack.c.b16 %v5405, %v5399
    %v5454 = vpack.c.b16 %v5406, %v5400
    %v5455 = vpack.c.b16 %v5407, %v5401
    %v5456 = vpack.c.b16 %v5408, %v5402
    %5505 = vmatprep.subr.bf16.mxu0 %v5410
    %5506 = vmatpush1.bf16.msra.mxu0 %v5409
    %5507 = vmatprep.subr.bf16.mxu0 %v5416
    %5508 = vmatpush1.bf16.msra.mxu0 %v5415
    %5509 = vmatprep.subr.bf16.mxu0 %v5422
    %5510 = vmatpush1.bf16.msra.mxu0 %v5421
    %5511 = vmatprep.subr.bf16.mxu0 %v5428
    %5512 = vmatpush1.bf16.msra.mxu0 %v5427
    %5513 = vmatprep.subr.bf16.mxu0 %v5434
    %5514 = vmatpush1.bf16.msra.mxu0 %v5433
    %5515 = vmatprep.subr.bf16.mxu0 %v5440
    %5516 = vmatpush1.bf16.msra.mxu0 %v5439
    %5517 = vmatprep.subr.bf16.mxu0 %v5446
    %5518 = vmatpush1.bf16.msra.mxu0 %v5445
    %5519 = vmatprep.subr.bf16.mxu0 %v5452
    %5520 = vmatpush1.bf16.msra.mxu0 %v5451
    %5521 = vmatprep.subr.bf16.mxu0 0
    %5522 = vmatpush1.bf16.msra.mxu0 0
    %5523 = vmatprep.subr.bf16.mxu0 0
    %5524 = vmatpush1.bf16.msra.mxu0 0
    %5525 = vmatprep.subr.bf16.mxu0 0
    %5526 = vmatpush1.bf16.msra.mxu0 0
    %5527 = vmatprep.subr.bf16.mxu0 0
    %5528 = vmatpush1.bf16.msra.mxu0 0
    %5529 = vmatprep.subr.bf16.mxu0 0
    %5530 = vmatpush1.bf16.msra.mxu0 0
    %5531 = vmatprep.subr.bf16.mxu0 0
    %5532 = vmatpush1.bf16.msra.mxu0 0
    %5533 = vmatprep.subr.bf16.mxu0 0
    %5534 = vmatpush1.bf16.msra.mxu0 0
    %5535 = vmatprep.subr.bf16.mxu0 0
    %5536 = vmatpush1.bf16.msra.mxu0 0
    %5537 = vmatprep.mubr.bf16.mxu0 0
    %5538 = vmatmul.mubr.bf16.gmra.mrb[0].mxu0 %v5182
    %v5539 = vpop.f32.mrb[0].mxu0
    %v5540 = vadd.f32 %v5238, %v5539
    %v5541 = vpop.f32.mrb[0].mxu0
    %v5542 = vadd.f32 %v5242, %v5541
    %v5543 = vpop.f32.mrb[0].mxu0
    %v5544 = vadd.f32 %v5238, %v5543
    %v5545 = vpop.f32.mrb[0].mxu0
    %v5546 = vadd.f32 %v5242, %v5545
    %5547 = vdwg.mxu0
    %5548 = vmatprep.subr.bf16.mxu0 %v5412
    %5549 = vmatpush1.bf16.msra.mxu0 %v5411
    %5550 = vmatprep.subr.bf16.mxu0 %v5418
    %5551 = vmatpush1.bf16.msra.mxu0 %v5417
    %5552 = vmatprep.subr.bf16.mxu0 %v5424
    %5553 = vmatpush1.bf16.msra.mxu0 %v5423
    %5554 = vmatprep.subr.bf16.mxu0 %v5430
    %5555 = vmatpush1.bf16.msra.mxu0 %v5429
    %5556 = vmatprep.subr.bf16.mxu0 %v5436
    %5557 = vmatpush1.bf16.msra.mxu0 %v5435
    %5558 = vmatprep.subr.bf16.mxu0 %v5442
    %5559 = vmatpush1.bf16.msra.mxu0 %v5441
    %5560 = vmatprep.subr.bf16.mxu0 %v5448
    %5561 = vmatpush1.bf16.msra.mxu0 %v5447
    %5562 = vmatprep.subr.bf16.mxu0 %v5454
    %5563 = vmatpush1.bf16.msra.mxu0 %v5453
    %5564 = vmatprep.subr.bf16.mxu0 0
    %5565 = vmatpush1.bf16.msra.mxu0 0
    %5566 = vmatprep.subr.bf16.mxu0 0
    %5567 = vmatpush1.bf16.msra.mxu0 0
    %5568 = vmatprep.subr.bf16.mxu0 0
    %5569 = vmatpush1.bf16.msra.mxu0 0
    %5570 = vmatprep.subr.bf16.mxu0 0
    %5571 = vmatpush1.bf16.msra.mxu0 0
    %5572 = vmatprep.subr.bf16.mxu0 0
    %5573 = vmatpush1.bf16.msra.mxu0 0
    %5574 = vmatprep.subr.bf16.mxu0 0
    %5575 = vmatpush1.bf16.msra.mxu0 0
    %5576 = vmatprep.subr.bf16.mxu0 0
    %5577 = vmatpush1.bf16.msra.mxu0 0
    %5578 = vmatprep.subr.bf16.mxu0 0
    %5579 = vmatpush1.bf16.msra.mxu0 0
    %5580 = vmatprep.mubr.bf16.mxu0 0
    %5581 = vmatmul.mubr.bf16.gmra.mrb[0].mxu0 %v5182
    %v5582 = vpop.f32.mrb[0].mxu0
    %v5583 = vadd.f32 %v5246, %v5582
    %v5584 = vpop.f32.mrb[0].mxu0
    %v5585 = vadd.f32 %v5250, %v5584
    %v5586 = vpop.f32.mrb[0].mxu0
    %v5587 = vadd.f32 %v5246, %v5586
    %v5588 = vpop.f32.mrb[0].mxu0
    %v5589 = vadd.f32 %v5250, %v5588
    %5590 = vdwg.mxu0
    %5591 = vmatprep.subr.bf16.mxu0 %v5414
    %5592 = vmatpush1.bf16.msra.mxu0 %v5413
    %5593 = vmatprep.subr.bf16.mxu0 %v5420
    %5594 = vmatpush1.bf16.msra.mxu0 %v5419
    %5595 = vmatprep.subr.bf16.mxu0 %v5426
    %5596 = vmatpush1.bf16.msra.mxu0 %v5425
    %5597 = vmatprep.subr.bf16.mxu0 %v5432
    %5598 = vmatpush1.bf16.msra.mxu0 %v5431
    %5599 = vmatprep.subr.bf16.mxu0 %v5438
    %5600 = vmatpush1.bf16.msra.mxu0 %v5437
    %5601 = vmatprep.subr.bf16.mxu0 %v5444
    %5602 = vmatpush1.bf16.msra.mxu0 %v5443
    %5603 = vmatprep.subr.bf16.mxu0 %v5450
    %5604 = vmatpush1.bf16.msra.mxu0 %v5449
    %5605 = vmatprep.subr.bf16.mxu0 %v5456
    %5606 = vmatpush1.bf16.msra.mxu0 %v5455
    %5607 = vmatprep.subr.bf16.mxu0 0
    %5608 = vmatpush1.bf16.msra.mxu0 0
    %5609 = vmatprep.subr.bf16.mxu0 0
    %5610 = vmatpush1.bf16.msra.mxu0 0
    %5611 = vmatprep.subr.bf16.mxu0 0
    %5612 = vmatpush1.bf16.msra.mxu0 0
    %5613 = vmatprep.subr.bf16.mxu0 0
    %5614 = vmatpush1.bf16.msra.mxu0 0
    %5615 = vmatprep.subr.bf16.mxu0 0
    %5616 = vmatpush1.bf16.msra.mxu0 0
    %5617 = vmatprep.subr.bf16.mxu0 0
    %5618 = vmatpush1.bf16.msra.mxu0 0
    %5619 = vmatprep.subr.bf16.mxu0 0
    %5620 = vmatpush1.bf16.msra.mxu0 0
    %5621 = vmatprep.subr.bf16.mxu0 0
    %5622 = vmatpush1.bf16.msra.mxu0 0
    %5623 = vmatprep.mubr.bf16.mxu0 0
    %5624 = vmatmul.mubr.bf16.gmra.mrb[0].mxu0 %v5182
    %v5625 = vpop.f32.mrb[0].mxu0
    %v5626 = vadd.f32 %v5254, %v5625
    %v5627 = vpop.f32.mrb[0].mxu0
    %v5628 = vadd.f32 %v5258, %v5627
    %v5629 = vpop.f32.mrb[0].mxu0
    %v5630 = vadd.f32 %v5254, %v5629
    %v5631 = vpop.f32.mrb[0].mxu0
    %v5632 = vadd.f32 %v5258, %v5631
    %5633 = vdwg.mxu0
    %v5634 = vpack.c.bf16 %v5540, %v5540
    %v5635 = vpack.c.bf16 %v5544, %v5544
    %v5636 = vpack.c.bf16 %v5583, %v5583
    %v5637 = vpack.c.bf16 %v5587, %v5587
    %v5638 = vpack.c.bf16 %v5626, %v5626
    %v5639 = vpack.c.bf16 %v5630, %v5630
    %5640 = vmatprep.subr.bf16.mxu0 0
    %5641 = vmatpush1.bf16.xpose.msra.mxu0 %v5636
    %5642 = vmatprep.subr.bf16.mxu0 0
    %5643 = vmatpush1.bf16.xpose.msra.mxu0 0
    %5644 = vmatprep.subr.bf16.mxu0 0
    %5645 = vmatpush1.bf16.xpose.msra.mxu0 0
    %5646 = vmatprep.subr.bf16.mxu0 0
    %5647 = vmatpush1.bf16.xpose.msra.mxu0 0
    %5648 = vmatprep.subr.bf16.mxu0 0
    %5649 = vmatpush1.bf16.xpose.msra.mxu0 0
    %5650 = vmatprep.subr.bf16.mxu0 0
    %5651 = vmatpush1.bf16.xpose.msra.mxu0 0
    %5652 = vmatprep.subr.bf16.mxu0 0
    %5653 = vmatpush1.bf16.xpose.msra.mxu0 0
    %5654 = vmatprep.subr.bf16.mxu0 0
    %5655 = vmatpush1.bf16.xpose.msra.mxu0 0
    %5656 = vmatprep.subr.bf16.mxu0 0
    %5657 = vmatpush1.bf16.xpose.msra.mxu0 0
    %5658 = vmatprep.subr.bf16.mxu0 0
    %5659 = vmatpush1.bf16.xpose.msra.mxu0 0
    %5660 = vmatprep.subr.bf16.mxu0 0
    %5661 = vmatpush1.bf16.xpose.msra.mxu0 0
    %5662 = vmatprep.subr.bf16.mxu0 0
    %5663 = vmatpush1.bf16.xpose.msra.mxu0 0
    %5664 = vmatprep.subr.bf16.mxu0 0
    %5665 = vmatpush1.bf16.xpose.msra.mxu0 0
    %5666 = vmatprep.subr.bf16.mxu0 0
    %5667 = vmatpush1.bf16.xpose.msra.mxu0 0
    %5668 = vmatprep.subr.bf16.mxu0 0
    %5669 = vmatpush1.bf16.xpose.msra.mxu0 0
    %5670 = vmatprep.subr.bf16.mxu0 0
    %5671 = vmatpush1.bf16.xpose.msra.mxu0 0
    %5672 = vmatprep.mubr.bf16.mxu0 0
    %5673 = vmatmul.mubr.bf16.gmra.mrb[0].mxu0 %v5634
    %v5674 = vpop.f32.mrb[0].mxu0
    %v5675 = vadd.f32 %v106, %v5674
    %v5676 = vpop.f32.mrb[0].mxu0
    %v5677 = vpop.f32.mrb[0].mxu0
    %v5678 = vpop.f32.mrb[0].mxu0
    %5679 = vdwg.mxu0
    %5680 = vmatprep.subr.bf16.mxu0 0
    %5681 = vmatpush1.bf16.xpose.msra.mxu0 %v5637
    %5682 = vmatprep.subr.bf16.mxu0 0
    %5683 = vmatpush1.bf16.xpose.msra.mxu0 0
    %5684 = vmatprep.subr.bf16.mxu0 0
    %5685 = vmatpush1.bf16.xpose.msra.mxu0 0
    %5686 = vmatprep.subr.bf16.mxu0 0
    %5687 = vmatpush1.bf16.xpose.msra.mxu0 0
    %5688 = vmatprep.subr.bf16.mxu0 0
    %5689 = vmatpush1.bf16.xpose.msra.mxu0 0
    %5690 = vmatprep.subr.bf16.mxu0 0
    %5691 = vmatpush1.bf16.xpose.msra.mxu0 0
    %5692 = vmatprep.subr.bf16.mxu0 0
    %5693 = vmatpush1.bf16.xpose.msra.mxu0 0
    %5694 = vmatprep.subr.bf16.mxu0 0
    %5695 = vmatpush1.bf16.xpose.msra.mxu0 0
    %5696 = vmatprep.subr.bf16.mxu0 0
    %5697 = vmatpush1.bf16.xpose.msra.mxu0 0
    %5698 = vmatprep.subr.bf16.mxu0 0
    %5699 = vmatpush1.bf16.xpose.msra.mxu0 0
    %5700 = vmatprep.subr.bf16.mxu0 0
    %5701 = vmatpush1.bf16.xpose.msra.mxu0 0
    %5702 = vmatprep.subr.bf16.mxu0 0
    %5703 = vmatpush1.bf16.xpose.msra.mxu0 0
    %5704 = vmatprep.subr.bf16.mxu0 0
    %5705 = vmatpush1.bf16.xpose.msra.mxu0 0
    %5706 = vmatprep.subr.bf16.mxu0 0
    %5707 = vmatpush1.bf16.xpose.msra.mxu0 0
    %5708 = vmatprep.subr.bf16.mxu0 0
    %5709 = vmatpush1.bf16.xpose.msra.mxu0 0
    %5710 = vmatprep.subr.bf16.mxu0 0
    %5711 = vmatpush1.bf16.xpose.msra.mxu0 0
    %5712 = vmatprep.mubr.bf16.mxu0 0
    %5713 = vmatmul.mubr.bf16.gmra.mrb[0].mxu0 %v5635
    %v5714 = vpop.f32.mrb[0].mxu0
    %v5715 = vadd.f32 %v106, %v5714
    %v5716 = vpop.f32.mrb[0].mxu0
    %v5717 = vpop.f32.mrb[0].mxu0
    %v5718 = vpop.f32.mrb[0].mxu0
    %5719 = vdwg.mxu0
    %v5720 = vsel %vm643, %v5675, -inf
    %5721 = vmax.xlane.f32.xlu0 %v5720
    %v5722 = vpop.xlane.xlu0 %5721
    %v5723 = vsel %vm643, %v5715, -inf
    %5724 = vmax.xlane.f32.xlu0 %v5723
    %v5725 = vpop.xlane.xlu0 %5724
    %v5726 = vsub.f32 %v5675, %v5722
    %v5727 = vsub.f32 %v5715, %v5725
    %v5728 = vmul.f32 %v5726, 1.442695
    %v5729 = vpow.pop %v5728
    %v5730 = vmul.f32 %v5727, 1.442695
    %v5731 = vpow.pop %v5730
    %v5732 = vsel %vm643, %v5729, 0.0
    %5733 = vadd.xlane.f32.xlu0 %v5732
    %v5734 = vpop.xlane.xlu0 %5733
    %v5735 = vsel %vm643, %v5731, 0.0
    %5736 = vadd.xlane.f32.xlu0 %v5735
    %v5737 = vpop.xlane.xlu0 %5736
    %v5738 = vrcp.pop %v5734
    %v5739 = vrcp.pop %v5737
    %v5740 = vmul.f32 %v5729, %v5738
    %v5741 = vmul.f32 %v5731, %v5739
    %v5742 = vpack.c.bf16 %v5740, %v5740
    %v5743 = vpack.c.bf16 %v5741, %v5741
    %v5745 = vsel %vm643, %v5742, 0
    %v5748 = vsel %vm671, %v5638, 0
    %5750 = vmatprep.subr.bf16.mxu0 0
    %5751 = vmatpush1.bf16.msra.mxu0 %v5748
    %5752 = vmatprep.subr.bf16.mxu0 0
    %5753 = vmatpush1.bf16.msra.mxu0 0
    %5754 = vmatprep.subr.bf16.mxu0 0
    %5755 = vmatpush1.bf16.msra.mxu0 0
    %5756 = vmatprep.subr.bf16.mxu0 0
    %5757 = vmatpush1.bf16.msra.mxu0 0
    %5758 = vmatprep.subr.bf16.mxu0 0
    %5759 = vmatpush1.bf16.msra.mxu0 0
    %5760 = vmatprep.subr.bf16.mxu0 0
    %5761 = vmatpush1.bf16.msra.mxu0 0
    %5762 = vmatprep.subr.bf16.mxu0 0
    %5763 = vmatpush1.bf16.msra.mxu0 0
    %5764 = vmatprep.subr.bf16.mxu0 0
    %5765 = vmatpush1.bf16.msra.mxu0 0
    %5766 = vmatprep.subr.bf16.mxu0 0
    %5767 = vmatpush1.bf16.msra.mxu0 0
    %5768 = vmatprep.subr.bf16.mxu0 0
    %5769 = vmatpush1.bf16.msra.mxu0 0
    %5770 = vmatprep.subr.bf16.mxu0 0
    %5771 = vmatpush1.bf16.msra.mxu0 0
    %5772 = vmatprep.subr.bf16.mxu0 0
    %5773 = vmatpush1.bf16.msra.mxu0 0
    %5774 = vmatprep.subr.bf16.mxu0 0
    %5775 = vmatpush1.bf16.msra.mxu0 0
    %5776 = vmatprep.subr.bf16.mxu0 0
    %5777 = vmatpush1.bf16.msra.mxu0 0
    %5778 = vmatprep.subr.bf16.mxu0 0
    %5779 = vmatpush1.bf16.msra.mxu0 0
    %5780 = vmatprep.subr.bf16.mxu0 0
    %5781 = vmatpush1.bf16.msra.mxu0 0
    %5782 = vmatprep.mubr.bf16.mxu0 0
    %5783 = vmatmul.mubr.bf16.gmra.mrb[0].mxu0 %v5745
    %v5784 = vpop.f32.mrb[0].mxu0
    %v5785 = vadd.f32 0.0, %v5784
    %v5786 = vpop.f32.mrb[0].mxu0
    %v5787 = vpop.f32.mrb[0].mxu0
    %v5788 = vpop.f32.mrb[0].mxu0
    %5789 = vdwg.mxu0
    %v5791 = vsel %vm643, %v5743, 0
    %v5794 = vsel %vm671, %v5639, 0
    %5796 = vmatprep.subr.bf16.mxu0 0
    %5797 = vmatpush1.bf16.msra.mxu0 %v5794
    %5798 = vmatprep.subr.bf16.mxu0 0
    %5799 = vmatpush1.bf16.msra.mxu0 0
    %5800 = vmatprep.subr.bf16.mxu0 0
    %5801 = vmatpush1.bf16.msra.mxu0 0
    %5802 = vmatprep.subr.bf16.mxu0 0
    %5803 = vmatpush1.bf16.msra.mxu0 0
    %5804 = vmatprep.subr.bf16.mxu0 0
    %5805 = vmatpush1.bf16.msra.mxu0 0
    %5806 = vmatprep.subr.bf16.mxu0 0
    %5807 = vmatpush1.bf16.msra.mxu0 0
    %5808 = vmatprep.subr.bf16.mxu0 0
    %5809 = vmatpush1.bf16.msra.mxu0 0
    %5810 = vmatprep.subr.bf16.mxu0 0
    %5811 = vmatpush1.bf16.msra.mxu0 0
    %5812 = vmatprep.subr.bf16.mxu0 0
    %5813 = vmatpush1.bf16.msra.mxu0 0
    %5814 = vmatprep.subr.bf16.mxu0 0
    %5815 = vmatpush1.bf16.msra.mxu0 0
    %5816 = vmatprep.subr.bf16.mxu0 0
    %5817 = vmatpush1.bf16.msra.mxu0 0
    %5818 = vmatprep.subr.bf16.mxu0 0
    %5819 = vmatpush1.bf16.msra.mxu0 0
    %5820 = vmatprep.subr.bf16.mxu0 0
    %5821 = vmatpush1.bf16.msra.mxu0 0
    %5822 = vmatprep.subr.bf16.mxu0 0
    %5823 = vmatpush1.bf16.msra.mxu0 0
    %5824 = vmatprep.subr.bf16.mxu0 0
    %5825 = vmatpush1.bf16.msra.mxu0 0
    %5826 = vmatprep.subr.bf16.mxu0 0
    %5827 = vmatpush1.bf16.msra.mxu0 0
    %5828 = vmatprep.mubr.bf16.mxu0 0
    %5829 = vmatmul.mubr.bf16.gmra.mrb[0].mxu0 %v5791
    %v5830 = vpop.f32.mrb[0].mxu0
    %v5831 = vadd.f32 0.0, %v5830
    %v5832 = vpop.f32.mrb[0].mxu0
    %v5833 = vpop.f32.mrb[0].mxu0
    %v5834 = vpop.f32.mrb[0].mxu0
    %5835 = vdwg.mxu0
    %v5836 = vpack.c.bf16 %v5542, %v5542
    %v5837 = vpack.c.bf16 %v5546, %v5546
    %v5838 = vpack.c.bf16 %v5585, %v5585
    %v5839 = vpack.c.bf16 %v5589, %v5589
    %v5840 = vpack.c.bf16 %v5628, %v5628
    %v5841 = vpack.c.bf16 %v5632, %v5632
    %5842 = vmatprep.subr.bf16.mxu0 0
    %5843 = vmatpush1.bf16.xpose.msra.mxu0 %v5838
    %5844 = vmatprep.subr.bf16.mxu0 0
    %5845 = vmatpush1.bf16.xpose.msra.mxu0 0
    %5846 = vmatprep.subr.bf16.mxu0 0
    %5847 = vmatpush1.bf16.xpose.msra.mxu0 0
    %5848 = vmatprep.subr.bf16.mxu0 0
    %5849 = vmatpush1.bf16.xpose.msra.mxu0 0
    %5850 = vmatprep.subr.bf16.mxu0 0
    %5851 = vmatpush1.bf16.xpose.msra.mxu0 0
    %5852 = vmatprep.subr.bf16.mxu0 0
    %5853 = vmatpush1.bf16.xpose.msra.mxu0 0
    %5854 = vmatprep.subr.bf16.mxu0 0
    %5855 = vmatpush1.bf16.xpose.msra.mxu0 0
    %5856 = vmatprep.subr.bf16.mxu0 0
    %5857 = vmatpush1.bf16.xpose.msra.mxu0 0
    %5858 = vmatprep.subr.bf16.mxu0 0
    %5859 = vmatpush1.bf16.xpose.msra.mxu0 0
    %5860 = vmatprep.subr.bf16.mxu0 0
    %5861 = vmatpush1.bf16.xpose.msra.mxu0 0
    %5862 = vmatprep.subr.bf16.mxu0 0
    %5863 = vmatpush1.bf16.xpose.msra.mxu0 0
    %5864 = vmatprep.subr.bf16.mxu0 0
    %5865 = vmatpush1.bf16.xpose.msra.mxu0 0
    %5866 = vmatprep.subr.bf16.mxu0 0
    %5867 = vmatpush1.bf16.xpose.msra.mxu0 0
    %5868 = vmatprep.subr.bf16.mxu0 0
    %5869 = vmatpush1.bf16.xpose.msra.mxu0 0
    %5870 = vmatprep.subr.bf16.mxu0 0
    %5871 = vmatpush1.bf16.xpose.msra.mxu0 0
    %5872 = vmatprep.subr.bf16.mxu0 0
    %5873 = vmatpush1.bf16.xpose.msra.mxu0 0
    %5874 = vmatprep.mubr.bf16.mxu0 0
    %5875 = vmatmul.mubr.bf16.gmra.mrb[0].mxu0 %v5836
    %v5876 = vpop.f32.mrb[0].mxu0
    %v5877 = vadd.f32 %v106, %v5876
    %v5878 = vpop.f32.mrb[0].mxu0
    %v5879 = vpop.f32.mrb[0].mxu0
    %v5880 = vpop.f32.mrb[0].mxu0
    %5881 = vdwg.mxu0
    %5882 = vmatprep.subr.bf16.mxu0 0
    %5883 = vmatpush1.bf16.xpose.msra.mxu0 %v5839
    %5884 = vmatprep.subr.bf16.mxu0 0
    %5885 = vmatpush1.bf16.xpose.msra.mxu0 0
    %5886 = vmatprep.subr.bf16.mxu0 0
    %5887 = vmatpush1.bf16.xpose.msra.mxu0 0
    %5888 = vmatprep.subr.bf16.mxu0 0
    %5889 = vmatpush1.bf16.xpose.msra.mxu0 0
    %5890 = vmatprep.subr.bf16.mxu0 0
    %5891 = vmatpush1.bf16.xpose.msra.mxu0 0
    %5892 = vmatprep.subr.bf16.mxu0 0
    %5893 = vmatpush1.bf16.xpose.msra.mxu0 0
    %5894 = vmatprep.subr.bf16.mxu0 0
    %5895 = vmatpush1.bf16.xpose.msra.mxu0 0
    %5896 = vmatprep.subr.bf16.mxu0 0
    %5897 = vmatpush1.bf16.xpose.msra.mxu0 0
    %5898 = vmatprep.subr.bf16.mxu0 0
    %5899 = vmatpush1.bf16.xpose.msra.mxu0 0
    %5900 = vmatprep.subr.bf16.mxu0 0
    %5901 = vmatpush1.bf16.xpose.msra.mxu0 0
    %5902 = vmatprep.subr.bf16.mxu0 0
    %5903 = vmatpush1.bf16.xpose.msra.mxu0 0
    %5904 = vmatprep.subr.bf16.mxu0 0
    %5905 = vmatpush1.bf16.xpose.msra.mxu0 0
    %5906 = vmatprep.subr.bf16.mxu0 0
    %5907 = vmatpush1.bf16.xpose.msra.mxu0 0
    %5908 = vmatprep.subr.bf16.mxu0 0
    %5909 = vmatpush1.bf16.xpose.msra.mxu0 0
    %5910 = vmatprep.subr.bf16.mxu0 0
    %5911 = vmatpush1.bf16.xpose.msra.mxu0 0
    %5912 = vmatprep.subr.bf16.mxu0 0
    %5913 = vmatpush1.bf16.xpose.msra.mxu0 0
    %5914 = vmatprep.mubr.bf16.mxu0 0
    %5915 = vmatmul.mubr.bf16.gmra.mrb[0].mxu0 %v5837
    %v5916 = vpop.f32.mrb[0].mxu0
    %v5917 = vadd.f32 %v106, %v5916
    %v5918 = vpop.f32.mrb[0].mxu0
    %v5919 = vpop.f32.mrb[0].mxu0
    %v5920 = vpop.f32.mrb[0].mxu0
    %5921 = vdwg.mxu0
    %v5922 = vsel %vm643, %v5877, -inf
    %5923 = vmax.xlane.f32.xlu0 %v5922
    %v5924 = vpop.xlane.xlu0 %5923
    %v5925 = vsel %vm643, %v5917, -inf
    %5926 = vmax.xlane.f32.xlu0 %v5925
    %v5927 = vpop.xlane.xlu0 %5926
    %v5928 = vsub.f32 %v5877, %v5924
    %v5929 = vsub.f32 %v5917, %v5927
    %v5930 = vmul.f32 %v5928, 1.442695
    %v5931 = vpow.pop %v5930
    %v5932 = vmul.f32 %v5929, 1.442695
    %v5933 = vpow.pop %v5932
    %v5934 = vsel %vm643, %v5931, 0.0
    %5935 = vadd.xlane.f32.xlu0 %v5934
    %v5936 = vpop.xlane.xlu0 %5935
    %v5937 = vsel %vm643, %v5933, 0.0
    %5938 = vadd.xlane.f32.xlu0 %v5937
    %v5939 = vpop.xlane.xlu0 %5938
    %v5940 = vrcp.pop %v5936
    %v5941 = vrcp.pop %v5939
    %v5942 = vmul.f32 %v5931, %v5940
    %v5943 = vmul.f32 %v5933, %v5941
    %v5944 = vpack.c.bf16 %v5942, %v5942
    %v5945 = vpack.c.bf16 %v5943, %v5943
    %v5947 = vsel %vm643, %v5944, 0
    %v5950 = vsel %vm671, %v5840, 0
    %5952 = vmatprep.subr.bf16.mxu0 0
    %5953 = vmatpush1.bf16.msra.mxu0 %v5950
    %5954 = vmatprep.subr.bf16.mxu0 0
    %5955 = vmatpush1.bf16.msra.mxu0 0
    %5956 = vmatprep.subr.bf16.mxu0 0
    %5957 = vmatpush1.bf16.msra.mxu0 0
    %5958 = vmatprep.subr.bf16.mxu0 0
    %5959 = vmatpush1.bf16.msra.mxu0 0
    %5960 = vmatprep.subr.bf16.mxu0 0
    %5961 = vmatpush1.bf16.msra.mxu0 0
    %5962 = vmatprep.subr.bf16.mxu0 0
    %5963 = vmatpush1.bf16.msra.mxu0 0
    %5964 = vmatprep.subr.bf16.mxu0 0
    %5965 = vmatpush1.bf16.msra.mxu0 0
    %5966 = vmatprep.subr.bf16.mxu0 0
    %5967 = vmatpush1.bf16.msra.mxu0 0
    %5968 = vmatprep.subr.bf16.mxu0 0
    %5969 = vmatpush1.bf16.msra.mxu0 0
    %5970 = vmatprep.subr.bf16.mxu0 0
    %5971 = vmatpush1.bf16.msra.mxu0 0
    %5972 = vmatprep.subr.bf16.mxu0 0
    %5973 = vmatpush1.bf16.msra.mxu0 0
    %5974 = vmatprep.subr.bf16.mxu0 0
    %5975 = vmatpush1.bf16.msra.mxu0 0
    %5976 = vmatprep.subr.bf16.mxu0 0
    %5977 = vmatpush1.bf16.msra.mxu0 0
    %5978 = vmatprep.subr.bf16.mxu0 0
    %5979 = vmatpush1.bf16.msra.mxu0 0
    %5980 = vmatprep.subr.bf16.mxu0 0
    %5981 = vmatpush1.bf16.msra.mxu0 0
    %5982 = vmatprep.subr.bf16.mxu0 0
    %5983 = vmatpush1.bf16.msra.mxu0 0
    %5984 = vmatprep.mubr.bf16.mxu0 0
    %5985 = vmatmul.mubr.bf16.gmra.mrb[0].mxu0 %v5947
    %v5986 = vpop.f32.mrb[0].mxu0
    %v5987 = vadd.f32 0.0, %v5986
    %v5988 = vpop.f32.mrb[0].mxu0
    %v5989 = vpop.f32.mrb[0].mxu0
    %v5990 = vpop.f32.mrb[0].mxu0
    %5991 = vdwg.mxu0
    %v5993 = vsel %vm643, %v5945, 0
    %v5996 = vsel %vm671, %v5841, 0
    %5998 = vmatprep.subr.bf16.mxu0 0
    %5999 = vmatpush1.bf16.msra.mxu0 %v5996
    %6000 = vmatprep.subr.bf16.mxu0 0
    %6001 = vmatpush1.bf16.msra.mxu0 0
    %6002 = vmatprep.subr.bf16.mxu0 0
    %6003 = vmatpush1.bf16.msra.mxu0 0
    %6004 = vmatprep.subr.bf16.mxu0 0
    %6005 = vmatpush1.bf16.msra.mxu0 0
    %6006 = vmatprep.subr.bf16.mxu0 0
    %6007 = vmatpush1.bf16.msra.mxu0 0
    %6008 = vmatprep.subr.bf16.mxu0 0
    %6009 = vmatpush1.bf16.msra.mxu0 0
    %6010 = vmatprep.subr.bf16.mxu0 0
    %6011 = vmatpush1.bf16.msra.mxu0 0
    %6012 = vmatprep.subr.bf16.mxu0 0
    %6013 = vmatpush1.bf16.msra.mxu0 0
    %6014 = vmatprep.subr.bf16.mxu0 0
    %6015 = vmatpush1.bf16.msra.mxu0 0
    %6016 = vmatprep.subr.bf16.mxu0 0
    %6017 = vmatpush1.bf16.msra.mxu0 0
    %6018 = vmatprep.subr.bf16.mxu0 0
    %6019 = vmatpush1.bf16.msra.mxu0 0
    %6020 = vmatprep.subr.bf16.mxu0 0
    %6021 = vmatpush1.bf16.msra.mxu0 0
    %6022 = vmatprep.subr.bf16.mxu0 0
    %6023 = vmatpush1.bf16.msra.mxu0 0
    %6024 = vmatprep.subr.bf16.mxu0 0
    %6025 = vmatpush1.bf16.msra.mxu0 0
    %6026 = vmatprep.subr.bf16.mxu0 0
    %6027 = vmatpush1.bf16.msra.mxu0 0
    %6028 = vmatprep.subr.bf16.mxu0 0
    %6029 = vmatpush1.bf16.msra.mxu0 0
    %6030 = vmatprep.mubr.bf16.mxu0 0
    %6031 = vmatmul.mubr.bf16.gmra.mrb[0].mxu0 %v5993
    %v6032 = vpop.f32.mrb[0].mxu0
    %v6033 = vadd.f32 0.0, %v6032
    %v6034 = vpop.f32.mrb[0].mxu0
    %v6035 = vpop.f32.mrb[0].mxu0
    %v6036 = vpop.f32.mrb[0].mxu0
    %6037 = vdwg.mxu0
    %v6038 = vpack.c.bf16 %v5831, %v5785
    %v6039 = vpack.c.bf16 %v6033, %v5987
    %s6040 = scalar_lea.vmem [#allocation4], 768
    %v6041 = vld [vmem:[%s6040] sm:$0xf]
    %v6042 = vld [vmem:[%s6040 + $0xc] sm:$0xf]
    %v6043 = vld [vmem:[%s6040 + $0x18] sm:$0xf]
    %v6044 = vld [vmem:[%s6040 + $0x24] sm:$0xf]
    %v6045 = vld [vmem:[%s6040 + $0x30] sm:$0xf]
    %v6046 = vld [vmem:[%s6040 + $0x3c] sm:$0xf]
    %v6047 = vld [vmem:[%s6040 + $0x48] sm:$0xf]
    %v6048 = vld [vmem:[%s6040 + $0x54] sm:$0xf]
    %v6049 = vld [vmem:[%s6040 + $0x60] sm:$0xf]
    %v6050 = vld [vmem:[%s6040 + $0x6c] sm:$0xf]
    %v6051 = vld [vmem:[%s6040 + $0x78] sm:$0xf]
    %v6052 = vld [vmem:[%s6040 + $0x84] sm:$0xf]
    %v6053 = vld [vmem:[%s6040 + $0x90] sm:$0xf]
    %v6054 = vld [vmem:[%s6040 + $0x9c] sm:$0xf]
    %v6055 = vld [vmem:[%s6040 + $0xa8] sm:$0xf]
    %v6056 = vld [vmem:[%s6040 + $0xb4] sm:$0xf]
    %v6057 = vld [vmem:[%s6040 + $0xc0] sm:$0xf]
    %v6058 = vld [vmem:[%s6040 + $0xcc] sm:$0xf]
    %v6059 = vld [vmem:[%s6040 + $0xd8] sm:$0xf]
    %v6060 = vld [vmem:[%s6040 + $0xe4] sm:$0xf]
    %v6061 = vld [vmem:[%s6040 + $0xf0] sm:$0xf]
    %v6062 = vld [vmem:[%s6040 + $0xfc] sm:$0xf]
    %v6063 = vld [vmem:[%s6040 + $0x108] sm:$0xf]
    %v6064 = vld [vmem:[%s6040 + $0x114] sm:$0xf]
    %v6065 = vld [vmem:[%s6040 + $0x120] sm:$0xf]
    %v6066 = vld [vmem:[%s6040 + $0x12c] sm:$0xf]
    %v6067 = vld [vmem:[%s6040 + $0x138] sm:$0xf]
    %v6068 = vld [vmem:[%s6040 + $0x144] sm:$0xf]
    %v6069 = vld [vmem:[%s6040 + $0x150] sm:$0xf]
    %v6070 = vld [vmem:[%s6040 + $0x15c] sm:$0xf]
    %v6071 = vld [vmem:[%s6040 + $0x168] sm:$0xf]
    %v6072 = vld [vmem:[%s6040 + $0x174] sm:$0xf]
    %v6073 = vld [vmem:[%s5232 + $0xe] sm:$0x1]
    %v6075 = vlaneseq
    %v6076 = vshrl.u32 %v6075, 7
    %v6077 = vsub.s32 0, %v6076
    %v6078 = vrot.slane %v6073, %v6077
    %v6112 = vunpack.c.l.b16 %v6041
    %v6113 = vunpack.c.l.b16 %v6042
    %v6114 = vunpack.c.l.b16 %v6043
    %v6115 = vunpack.c.l.b16 %v6044
    %v6116 = vunpack.c.l.b16 %v6045
    %v6117 = vunpack.c.l.b16 %v6046
    %v6118 = vunpack.c.l.b16 %v6047
    %v6119 = vunpack.c.l.b16 %v6048
    %v6120 = vunpack.c.l.b16 %v6049
    %v6121 = vunpack.c.l.b16 %v6050
    %v6122 = vunpack.c.l.b16 %v6051
    %v6123 = vunpack.c.l.b16 %v6052
    %v6124 = vunpack.c.l.b16 %v6053
    %v6125 = vunpack.c.l.b16 %v6054
    %v6126 = vunpack.c.l.b16 %v6055
    %v6127 = vunpack.c.l.b16 %v6056
    %v6128 = vunpack.c.l.b16 %v6057
    %v6129 = vunpack.c.l.b16 %v6058
    %v6130 = vunpack.c.l.b16 %v6059
    %v6131 = vunpack.c.l.b16 %v6060
    %v6132 = vunpack.c.l.b16 %v6061
    %v6133 = vunpack.c.l.b16 %v6062
    %v6134 = vunpack.c.l.b16 %v6063
    %v6135 = vunpack.c.l.b16 %v6064
    %v6136 = vunpack.c.l.b16 %v6065
    %v6137 = vunpack.c.l.b16 %v6066
    %v6138 = vunpack.c.l.b16 %v6067
    %v6139 = vunpack.c.l.b16 %v6068
    %v6140 = vunpack.c.l.b16 %v6069
    %v6141 = vunpack.c.l.b16 %v6070
    %v6142 = vunpack.c.l.b16 %v6071
    %v6143 = vunpack.c.l.b16 %v6072
    %v6144 = vpack.c.b16 %v6113, %v6112
    %v6145 = vpack.c.b16 %v6115, %v6114
    %v6146 = vpack.c.b16 %v6117, %v6116
    %v6147 = vpack.c.b16 %v6119, %v6118
    %v6148 = vpack.c.b16 %v6121, %v6120
    %v6149 = vpack.c.b16 %v6123, %v6122
    %v6150 = vpack.c.b16 %v6125, %v6124
    %v6151 = vpack.c.b16 %v6127, %v6126
    %v6152 = vpack.c.b16 %v6129, %v6128
    %v6153 = vpack.c.b16 %v6131, %v6130
    %v6154 = vpack.c.b16 %v6133, %v6132
    %v6155 = vpack.c.b16 %v6135, %v6134
    %v6156 = vpack.c.b16 %v6137, %v6136
    %v6157 = vpack.c.b16 %v6139, %v6138
    %v6158 = vpack.c.b16 %v6141, %v6140
    %v6159 = vpack.c.b16 %v6143, %v6142
    %6176 = vmatprep.subr.bf16.mxu0 0
    %6177 = vmatpush1.bf16.msra.mxu0 %v6144
    %6178 = vmatprep.subr.bf16.mxu0 0
    %6179 = vmatpush1.bf16.msra.mxu0 %v6145
    %6180 = vmatprep.subr.bf16.mxu0 0
    %6181 = vmatpush1.bf16.msra.mxu0 %v6146
    %6182 = vmatprep.subr.bf16.mxu0 0
    %6183 = vmatpush1.bf16.msra.mxu0 %v6147
    %6184 = vmatprep.subr.bf16.mxu0 0
    %6185 = vmatpush1.bf16.msra.mxu0 %v6148
    %6186 = vmatprep.subr.bf16.mxu0 0
    %6187 = vmatpush1.bf16.msra.mxu0 %v6149
    %6188 = vmatprep.subr.bf16.mxu0 0
    %6189 = vmatpush1.bf16.msra.mxu0 %v6150
    %6190 = vmatprep.subr.bf16.mxu0 0
    %6191 = vmatpush1.bf16.msra.mxu0 %v6151
    %6192 = vmatprep.subr.bf16.mxu0 0
    %6193 = vmatpush1.bf16.msra.mxu0 %v6152
    %6194 = vmatprep.subr.bf16.mxu0 0
    %6195 = vmatpush1.bf16.msra.mxu0 %v6153
    %6196 = vmatprep.subr.bf16.mxu0 0
    %6197 = vmatpush1.bf16.msra.mxu0 %v6154
    %6198 = vmatprep.subr.bf16.mxu0 0
    %6199 = vmatpush1.bf16.msra.mxu0 %v6155
    %6200 = vmatprep.subr.bf16.mxu0 0
    %6201 = vmatpush1.bf16.msra.mxu0 %v6156
    %6202 = vmatprep.subr.bf16.mxu0 0
    %6203 = vmatpush1.bf16.msra.mxu0 %v6157
    %6204 = vmatprep.subr.bf16.mxu0 0
    %6205 = vmatpush1.bf16.msra.mxu0 %v6158
    %6206 = vmatprep.subr.bf16.mxu0 0
    %6207 = vmatpush1.bf16.msra.mxu0 %v6159
    %6208 = vmatprep.mubr.bf16.mxu0 %v6039
    %6209 = vmatmul.mubr.bf16.gmra.mrb[0].mxu0 %v6038
    %v6210 = vpop.f32.mrb[0].mxu0
    %v6211 = vadd.f32 %v6078, %v6210
    %v6212 = vpop.f32.mrb[0].mxu0
    %v6213 = vpop.f32.mrb[0].mxu0
    %v6214 = vadd.f32 %v6078, %v6213
    %v6215 = vpop.f32.mrb[0].mxu0
    %6216 = vdwg.mxu0
    %v6217 = vadd.f32 %v5180, %v6211
    %v6218 = vadd.f32 %v5181, %v6214
    %v6219 = vld [vmem:[%s5232 + $0x11] sm:$0x1]
    %v6220 = vld [vmem:[%s5232 + $0x12] sm:$0x1]
    %6221 = vadd.xlane.f32.xlu0 %v6217
    %v6222 = vpop.xlane.xlu0 %6221
    %6223 = vadd.xlane.f32.xlu0 %v6218
    %v6224 = vpop.xlane.xlu0 %6223
    %v6225 = vmul.f32 %v6222, %v1149
    %v6226 = vmul.f32 %v6224, %v1149
    %v6227 = vsub.f32 %v6217, %v6225
    %v6228 = vsub.f32 %v6218, %v6226
    %v6229 = vmul.f32 %v6227, %v6227
    %v6230 = vmul.f32 %v6228, %v6228
    %6231 = vadd.xlane.f32.xlu0 %v6229
    %v6232 = vpop.xlane.xlu0 %6231
    %6233 = vadd.xlane.f32.xlu0 %v6230
    %v6234 = vpop.xlane.xlu0 %6233
    %v6235 = vmul.f32 %v6232, %v1149
    %v6236 = vmul.f32 %v6234, %v1149
    %v6237 = vadd.f32 %v6235, 1e-05
    %v6238 = vadd.f32 %v6236, 1e-05
    %v6239 = vrsqrt.pop %v6237
    %v6240 = vrsqrt.pop %v6238
    %v6241 = vmul.f32 %v6227, %v6239
    %v6242 = vmul.f32 %v6228, %v6240
    %v6244 = vlaneseq
    %v6245 = vshrl.u32 %v6244, 7
    %v6246 = vsub.s32 0, %v6245
    %v6247 = vrot.slane %v6219, %v6246
    %v6249 = vmul.f32 %v6241, %v6247
    %v6250 = vmul.f32 %v6242, %v6247
    %v6252 = vlaneseq
    %v6253 = vshrl.u32 %v6252, 7
    %v6254 = vsub.s32 0, %v6253
    %v6255 = vrot.slane %v6220, %v6254
    %v6257 = vadd.f32 %v6249, %v6255
    %v6258 = vadd.f32 %v6250, %v6255
    %v6259 = vpack.c.bf16 %v6258, %v6257
    %v6260 = vld [vmem:[%s5183 + $0x18] sm:$0xff]
    %v6261 = vld [vmem:[%s5183 + $0x50] sm:$0xff]
    %v6262 = vld [vmem:[%s5183 + $0x88] sm:$0xff]
    %v6263 = vld [vmem:[%s5183 + $0xc0] sm:$0xff]
    %v6264 = vld [vmem:[%s5183 + $0xf8] sm:$0xff]
    %v6265 = vld [vmem:[%s5183 + $0x130] sm:$0xff]
    %v6266 = vld [vmem:[%s5183 + $0x168] sm:$0xff]
    %v6267 = vld [vmem:[%s5183 + $0x1a0] sm:$0xff]
    %v6268 = vld [vmem:[%s5183 + $0x1d8] sm:$0xff]
    %v6269 = vld [vmem:[%s5183 + $0x210] sm:$0xff]
    %v6270 = vld [vmem:[%s5183 + $0x248] sm:$0xff]
    %v6271 = vld [vmem:[%s5183 + $0x280] sm:$0xff]
    %v6272 = vld [vmem:[%s5183 + $0x2b8] sm:$0xff]
    %v6273 = vld [vmem:[%s5183 + $0x2f0] sm:$0xff]
    %v6274 = vld [vmem:[%s5183 + $0x328] sm:$0xff]
    %v6275 = vld [vmem:[%s5183 + $0x360] sm:$0xff]
    %v6276 = vld [vmem:[%s5232 + $0x6] sm:$0x3]
    %v6278 = vlaneseq
    %v6279 = vshrl.u32 %v6278, 7
    %v6280 = vsub.s32 0, %v6279
    %v6281 = vrot.slane %v6276, %v6280
    %v6282 = vlaneseq
    %v6283 = vshrl.u32 %v6282, 7
    %v6284 = vsub.s32 1, %v6283
    %v6285 = vrot.slane %v6276, %v6284
    %v6304 = vunpack.c.l.b16 %v6260
    %v6305 = vunpack.c.h.b16 %v6260
    %v6306 = vunpack.c.l.b16 %v6261
    %v6307 = vunpack.c.h.b16 %v6261
    %v6308 = vunpack.c.l.b16 %v6262
    %v6309 = vunpack.c.h.b16 %v6262
    %v6310 = vunpack.c.l.b16 %v6263
    %v6311 = vunpack.c.h.b16 %v6263
    %v6312 = vunpack.c.l.b16 %v6264
    %v6313 = vunpack.c.h.b16 %v6264
    %v6314 = vunpack.c.l.b16 %v6265
    %v6315 = vunpack.c.h.b16 %v6265
    %v6316 = vunpack.c.l.b16 %v6266
    %v6317 = vunpack.c.h.b16 %v6266
    %v6318 = vunpack.c.l.b16 %v6267
    %v6319 = vunpack.c.h.b16 %v6267
    %v6320 = vunpack.c.l.b16 %v6268
    %v6321 = vunpack.c.h.b16 %v6268
    %v6322 = vunpack.c.l.b16 %v6269
    %v6323 = vunpack.c.h.b16 %v6269
    %v6324 = vunpack.c.l.b16 %v6270
    %v6325 = vunpack.c.h.b16 %v6270
    %v6326 = vunpack.c.l.b16 %v6271
    %v6327 = vunpack.c.h.b16 %v6271
    %v6328 = vunpack.c.l.b16 %v6272
    %v6329 = vunpack.c.h.b16 %v6272
    %v6330 = vunpack.c.l.b16 %v6273
    %v6331 = vunpack.c.h.b16 %v6273
    %v6332 = vunpack.c.l.b16 %v6274
    %v6333 = vunpack.c.h.b16 %v6274
    %v6334 = vunpack.c.l.b16 %v6275
    %v6335 = vunpack.c.h.b16 %v6275
    %v6336 = vpack.c.b16 %v6306, %v6304
    %v6337 = vpack.c.b16 %v6307, %v6305
    %v6338 = vpack.c.b16 %v6310, %v6308
    %v6339 = vpack.c.b16 %v6311, %v6309
    %v6340 = vpack.c.b16 %v6314, %v6312
    %v6341 = vpack.c.b16 %v6315, %v6313
    %v6342 = vpack.c.b16 %v6318, %v6316
    %v6343 = vpack.c.b16 %v6319, %v6317
    %v6344 = vpack.c.b16 %v6322, %v6320
    %v6345 = vpack.c.b16 %v6323, %v6321
    %v6346 = vpack.c.b16 %v6326, %v6324
    %v6347 = vpack.c.b16 %v6327, %v6325
    %v6348 = vpack.c.b16 %v6330, %v6328
    %v6349 = vpack.c.b16 %v6331, %v6329
    %v6350 = vpack.c.b16 %v6334, %v6332
    %v6351 = vpack.c.b16 %v6335, %v6333
    %6368 = vmatprep.subr.bf16.mxu0 %v6337
    %6369 = vmatpush1.bf16.msra.mxu0 %v6336
    %6370 = vmatprep.subr.bf16.mxu0 %v6339
    %6371 = vmatpush1.bf16.msra.mxu0 %v6338
    %6372 = vmatprep.subr.bf16.mxu0 %v6341
    %6373 = vmatpush1.bf16.msra.mxu0 %v6340
    %6374 = vmatprep.subr.bf16.mxu0 %v6343
    %6375 = vmatpush1.bf16.msra.mxu0 %v6342
    %6376 = vmatprep.subr.bf16.mxu0 %v6345
    %6377 = vmatpush1.bf16.msra.mxu0 %v6344
    %6378 = vmatprep.subr.bf16.mxu0 %v6347
    %6379 = vmatpush1.bf16.msra.mxu0 %v6346
    %6380 = vmatprep.subr.bf16.mxu0 %v6349
    %6381 = vmatpush1.bf16.msra.mxu0 %v6348
    %6382 = vmatprep.subr.bf16.mxu0 %v6351
    %6383 = vmatpush1.bf16.msra.mxu0 %v6350
    %6384 = vmatprep.subr.bf16.mxu0 0
    %6385 = vmatpush1.bf16.msra.mxu0 0
    %6386 = vmatprep.subr.bf16.mxu0 0
    %6387 = vmatpush1.bf16.msra.mxu0 0
    %6388 = vmatprep.subr.bf16.mxu0 0
    %6389 = vmatpush1.bf16.msra.mxu0 0
    %6390 = vmatprep.subr.bf16.mxu0 0
    %6391 = vmatpush1.bf16.msra.mxu0 0
    %6392 = vmatprep.subr.bf16.mxu0 0
    %6393 = vmatpush1.bf16.msra.mxu0 0
    %6394 = vmatprep.subr.bf16.mxu0 0
    %6395 = vmatpush1.bf16.msra.mxu0 0
    %6396 = vmatprep.subr.bf16.mxu0 0
    %6397 = vmatpush1.bf16.msra.mxu0 0
    %6398 = vmatprep.subr.bf16.mxu0 0
    %6399 = vmatpush1.bf16.msra.mxu0 0
    %6400 = vmatprep.mubr.bf16.mxu0 0
    %6401 = vmatmul.mubr.bf16.gmra.mrb[0].mxu0 %v6259
    %v6402 = vpop.f32.mrb[0].mxu0
    %v6403 = vadd.f32 %v6281, %v6402
    %v6404 = vpop.f32.mrb[0].mxu0
    %v6405 = vadd.f32 %v6285, %v6404
    %v6406 = vpop.f32.mrb[0].mxu0
    %v6407 = vadd.f32 %v6281, %v6406
    %v6408 = vpop.f32.mrb[0].mxu0
    %v6409 = vadd.f32 %v6285, %v6408
    %6410 = vdwg.mxu0
    %v6411 = vld [vmem:[%s5183 + $0x20] sm:$0xff]
    %v6412 = vld [vmem:[%s5183 + $0x28] sm:$0xff]
    %v6413 = vld [vmem:[%s5183 + $0x58] sm:$0xff]
    %v6414 = vld [vmem:[%s5183 + $0x60] sm:$0xff]
    %v6415 = vld [vmem:[%s5183 + $0x90] sm:$0xff]
    %v6416 = vld [vmem:[%s5183 + $0x98] sm:$0xff]
    %v6417 = vld [vmem:[%s5183 + $0xc8] sm:$0xff]
    %v6418 = vld [vmem:[%s5183 + $0xd0] sm:$0xff]
    %v6419 = vld [vmem:[%s5183 + $0x100] sm:$0xff]
    %v6420 = vld [vmem:[%s5183 + $0x108] sm:$0xff]
    %v6421 = vld [vmem:[%s5183 + $0x138] sm:$0xff]
    %v6422 = vld [vmem:[%s5183 + $0x140] sm:$0xff]
    %v6423 = vld [vmem:[%s5183 + $0x170] sm:$0xff]
    %v6424 = vld [vmem:[%s5183 + $0x178] sm:$0xff]
    %v6425 = vld [vmem:[%s5183 + $0x1a8] sm:$0xff]
    %v6426 = vld [vmem:[%s5183 + $0x1b0] sm:$0xff]
    %v6427 = vld [vmem:[%s5183 + $0x1e0] sm:$0xff]
    %v6428 = vld [vmem:[%s5183 + $0x1e8] sm:$0xff]
    %v6429 = vld [vmem:[%s5183 + $0x218] sm:$0xff]
    %v6430 = vld [vmem:[%s5183 + $0x220] sm:$0xff]
    %v6431 = vld [vmem:[%s5183 + $0x250] sm:$0xff]
    %v6432 = vld [vmem:[%s5183 + $0x258] sm:$0xff]
    %v6433 = vld [vmem:[%s5183 + $0x288] sm:$0xff]
    %v6434 = vld [vmem:[%s5183 + $0x290] sm:$0xff]
    %v6435 = vld [vmem:[%s5183 + $0x2c0] sm:$0xff]
    %v6436 = vld [vmem:[%s5183 + $0x2c8] sm:$0xff]
    %v6437 = vld [vmem:[%s5183 + $0x2f8] sm:$0xff]
    %v6438 = vld [vmem:[%s5183 + $0x300] sm:$0xff]
    %v6439 = vld [vmem:[%s5183 + $0x330] sm:$0xff]
    %v6440 = vld [vmem:[%s5183 + $0x338] sm:$0xff]
    %v6441 = vld [vmem:[%s5183 + $0x368] sm:$0xff]
    %v6442 = vld [vmem:[%s5183 + $0x370] sm:$0xff]
    %v6443 = vld [vmem:[%s5232 + $0x8] sm:$0xf]
    %v6445 = vlaneseq
    %v6446 = vshrl.u32 %v6445, 7
    %v6447 = vsub.s32 0, %v6446
    %v6448 = vrot.slane %v6443, %v6447
    %v6449 = vlaneseq
    %v6450 = vshrl.u32 %v6449, 7
    %v6451 = vsub.s32 1, %v6450
    %v6452 = vrot.slane %v6443, %v6451
    %v6453 = vlaneseq
    %v6454 = vshrl.u32 %v6453, 7
    %v6455 = vsub.s32 2, %v6454
    %v6456 = vrot.slane %v6443, %v6455
    %v6457 = vlaneseq
    %v6458 = vshrl.u32 %v6457, 7
    %v6459 = vsub.s32 3, %v6458
    %v6460 = vrot.slane %v6443, %v6459
    %v6497 = vunpack.c.l.b16 %v6411
    %v6498 = vunpack.c.h.b16 %v6411
    %v6499 = vunpack.c.l.b16 %v6412
    %v6500 = vunpack.c.h.b16 %v6412
    %v6501 = vunpack.c.l.b16 %v6413
    %v6502 = vunpack.c.h.b16 %v6413
    %v6503 = vunpack.c.l.b16 %v6414
    %v6504 = vunpack.c.h.b16 %v6414
    %v6505 = vunpack.c.l.b16 %v6415
    %v6506 = vunpack.c.h.b16 %v6415
    %v6507 = vunpack.c.l.b16 %v6416
    %v6508 = vunpack.c.h.b16 %v6416
    %v6509 = vunpack.c.l.b16 %v6417
    %v6510 = vunpack.c.h.b16 %v6417
    %v6511 = vunpack.c.l.b16 %v6418
    %v6512 = vunpack.c.h.b16 %v6418
    %v6513 = vunpack.c.l.b16 %v6419
    %v6514 = vunpack.c.h.b16 %v6419
    %v6515 = vunpack.c.l.b16 %v6420
    %v6516 = vunpack.c.h.b16 %v6420
    %v6517 = vunpack.c.l.b16 %v6421
    %v6518 = vunpack.c.h.b16 %v6421
    %v6519 = vunpack.c.l.b16 %v6422
    %v6520 = vunpack.c.h.b16 %v6422
    %v6521 = vunpack.c.l.b16 %v6423
    %v6522 = vunpack.c.h.b16 %v6423
    %v6523 = vunpack.c.l.b16 %v6424
    %v6524 = vunpack.c.h.b16 %v6424
    %v6525 = vunpack.c.l.b16 %v6425
    %v6526 = vunpack.c.h.b16 %v6425
    %v6527 = vunpack.c.l.b16 %v6426
    %v6528 = vunpack.c.h.b16 %v6426
    %v6529 = vunpack.c.l.b16 %v6427
    %v6530 = vunpack.c.h.b16 %v6427
    %v6531 = vunpack.c.l.b16 %v6428
    %v6532 = vunpack.c.h.b16 %v6428
    %v6533 = vunpack.c.l.b16 %v6429
    %v6534 = vunpack.c.h.b16 %v6429
    %v6535 = vunpack.c.l.b16 %v6430
    %v6536 = vunpack.c.h.b16 %v6430
    %v6537 = vunpack.c.l.b16 %v6431
    %v6538 = vunpack.c.h.b16 %v6431
    %v6539 = vunpack.c.l.b16 %v6432
    %v6540 = vunpack.c.h.b16 %v6432
    %v6541 = vunpack.c.l.b16 %v6433
    %v6542 = vunpack.c.h.b16 %v6433
    %v6543 = vunpack.c.l.b16 %v6434
    %v6544 = vunpack.c.h.b16 %v6434
    %v6545 = vunpack.c.l.b16 %v6435
    %v6546 = vunpack.c.h.b16 %v6435
    %v6547 = vunpack.c.l.b16 %v6436
    %v6548 = vunpack.c.h.b16 %v6436
    %v6549 = vunpack.c.l.b16 %v6437
    %v6550 = vunpack.c.h.b16 %v6437
    %v6551 = vunpack.c.l.b16 %v6438
    %v6552 = vunpack.c.h.b16 %v6438
    %v6553 = vunpack.c.l.b16 %v6439
    %v6554 = vunpack.c.h.b16 %v6439
    %v6555 = vunpack.c.l.b16 %v6440
    %v6556 = vunpack.c.h.b16 %v6440
    %v6557 = vunpack.c.l.b16 %v6441
    %v6558 = vunpack.c.h.b16 %v6441
    %v6559 = vunpack.c.l.b16 %v6442
    %v6560 = vunpack.c.h.b16 %v6442
    %v6561 = vpack.c.b16 %v6501, %v6497
    %v6562 = vpack.c.b16 %v6502, %v6498
    %v6563 = vpack.c.b16 %v6503, %v6499
    %v6564 = vpack.c.b16 %v6504, %v6500
    %v6565 = vpack.c.b16 %v6509, %v6505
    %v6566 = vpack.c.b16 %v6510, %v6506
    %v6567 = vpack.c.b16 %v6511, %v6507
    %v6568 = vpack.c.b16 %v6512, %v6508
    %v6569 = vpack.c.b16 %v6517, %v6513
    %v6570 = vpack.c.b16 %v6518, %v6514
    %v6571 = vpack.c.b16 %v6519, %v6515
    %v6572 = vpack.c.b16 %v6520, %v6516
    %v6573 = vpack.c.b16 %v6525, %v6521
    %v6574 = vpack.c.b16 %v6526, %v6522
    %v6575 = vpack.c.b16 %v6527, %v6523
    %v6576 = vpack.c.b16 %v6528, %v6524
    %v6577 = vpack.c.b16 %v6533, %v6529
    %v6578 = vpack.c.b16 %v6534, %v6530
    %v6579 = vpack.c.b16 %v6535, %v6531
    %v6580 = vpack.c.b16 %v6536, %v6532
    %v6581 = vpack.c.b16 %v6541, %v6537
    %v6582 = vpack.c.b16 %v6542, %v6538
    %v6583 = vpack.c.b16 %v6543, %v6539
    %v6584 = vpack.c.b16 %v6544, %v6540
    %v6585 = vpack.c.b16 %v6549, %v6545
    %v6586 = vpack.c.b16 %v6550, %v6546
    %v6587 = vpack.c.b16 %v6551, %v6547
    %v6588 = vpack.c.b16 %v6552, %v6548
    %v6589 = vpack.c.b16 %v6557, %v6553
    %v6590 = vpack.c.b16 %v6558, %v6554
    %v6591 = vpack.c.b16 %v6559, %v6555
    %v6592 = vpack.c.b16 %v6560, %v6556
    %6625 = vmatprep.subr.bf16.mxu0 %v6562
    %6626 = vmatpush1.bf16.msra.mxu0 %v6561
    %6627 = vmatprep.subr.bf16.mxu0 %v6566
    %6628 = vmatpush1.bf16.msra.mxu0 %v6565
    %6629 = vmatprep.subr.bf16.mxu0 %v6570
    %6630 = vmatpush1.bf16.msra.mxu0 %v6569
    %6631 = vmatprep.subr.bf16.mxu0 %v6574
    %6632 = vmatpush1.bf16.msra.mxu0 %v6573
    %6633 = vmatprep.subr.bf16.mxu0 %v6578
    %6634 = vmatpush1.bf16.msra.mxu0 %v6577
    %6635 = vmatprep.subr.bf16.mxu0 %v6582
    %6636 = vmatpush1.bf16.msra.mxu0 %v6581
    %6637 = vmatprep.subr.bf16.mxu0 %v6586
    %6638 = vmatpush1.bf16.msra.mxu0 %v6585
    %6639 = vmatprep.subr.bf16.mxu0 %v6590
    %6640 = vmatpush1.bf16.msra.mxu0 %v6589
    %6641 = vmatprep.subr.bf16.mxu0 0
    %6642 = vmatpush1.bf16.msra.mxu0 0
    %6643 = vmatprep.subr.bf16.mxu0 0
    %6644 = vmatpush1.bf16.msra.mxu0 0
    %6645 = vmatprep.subr.bf16.mxu0 0
    %6646 = vmatpush1.bf16.msra.mxu0 0
    %6647 = vmatprep.subr.bf16.mxu0 0
    %6648 = vmatpush1.bf16.msra.mxu0 0
    %6649 = vmatprep.subr.bf16.mxu0 0
    %6650 = vmatpush1.bf16.msra.mxu0 0
    %6651 = vmatprep.subr.bf16.mxu0 0
    %6652 = vmatpush1.bf16.msra.mxu0 0
    %6653 = vmatprep.subr.bf16.mxu0 0
    %6654 = vmatpush1.bf16.msra.mxu0 0
    %6655 = vmatprep.subr.bf16.mxu0 0
    %6656 = vmatpush1.bf16.msra.mxu0 0
    %6657 = vmatprep.mubr.bf16.mxu0 0
    %6658 = vmatmul.mubr.bf16.gmra.mrb[0].mxu0 %v99
    %v6659 = vpop.f32.mrb[0].mxu0
    %v6660 = vadd.f32 %v6448, %v6659
    %v6661 = vpop.f32.mrb[0].mxu0
    %v6662 = vadd.f32 %v6452, %v6661
    %v6663 = vpop.f32.mrb[0].mxu0
    %v6664 = vadd.f32 %v6448, %v6663
    %v6665 = vpop.f32.mrb[0].mxu0
    %v6666 = vadd.f32 %v6452, %v6665
    %6667 = vmatprep.mubr.bf16.mxu0 0
    %6668 = vmatmul.mubr.bf16.gmra.mrb[0].mxu0 %v100
    %v6669 = vpop.f32.mrb[0].mxu0
    %v6670 = vadd.f32 %v6448, %v6669
    %v6671 = vpop.f32.mrb[0].mxu0
    %v6672 = vadd.f32 %v6452, %v6671
    %v6673 = vpop.f32.mrb[0].mxu0
    %v6674 = vadd.f32 %v6448, %v6673
    %v6675 = vpop.f32.mrb[0].mxu0
    %v6676 = vadd.f32 %v6452, %v6675
    %6677 = vdwg.mxu0
    %6678 = vmatprep.subr.bf16.mxu0 %v6564
    %6679 = vmatpush1.bf16.msra.mxu0 %v6563
    %6680 = vmatprep.subr.bf16.mxu0 %v6568
    %6681 = vmatpush1.bf16.msra.mxu0 %v6567
    %6682 = vmatprep.subr.bf16.mxu0 %v6572
    %6683 = vmatpush1.bf16.msra.mxu0 %v6571
    %6684 = vmatprep.subr.bf16.mxu0 %v6576
    %6685 = vmatpush1.bf16.msra.mxu0 %v6575
    %6686 = vmatprep.subr.bf16.mxu0 %v6580
    %6687 = vmatpush1.bf16.msra.mxu0 %v6579
    %6688 = vmatprep.subr.bf16.mxu0 %v6584
    %6689 = vmatpush1.bf16.msra.mxu0 %v6583
    %6690 = vmatprep.subr.bf16.mxu0 %v6588
    %6691 = vmatpush1.bf16.msra.mxu0 %v6587
    %6692 = vmatprep.subr.bf16.mxu0 %v6592
    %6693 = vmatpush1.bf16.msra.mxu0 %v6591
    %6694 = vmatprep.subr.bf16.mxu0 0
    %6695 = vmatpush1.bf16.msra.mxu0 0
    %6696 = vmatprep.subr.bf16.mxu0 0
    %6697 = vmatpush1.bf16.msra.mxu0 0
    %6698 = vmatprep.subr.bf16.mxu0 0
    %6699 = vmatpush1.bf16.msra.mxu0 0
    %6700 = vmatprep.subr.bf16.mxu0 0
    %6701 = vmatpush1.bf16.msra.mxu0 0
    %6702 = vmatprep.subr.bf16.mxu0 0
    %6703 = vmatpush1.bf16.msra.mxu0 0
    %6704 = vmatprep.subr.bf16.mxu0 0
    %6705 = vmatpush1.bf16.msra.mxu0 0
    %6706 = vmatprep.subr.bf16.mxu0 0
    %6707 = vmatpush1.bf16.msra.mxu0 0
    %6708 = vmatprep.subr.bf16.mxu0 0
    %6709 = vmatpush1.bf16.msra.mxu0 0
    %6710 = vmatprep.mubr.bf16.mxu0 0
    %6711 = vmatmul.mubr.bf16.gmra.mrb[0].mxu0 %v99
    %v6712 = vpop.f32.mrb[0].mxu0
    %v6713 = vadd.f32 %v6456, %v6712
    %v6714 = vpop.f32.mrb[0].mxu0
    %v6715 = vadd.f32 %v6460, %v6714
    %v6716 = vpop.f32.mrb[0].mxu0
    %v6717 = vadd.f32 %v6456, %v6716
    %v6718 = vpop.f32.mrb[0].mxu0
    %v6719 = vadd.f32 %v6460, %v6718
    %6720 = vmatprep.mubr.bf16.mxu0 0
    %6721 = vmatmul.mubr.bf16.gmra.mrb[0].mxu0 %v100
    %v6722 = vpop.f32.mrb[0].mxu0
    %v6723 = vadd.f32 %v6456, %v6722
    %v6724 = vpop.f32.mrb[0].mxu0
    %v6725 = vadd.f32 %v6460, %v6724
    %v6726 = vpop.f32.mrb[0].mxu0
    %v6727 = vadd.f32 %v6456, %v6726
    %v6728 = vpop.f32.mrb[0].mxu0
    %v6729 = vadd.f32 %v6460, %v6728
    %6730 = vdwg.mxu0
    %v6731 = vpack.c.bf16 %v6403, %v6403
    %v6732 = vpack.c.bf16 %v6407, %v6407
    %v6733 = vpack.c.bf16 %v6664, %v6660
    %v6734 = vpack.c.bf16 %v6674, %v6670
    %v6735 = vpack.c.bf16 %v6717, %v6713
    %v6736 = vpack.c.bf16 %v6727, %v6723
    %6737 = vmatprep.subr.bf16.mxu0 0
    %6738 = vmatpush1.bf16.xpose.msra.mxu0 %v6733
    %6739 = vmatprep.subr.bf16.mxu0 0
    %6740 = vmatpush1.bf16.xpose.msra.mxu0 0
    %6741 = vmatprep.subr.bf16.mxu0 0
    %6742 = vmatpush1.bf16.xpose.msra.mxu0 0
    %6743 = vmatprep.subr.bf16.mxu0 0
    %6744 = vmatpush1.bf16.xpose.msra.mxu0 0
    %6745 = vmatprep.subr.bf16.mxu0 0
    %6746 = vmatpush1.bf16.xpose.msra.mxu0 0
    %6747 = vmatprep.subr.bf16.mxu0 0
    %6748 = vmatpush1.bf16.xpose.msra.mxu0 0
    %6749 = vmatprep.subr.bf16.mxu0 0
    %6750 = vmatpush1.bf16.xpose.msra.mxu0 0
    %6751 = vmatprep.subr.bf16.mxu0 0
    %6752 = vmatpush1.bf16.xpose.msra.mxu0 0
    %6753 = vmatprep.subr.bf16.mxu0 0
    %6754 = vmatpush1.bf16.xpose.msra.mxu0 0
    %6755 = vmatprep.subr.bf16.mxu0 0
    %6756 = vmatpush1.bf16.xpose.msra.mxu0 0
    %6757 = vmatprep.subr.bf16.mxu0 0
    %6758 = vmatpush1.bf16.xpose.msra.mxu0 0
    %6759 = vmatprep.subr.bf16.mxu0 0
    %6760 = vmatpush1.bf16.xpose.msra.mxu0 0
    %6761 = vmatprep.subr.bf16.mxu0 0
    %6762 = vmatpush1.bf16.xpose.msra.mxu0 0
    %6763 = vmatprep.subr.bf16.mxu0 0
    %6764 = vmatpush1.bf16.xpose.msra.mxu0 0
    %6765 = vmatprep.subr.bf16.mxu0 0
    %6766 = vmatpush1.bf16.xpose.msra.mxu0 0
    %6767 = vmatprep.subr.bf16.mxu0 0
    %6768 = vmatpush1.bf16.xpose.msra.mxu0 0
    %6769 = vmatprep.mubr.bf16.mxu0 0
    %6770 = vmatmul.mubr.bf16.gmra.mrb[0].mxu0 %v6731
    %v6771 = vpop.f32.mrb[0].mxu0
    %v6772 = vadd.f32 0.0, %v6771
    %v6773 = vpop.f32.mrb[0].mxu0
    %v6774 = vpop.f32.mrb[0].mxu0
    %v6775 = vpop.f32.mrb[0].mxu0
    %6776 = vdwg.mxu0
    %6777 = vmatprep.subr.bf16.mxu0 0
    %6778 = vmatpush1.bf16.xpose.msra.mxu0 %v6734
    %6779 = vmatprep.subr.bf16.mxu0 0
    %6780 = vmatpush1.bf16.xpose.msra.mxu0 0
    %6781 = vmatprep.subr.bf16.mxu0 0
    %6782 = vmatpush1.bf16.xpose.msra.mxu0 0
    %6783 = vmatprep.subr.bf16.mxu0 0
    %6784 = vmatpush1.bf16.xpose.msra.mxu0 0
    %6785 = vmatprep.subr.bf16.mxu0 0
    %6786 = vmatpush1.bf16.xpose.msra.mxu0 0
    %6787 = vmatprep.subr.bf16.mxu0 0
    %6788 = vmatpush1.bf16.xpose.msra.mxu0 0
    %6789 = vmatprep.subr.bf16.mxu0 0
    %6790 = vmatpush1.bf16.xpose.msra.mxu0 0
    %6791 = vmatprep.subr.bf16.mxu0 0
    %6792 = vmatpush1.bf16.xpose.msra.mxu0 0
    %6793 = vmatprep.subr.bf16.mxu0 0
    %6794 = vmatpush1.bf16.xpose.msra.mxu0 0
    %6795 = vmatprep.subr.bf16.mxu0 0
    %6796 = vmatpush1.bf16.xpose.msra.mxu0 0
    %6797 = vmatprep.subr.bf16.mxu0 0
    %6798 = vmatpush1.bf16.xpose.msra.mxu0 0
    %6799 = vmatprep.subr.bf16.mxu0 0
    %6800 = vmatpush1.bf16.xpose.msra.mxu0 0
    %6801 = vmatprep.subr.bf16.mxu0 0
    %6802 = vmatpush1.bf16.xpose.msra.mxu0 0
    %6803 = vmatprep.subr.bf16.mxu0 0
    %6804 = vmatpush1.bf16.xpose.msra.mxu0 0
    %6805 = vmatprep.subr.bf16.mxu0 0
    %6806 = vmatpush1.bf16.xpose.msra.mxu0 0
    %6807 = vmatprep.subr.bf16.mxu0 0
    %6808 = vmatpush1.bf16.xpose.msra.mxu0 0
    %6809 = vmatprep.mubr.bf16.mxu0 0
    %6810 = vmatmul.mubr.bf16.gmra.mrb[0].mxu0 %v6732
    %v6811 = vpop.f32.mrb[0].mxu0
    %v6812 = vadd.f32 0.0, %v6811
    %v6813 = vpop.f32.mrb[0].mxu0
    %v6814 = vpop.f32.mrb[0].mxu0
    %v6815 = vpop.f32.mrb[0].mxu0
    %6816 = vdwg.mxu0
    %v6817 = vsel %vm1742, %v6772, -inf
    %6818 = vmax.xlane.f32.xlu0 %v6817
    %v6819 = vpop.xlane.xlu0 %6818
    %v6820 = vsel %vm1742, %v6812, -inf
    %6821 = vmax.xlane.f32.xlu0 %v6820
    %v6822 = vpop.xlane.xlu0 %6821
    %v6823 = vsub.f32 %v6772, %v6819
    %v6824 = vsub.f32 %v6812, %v6822
    %v6825 = vmul.f32 %v6823, 1.442695
    %v6826 = vpow.pop %v6825
    %v6827 = vmul.f32 %v6824, 1.442695
    %v6828 = vpow.pop %v6827
    %v6829 = vsel %vm1742, %v6826, 0.0
    %6830 = vadd.xlane.f32.xlu0 %v6829
    %v6831 = vpop.xlane.xlu0 %6830
    %v6832 = vsel %vm1742, %v6828, 0.0
    %6833 = vadd.xlane.f32.xlu0 %v6832
    %v6834 = vpop.xlane.xlu0 %6833
    %v6835 = vrcp.pop %v6831
    %v6836 = vrcp.pop %v6834
    %v6837 = vmul.f32 %v6826, %v6835
    %v6838 = vmul.f32 %v6828, %v6836
    %v6839 = vpack.c.bf16 %v6837, %v6837
    %v6840 = vpack.c.bf16 %v6838, %v6838
    %v6842 = vsel %vm1742, %v6839, 0
    %6844 = vmatprep.subr.bf16.mxu0 0
    %6845 = vmatpush1.bf16.msra.mxu0 %v6735
    %6846 = vmatprep.subr.bf16.mxu0 0
    %6847 = vmatpush1.bf16.msra.mxu0 0
    %6848 = vmatprep.subr.bf16.mxu0 0
    %6849 = vmatpush1.bf16.msra.mxu0 0
    %6850 = vmatprep.subr.bf16.mxu0 0
    %6851 = vmatpush1.bf16.msra.mxu0 0
    %6852 = vmatprep.subr.bf16.mxu0 0
    %6853 = vmatpush1.bf16.msra.mxu0 0
    %6854 = vmatprep.subr.bf16.mxu0 0
    %6855 = vmatpush1.bf16.msra.mxu0 0
    %6856 = vmatprep.subr.bf16.mxu0 0
    %6857 = vmatpush1.bf16.msra.mxu0 0
    %6858 = vmatprep.subr.bf16.mxu0 0
    %6859 = vmatpush1.bf16.msra.mxu0 0
    %6860 = vmatprep.subr.bf16.mxu0 0
    %6861 = vmatpush1.bf16.msra.mxu0 0
    %6862 = vmatprep.subr.bf16.mxu0 0
    %6863 = vmatpush1.bf16.msra.mxu0 0
    %6864 = vmatprep.subr.bf16.mxu0 0
    %6865 = vmatpush1.bf16.msra.mxu0 0
    %6866 = vmatprep.subr.bf16.mxu0 0
    %6867 = vmatpush1.bf16.msra.mxu0 0
    %6868 = vmatprep.subr.bf16.mxu0 0
    %6869 = vmatpush1.bf16.msra.mxu0 0
    %6870 = vmatprep.subr.bf16.mxu0 0
    %6871 = vmatpush1.bf16.msra.mxu0 0
    %6872 = vmatprep.subr.bf16.mxu0 0
    %6873 = vmatpush1.bf16.msra.mxu0 0
    %6874 = vmatprep.subr.bf16.mxu0 0
    %6875 = vmatpush1.bf16.msra.mxu0 0
    %6876 = vmatprep.mubr.bf16.mxu0 0
    %6877 = vmatmul.mubr.bf16.gmra.mrb[0].mxu0 %v6842
    %v6878 = vpop.f32.mrb[0].mxu0
    %v6879 = vadd.f32 0.0, %v6878
    %v6880 = vpop.f32.mrb[0].mxu0
    %v6881 = vpop.f32.mrb[0].mxu0
    %v6882 = vpop.f32.mrb[0].mxu0
    %6883 = vdwg.mxu0
    %v6885 = vsel %vm1742, %v6840, 0
    %6887 = vmatprep.subr.bf16.mxu0 0
    %6888 = vmatpush1.bf16.msra.mxu0 %v6736
    %6889 = vmatprep.subr.bf16.mxu0 0
    %6890 = vmatpush1.bf16.msra.mxu0 0
    %6891 = vmatprep.subr.bf16.mxu0 0
    %6892 = vmatpush1.bf16.msra.mxu0 0
    %6893 = vmatprep.subr.bf16.mxu0 0
    %6894 = vmatpush1.bf16.msra.mxu0 0
    %6895 = vmatprep.subr.bf16.mxu0 0
    %6896 = vmatpush1.bf16.msra.mxu0 0
    %6897 = vmatprep.subr.bf16.mxu0 0
    %6898 = vmatpush1.bf16.msra.mxu0 0
    %6899 = vmatprep.subr.bf16.mxu0 0
    %6900 = vmatpush1.bf16.msra.mxu0 0
    %6901 = vmatprep.subr.bf16.mxu0 0
    %6902 = vmatpush1.bf16.msra.mxu0 0
    %6903 = vmatprep.subr.bf16.mxu0 0
    %6904 = vmatpush1.bf16.msra.mxu0 0
    %6905 = vmatprep.subr.bf16.mxu0 0
    %6906 = vmatpush1.bf16.msra.mxu0 0
    %6907 = vmatprep.subr.bf16.mxu0 0
    %6908 = vmatpush1.bf16.msra.mxu0 0
    %6909 = vmatprep.subr.bf16.mxu0 0
    %6910 = vmatpush1.bf16.msra.mxu0 0
    %6911 = vmatprep.subr.bf16.mxu0 0
    %6912 = vmatpush1.bf16.msra.mxu0 0
    %6913 = vmatprep.subr.bf16.mxu0 0
    %6914 = vmatpush1.bf16.msra.mxu0 0
    %6915 = vmatprep.subr.bf16.mxu0 0
    %6916 = vmatpush1.bf16.msra.mxu0 0
    %6917 = vmatprep.subr.bf16.mxu0 0
    %6918 = vmatpush1.bf16.msra.mxu0 0
    %6919 = vmatprep.mubr.bf16.mxu0 0
    %6920 = vmatmul.mubr.bf16.gmra.mrb[0].mxu0 %v6885
    %v6921 = vpop.f32.mrb[0].mxu0
    %v6922 = vadd.f32 0.0, %v6921
    %v6923 = vpop.f32.mrb[0].mxu0
    %v6924 = vpop.f32.mrb[0].mxu0
    %v6925 = vpop.f32.mrb[0].mxu0
    %6926 = vdwg.mxu0
    %v6927 = vpack.c.bf16 %v6405, %v6405
    %v6928 = vpack.c.bf16 %v6409, %v6409
    %v6929 = vpack.c.bf16 %v6666, %v6662
    %v6930 = vpack.c.bf16 %v6676, %v6672
    %v6931 = vpack.c.bf16 %v6719, %v6715
    %v6932 = vpack.c.bf16 %v6729, %v6725
    %6933 = vmatprep.subr.bf16.mxu0 0
    %6934 = vmatpush1.bf16.xpose.msra.mxu0 %v6929
    %6935 = vmatprep.subr.bf16.mxu0 0
    %6936 = vmatpush1.bf16.xpose.msra.mxu0 0
    %6937 = vmatprep.subr.bf16.mxu0 0
    %6938 = vmatpush1.bf16.xpose.msra.mxu0 0
    %6939 = vmatprep.subr.bf16.mxu0 0
    %6940 = vmatpush1.bf16.xpose.msra.mxu0 0
    %6941 = vmatprep.subr.bf16.mxu0 0
    %6942 = vmatpush1.bf16.xpose.msra.mxu0 0
    %6943 = vmatprep.subr.bf16.mxu0 0
    %6944 = vmatpush1.bf16.xpose.msra.mxu0 0
    %6945 = vmatprep.subr.bf16.mxu0 0
    %6946 = vmatpush1.bf16.xpose.msra.mxu0 0
    %6947 = vmatprep.subr.bf16.mxu0 0
    %6948 = vmatpush1.bf16.xpose.msra.mxu0 0
    %6949 = vmatprep.subr.bf16.mxu0 0
    %6950 = vmatpush1.bf16.xpose.msra.mxu0 0
    %6951 = vmatprep.subr.bf16.mxu0 0
    %6952 = vmatpush1.bf16.xpose.msra.mxu0 0
    %6953 = vmatprep.subr.bf16.mxu0 0
    %6954 = vmatpush1.bf16.xpose.msra.mxu0 0
    %6955 = vmatprep.subr.bf16.mxu0 0
    %6956 = vmatpush1.bf16.xpose.msra.mxu0 0
    %6957 = vmatprep.subr.bf16.mxu0 0
    %6958 = vmatpush1.bf16.xpose.msra.mxu0 0
    %6959 = vmatprep.subr.bf16.mxu0 0
    %6960 = vmatpush1.bf16.xpose.msra.mxu0 0
    %6961 = vmatprep.subr.bf16.mxu0 0
    %6962 = vmatpush1.bf16.xpose.msra.mxu0 0
    %6963 = vmatprep.subr.bf16.mxu0 0
    %6964 = vmatpush1.bf16.xpose.msra.mxu0 0
    %6965 = vmatprep.mubr.bf16.mxu0 0
    %6966 = vmatmul.mubr.bf16.gmra.mrb[0].mxu0 %v6927
    %v6967 = vpop.f32.mrb[0].mxu0
    %v6968 = vadd.f32 0.0, %v6967
    %v6969 = vpop.f32.mrb[0].mxu0
    %v6970 = vpop.f32.mrb[0].mxu0
    %v6971 = vpop.f32.mrb[0].mxu0
    %6972 = vdwg.mxu0
    %6973 = vmatprep.subr.bf16.mxu0 0
    %6974 = vmatpush1.bf16.xpose.msra.mxu0 %v6930
    %6975 = vmatprep.subr.bf16.mxu0 0
    %6976 = vmatpush1.bf16.xpose.msra.mxu0 0
    %6977 = vmatprep.subr.bf16.mxu0 0
    %6978 = vmatpush1.bf16.xpose.msra.mxu0 0
    %6979 = vmatprep.subr.bf16.mxu0 0
    %6980 = vmatpush1.bf16.xpose.msra.mxu0 0
    %6981 = vmatprep.subr.bf16.mxu0 0
    %6982 = vmatpush1.bf16.xpose.msra.mxu0 0
    %6983 = vmatprep.subr.bf16.mxu0 0
    %6984 = vmatpush1.bf16.xpose.msra.mxu0 0
    %6985 = vmatprep.subr.bf16.mxu0 0
    %6986 = vmatpush1.bf16.xpose.msra.mxu0 0
    %6987 = vmatprep.subr.bf16.mxu0 0
    %6988 = vmatpush1.bf16.xpose.msra.mxu0 0
    %6989 = vmatprep.subr.bf16.mxu0 0
    %6990 = vmatpush1.bf16.xpose.msra.mxu0 0
    %6991 = vmatprep.subr.bf16.mxu0 0
    %6992 = vmatpush1.bf16.xpose.msra.mxu0 0
    %6993 = vmatprep.subr.bf16.mxu0 0
    %6994 = vmatpush1.bf16.xpose.msra.mxu0 0
    %6995 = vmatprep.subr.bf16.mxu0 0
    %6996 = vmatpush1.bf16.xpose.msra.mxu0 0
    %6997 = vmatprep.subr.bf16.mxu0 0
    %6998 = vmatpush1.bf16.xpose.msra.mxu0 0
    %6999 = vmatprep.subr.bf16.mxu0 0
    %7000 = vmatpush1.bf16.xpose.msra.mxu0 0
    %7001 = vmatprep.subr.bf16.mxu0 0
    %7002 = vmatpush1.bf16.xpose.msra.mxu0 0
    %7003 = vmatprep.subr.bf16.mxu0 0
    %7004 = vmatpush1.bf16.xpose.msra.mxu0 0
    %7005 = vmatprep.mubr.bf16.mxu0 0
    %7006 = vmatmul.mubr.bf16.gmra.mrb[0].mxu0 %v6928
    %v7007 = vpop.f32.mrb[0].mxu0
    %v7008 = vadd.f32 0.0, %v7007
    %v7009 = vpop.f32.mrb[0].mxu0
    %v7010 = vpop.f32.mrb[0].mxu0
    %v7011 = vpop.f32.mrb[0].mxu0
    %7012 = vdwg.mxu0
    %v7013 = vsel %vm1742, %v6968, -inf
    %7014 = vmax.xlane.f32.xlu0 %v7013
    %v7015 = vpop.xlane.xlu0 %7014
    %v7016 = vsel %vm1742, %v7008, -inf
    %7017 = vmax.xlane.f32.xlu0 %v7016
    %v7018 = vpop.xlane.xlu0 %7017
    %v7019 = vsub.f32 %v6968, %v7015
    %v7020 = vsub.f32 %v7008, %v7018
    %v7021 = vmul.f32 %v7019, 1.442695
    %v7022 = vpow.pop %v7021
    %v7023 = vmul.f32 %v7020, 1.442695
    %v7024 = vpow.pop %v7023
    %v7025 = vsel %vm1742, %v7022, 0.0
    %7026 = vadd.xlane.f32.xlu0 %v7025
    %v7027 = vpop.xlane.xlu0 %7026
    %v7028 = vsel %vm1742, %v7024, 0.0
    %7029 = vadd.xlane.f32.xlu0 %v7028
    %v7030 = vpop.xlane.xlu0 %7029
    %v7031 = vrcp.pop %v7027
    %v7032 = vrcp.pop %v7030
    %v7033 = vmul.f32 %v7022, %v7031
    %v7034 = vmul.f32 %v7024, %v7032
    %v7035 = vpack.c.bf16 %v7033, %v7033
    %v7036 = vpack.c.bf16 %v7034, %v7034
    %v7038 = vsel %vm1742, %v7035, 0
    %7040 = vmatprep.subr.bf16.mxu0 0
    %7041 = vmatpush1.bf16.msra.mxu0 %v6931
    %7042 = vmatprep.subr.bf16.mxu0 0
    %7043 = vmatpush1.bf16.msra.mxu0 0
    %7044 = vmatprep.subr.bf16.mxu0 0
    %7045 = vmatpush1.bf16.msra.mxu0 0
    %7046 = vmatprep.subr.bf16.mxu0 0
    %7047 = vmatpush1.bf16.msra.mxu0 0
    %7048 = vmatprep.subr.bf16.mxu0 0
    %7049 = vmatpush1.bf16.msra.mxu0 0
    %7050 = vmatprep.subr.bf16.mxu0 0
    %7051 = vmatpush1.bf16.msra.mxu0 0
    %7052 = vmatprep.subr.bf16.mxu0 0
    %7053 = vmatpush1.bf16.msra.mxu0 0
    %7054 = vmatprep.subr.bf16.mxu0 0
    %7055 = vmatpush1.bf16.msra.mxu0 0
    %7056 = vmatprep.subr.bf16.mxu0 0
    %7057 = vmatpush1.bf16.msra.mxu0 0
    %7058 = vmatprep.subr.bf16.mxu0 0
    %7059 = vmatpush1.bf16.msra.mxu0 0
    %7060 = vmatprep.subr.bf16.mxu0 0
    %7061 = vmatpush1.bf16.msra.mxu0 0
    %7062 = vmatprep.subr.bf16.mxu0 0
    %7063 = vmatpush1.bf16.msra.mxu0 0
    %7064 = vmatprep.subr.bf16.mxu0 0
    %7065 = vmatpush1.bf16.msra.mxu0 0
    %7066 = vmatprep.subr.bf16.mxu0 0
    %7067 = vmatpush1.bf16.msra.mxu0 0
    %7068 = vmatprep.subr.bf16.mxu0 0
    %7069 = vmatpush1.bf16.msra.mxu0 0
    %7070 = vmatprep.subr.bf16.mxu0 0
    %7071 = vmatpush1.bf16.msra.mxu0 0
    %7072 = vmatprep.mubr.bf16.mxu0 0
    %7073 = vmatmul.mubr.bf16.gmra.mrb[0].mxu0 %v7038
    %v7074 = vpop.f32.mrb[0].mxu0
    %v7075 = vadd.f32 0.0, %v7074
    %v7076 = vpop.f32.mrb[0].mxu0
    %v7077 = vpop.f32.mrb[0].mxu0
    %v7078 = vpop.f32.mrb[0].mxu0
    %7079 = vdwg.mxu0
    %v7081 = vsel %vm1742, %v7036, 0
    %7083 = vmatprep.subr.bf16.mxu0 0
    %7084 = vmatpush1.bf16.msra.mxu0 %v6932
    %7085 = vmatprep.subr.bf16.mxu0 0
    %7086 = vmatpush1.bf16.msra.mxu0 0
    %7087 = vmatprep.subr.bf16.mxu0 0
    %7088 = vmatpush1.bf16.msra.mxu0 0
    %7089 = vmatprep.subr.bf16.mxu0 0
    %7090 = vmatpush1.bf16.msra.mxu0 0
    %7091 = vmatprep.subr.bf16.mxu0 0
    %7092 = vmatpush1.bf16.msra.mxu0 0
    %7093 = vmatprep.subr.bf16.mxu0 0
    %7094 = vmatpush1.bf16.msra.mxu0 0
    %7095 = vmatprep.subr.bf16.mxu0 0
    %7096 = vmatpush1.bf16.msra.mxu0 0
    %7097 = vmatprep.subr.bf16.mxu0 0
    %7098 = vmatpush1.bf16.msra.mxu0 0
    %7099 = vmatprep.subr.bf16.mxu0 0
    %7100 = vmatpush1.bf16.msra.mxu0 0
    %7101 = vmatprep.subr.bf16.mxu0 0
    %7102 = vmatpush1.bf16.msra.mxu0 0
    %7103 = vmatprep.subr.bf16.mxu0 0
    %7104 = vmatpush1.bf16.msra.mxu0 0
    %7105 = vmatprep.subr.bf16.mxu0 0
    %7106 = vmatpush1.bf16.msra.mxu0 0
    %7107 = vmatprep.subr.bf16.mxu0 0
    %7108 = vmatpush1.bf16.msra.mxu0 0
    %7109 = vmatprep.subr.bf16.mxu0 0
    %7110 = vmatpush1.bf16.msra.mxu0 0
    %7111 = vmatprep.subr.bf16.mxu0 0
    %7112 = vmatpush1.bf16.msra.mxu0 0
    %7113 = vmatprep.subr.bf16.mxu0 0
    %7114 = vmatpush1.bf16.msra.mxu0 0
    %7115 = vmatprep.mubr.bf16.mxu0 0
    %7116 = vmatmul.mubr.bf16.gmra.mrb[0].mxu0 %v7081
    %v7117 = vpop.f32.mrb[0].mxu0
    %v7118 = vadd.f32 0.0, %v7117
    %v7119 = vpop.f32.mrb[0].mxu0
    %v7120 = vpop.f32.mrb[0].mxu0
    %v7121 = vpop.f32.mrb[0].mxu0
    %7122 = vdwg.mxu0
    %v7123 = vpack.c.bf16 %v6922, %v6879
    %v7124 = vpack.c.bf16 %v7118, %v7075
    %v7125 = vld [vmem:[%s6040 + $0x4] sm:$0xf]
    %v7126 = vld [vmem:[%s6040 + $0x10] sm:$0xf]
    %v7127 = vld [vmem:[%s6040 + $0x1c] sm:$0xf]
    %v7128 = vld [vmem:[%s6040 + $0x28] sm:$0xf]
    %v7129 = vld [vmem:[%s6040 + $0x34] sm:$0xf]
    %v7130 = vld [vmem:[%s6040 + $0x40] sm:$0xf]
    %v7131 = vld [vmem:[%s6040 + $0x4c] sm:$0xf]
    %v7132 = vld [vmem:[%s6040 + $0x58] sm:$0xf]
    %v7133 = vld [vmem:[%s6040 + $0x64] sm:$0xf]
    %v7134 = vld [vmem:[%s6040 + $0x70] sm:$0xf]
    %v7135 = vld [vmem:[%s6040 + $0x7c] sm:$0xf]
    %v7136 = vld [vmem:[%s6040 + $0x88] sm:$0xf]
    %v7137 = vld [vmem:[%s6040 + $0x94] sm:$0xf]
    %v7138 = vld [vmem:[%s6040 + $0xa0] sm:$0xf]
    %v7139 = vld [vmem:[%s6040 + $0xac] sm:$0xf]
    %v7140 = vld [vmem:[%s6040 + $0xb8] sm:$0xf]
    %v7141 = vld [vmem:[%s6040 + $0xc4] sm:$0xf]
    %v7142 = vld [vmem:[%s6040 + $0xd0] sm:$0xf]
    %v7143 = vld [vmem:[%s6040 + $0xdc] sm:$0xf]
    %v7144 = vld [vmem:[%s6040 + $0xe8] sm:$0xf]
    %v7145 = vld [vmem:[%s6040 + $0xf4] sm:$0xf]
    %v7146 = vld [vmem:[%s6040 + $0x100] sm:$0xf]
    %v7147 = vld [vmem:[%s6040 + $0x10c] sm:$0xf]
    %v7148 = vld [vmem:[%s6040 + $0x118] sm:$0xf]
    %v7149 = vld [vmem:[%s6040 + $0x124] sm:$0xf]
    %v7150 = vld [vmem:[%s6040 + $0x130] sm:$0xf]
    %v7151 = vld [vmem:[%s6040 + $0x13c] sm:$0xf]
    %v7152 = vld [vmem:[%s6040 + $0x148] sm:$0xf]
    %v7153 = vld [vmem:[%s6040 + $0x154] sm:$0xf]
    %v7154 = vld [vmem:[%s6040 + $0x160] sm:$0xf]
    %v7155 = vld [vmem:[%s6040 + $0x16c] sm:$0xf]
    %v7156 = vld [vmem:[%s6040 + $0x178] sm:$0xf]
    %v7157 = vld [vmem:[%s5232 + $0xf] sm:$0x1]
    %v7159 = vlaneseq
    %v7160 = vshrl.u32 %v7159, 7
    %v7161 = vsub.s32 0, %v7160
    %v7162 = vrot.slane %v7157, %v7161
    %v7196 = vunpack.c.l.b16 %v7125
    %v7197 = vunpack.c.l.b16 %v7126
    %v7198 = vunpack.c.l.b16 %v7127
    %v7199 = vunpack.c.l.b16 %v7128
    %v7200 = vunpack.c.l.b16 %v7129
    %v7201 = vunpack.c.l.b16 %v7130
    %v7202 = vunpack.c.l.b16 %v7131
    %v7203 = vunpack.c.l.b16 %v7132
    %v7204 = vunpack.c.l.b16 %v7133
    %v7205 = vunpack.c.l.b16 %v7134
    %v7206 = vunpack.c.l.b16 %v7135
    %v7207 = vunpack.c.l.b16 %v7136
    %v7208 = vunpack.c.l.b16 %v7137
    %v7209 = vunpack.c.l.b16 %v7138
    %v7210 = vunpack.c.l.b16 %v7139
    %v7211 = vunpack.c.l.b16 %v7140
    %v7212 = vunpack.c.l.b16 %v7141
    %v7213 = vunpack.c.l.b16 %v7142
    %v7214 = vunpack.c.l.b16 %v7143
    %v7215 = vunpack.c.l.b16 %v7144
    %v7216 = vunpack.c.l.b16 %v7145
    %v7217 = vunpack.c.l.b16 %v7146
    %v7218 = vunpack.c.l.b16 %v7147
    %v7219 = vunpack.c.l.b16 %v7148
    %v7220 = vunpack.c.l.b16 %v7149
    %v7221 = vunpack.c.l.b16 %v7150
    %v7222 = vunpack.c.l.b16 %v7151
    %v7223 = vunpack.c.l.b16 %v7152
    %v7224 = vunpack.c.l.b16 %v7153
    %v7225 = vunpack.c.l.b16 %v7154
    %v7226 = vunpack.c.l.b16 %v7155
    %v7227 = vunpack.c.l.b16 %v7156
    %v7228 = vpack.c.b16 %v7197, %v7196
    %v7229 = vpack.c.b16 %v7199, %v7198
    %v7230 = vpack.c.b16 %v7201, %v7200
    %v7231 = vpack.c.b16 %v7203, %v7202
    %v7232 = vpack.c.b16 %v7205, %v7204
    %v7233 = vpack.c.b16 %v7207, %v7206
    %v7234 = vpack.c.b16 %v7209, %v7208
    %v7235 = vpack.c.b16 %v7211, %v7210
    %v7236 = vpack.c.b16 %v7213, %v7212
    %v7237 = vpack.c.b16 %v7215, %v7214
    %v7238 = vpack.c.b16 %v7217, %v7216
    %v7239 = vpack.c.b16 %v7219, %v7218
    %v7240 = vpack.c.b16 %v7221, %v7220
    %v7241 = vpack.c.b16 %v7223, %v7222
    %v7242 = vpack.c.b16 %v7225, %v7224
    %v7243 = vpack.c.b16 %v7227, %v7226
    %7260 = vmatprep.subr.bf16.mxu0 0
    %7261 = vmatpush1.bf16.msra.mxu0 %v7228
    %7262 = vmatprep.subr.bf16.mxu0 0
    %7263 = vmatpush1.bf16.msra.mxu0 %v7229
    %7264 = vmatprep.subr.bf16.mxu0 0
    %7265 = vmatpush1.bf16.msra.mxu0 %v7230
    %7266 = vmatprep.subr.bf16.mxu0 0
    %7267 = vmatpush1.bf16.msra.mxu0 %v7231
    %7268 = vmatprep.subr.bf16.mxu0 0
    %7269 = vmatpush1.bf16.msra.mxu0 %v7232
    %7270 = vmatprep.subr.bf16.mxu0 0
    %7271 = vmatpush1.bf16.msra.mxu0 %v7233
    %7272 = vmatprep.subr.bf16.mxu0 0
    %7273 = vmatpush1.bf16.msra.mxu0 %v7234
    %7274 = vmatprep.subr.bf16.mxu0 0
    %7275 = vmatpush1.bf16.msra.mxu0 %v7235
    %7276 = vmatprep.subr.bf16.mxu0 0
    %7277 = vmatpush1.bf16.msra.mxu0 %v7236
    %7278 = vmatprep.subr.bf16.mxu0 0
    %7279 = vmatpush1.bf16.msra.mxu0 %v7237
    %7280 = vmatprep.subr.bf16.mxu0 0
    %7281 = vmatpush1.bf16.msra.mxu0 %v7238
    %7282 = vmatprep.subr.bf16.mxu0 0
    %7283 = vmatpush1.bf16.msra.mxu0 %v7239
    %7284 = vmatprep.subr.bf16.mxu0 0
    %7285 = vmatpush1.bf16.msra.mxu0 %v7240
    %7286 = vmatprep.subr.bf16.mxu0 0
    %7287 = vmatpush1.bf16.msra.mxu0 %v7241
    %7288 = vmatprep.subr.bf16.mxu0 0
    %7289 = vmatpush1.bf16.msra.mxu0 %v7242
    %7290 = vmatprep.subr.bf16.mxu0 0
    %7291 = vmatpush1.bf16.msra.mxu0 %v7243
    %7292 = vmatprep.mubr.bf16.mxu0 %v7124
    %7293 = vmatmul.mubr.bf16.gmra.mrb[0].mxu0 %v7123
    %v7294 = vpop.f32.mrb[0].mxu0
    %v7295 = vadd.f32 %v7162, %v7294
    %v7296 = vpop.f32.mrb[0].mxu0
    %v7297 = vpop.f32.mrb[0].mxu0
    %v7298 = vadd.f32 %v7162, %v7297
    %v7299 = vpop.f32.mrb[0].mxu0
    %7300 = vdwg.mxu0
    %v7301 = vadd.f32 %v6257, %v7295
    %v7302 = vadd.f32 %v6258, %v7298
    %v7303 = vld [vmem:[%s5232 + $0x13] sm:$0x1]
    %v7304 = vld [vmem:[%s5232 + $0x14] sm:$0x1]
    %7305 = vadd.xlane.f32.xlu0 %v7301
    %v7306 = vpop.xlane.xlu0 %7305
    %7307 = vadd.xlane.f32.xlu0 %v7302
    %v7308 = vpop.xlane.xlu0 %7307
    %v7309 = vmul.f32 %v7306, %v1149
    %v7310 = vmul.f32 %v7308, %v1149
    %v7311 = vsub.f32 %v7301, %v7309
    %v7312 = vsub.f32 %v7302, %v7310
    %v7313 = vmul.f32 %v7311, %v7311
    %v7314 = vmul.f32 %v7312, %v7312
    %7315 = vadd.xlane.f32.xlu0 %v7313
    %v7316 = vpop.xlane.xlu0 %7315
    %7317 = vadd.xlane.f32.xlu0 %v7314
    %v7318 = vpop.xlane.xlu0 %7317
    %v7319 = vmul.f32 %v7316, %v1149
    %v7320 = vmul.f32 %v7318, %v1149
    %v7321 = vadd.f32 %v7319, 1e-05
    %v7322 = vadd.f32 %v7320, 1e-05
    %v7323 = vrsqrt.pop %v7321
    %v7324 = vrsqrt.pop %v7322
    %v7325 = vmul.f32 %v7311, %v7323
    %v7326 = vmul.f32 %v7312, %v7324
    %v7328 = vlaneseq
    %v7329 = vshrl.u32 %v7328, 7
    %v7330 = vsub.s32 0, %v7329
    %v7331 = vrot.slane %v7303, %v7330
    %v7333 = vmul.f32 %v7325, %v7331
    %v7334 = vmul.f32 %v7326, %v7331
    %v7336 = vlaneseq
    %v7337 = vshrl.u32 %v7336, 7
    %v7338 = vsub.s32 0, %v7337
    %v7339 = vrot.slane %v7304, %v7338
    %v7341 = vadd.f32 %v7333, %v7339
    %v7342 = vadd.f32 %v7334, %v7339
    %v7343 = vpack.c.bf16 %v7342, %v7341
    %v7344 = vld [vmem:[%s5183 + $0x30] sm:$0xff]
    %v7345 = vld [vmem:[%s5183 + $0x68] sm:$0xff]
    %v7346 = vld [vmem:[%s5183 + $0xa0] sm:$0xff]
    %v7347 = vld [vmem:[%s5183 + $0xd8] sm:$0xff]
    %v7348 = vld [vmem:[%s5183 + $0x110] sm:$0xff]
    %v7349 = vld [vmem:[%s5183 + $0x148] sm:$0xff]
    %v7350 = vld [vmem:[%s5183 + $0x180] sm:$0xff]
    %v7351 = vld [vmem:[%s5183 + $0x1b8] sm:$0xff]
    %v7352 = vld [vmem:[%s5183 + $0x1f0] sm:$0xff]
    %v7353 = vld [vmem:[%s5183 + $0x228] sm:$0xff]
    %v7354 = vld [vmem:[%s5183 + $0x260] sm:$0xff]
    %v7355 = vld [vmem:[%s5183 + $0x298] sm:$0xff]
    %v7356 = vld [vmem:[%s5183 + $0x2d0] sm:$0xff]
    %v7357 = vld [vmem:[%s5183 + $0x308] sm:$0xff]
    %v7358 = vld [vmem:[%s5183 + $0x340] sm:$0xff]
    %v7359 = vld [vmem:[%s5183 + $0x378] sm:$0xff]
    %v7360 = vld [vmem:[%s5232 + $0xc] sm:$0x3]
    %v7362 = vlaneseq
    %v7363 = vshrl.u32 %v7362, 7
    %v7364 = vsub.s32 0, %v7363
    %v7365 = vrot.slane %v7360, %v7364
    %v7366 = vlaneseq
    %v7367 = vshrl.u32 %v7366, 7
    %v7368 = vsub.s32 1, %v7367
    %v7369 = vrot.slane %v7360, %v7368
    %v7388 = vunpack.c.l.b16 %v7344
    %v7389 = vunpack.c.h.b16 %v7344
    %v7390 = vunpack.c.l.b16 %v7345
    %v7391 = vunpack.c.h.b16 %v7345
    %v7392 = vunpack.c.l.b16 %v7346
    %v7393 = vunpack.c.h.b16 %v7346
    %v7394 = vunpack.c.l.b16 %v7347
    %v7395 = vunpack.c.h.b16 %v7347
    %v7396 = vunpack.c.l.b16 %v7348
    %v7397 = vunpack.c.h.b16 %v7348
    %v7398 = vunpack.c.l.b16 %v7349
    %v7399 = vunpack.c.h.b16 %v7349
    %v7400 = vunpack.c.l.b16 %v7350
    %v7401 = vunpack.c.h.b16 %v7350
    %v7402 = vunpack.c.l.b16 %v7351
    %v7403 = vunpack.c.h.b16 %v7351
    %v7404 = vunpack.c.l.b16 %v7352
    %v7405 = vunpack.c.h.b16 %v7352
    %v7406 = vunpack.c.l.b16 %v7353
    %v7407 = vunpack.c.h.b16 %v7353
    %v7408 = vunpack.c.l.b16 %v7354
    %v7409 = vunpack.c.h.b16 %v7354
    %v7410 = vunpack.c.l.b16 %v7355
    %v7411 = vunpack.c.h.b16 %v7355
    %v7412 = vunpack.c.l.b16 %v7356
    %v7413 = vunpack.c.h.b16 %v7356
    %v7414 = vunpack.c.l.b16 %v7357
    %v7415 = vunpack.c.h.b16 %v7357
    %v7416 = vunpack.c.l.b16 %v7358
    %v7417 = vunpack.c.h.b16 %v7358
    %v7418 = vunpack.c.l.b16 %v7359
    %v7419 = vunpack.c.h.b16 %v7359
    %v7420 = vpack.c.b16 %v7390, %v7388
    %v7421 = vpack.c.b16 %v7391, %v7389
    %v7422 = vpack.c.b16 %v7394, %v7392
    %v7423 = vpack.c.b16 %v7395, %v7393
    %v7424 = vpack.c.b16 %v7398, %v7396
    %v7425 = vpack.c.b16 %v7399, %v7397
    %v7426 = vpack.c.b16 %v7402, %v7400
    %v7427 = vpack.c.b16 %v7403, %v7401
    %v7428 = vpack.c.b16 %v7406, %v7404
    %v7429 = vpack.c.b16 %v7407, %v7405
    %v7430 = vpack.c.b16 %v7410, %v7408
    %v7431 = vpack.c.b16 %v7411, %v7409
    %v7432 = vpack.c.b16 %v7414, %v7412
    %v7433 = vpack.c.b16 %v7415, %v7413
    %v7434 = vpack.c.b16 %v7418, %v7416
    %v7435 = vpack.c.b16 %v7419, %v7417
    %7452 = vmatprep.subr.bf16.mxu0 %v7421
    %7453 = vmatpush1.bf16.msra.mxu0 %v7420
    %7454 = vmatprep.subr.bf16.mxu0 %v7423
    %7455 = vmatpush1.bf16.msra.mxu0 %v7422
    %7456 = vmatprep.subr.bf16.mxu0 %v7425
    %7457 = vmatpush1.bf16.msra.mxu0 %v7424
    %7458 = vmatprep.subr.bf16.mxu0 %v7427
    %7459 = vmatpush1.bf16.msra.mxu0 %v7426
    %7460 = vmatprep.subr.bf16.mxu0 %v7429
    %7461 = vmatpush1.bf16.msra.mxu0 %v7428
    %7462 = vmatprep.subr.bf16.mxu0 %v7431
    %7463 = vmatpush1.bf16.msra.mxu0 %v7430
    %7464 = vmatprep.subr.bf16.mxu0 %v7433
    %7465 = vmatpush1.bf16.msra.mxu0 %v7432
    %7466 = vmatprep.subr.bf16.mxu0 %v7435
    %7467 = vmatpush1.bf16.msra.mxu0 %v7434
    %7468 = vmatprep.subr.bf16.mxu0 0
    %7469 = vmatpush1.bf16.msra.mxu0 0
    %7470 = vmatprep.subr.bf16.mxu0 0
    %7471 = vmatpush1.bf16.msra.mxu0 0
    %7472 = vmatprep.subr.bf16.mxu0 0
    %7473 = vmatpush1.bf16.msra.mxu0 0
    %7474 = vmatprep.subr.bf16.mxu0 0
    %7475 = vmatpush1.bf16.msra.mxu0 0
    %7476 = vmatprep.subr.bf16.mxu0 0
    %7477 = vmatpush1.bf16.msra.mxu0 0
    %7478 = vmatprep.subr.bf16.mxu0 0
    %7479 = vmatpush1.bf16.msra.mxu0 0
    %7480 = vmatprep.subr.bf16.mxu0 0
    %7481 = vmatpush1.bf16.msra.mxu0 0
    %7482 = vmatprep.subr.bf16.mxu0 0
    %7483 = vmatpush1.bf16.msra.mxu0 0
    %7484 = vmatprep.mubr.bf16.mxu0 0
    %7485 = vmatmul.mubr.bf16.gmra.mrb[0].mxu0 %v7343
    %v7486 = vpop.f32.mrb[0].mxu0
    %v7487 = vadd.f32 %v7365, %v7486
    %v7488 = vpop.f32.mrb[0].mxu0
    %v7489 = vadd.f32 %v7369, %v7488
    %v7490 = vpop.f32.mrb[0].mxu0
    %v7491 = vadd.f32 %v7365, %v7490
    %v7492 = vpop.f32.mrb[0].mxu0
    %v7493 = vadd.f32 %v7369, %v7492
    %7494 = vdwg.mxu0
    %v7495 = vmax.f32 %v7487, 0.0
    %v7496 = vmax.f32 %v7489, 0.0
    %v7497 = vmax.f32 %v7491, 0.0
    %v7498 = vmax.f32 %v7493, 0.0
    %v7499 = vpack.c.bf16 %v7497, %v7495
    %v7500 = vpack.c.bf16 %v7498, %v7496
    %v7501 = vld [vmem:[%s6040 + $0x8] sm:$0xf]
    %v7502 = vld [vmem:[%s6040 + $0x14] sm:$0xf]
    %v7503 = vld [vmem:[%s6040 + $0x20] sm:$0xf]
    %v7504 = vld [vmem:[%s6040 + $0x2c] sm:$0xf]
    %v7505 = vld [vmem:[%s6040 + $0x38] sm:$0xf]
    %v7506 = vld [vmem:[%s6040 + $0x44] sm:$0xf]
    %v7507 = vld [vmem:[%s6040 + $0x50] sm:$0xf]
    %v7508 = vld [vmem:[%s6040 + $0x5c] sm:$0xf]
    %v7509 = vld [vmem:[%s6040 + $0x68] sm:$0xf]
    %v7510 = vld [vmem:[%s6040 + $0x74] sm:$0xf]
    %v7511 = vld [vmem:[%s6040 + $0x80] sm:$0xf]
    %v7512 = vld [vmem:[%s6040 + $0x8c] sm:$0xf]
    %v7513 = vld [vmem:[%s6040 + $0x98] sm:$0xf]
    %v7514 = vld [vmem:[%s6040 + $0xa4] sm:$0xf]
    %v7515 = vld [vmem:[%s6040 + $0xb0] sm:$0xf]
    %v7516 = vld [vmem:[%s6040 + $0xbc] sm:$0xf]
    %v7517 = vld [vmem:[%s6040 + $0xc8] sm:$0xf]
    %v7518 = vld [vmem:[%s6040 + $0xd4] sm:$0xf]
    %v7519 = vld [vmem:[%s6040 + $0xe0] sm:$0xf]
    %v7520 = vld [vmem:[%s6040 + $0xec] sm:$0xf]
    %v7521 = vld [vmem:[%s6040 + $0xf8] sm:$0xf]
    %v7522 = vld [vmem:[%s6040 + $0x104] sm:$0xf]
    %v7523 = vld [vmem:[%s6040 + $0x110] sm:$0xf]
    %v7524 = vld [vmem:[%s6040 + $0x11c] sm:$0xf]
    %v7525 = vld [vmem:[%s6040 + $0x128] sm:$0xf]
    %v7526 = vld [vmem:[%s6040 + $0x134] sm:$0xf]
    %v7527 = vld [vmem:[%s6040 + $0x140] sm:$0xf]
    %v7528 = vld [vmem:[%s6040 + $0x14c] sm:$0xf]
    %v7529 = vld [vmem:[%s6040 + $0x158] sm:$0xf]
    %v7530 = vld [vmem:[%s6040 + $0x164] sm:$0xf]
    %v7531 = vld [vmem:[%s6040 + $0x170] sm:$0xf]
    %v7532 = vld [vmem:[%s6040 + $0x17c] sm:$0xf]
    %v7533 = vld [vmem:[%s5232 + $0x10] sm:$0x1]
    %v7535 = vlaneseq
    %v7536 = vshrl.u32 %v7535, 7
    %v7537 = vsub.s32 0, %v7536
    %v7538 = vrot.slane %v7533, %v7537
    %v7572 = vunpack.c.l.b16 %v7501
    %v7573 = vunpack.c.l.b16 %v7502
    %v7574 = vunpack.c.l.b16 %v7503
    %v7575 = vunpack.c.l.b16 %v7504
    %v7576 = vunpack.c.l.b16 %v7505
    %v7577 = vunpack.c.l.b16 %v7506
    %v7578 = vunpack.c.l.b16 %v7507
    %v7579 = vunpack.c.l.b16 %v7508
    %v7580 = vunpack.c.l.b16 %v7509
    %v7581 = vunpack.c.l.b16 %v7510
    %v7582 = vunpack.c.l.b16 %v7511
    %v7583 = vunpack.c.l.b16 %v7512
    %v7584 = vunpack.c.l.b16 %v7513
    %v7585 = vunpack.c.l.b16 %v7514
    %v7586 = vunpack.c.l.b16 %v7515
    %v7587 = vunpack.c.l.b16 %v7516
    %v7588 = vunpack.c.l.b16 %v7517
    %v7589 = vunpack.c.l.b16 %v7518
    %v7590 = vunpack.c.l.b16 %v7519
    %v7591 = vunpack.c.l.b16 %v7520
    %v7592 = vunpack.c.l.b16 %v7521
    %v7593 = vunpack.c.l.b16 %v7522
    %v7594 = vunpack.c.l.b16 %v7523
    %v7595 = vunpack.c.l.b16 %v7524
    %v7596 = vunpack.c.l.b16 %v7525
    %v7597 = vunpack.c.l.b16 %v7526
    %v7598 = vunpack.c.l.b16 %v7527
    %v7599 = vunpack.c.l.b16 %v7528
    %v7600 = vunpack.c.l.b16 %v7529
    %v7601 = vunpack.c.l.b16 %v7530
    %v7602 = vunpack.c.l.b16 %v7531
    %v7603 = vunpack.c.l.b16 %v7532
    %v7604 = vpack.c.b16 %v7573, %v7572
    %v7605 = vpack.c.b16 %v7575, %v7574
    %v7606 = vpack.c.b16 %v7577, %v7576
    %v7607 = vpack.c.b16 %v7579, %v7578
    %v7608 = vpack.c.b16 %v7581, %v7580
    %v7609 = vpack.c.b16 %v7583, %v7582
    %v7610 = vpack.c.b16 %v7585, %v7584
    %v7611 = vpack.c.b16 %v7587, %v7586
    %v7612 = vpack.c.b16 %v7589, %v7588
    %v7613 = vpack.c.b16 %v7591, %v7590
    %v7614 = vpack.c.b16 %v7593, %v7592
    %v7615 = vpack.c.b16 %v7595, %v7594
    %v7616 = vpack.c.b16 %v7597, %v7596
    %v7617 = vpack.c.b16 %v7599, %v7598
    %v7618 = vpack.c.b16 %v7601, %v7600
    %v7619 = vpack.c.b16 %v7603, %v7602
    %7636 = vmatprep.subr.bf16.mxu0 0
    %7637 = vmatpush1.bf16.msra.mxu0 %v7604
    %7638 = vmatprep.subr.bf16.mxu0 0
    %7639 = vmatpush1.bf16.msra.mxu0 %v7605
    %7640 = vmatprep.subr.bf16.mxu0 0
    %7641 = vmatpush1.bf16.msra.mxu0 %v7606
    %7642 = vmatprep.subr.bf16.mxu0 0
    %7643 = vmatpush1.bf16.msra.mxu0 %v7607
    %7644 = vmatprep.subr.bf16.mxu0 0
    %7645 = vmatpush1.bf16.msra.mxu0 %v7608
    %7646 = vmatprep.subr.bf16.mxu0 0
    %7647 = vmatpush1.bf16.msra.mxu0 %v7609
    %7648 = vmatprep.subr.bf16.mxu0 0
    %7649 = vmatpush1.bf16.msra.mxu0 %v7610
    %7650 = vmatprep.subr.bf16.mxu0 0
    %7651 = vmatpush1.bf16.msra.mxu0 %v7611
    %7652 = vmatprep.subr.bf16.mxu0 0
    %7653 = vmatpush1.bf16.msra.mxu0 %v7612
    %7654 = vmatprep.subr.bf16.mxu0 0
    %7655 = vmatpush1.bf16.msra.mxu0 %v7613
    %7656 = vmatprep.subr.bf16.mxu0 0
    %7657 = vmatpush1.bf16.msra.mxu0 %v7614
    %7658 = vmatprep.subr.bf16.mxu0 0
    %7659 = vmatpush1.bf16.msra.mxu0 %v7615
    %7660 = vmatprep.subr.bf16.mxu0 0
    %7661 = vmatpush1.bf16.msra.mxu0 %v7616
    %7662 = vmatprep.subr.bf16.mxu0 0
    %7663 = vmatpush1.bf16.msra.mxu0 %v7617
    %7664 = vmatprep.subr.bf16.mxu0 0
    %7665 = vmatpush1.bf16.msra.mxu0 %v7618
    %7666 = vmatprep.subr.bf16.mxu0 0
    %7667 = vmatpush1.bf16.msra.mxu0 %v7619
    %7668 = vmatprep.mubr.bf16.mxu0 %v7500
    %7669 = vmatmul.mubr.bf16.gmra.mrb[0].mxu0 %v7499
    %v7670 = vpop.f32.mrb[0].mxu0
    %v7671 = vadd.f32 %v7538, %v7670
    %v7672 = vpop.f32.mrb[0].mxu0
    %v7673 = vpop.f32.mrb[0].mxu0
    %v7674 = vadd.f32 %v7538, %v7673
    %v7675 = vpop.f32.mrb[0].mxu0
    %7676 = vdwg.mxu0
    %v7677 = vadd.f32 %v7341, %v7671
    %v7678 = vadd.f32 %v7342, %v7674
    %v7679 = vld [vmem:[%s5232 + $0x15] sm:$0x1]
    %v7680 = vld [vmem:[%s5232 + $0x16] sm:$0x1]
    %7681 = vadd.xlane.f32.xlu0 %v7677
    %v7682 = vpop.xlane.xlu0 %7681
    %7683 = vadd.xlane.f32.xlu0 %v7678
    %v7684 = vpop.xlane.xlu0 %7683
    %v7685 = vmul.f32 %v7682, %v1149
    %v7686 = vmul.f32 %v7684, %v1149
    %v7687 = vsub.f32 %v7677, %v7685
    %v7688 = vsub.f32 %v7678, %v7686
    %v7689 = vmul.f32 %v7687, %v7687
    %v7690 = vmul.f32 %v7688, %v7688
    %7691 = vadd.xlane.f32.xlu0 %v7689
    %v7692 = vpop.xlane.xlu0 %7691
    %7693 = vadd.xlane.f32.xlu0 %v7690
    %v7694 = vpop.xlane.xlu0 %7693
    %v7695 = vmul.f32 %v7692, %v1149
    %v7696 = vmul.f32 %v7694, %v1149
    %v7697 = vadd.f32 %v7695, 1e-05
    %v7698 = vadd.f32 %v7696, 1e-05
    %v7699 = vrsqrt.pop %v7697
    %v7700 = vrsqrt.pop %v7698
    %v7701 = vmul.f32 %v7687, %v7699
    %v7702 = vmul.f32 %v7688, %v7700
    %v7704 = vlaneseq
    %v7705 = vshrl.u32 %v7704, 7
    %v7706 = vsub.s32 0, %v7705
    %v7707 = vrot.slane %v7679, %v7706
    %v7709 = vmul.f32 %v7701, %v7707
    %v7710 = vmul.f32 %v7702, %v7707
    %v7712 = vlaneseq
    %v7713 = vshrl.u32 %v7712, 7
    %v7714 = vsub.s32 0, %v7713
    %v7715 = vrot.slane %v7680, %v7714
    %v7717 = vadd.f32 %v7709, %v7715
    %v7718 = vadd.f32 %v7710, %v7715
    %v7719 = vpack.c.bf16 %v7718, %v7717
    %v7720 = vld [vmem:[#allocation7] sm:$0xf]
    %v7721 = vld [vmem:[#allocation7 + $0x4] sm:$0xf]
    %v7722 = vld [vmem:[#allocation7 + $0x8] sm:$0xf]
    %v7723 = vld [vmem:[#allocation7 + $0xc] sm:$0xf]
    %v7724 = vld [vmem:[#allocation7 + $0x10] sm:$0xf]
    %v7725 = vld [vmem:[#allocation7 + $0x14] sm:$0xf]
    %v7726 = vld [vmem:[#allocation7 + $0x18] sm:$0xf]
    %v7727 = vld [vmem:[#allocation7 + $0x1c] sm:$0xf]
    %v7728 = vld [vmem:[#allocation7 + $0x20] sm:$0xf]
    %v7729 = vld [vmem:[#allocation7 + $0x24] sm:$0xf]
    %v7730 = vld [vmem:[#allocation7 + $0x28] sm:$0xf]
    %v7731 = vld [vmem:[#allocation7 + $0x2c] sm:$0xf]
    %v7732 = vld [vmem:[#allocation7 + $0x30] sm:$0xf]
    %v7733 = vld [vmem:[#allocation7 + $0x34] sm:$0xf]
    %v7734 = vld [vmem:[#allocation7 + $0x38] sm:$0xf]
    %v7735 = vld [vmem:[#allocation7 + $0x3c] sm:$0xf]
    %v7736 = vld [vmem:[#allocation9] sm:$0x1]
    %v7738 = vlaneseq
    %v7739 = vshrl.u32 %v7738, 7
    %v7740 = vsub.s32 0, %v7739
    %v7741 = vrot.slane %v7736, %v7740
    %v7759 = vunpack.c.l.b16 %v7720
    %v7760 = vunpack.c.l.b16 %v7721
    %v7761 = vunpack.c.l.b16 %v7722
    %v7762 = vunpack.c.l.b16 %v7723
    %v7763 = vunpack.c.l.b16 %v7724
    %v7764 = vunpack.c.l.b16 %v7725
    %v7765 = vunpack.c.l.b16 %v7726
    %v7766 = vunpack.c.l.b16 %v7727
    %v7767 = vunpack.c.l.b16 %v7728
    %v7768 = vunpack.c.l.b16 %v7729
    %v7769 = vunpack.c.l.b16 %v7730
    %v7770 = vunpack.c.l.b16 %v7731
    %v7771 = vunpack.c.l.b16 %v7732
    %v7772 = vunpack.c.l.b16 %v7733
    %v7773 = vunpack.c.l.b16 %v7734
    %v7774 = vunpack.c.l.b16 %v7735
    %v7775 = vpack.c.b16 %v7760, %v7759
    %v7776 = vpack.c.b16 %v7762, %v7761
    %v7777 = vpack.c.b16 %v7764, %v7763
    %v7778 = vpack.c.b16 %v7766, %v7765
    %v7779 = vpack.c.b16 %v7768, %v7767
    %v7780 = vpack.c.b16 %v7770, %v7769
    %v7781 = vpack.c.b16 %v7772, %v7771
    %v7782 = vpack.c.b16 %v7774, %v7773
    %7791 = vmatprep.subr.bf16.mxu0 0
    %7792 = vmatpush1.bf16.msra.mxu0 %v7775
    %7793 = vmatprep.subr.bf16.mxu0 0
    %7794 = vmatpush1.bf16.msra.mxu0 %v7776
    %7795 = vmatprep.subr.bf16.mxu0 0
    %7796 = vmatpush1.bf16.msra.mxu0 %v7777
    %7797 = vmatprep.subr.bf16.mxu0 0
    %7798 = vmatpush1.bf16.msra.mxu0 %v7778
    %7799 = vmatprep.subr.bf16.mxu0 0
    %7800 = vmatpush1.bf16.msra.mxu0 %v7779
    %7801 = vmatprep.subr.bf16.mxu0 0
    %7802 = vmatpush1.bf16.msra.mxu0 %v7780
    %7803 = vmatprep.subr.bf16.mxu0 0
    %7804 = vmatpush1.bf16.msra.mxu0 %v7781
    %7805 = vmatprep.subr.bf16.mxu0 0
    %7806 = vmatpush1.bf16.msra.mxu0 %v7782
    %7807 = vmatprep.subr.bf16.mxu0 0
    %7808 = vmatpush1.bf16.msra.mxu0 0
    %7809 = vmatprep.subr.bf16.mxu0 0
    %7810 = vmatpush1.bf16.msra.mxu0 0
    %7811 = vmatprep.subr.bf16.mxu0 0
    %7812 = vmatpush1.bf16.msra.mxu0 0
    %7813 = vmatprep.subr.bf16.mxu0 0
    %7814 = vmatpush1.bf16.msra.mxu0 0
    %7815 = vmatprep.subr.bf16.mxu0 0
    %7816 = vmatpush1.bf16.msra.mxu0 0
    %7817 = vmatprep.subr.bf16.mxu0 0
    %7818 = vmatpush1.bf16.msra.mxu0 0
    %7819 = vmatprep.subr.bf16.mxu0 0
    %7820 = vmatpush1.bf16.msra.mxu0 0
    %7821 = vmatprep.subr.bf16.mxu0 0
    %7822 = vmatpush1.bf16.msra.mxu0 0
    %7823 = vmatprep.mubr.bf16.mxu0 0
    %7824 = vmatmul.mubr.bf16.gmra.mrb[0].mxu0 %v7719
    %v7825 = vpop.f32.mrb[0].mxu0
    %v7826 = vadd.f32 %v7741, %v7825
    %v7827 = vpop.f32.mrb[0].mxu0
    %v7828 = vpop.f32.mrb[0].mxu0
    %v7829 = vadd.f32 %v7741, %v7828
    %v7830 = vpop.f32.mrb[0].mxu0
    %7831 = vdwg.mxu0
    %7832 = vst [vmem:[%s7] sm:$0xff] %v7826
    %7833 = vst [vmem:[%s7 + $0x8] sm:$0xff] %v7829
    // Predicated region
    $region50: #{tfdecoder_forward.1} parent=1 // pred_check
      _
    $region51: #{tfdecoder_forward.1} parent=1 // pred_check_branch
      %7835 = sbr.rel (0) target = $region53
    $region52: #{tfdecoder_forward.1} parent=1 // pred_region
      _
    $region53: #{tfdecoder_forward.1} parent=1 // pred_fallthru
      _
    // Predicated region
    $region54: #{tfdecoder_forward.1} parent=1 // pred_check
      _
    $region55: #{tfdecoder_forward.1} parent=1 // pred_check_branch
      %7837 = sbr.rel (0) target = $region57
    $region56: #{tfdecoder_forward.1} parent=1 // pred_region
      _
    $region57: #{tfdecoder_forward.1} parent=1 // pred_fallthru
      _
    %7838 = vsyncpa [#allocation3], 1
    %7839 = vsyncpa [#allocation5], 1
    %7840 = vsyncpa [#allocation8], 1

</llo_original>
